<compile_context>
chip_gen: v7x
topology: tpu7x:2x2x1
jax: 0.10.0
libtpu: 0.0.40
codegen_flags: <defaults>
</compile_context>

<pallas_src>
import functools

import jax
import jax.numpy as jnp
from jax import lax
from jax.experimental import pallas as pl
from jax.experimental.pallas import tpu as pltpu


# ----------------------------- Pallas kernels ------------------------------

def _qkv_kernel(n_ref, a_ref, wn_ref, wa_ref, scale_ref, shift_ref,
                wqk_ref, wv_ref, q_ref, k_ref, v_ref, *, C):
    # n_aux = leaky_relu(bn(noisy @ Wn + aux @ Wa + b));  bias folded in shift.
    n = n_ref[...].astype(jnp.bfloat16)
    a = a_ref[...].astype(jnp.bfloat16)
    acc = jnp.dot(n, wn_ref[...], preferred_element_type=jnp.float32)
    acc = acc + jnp.dot(a, wa_ref[...], preferred_element_type=jnp.float32)
    naux = acc * scale_ref[...] + shift_ref[...]
    naux = jnp.where(naux >= 0.0, naux, 0.2 * naux).astype(jnp.bfloat16)
    # q and k share one widened matmul (lane-dense 2C output).
    qk = jnp.dot(naux, wqk_ref[...], preferred_element_type=jnp.float32)
    q_ref[...] = qk[:, :C]
    k_ref[...] = qk[:, C:]
    v_ref[...] = jnp.dot(n, wv_ref[...], preferred_element_type=jnp.float32)


def _conv3x3_kernel(*refs, H, W, Cout, with_residual):
    # y = leaky_relu(bn(conv3x3_reflect(x))) [+ residual]
    if with_residual:
        xp_ref, w_ref, scale_ref, shift_ref, res_ref, o_ref = refs
    else:
        xp_ref, w_ref, scale_ref, shift_ref, o_ref = refs
        res_ref = None
    acc = jnp.zeros((H * W, Cout), jnp.float32)
    for kh in range(3):
        for kw in range(3):
            tap = xp_ref[0, kh:kh + H, kw:kw + W, :]
            tap = tap.reshape(H * W, -1).astype(jnp.bfloat16)
            acc = acc + jnp.dot(tap, w_ref[kh, kw],
                                preferred_element_type=jnp.float32)
    y = acc * scale_ref[...] + shift_ref[...]
    y = jnp.where(y >= 0.0, y, 0.2 * y)
    y = y.reshape(H, W, Cout)
    if with_residual:
        y = y + res_ref[0]
    o_ref[0] = y


def _afgsa_kernel(q_ref, k_ref, v_ref, rel_ref, bias_ref, noisy_ref, o_ref,
                  *, block, KP, heads, C):
    # One (batch, block_row, block_col) tile, all heads at once.
    d = C // heads
    i = pl.program_id(1)
    j = pl.program_id(2)
    r0 = pl.multiple_of(i * block, block)
    c0 = pl.multiple_of(j * block, block)

    # q already carries the head_ch**-0.5 scale (folded into the projection).
    q = q_ref[0].reshape(block * block, C).astype(jnp.bfloat16)      # (Lq, C)

    # Overlapping (KP, KP, C) halo windows sliced straight from padded k/v.
    kwin = k_ref[0, pl.ds(r0, KP), pl.ds(c0, KP), :]                 # f32
    vwin = v_ref[0, pl.ds(r0, KP), pl.ds(c0, KP), :]
    kmat = (kwin.reshape(KP * KP, C) + rel_ref[...]).astype(jnp.bfloat16)
    vmat = vwin.reshape(KP * KP, C).astype(jnp.bfloat16)

    outs = []
    for h in range(heads):
        sl = slice(h * d, (h + 1) * d)
        sim = lax.dot_general(q[:, sl], kmat[:, sl],
                              (((1,), (1,)), ((), ())),
                              preferred_element_type=jnp.float32)    # (Lq, KP*KP)
        sim = sim + bias_ref[...]            # -1e30 on the padded key columns
        sim = sim - jnp.max(sim, axis=-1, keepdims=True)
        p = jnp.exp(sim)
        denom = jnp.sum(p, axis=-1, keepdims=True)
        oh = jnp.dot(p.astype(jnp.bfloat16), vmat[:, sl],
                     preferred_element_type=jnp.float32)             # (Lq, d)
        outs.append(oh * pl.reciprocal(denom, approx=True))

    o = jnp.concatenate(outs, axis=-1).reshape(block, block, C)
    o_ref[0] = noisy_ref[0] + o              # fused residual add


# ------------------------------- wrappers -----------------------------------

def _row_tile(M):
    tile = M
    for cand in (512, 256, 128, 64, 32, 16, 8):
        if M % cand == 0:
            tile = cand
            if M // cand >= 8:               # keep both v7x cores busy
                break
    return tile


def qkv_project(noisy, aux, wn, wa, scale, shift, wqk, wv):
    B, H, W, C = noisy.shape
    M = B * H * W
    tm = _row_tile(M)
    nf = noisy.reshape(M, C)
    af = aux.reshape(M, C)
    kern = functools.partial(_qkv_kernel, C=C)
    q, k, v = pl.pallas_call(
        kern,
        out_shape=(jax.ShapeDtypeStruct((M, C), jnp.float32),
                   jax.ShapeDtypeStruct((M, C), jnp.float32),
                   jax.ShapeDtypeStruct((M, C), jnp.float32)),
        grid_spec=pltpu.PrefetchScalarGridSpec(
            num_scalar_prefetch=0,
            grid=(M // tm,),
            in_specs=[
                pl.BlockSpec((tm, C), lambda i: (i, 0)),
                pl.BlockSpec((tm, C), lambda i: (i, 0)),
                pl.BlockSpec((C, C), lambda i: (0, 0)),
                pl.BlockSpec((C, C), lambda i: (0, 0)),
                pl.BlockSpec((1, C), lambda i: (0, 0)),
                pl.BlockSpec((1, C), lambda i: (0, 0)),
                pl.BlockSpec((C, 2 * C), lambda i: (0, 0)),
                pl.BlockSpec((C, C), lambda i: (0, 0)),
            ],
            out_specs=[pl.BlockSpec((tm, C), lambda i: (i, 0))] * 3,
        ),
        compiler_params=pltpu.CompilerParams(dimension_semantics=("parallel",)),
    )(nf, af, wn, wa, scale, shift, wqk, wv)
    return (q.reshape(B, H, W, C), k.reshape(B, H, W, C), v.reshape(B, H, W, C))


def conv3x3_bn_lrelu(x, w_bf16, scale, eff_shift, residual=None):
    B, H, W, C = x.shape
    Cout = w_bf16.shape[-1]
    xp = jnp.pad(x, ((0, 0), (1, 1), (1, 1), (0, 0)), mode='reflect')
    kern = functools.partial(_conv3x3_kernel, H=H, W=W, Cout=Cout,
                             with_residual=residual is not None)
    in_specs = [
        pl.BlockSpec((1, H + 2, W + 2, C), lambda b: (b, 0, 0, 0)),
        pl.BlockSpec((3, 3, C, Cout), lambda b: (0, 0, 0, 0)),
        pl.BlockSpec((1, Cout), lambda b: (0, 0)),
        pl.BlockSpec((1, Cout), lambda b: (0, 0)),
    ]
    args = [xp, w_bf16, scale.reshape(1, Cout), eff_shift.reshape(1, Cout)]
    if residual is not None:
        in_specs.append(pl.BlockSpec((1, H, W, Cout), lambda b: (b, 0, 0, 0)))
        args.append(residual)
    return pl.pallas_call(
        kern,
        out_shape=jax.ShapeDtypeStruct((B, H, W, Cout), jnp.float32),
        grid_spec=pltpu.PrefetchScalarGridSpec(
            num_scalar_prefetch=0,
            grid=(B,),
            in_specs=in_specs,
            out_specs=pl.BlockSpec((1, H, W, Cout), lambda b: (b, 0, 0, 0)),
        ),
        compiler_params=pltpu.CompilerParams(dimension_semantics=("parallel",)),
    )(*args)


def afgsa_attention(q, k_pad, v_pad, rel_mat, win_bias, noisy,
                    *, block, KP, heads):
    B, H, W, C = noisy.shape
    hb, wb = H // block, W // block
    Hp2, Wp2 = k_pad.shape[1], k_pad.shape[2]
    kern = functools.partial(_afgsa_kernel, block=block, KP=KP,
                             heads=heads, C=C)
    return pl.pallas_call(
        kern,
        out_shape=jax.ShapeDtypeStruct((B, H, W, C), jnp.float32),
        grid_spec=pltpu.PrefetchScalarGridSpec(
            num_scalar_prefetch=0,
            grid=(B, hb, wb),
            in_specs=[
                pl.BlockSpec((1, block, block, C), lambda b, i, j: (b, i, j, 0)),
                pl.BlockSpec((1, Hp2, Wp2, C), lambda b, i, j: (b, 0, 0, 0)),
                pl.BlockSpec((1, Hp2, Wp2, C), lambda b, i, j: (b, 0, 0, 0)),
                pl.BlockSpec((KP * KP, C), lambda b, i, j: (0, 0)),
                pl.BlockSpec((1, KP * KP), lambda b, i, j: (0, 0)),
                pl.BlockSpec((1, block, block, C), lambda b, i, j: (b, i, j, 0)),
            ],
            out_specs=pl.BlockSpec((1, block, block, C),
                                   lambda b, i, j: (b, i, j, 0)),
        ),
        compiler_params=pltpu.CompilerParams(
            dimension_semantics=("parallel", "parallel", "arbitrary")),
    )(q, k_pad, v_pad, rel_mat, win_bias, noisy)


def afgsa_forward(p, noisy, aux, ch, block, halo, heads):
    B, H, W, C = noisy.shape
    assert C == ch and C % heads == 0 and H % block == 0 and W % block == 0
    assert block % 8 == 0
    d = C // heads
    K = block + 2 * halo
    KP = ((K + 7) // 8) * 8                  # pad window to sublane multiple
    pad_hi = KP - block - halo               # >= halo

    # Weight prep: bf16, bias folded into BN shift, q pre-scaled.
    wn = p['conv_map_w'][:C].astype(jnp.bfloat16)
    wa = p['conv_map_w'][C:].astype(jnp.bfloat16)
    cm_scale = p['conv_map_scale'].reshape(1, C)
    cm_shift = (p['conv_map_b'] * p['conv_map_scale']
                + p['conv_map_shift']).reshape(1, C)
    wqk = jnp.concatenate([p['q_w'] * (float(d) ** -0.5), p['k_w']],
                          axis=1).astype(jnp.bfloat16)               # (C, 2C)
    wv = p['v_w'].astype(jnp.bfloat16)

    q, k, v = qkv_project(noisy, aux, wn, wa, cm_scale, cm_shift, wqk, wv)

    # Zero-pad k/v so every (KP, KP) window starting at multiples of `block`
    # is in-bounds (matches F.unfold's zero padding inside the true K window).
    pads = ((0, 0), (halo, pad_hi), (halo, pad_hi), (0, 0))
    k_pad = jnp.pad(k, pads)
    v_pad = jnp.pad(v, pads)

    # Relative positional embedding (same for every head), padded to KPxKP.
    rel = jnp.concatenate(
        [jnp.broadcast_to(p['rel_h'], (K, K, d // 2)),
         jnp.broadcast_to(p['rel_w'], (K, K, d // 2))], axis=-1)     # (K, K, d)
    rel = jnp.tile(rel, (1, 1, heads))                               # (K, K, C)
    rel = jnp.pad(rel, ((0, KP - K), (0, KP - K), (0, 0)))
    rel_mat = rel.reshape(KP * KP, C)

    # Additive mask: -1e30 on key positions outside the true KxK window.
    pos = jnp.arange(KP * KP)
    win_bias = jnp.where((pos % KP < K) & (pos // KP < K), 0.0, -1e30)
    win_bias = win_bias.astype(jnp.float32).reshape(1, KP * KP)

    return afgsa_attention(q, k_pad, v_pad, rel_mat, win_bias, noisy,
                           block=block, KP=KP, heads=heads)


def transformer_forward(p, noisy_nchw, aux_nchw, ch, block=8, halo=3, heads=4):
    noisy = jnp.transpose(noisy_nchw, (0, 2, 3, 1))        # NCHW -> NHWC
    aux = jnp.transpose(aux_nchw, (0, 2, 3, 1))

    # noisy1 = noisy + attention(noisy, aux)   (residual fused in the kernel)
    noisy1 = afgsa_forward(p, noisy, aux, ch, block, halo, heads)

    ff1_shift = p['ff1_b'] * p['ff1_scale'] + p['ff1_shift']
    ff2_shift = p['ff2_b'] * p['ff2_scale'] + p['ff2_shift']
    ff_mid = conv3x3_bn_lrelu(noisy1, p['ff1_w'].astype(jnp.bfloat16),
                              p['ff1_scale'], ff1_shift)
    # second FF conv with the residual add fused into the store
    noisy2 = conv3x3_bn_lrelu(ff_mid, p['ff2_w'].astype(jnp.bfloat16),
                              p['ff2_scale'], ff2_shift, residual=noisy1)

    return jnp.transpose(noisy2, (0, 3, 1, 2)), aux_nchw   # back to NCHW


# ----------------------------- parameter init ------------------------------

def init_params(key, ch, block_size=8, halo_size=3, num_heads=4):
    head_ch = ch // num_heads
    keys = jax.random.split(key, 16)

    def nrm(k, shape, std=0.1):
        return std * jax.random.normal(k, shape, dtype=jnp.float32)

    def bn(k, c):
        k1, k2, k3, k4 = jax.random.split(k, 4)
        gamma = 1.0 + 0.1 * jax.random.normal(k1, (c,), jnp.float32)
        beta = 0.1 * jax.random.normal(k2, (c,), jnp.float32)
        mean = 0.1 * jax.random.normal(k3, (c,), jnp.float32)
        var = 0.5 + jax.random.uniform(k4, (c,), jnp.float32)
        scale = gamma / jnp.sqrt(var + 1e-5)
        shift = beta - mean * scale
        return scale, shift

    K = block_size + 2 * halo_size
    p = {}
    p['conv_map_w'] = nrm(keys[0], (2 * ch, ch))
    p['conv_map_b'] = nrm(keys[1], (ch,))
    p['conv_map_scale'], p['conv_map_shift'] = bn(keys[2], ch)
    p['q_w'] = nrm(keys[3], (ch, ch))
    p['k_w'] = nrm(keys[4], (ch, ch))
    p['v_w'] = nrm(keys[5], (ch, ch))
    p['rel_h'] = jax.random.normal(keys[6], (K, 1, head_ch // 2), jnp.float32)
    p['rel_w'] = jax.random.normal(keys[7], (1, K, head_ch // 2), jnp.float32)
    p['ff1_w'] = nrm(keys[8], (3, 3, ch, ch))
    p['ff1_b'] = nrm(keys[9], (ch,))
    p['ff1_scale'], p['ff1_shift'] = bn(keys[10], ch)
    p['ff2_w'] = nrm(keys[11], (3, 3, ch, ch))
    p['ff2_b'] = nrm(keys[12], (ch,))
    p['ff2_scale'], p['ff2_shift'] = bn(keys[13], ch)
    return p


# ---------------------------------- main ------------------------------------

if __name__ == "__main__":
    B, CH, H, W = 2, 16, 16, 16          # ch divisible by num_heads=4; H,W % 8 == 0
    key = jax.random.PRNGKey(0)
    k1, k2, k3 = jax.random.split(key, 3)
    noisy = jax.random.normal(k1, (B, CH, H, W), jnp.float32)
    aux = jax.random.normal(k2, (B, CH, H, W), jnp.float32)
    params = init_params(k3, CH)

    fwd = jax.jit(functools.partial(transformer_forward, ch=CH))
    out_noisy, out_aux = fwd(params, noisy, aux)
    jax.block_until_ready((out_noisy, out_aux))

    assert out_noisy.shape == (B, CH, H, W) and out_aux.shape == (B, CH, H, W)
    assert bool(jnp.all(jnp.isfinite(out_noisy)))
    print("KERNEL_OK")
</pallas_src>

<mosaic_0001>
module attributes {stable_mosaic.version = 11 : i64} {
  func.func @_qkv_kernel(%arg0: i32, %arg1: memref<64x16xf32, #tpu.memory_space<vmem>>, %arg2: memref<64x16xf32, #tpu.memory_space<vmem>>, %arg3: memref<16x16xbf16, #tpu.memory_space<vmem>>, %arg4: memref<16x16xbf16, #tpu.memory_space<vmem>>, %arg5: memref<1x16xf32, #tpu.memory_space<vmem>>, %arg6: memref<1x16xf32, #tpu.memory_space<vmem>>, %arg7: memref<16x32xbf16, #tpu.memory_space<vmem>>, %arg8: memref<16x16xbf16, #tpu.memory_space<vmem>>, %arg9: memref<64x16xf32, #tpu.memory_space<vmem>>, %arg10: memref<64x16xf32, #tpu.memory_space<vmem>>, %arg11: memref<64x16xf32, #tpu.memory_space<vmem>>) attributes {dimension_semantics = [#tpu.dimension_semantics<parallel>], iteration_bounds = array<i64: 8>, scalar_prefetch = 0 : i64, scratch_operands = 0 : i64, tpu.core_type = #tpu.core_type<tc>, window_params = [{transform_indices = @transform_0, window_bounds = array<i64: 64, 16>}, {transform_indices = @transform_1, window_bounds = array<i64: 64, 16>}, {pipeline_mode = #tpu.pipeline_mode<synchronous>, transform_indices = @transform_2, window_bounds = array<i64: 16, 16>}, {pipeline_mode = #tpu.pipeline_mode<synchronous>, transform_indices = @transform_3, window_bounds = array<i64: 16, 16>}, {pipeline_mode = #tpu.pipeline_mode<synchronous>, transform_indices = @transform_4, window_bounds = array<i64: 1, 16>}, {pipeline_mode = #tpu.pipeline_mode<synchronous>, transform_indices = @transform_5, window_bounds = array<i64: 1, 16>}, {pipeline_mode = #tpu.pipeline_mode<synchronous>, transform_indices = @transform_6, window_bounds = array<i64: 16, 32>}, {pipeline_mode = #tpu.pipeline_mode<synchronous>, transform_indices = @transform_7, window_bounds = array<i64: 16, 16>}, {transform_indices = @transform_8, window_bounds = array<i64: 64, 16>}, {transform_indices = @transform_9, window_bounds = array<i64: 64, 16>}, {transform_indices = @transform_10, window_bounds = array<i64: 64, 16>}]} {
    %c0 = arith.constant 0 : index
    %c0_0 = arith.constant 0 : index
    %0 = vector.load %arg1[%c0, %c0_0] : memref<64x16xf32, #tpu.memory_space<vmem>>, vector<64x16xf32>
    %1 = arith.truncf %0 : vector<64x16xf32> to vector<64x16xbf16>
    %c0_1 = arith.constant 0 : index
    %c0_2 = arith.constant 0 : index
    %2 = vector.load %arg2[%c0_1, %c0_2] : memref<64x16xf32, #tpu.memory_space<vmem>>, vector<64x16xf32>
    %3 = arith.truncf %2 : vector<64x16xf32> to vector<64x16xbf16>
    %c0_3 = arith.constant 0 : index
    %c0_4 = arith.constant 0 : index
    %4 = vector.load %arg3[%c0_3, %c0_4] : memref<16x16xbf16, #tpu.memory_space<vmem>>, vector<16x16xbf16>
    %cst = arith.constant dense<0.000000e+00> : vector<64x16xf32>
    %5 = tpu.matmul %1, %4, %cst {dimension_numbers = #tpu.dot_dimension_numbers<[1], [0], [0], [1], [0, 0, 1, 1], [], []>} : vector<64x16xbf16>, vector<16x16xbf16>, vector<64x16xf32> -> vector<64x16xf32>
    %c0_5 = arith.constant 0 : index
    %c0_6 = arith.constant 0 : index
    %6 = vector.load %arg4[%c0_5, %c0_6] : memref<16x16xbf16, #tpu.memory_space<vmem>>, vector<16x16xbf16>
    %cst_7 = arith.constant dense<0.000000e+00> : vector<64x16xf32>
    %7 = tpu.matmul %3, %6, %cst_7 {dimension_numbers = #tpu.dot_dimension_numbers<[1], [0], [0], [1], [0, 0, 1, 1], [], []>} : vector<64x16xbf16>, vector<16x16xbf16>, vector<64x16xf32> -> vector<64x16xf32>
    %8 = arith.addf %5, %7 : vector<64x16xf32>
    %c0_8 = arith.constant 0 : index
    %c0_9 = arith.constant 0 : index
    %9 = vector.load %arg5[%c0_8, %c0_9] : memref<1x16xf32, #tpu.memory_space<vmem>>, vector<1x16xf32>
    %10 = vector.broadcast %9 : vector<1x16xf32> to vector<64x16xf32>
    %11 = arith.mulf %8, %10 : vector<64x16xf32>
    %c0_10 = arith.constant 0 : index
    %c0_11 = arith.constant 0 : index
    %12 = vector.load %arg6[%c0_10, %c0_11] : memref<1x16xf32, #tpu.memory_space<vmem>>, vector<1x16xf32>
    %13 = vector.broadcast %12 : vector<1x16xf32> to vector<64x16xf32>
    %14 = arith.addf %11, %13 : vector<64x16xf32>
    %cst_12 = arith.constant 0.000000e+00 : f32
    %15 = vector.broadcast %cst_12 : f32 to vector<64x16xf32>
    %16 = arith.cmpf oge, %14, %15 : vector<64x16xf32>
    %cst_13 = arith.constant 2.000000e-01 : f32
    %17 = vector.broadcast %cst_13 : f32 to vector<64x16xf32>
    %18 = arith.mulf %17, %14 : vector<64x16xf32>
    %19 = arith.select %16, %14, %18 : vector<64x16xi1>, vector<64x16xf32>
    %20 = arith.truncf %19 : vector<64x16xf32> to vector<64x16xbf16>
    %c0_14 = arith.constant 0 : index
    %c0_15 = arith.constant 0 : index
    %21 = vector.load %arg7[%c0_14, %c0_15] : memref<16x32xbf16, #tpu.memory_space<vmem>>, vector<16x32xbf16>
    %cst_16 = arith.constant dense<0.000000e+00> : vector<64x32xf32>
    %22 = tpu.matmul %20, %21, %cst_16 {dimension_numbers = #tpu.dot_dimension_numbers<[1], [0], [0], [1], [0, 0, 1, 1], [], []>} : vector<64x16xbf16>, vector<16x32xbf16>, vector<64x32xf32> -> vector<64x32xf32>
    %23 = vector.extract_strided_slice %22 {offsets = [0, 0], sizes = [64, 16], strides = [1, 1]} : vector<64x32xf32> to vector<64x16xf32>
    %c0_17 = arith.constant 0 : index
    %c0_18 = arith.constant 0 : index
    %24 = vector.load %arg9[%c0_17, %c0_18] : memref<64x16xf32, #tpu.memory_space<vmem>>, vector<64x16xf32>
    tpu.vector_store %arg9[%c0_17, %c0_18], %23 {strides = array<i32>} : memref<64x16xf32, #tpu.memory_space<vmem>>, vector<64x16xf32>,
    %25 = vector.extract_strided_slice %22 {offsets = [0, 16], sizes = [64, 16], strides = [1, 1]} : vector<64x32xf32> to vector<64x16xf32>
    %c0_19 = arith.constant 0 : index
    %c0_20 = arith.constant 0 : index
    %26 = vector.load %arg10[%c0_19, %c0_20] : memref<64x16xf32, #tpu.memory_space<vmem>>, vector<64x16xf32>
    tpu.vector_store %arg10[%c0_19, %c0_20], %25 {strides = array<i32>} : memref<64x16xf32, #tpu.memory_space<vmem>>, vector<64x16xf32>,
    %c0_21 = arith.constant 0 : index
    %c0_22 = arith.constant 0 : index
    %27 = vector.load %arg8[%c0_21, %c0_22] : memref<16x16xbf16, #tpu.memory_space<vmem>>, vector<16x16xbf16>
    %cst_23 = arith.constant dense<0.000000e+00> : vector<64x16xf32>
    %28 = tpu.matmul %1, %27, %cst_23 {dimension_numbers = #tpu.dot_dimension_numbers<[1], [0], [0], [1], [0, 0, 1, 1], [], []>} : vector<64x16xbf16>, vector<16x16xbf16>, vector<64x16xf32> -> vector<64x16xf32>
    %c0_24 = arith.constant 0 : index
    %c0_25 = arith.constant 0 : index
    %29 = vector.load %arg11[%c0_24, %c0_25] : memref<64x16xf32, #tpu.memory_space<vmem>>, vector<64x16xf32>
    tpu.vector_store %arg11[%c0_24, %c0_25], %28 {strides = array<i32>} : memref<64x16xf32, #tpu.memory_space<vmem>>, vector<64x16xf32>,
    return
  }
  func.func @transform_0(%arg0: i32) -> (i32, i32) {
    %c0_i32 = arith.constant 0 : i32
    %c0_i32_0 = arith.constant 0 : i32
    return %arg0, %c0_i32 : i32, i32
  }
  func.func @transform_1(%arg0: i32) -> (i32, i32) {
    %c0_i32 = arith.constant 0 : i32
    %c0_i32_0 = arith.constant 0 : i32
    return %arg0, %c0_i32 : i32, i32
  }
  func.func @transform_2(%arg0: i32) -> (i32, i32) {
    %c0_i32 = arith.constant 0 : i32
    %c0_i32_0 = arith.constant 0 : i32
    %c0_i32_1 = arith.constant 0 : i32
    return %c0_i32, %c0_i32_0 : i32, i32
  }
  func.func @transform_3(%arg0: i32) -> (i32, i32) {
    %c0_i32 = arith.constant 0 : i32
    %c0_i32_0 = arith.constant 0 : i32
    %c0_i32_1 = arith.constant 0 : i32
    return %c0_i32, %c0_i32_0 : i32, i32
  }
  func.func @transform_4(%arg0: i32) -> (i32, i32) {
    %c0_i32 = arith.constant 0 : i32
    %c0_i32_0 = arith.constant 0 : i32
    %c0_i32_1 = arith.constant 0 : i32
    return %c0_i32, %c0_i32_0 : i32, i32
  }
  func.func @transform_5(%arg0: i32) -> (i32, i32) {
    %c0_i32 = arith.constant 0 : i32
    %c0_i32_0 = arith.constant 0 : i32
    %c0_i32_1 = arith.constant 0 : i32
    return %c0_i32, %c0_i32_0 : i32, i32
  }
  func.func @transform_6(%arg0: i32) -> (i32, i32) {
    %c0_i32 = arith.constant 0 : i32
    %c0_i32_0 = arith.constant 0 : i32
    %c0_i32_1 = arith.constant 0 : i32
    return %c0_i32, %c0_i32_0 : i32, i32
  }
  func.func @transform_7(%arg0: i32) -> (i32, i32) {
    %c0_i32 = arith.constant 0 : i32
    %c0_i32_0 = arith.constant 0 : i32
    %c0_i32_1 = arith.constant 0 : i32
    return %c0_i32, %c0_i32_0 : i32, i32
  }
  func.func @transform_8(%arg0: i32) -> (i32, i32) {
    %c0_i32 = arith.constant 0 : i32
    %c0_i32_0 = arith.constant 0 : i32
    return %arg0, %c0_i32 : i32, i32
  }
  func.func @transform_9(%arg0: i32) -> (i32, i32) {
    %c0_i32 = arith.constant 0 : i32
    %c0_i32_0 = arith.constant 0 : i32
    return %arg0, %c0_i32 : i32, i32
  }
  func.func @transform_10(%arg0: i32) -> (i32, i32) {
    %c0_i32 = arith.constant 0 : i32
    %c0_i32_0 = arith.constant 0 : i32
    return %arg0, %c0_i32 : i32, i32
  }
}

module attributes {stable_mosaic.version = 11 : i64} {
  func.func @_afgsa_kernel(%arg0: i32, %arg1: i32, %arg2: i32, %arg3: memref<1x8x8x16xf32, #tpu.memory_space<vmem>>, %arg4: memref<1x24x24x16xf32, #tpu.memory_space<vmem>>, %arg5: memref<1x24x24x16xf32, #tpu.memory_space<vmem>>, %arg6: memref<256x16xf32, #tpu.memory_space<vmem>>, %arg7: memref<1x256xf32, #tpu.memory_space<vmem>>, %arg8: memref<1x8x8x16xf32, #tpu.memory_space<vmem>>, %arg9: memref<1x8x8x16xf32, #tpu.memory_space<vmem>>) attributes {dimension_semantics = [#tpu.dimension_semantics<parallel>, #tpu.dimension_semantics<parallel>, #tpu.dimension_semantics<arbitrary>], iteration_bounds = array<i64: 2, 2, 2>, scalar_prefetch = 0 : i64, scratch_operands = 0 : i64, tpu.core_type = #tpu.core_type<tc>, window_params = [{transform_indices = @transform_0, window_bounds = array<i64: 1, 8, 8, 16>}, {transform_indices = @transform_1, window_bounds = array<i64: 1, 24, 24, 16>}, {transform_indices = @transform_2, window_bounds = array<i64: 1, 24, 24, 16>}, {pipeline_mode = #tpu.pipeline_mode<synchronous>, transform_indices = @transform_3, window_bounds = array<i64: 256, 16>}, {pipeline_mode = #tpu.pipeline_mode<synchronous>, transform_indices = @transform_4, window_bounds = array<i64: 1, 256>}, {transform_indices = @transform_5, window_bounds = array<i64: 1, 8, 8, 16>}, {transform_indices = @transform_6, window_bounds = array<i64: 1, 8, 8, 16>}]} {
    %c8_i32 = arith.constant 8 : i32
    %0 = arith.muli %arg1, %c8_i32 : i32
    %1 = tpu.assume_multiple %0, 8 : i32
    %c8_i32_0 = arith.constant 8 : i32
    %2 = arith.muli %arg2, %c8_i32_0 : i32
    %3 = tpu.assume_multiple %2, 8 : i32
    %c0 = arith.constant 0 : index
    %c0_1 = arith.constant 0 : index
    %c0_2 = arith.constant 0 : index
    %c0_3 = arith.constant 0 : index
    %4 = vector.load %arg3[%c0, %c0_1, %c0_2, %c0_3] : memref<1x8x8x16xf32, #tpu.memory_space<vmem>>, vector<1x8x8x16xf32>
    %5 = vector.shape_cast %4 : vector<1x8x8x16xf32> to vector<8x8x16xf32>
    %6 = vector.shape_cast %5 : vector<8x8x16xf32> to vector<64x16xf32>
    %7 = arith.truncf %6 : vector<64x16xf32> to vector<64x16xbf16>
    %c0_4 = arith.constant 0 : index
    %8 = arith.index_cast %1 : i32 to index
    %9 = arith.index_cast %3 : i32 to index
    %c0_5 = arith.constant 0 : index
    %10 = vector.load %arg4[%c0_4, %8, %9, %c0_5] : memref<1x24x24x16xf32, #tpu.memory_space<vmem>>, vector<1x16x16x16xf32>
    %11 = vector.shape_cast %10 : vector<1x16x16x16xf32> to vector<16x16x16xf32>
    %c0_6 = arith.constant 0 : index
    %12 = arith.index_cast %1 : i32 to index
    %13 = arith.index_cast %3 : i32 to index
    %c0_7 = arith.constant 0 : index
    %14 = vector.load %arg5[%c0_6, %12, %13, %c0_7] : memref<1x24x24x16xf32, #tpu.memory_space<vmem>>, vector<1x16x16x16xf32>
    %15 = vector.shape_cast %14 : vector<1x16x16x16xf32> to vector<16x16x16xf32>
    %16 = vector.shape_cast %11 : vector<16x16x16xf32> to vector<256x16xf32>
    %c0_8 = arith.constant 0 : index
    %c0_9 = arith.constant 0 : index
    %17 = vector.load %arg6[%c0_8, %c0_9] : memref<256x16xf32, #tpu.memory_space<vmem>>, vector<256x16xf32>
    %18 = arith.addf %16, %17 : vector<256x16xf32>
    %19 = arith.truncf %18 : vector<256x16xf32> to vector<256x16xbf16>
    %20 = vector.shape_cast %15 : vector<16x16x16xf32> to vector<256x16xf32>
    %21 = arith.truncf %20 : vector<256x16xf32> to vector<256x16xbf16>
    %22 = vector.extract_strided_slice %7 {offsets = [0, 0], sizes = [64, 4], strides = [1, 1]} : vector<64x16xbf16> to vector<64x4xbf16>
    %23 = vector.extract_strided_slice %19 {offsets = [0, 0], sizes = [256, 4], strides = [1, 1]} : vector<256x16xbf16> to vector<256x4xbf16>
    %cst = arith.constant dense<0.000000e+00> : vector<64x256xf32>
    %24 = tpu.matmul %22, %23, %cst {dimension_numbers = #tpu.dot_dimension_numbers<[1], [1], [0], [0], [0, 0, 1, 0], [], []>} : vector<64x4xbf16>, vector<256x4xbf16>, vector<64x256xf32> -> vector<64x256xf32>
    %c0_10 = arith.constant 0 : index
    %c0_11 = arith.constant 0 : index
    %25 = vector.load %arg7[%c0_10, %c0_11] : memref<1x256xf32, #tpu.memory_space<vmem>>, vector<1x256xf32>
    %26 = vector.broadcast %25 : vector<1x256xf32> to vector<64x256xf32>
    %27 = arith.addf %24, %26 : vector<64x256xf32>
    %cst_12 = arith.constant dense<0xFF800000> : vector<64xf32>
    %28 = vector.multi_reduction <maximumf>, %27, %cst_12 [1] : vector<64x256xf32> to vector<64xf32>
    %29 = vector.shape_cast %28 : vector<64xf32> to vector<64x1xf32>
    %30 = vector.broadcast %29 : vector<64x1xf32> to vector<64x256xf32>
    %31 = arith.subf %27, %30 : vector<64x256xf32>
    %32 = math.exp %31 : vector<64x256xf32>
    %cst_13 = arith.constant dense<0.000000e+00> : vector<64xf32>
    %33 = vector.multi_reduction <add>, %32, %cst_13 [1] : vector<64x256xf32> to vector<64xf32>
    %34 = vector.shape_cast %33 : vector<64xf32> to vector<64x1xf32>
    %35 = arith.truncf %32 : vector<64x256xf32> to vector<64x256xbf16>
    %36 = vector.extract_strided_slice %21 {offsets = [0, 0], sizes = [256, 4], strides = [1, 1]} : vector<256x16xbf16> to vector<256x4xbf16>
    %cst_14 = arith.constant dense<0.000000e+00> : vector<64x4xf32>
    %37 = tpu.matmul %35, %36, %cst_14 {dimension_numbers = #tpu.dot_dimension_numbers<[1], [0], [0], [1], [0, 0, 1, 1], [], []>} : vector<64x256xbf16>, vector<256x4xbf16>, vector<64x4xf32> -> vector<64x4xf32>
    %38 = tpu.reciprocal %34 {approx = true} : vector<64x1xf32> -> vector<64x1xf32>
    %39 = vector.broadcast %38 : vector<64x1xf32> to vector<64x4xf32>
    %40 = arith.mulf %37, %39 : vector<64x4xf32>
    %41 = vector.extract_strided_slice %7 {offsets = [0, 4], sizes = [64, 4], strides = [1, 1]} : vector<64x16xbf16> to vector<64x4xbf16>
    %42 = vector.extract_strided_slice %19 {offsets = [0, 4], sizes = [256, 4], strides = [1, 1]} : vector<256x16xbf16> to vector<256x4xbf16>
    %cst_15 = arith.constant dense<0.000000e+00> : vector<64x256xf32>
    %43 = tpu.matmul %41, %42, %cst_15 {dimension_numbers = #tpu.dot_dimension_numbers<[1], [1], [0], [0], [0, 0, 1, 0], [], []>} : vector<64x4xbf16>, vector<256x4xbf16>, vector<64x256xf32> -> vector<64x256xf32>
    %c0_16 = arith.constant 0 : index
    %c0_17 = arith.constant 0 : index
    %44 = vector.load %arg7[%c0_16, %c0_17] : memref<1x256xf32, #tpu.memory_space<vmem>>, vector<1x256xf32>
    %45 = vector.broadcast %44 : vector<1x256xf32> to vector<64x256xf32>
    %46 = arith.addf %43, %45 : vector<64x256xf32>
    %cst_18 = arith.constant dense<0xFF800000> : vector<64xf32>
    %47 = vector.multi_reduction <maximumf>, %46, %cst_18 [1] : vector<64x256xf32> to vector<64xf32>
    %48 = vector.shape_cast %47 : vector<64xf32> to vector<64x1xf32>
    %49 = vector.broadcast %48 : vector<64x1xf32> to vector<64x256xf32>
    %50 = arith.subf %46, %49 : vector<64x256xf32>
    %51 = math.exp %50 : vector<64x256xf32>
    %cst_19 = arith.constant dense<0.000000e+00> : vector<64xf32>
    %52 = vector.multi_reduction <add>, %51, %cst_19 [1] : vector<64x256xf32> to vector<64xf32>
    %53 = vector.shape_cast %52 : vector<64xf32> to vector<64x1xf32>
    %54 = arith.truncf %51 : vector<64x256xf32> to vector<64x256xbf16>
    %55 = vector.extract_strided_slice %21 {offsets = [0, 4], sizes = [256, 4], strides = [1, 1]} : vector<256x16xbf16> to vector<256x4xbf16>
    %cst_20 = arith.constant dense<0.000000e+00> : vector<64x4xf32>
    %56 = tpu.matmul %54, %55, %cst_20 {dimension_numbers = #tpu.dot_dimension_numbers<[1], [0], [0], [1], [0, 0, 1, 1], [], []>} : vector<64x256xbf16>, vector<256x4xbf16>, vector<64x4xf32> -> vector<64x4xf32>
    %57 = tpu.reciprocal %53 {approx = true} : vector<64x1xf32> -> vector<64x1xf32>
    %58 = vector.broadcast %57 : vector<64x1xf32> to vector<64x4xf32>
    %59 = arith.mulf %56, %58 : vector<64x4xf32>
    %60 = vector.extract_strided_slice %7 {offsets = [0, 8], sizes = [64, 4], strides = [1, 1]} : vector<64x16xbf16> to vector<64x4xbf16>
    %61 = vector.extract_strided_slice %19 {offsets = [0, 8], sizes = [256, 4], strides = [1, 1]} : vector<256x16xbf16> to vector<256x4xbf16>
    %cst_21 = arith.constant dense<0.000000e+00> : vector<64x256xf32>
    %62 = tpu.matmul %60, %61, %cst_21 {dimension_numbers = #tpu.dot_dimension_numbers<[1], [1], [0], [0], [0, 0, 1, 0], [], []>} : vector<64x4xbf16>, vector<256x4xbf16>, vector<64x256xf32> -> vector<64x256xf32>
    %c0_22 = arith.constant 0 : index
    %c0_23 = arith.constant 0 : index
    %63 = vector.load %arg7[%c0_22, %c0_23] : memref<1x256xf32, #tpu.memory_space<vmem>>, vector<1x256xf32>
    %64 = vector.broadcast %63 : vector<1x256xf32> to vector<64x256xf32>
    %65 = arith.addf %62, %64 : vector<64x256xf32>
    %cst_24 = arith.constant dense<0xFF800000> : vector<64xf32>
    %66 = vector.multi_reduction <maximumf>, %65, %cst_24 [1] : vector<64x256xf32> to vector<64xf32>
    %67 = vector.shape_cast %66 : vector<64xf32> to vector<64x1xf32>
    %68 = vector.broadcast %67 : vector<64x1xf32> to vector<64x256xf32>
    %69 = arith.subf %65, %68 : vector<64x256xf32>
    %70 = math.exp %69 : vector<64x256xf32>
    %cst_25 = arith.constant dense<0.000000e+00> : vector<64xf32>
    %71 = vector.multi_reduction <add>, %70, %cst_25 [1] : vector<64x256xf32> to vector<64xf32>
    %72 = vector.shape_cast %71 : vector<64xf32> to vector<64x1xf32>
    %73 = arith.truncf %70 : vector<64x256xf32> to vector<64x256xbf16>
    %74 = vector.extract_strided_slice %21 {offsets = [0, 8], sizes = [256, 4], strides = [1, 1]} : vector<256x16xbf16> to vector<256x4xbf16>
    %cst_26 = arith.constant dense<0.000000e+00> : vector<64x4xf32>
    %75 = tpu.matmul %73, %74, %cst_26 {dimension_numbers = #tpu.dot_dimension_numbers<[1], [0], [0], [1], [0, 0, 1, 1], [], []>} : vector<64x256xbf16>, vector<256x4xbf16>, vector<64x4xf32> -> vector<64x4xf32>
    %76 = tpu.reciprocal %72 {approx = true} : vector<64x1xf32> -> vector<64x1xf32>
    %77 = vector.broadcast %76 : vector<64x1xf32> to vector<64x4xf32>
    %78 = arith.mulf %75, %77 : vector<64x4xf32>
    %79 = vector.extract_strided_slice %7 {offsets = [0, 12], sizes = [64, 4], strides = [1, 1]} : vector<64x16xbf16> to vector<64x4xbf16>
    %80 = vector.extract_strided_slice %19 {offsets = [0, 12], sizes = [256, 4], strides = [1, 1]} : vector<256x16xbf16> to vector<256x4xbf16>
    %cst_27 = arith.constant dense<0.000000e+00> : vector<64x256xf32>
    %81 = tpu.matmul %79, %80, %cst_27 {dimension_numbers = #tpu.dot_dimension_numbers<[1], [1], [0], [0], [0, 0, 1, 0], [], []>} : vector<64x4xbf16>, vector<256x4xbf16>, vector<64x256xf32> -> vector<64x256xf32>
    %c0_28 = arith.constant 0 : index
    %c0_29 = arith.constant 0 : index
    %82 = vector.load %arg7[%c0_28, %c0_29] : memref<1x256xf32, #tpu.memory_space<vmem>>, vector<1x256xf32>
    %83 = vector.broadcast %82 : vector<1x256xf32> to vector<64x256xf32>
    %84 = arith.addf %81, %83 : vector<64x256xf32>
    %cst_30 = arith.constant dense<0xFF800000> : vector<64xf32>
    %85 = vector.multi_reduction <maximumf>, %84, %cst_30 [1] : vector<64x256xf32> to vector<64xf32>
    %86 = vector.shape_cast %85 : vector<64xf32> to vector<64x1xf32>
    %87 = vector.broadcast %86 : vector<64x1xf32> to vector<64x256xf32>
    %88 = arith.subf %84, %87 : vector<64x256xf32>
    %89 = math.exp %88 : vector<64x256xf32>
    %cst_31 = arith.constant dense<0.000000e+00> : vector<64xf32>
    %90 = vector.multi_reduction <add>, %89, %cst_31 [1] : vector<64x256xf32> to vector<64xf32>
    %91 = vector.shape_cast %90 : vector<64xf32> to vector<64x1xf32>
    %92 = arith.truncf %89 : vector<64x256xf32> to vector<64x256xbf16>
    %93 = vector.extract_strided_slice %21 {offsets = [0, 12], sizes = [256, 4], strides = [1, 1]} : vector<256x16xbf16> to vector<256x4xbf16>
    %cst_32 = arith.constant dense<0.000000e+00> : vector<64x4xf32>
    %94 = tpu.matmul %92, %93, %cst_32 {dimension_numbers = #tpu.dot_dimension_numbers<[1], [0], [0], [1], [0, 0, 1, 1], [], []>} : vector<64x256xbf16>, vector<256x4xbf16>, vector<64x4xf32> -> vector<64x4xf32>
    %95 = tpu.reciprocal %91 {approx = true} : vector<64x1xf32> -> vector<64x1xf32>
    %96 = vector.broadcast %95 : vector<64x1xf32> to vector<64x4xf32>
    %97 = arith.mulf %94, %96 : vector<64x4xf32>
    %98 = tpu.concatenate %40, %59, %78, %97 in 1 : vector<64x4xf32>, vector<64x4xf32>, vector<64x4xf32>, vector<64x4xf32> -> vector<64x16xf32>
    %99 = vector.shape_cast %98 : vector<64x16xf32> to vector<8x8x16xf32>
    %c0_33 = arith.constant 0 : index
    %c0_34 = arith.constant 0 : index
    %c0_35 = arith.constant 0 : index
    %c0_36 = arith.constant 0 : index
    %100 = vector.load %arg8[%c0_33, %c0_34, %c0_35, %c0_36] : memref<1x8x8x16xf32, #tpu.memory_space<vmem>>, vector<1x8x8x16xf32>
    %101 = vector.shape_cast %100 : vector<1x8x8x16xf32> to vector<8x8x16xf32>
    %102 = arith.addf %101, %99 : vector<8x8x16xf32>
    %c0_37 = arith.constant 0 : index
    %c0_38 = arith.constant 0 : index
    %c0_39 = arith.constant 0 : index
    %c0_40 = arith.constant 0 : index
    %103 = vector.load %arg9[%c0_37, %c0_38, %c0_39, %c0_40] : memref<1x8x8x16xf32, #tpu.memory_space<vmem>>, vector<1x8x8x16xf32>
    %104 = vector.shape_cast %103 : vector<1x8x8x16xf32> to vector<8x8x16xf32>
    %105 = vector.shape_cast %102 : vector<8x8x16xf32> to vector<1x8x8x16xf32>
    tpu.vector_store %arg9[%c0_37, %c0_38, %c0_39, %c0_40], %105 {strides = array<i32>} : memref<1x8x8x16xf32, #tpu.memory_space<vmem>>, vector<1x8x8x16xf32>,
    return
  }
  func.func @transform_0(%arg0: i32, %arg1: i32, %arg2: i32) -> (i32, i32, i32, i32) {
    %c0_i32 = arith.constant 0 : i32
    %c0_i32_0 = arith.constant 0 : i32
    return %arg0, %arg1, %arg2, %c0_i32 : i32, i32, i32, i32
  }
  func.func @transform_1(%arg0: i32, %arg1: i32, %arg2: i32) -> (i32, i32, i32, i32) {
    %c0_i32 = arith.constant 0 : i32
    %c0_i32_0 = arith.constant 0 : i32
    %c0_i32_1 = arith.constant 0 : i32
    %c0_i32_2 = arith.constant 0 : i32
    return %arg0, %c0_i32, %c0_i32_0, %c0_i32_1 : i32, i32, i32, i32
  }
  func.func @transform_2(%arg0: i32, %arg1: i32, %arg2: i32) -> (i32, i32, i32, i32) {
    %c0_i32 = arith.constant 0 : i32
    %c0_i32_0 = arith.constant 0 : i32
    %c0_i32_1 = arith.constant 0 : i32
    %c0_i32_2 = arith.constant 0 : i32
    return %arg0, %c0_i32, %c0_i32_0, %c0_i32_1 : i32, i32, i32, i32
  }
  func.func @transform_3(%arg0: i32, %arg1: i32, %arg2: i32) -> (i32, i32) {
    %c0_i32 = arith.constant 0 : i32
    %c0_i32_0 = arith.constant 0 : i32
    %c0_i32_1 = arith.constant 0 : i32
    return %c0_i32, %c0_i32_0 : i32, i32
  }
  func.func @transform_4(%arg0: i32, %arg1: i32, %arg2: i32) -> (i32, i32) {
    %c0_i32 = arith.constant 0 : i32
    %c0_i32_0 = arith.constant 0 : i32
    %c0_i32_1 = arith.constant 0 : i32
    return %c0_i32, %c0_i32_0 : i32, i32
  }
  func.func @transform_5(%arg0: i32, %arg1: i32, %arg2: i32) -> (i32, i32, i32, i32) {
    %c0_i32 = arith.constant 0 : i32
    %c0_i32_0 = arith.constant 0 : i32
    return %arg0, %arg1, %arg2, %c0_i32 : i32, i32, i32, i32
  }
  func.func @transform_6(%arg0: i32, %arg1: i32, %arg2: i32) -> (i32, i32, i32, i32) {
    %c0_i32 = arith.constant 0 : i32
    %c0_i32_0 = arith.constant 0 : i32
    return %arg0, %arg1, %arg2, %c0_i32 : i32, i32, i32, i32
  }
}

module attributes {stable_mosaic.version = 11 : i64} {
  func.func @_conv3x3_kernel(%arg0: i32, %arg1: memref<1x18x18x16xf32, #tpu.memory_space<vmem>>, %arg2: memref<3x3x16x16xbf16, #tpu.memory_space<vmem>>, %arg3: memref<1x16xf32, #tpu.memory_space<vmem>>, %arg4: memref<1x16xf32, #tpu.memory_space<vmem>>, %arg5: memref<1x16x16x16xf32, #tpu.memory_space<vmem>>) attributes {dimension_semantics = [#tpu.dimension_semantics<parallel>], iteration_bounds = array<i64: 2>, scalar_prefetch = 0 : i64, scratch_operands = 0 : i64, tpu.core_type = #tpu.core_type<tc>, window_params = [{transform_indices = @transform_0, window_bounds = array<i64: 1, 18, 18, 16>}, {pipeline_mode = #tpu.pipeline_mode<synchronous>, transform_indices = @transform_1, window_bounds = array<i64: 3, 3, 16, 16>}, {pipeline_mode = #tpu.pipeline_mode<synchronous>, transform_indices = @transform_2, window_bounds = array<i64: 1, 16>}, {pipeline_mode = #tpu.pipeline_mode<synchronous>, transform_indices = @transform_3, window_bounds = array<i64: 1, 16>}, {transform_indices = @transform_4, window_bounds = array<i64: 1, 16, 16, 16>}]} {
    %cst = arith.constant 0.000000e+00 : f32
    %0 = vector.broadcast %cst : f32 to vector<256x16xf32>
    %c0 = arith.constant 0 : index
    %c0_0 = arith.constant 0 : index
    %c0_1 = arith.constant 0 : index
    %c0_2 = arith.constant 0 : index
    %1 = vector.load %arg1[%c0, %c0_0, %c0_1, %c0_2] : memref<1x18x18x16xf32, #tpu.memory_space<vmem>>, vector<1x16x16x16xf32>
    %2 = vector.shape_cast %1 : vector<1x16x16x16xf32> to vector<16x16x16xf32>
    %3 = vector.shape_cast %2 : vector<16x16x16xf32> to vector<256x16xf32>
    %4 = arith.truncf %3 : vector<256x16xf32> to vector<256x16xbf16>
    %c0_3 = arith.constant 0 : index
    %c0_4 = arith.constant 0 : index
    %c0_5 = arith.constant 0 : index
    %c0_6 = arith.constant 0 : index
    %5 = vector.load %arg2[%c0_3, %c0_4, %c0_5, %c0_6] : memref<3x3x16x16xbf16, #tpu.memory_space<vmem>>, vector<1x1x16x16xbf16>
    %6 = vector.shape_cast %5 : vector<1x1x16x16xbf16> to vector<16x16xbf16>
    %cst_7 = arith.constant dense<0.000000e+00> : vector<256x16xf32>
    %7 = tpu.matmul %4, %6, %cst_7 {dimension_numbers = #tpu.dot_dimension_numbers<[1], [0], [0], [1], [0, 0, 1, 1], [], []>} : vector<256x16xbf16>, vector<16x16xbf16>, vector<256x16xf32> -> vector<256x16xf32>
    %8 = arith.addf %0, %7 : vector<256x16xf32>
    %c0_8 = arith.constant 0 : index
    %c0_9 = arith.constant 0 : index
    %c1 = arith.constant 1 : index
    %c0_10 = arith.constant 0 : index
    %9 = vector.load %arg1[%c0_8, %c0_9, %c1, %c0_10] : memref<1x18x18x16xf32, #tpu.memory_space<vmem>>, vector<1x16x16x16xf32>
    %10 = vector.shape_cast %9 : vector<1x16x16x16xf32> to vector<16x16x16xf32>
    %11 = vector.shape_cast %10 : vector<16x16x16xf32> to vector<256x16xf32>
    %12 = arith.truncf %11 : vector<256x16xf32> to vector<256x16xbf16>
    %c0_11 = arith.constant 0 : index
    %c1_12 = arith.constant 1 : index
    %c0_13 = arith.constant 0 : index
    %c0_14 = arith.constant 0 : index
    %13 = vector.load %arg2[%c0_11, %c1_12, %c0_13, %c0_14] : memref<3x3x16x16xbf16, #tpu.memory_space<vmem>>, vector<1x1x16x16xbf16>
    %14 = vector.shape_cast %13 : vector<1x1x16x16xbf16> to vector<16x16xbf16>
    %cst_15 = arith.constant dense<0.000000e+00> : vector<256x16xf32>
    %15 = tpu.matmul %12, %14, %cst_15 {dimension_numbers = #tpu.dot_dimension_numbers<[1], [0], [0], [1], [0, 0, 1, 1], [], []>} : vector<256x16xbf16>, vector<16x16xbf16>, vector<256x16xf32> -> vector<256x16xf32>
    %16 = arith.addf %8, %15 : vector<256x16xf32>
    %c0_16 = arith.constant 0 : index
    %c0_17 = arith.constant 0 : index
    %c2 = arith.constant 2 : index
    %c0_18 = arith.constant 0 : index
    %17 = vector.load %arg1[%c0_16, %c0_17, %c2, %c0_18] : memref<1x18x18x16xf32, #tpu.memory_space<vmem>>, vector<1x16x16x16xf32>
    %18 = vector.shape_cast %17 : vector<1x16x16x16xf32> to vector<16x16x16xf32>
    %19 = vector.shape_cast %18 : vector<16x16x16xf32> to vector<256x16xf32>
    %20 = arith.truncf %19 : vector<256x16xf32> to vector<256x16xbf16>
    %c0_19 = arith.constant 0 : index
    %c2_20 = arith.constant 2 : index
    %c0_21 = arith.constant 0 : index
    %c0_22 = arith.constant 0 : index
    %21 = vector.load %arg2[%c0_19, %c2_20, %c0_21, %c0_22] : memref<3x3x16x16xbf16, #tpu.memory_space<vmem>>, vector<1x1x16x16xbf16>
    %22 = vector.shape_cast %21 : vector<1x1x16x16xbf16> to vector<16x16xbf16>
    %cst_23 = arith.constant dense<0.000000e+00> : vector<256x16xf32>
    %23 = tpu.matmul %20, %22, %cst_23 {dimension_numbers = #tpu.dot_dimension_numbers<[1], [0], [0], [1], [0, 0, 1, 1], [], []>} : vector<256x16xbf16>, vector<16x16xbf16>, vector<256x16xf32> -> vector<256x16xf32>
    %24 = arith.addf %16, %23 : vector<256x16xf32>
    %c0_24 = arith.constant 0 : index
    %c1_25 = arith.constant 1 : index
    %c0_26 = arith.constant 0 : index
    %c0_27 = arith.constant 0 : index
    %25 = vector.load %arg1[%c0_24, %c1_25, %c0_26, %c0_27] : memref<1x18x18x16xf32, #tpu.memory_space<vmem>>, vector<1x16x16x16xf32>
    %26 = vector.shape_cast %25 : vector<1x16x16x16xf32> to vector<16x16x16xf32>
    %27 = vector.shape_cast %26 : vector<16x16x16xf32> to vector<256x16xf32>
    %28 = arith.truncf %27 : vector<256x16xf32> to vector<256x16xbf16>
    %c1_28 = arith.constant 1 : index
    %c0_29 = arith.constant 0 : index
    %c0_30 = arith.constant 0 : index
    %c0_31 = arith.constant 0 : index
    %29 = vector.load %arg2[%c1_28, %c0_29, %c0_30, %c0_31] : memref<3x3x16x16xbf16, #tpu.memory_space<vmem>>, vector<1x1x16x16xbf16>
    %30 = vector.shape_cast %29 : vector<1x1x16x16xbf16> to vector<16x16xbf16>
    %cst_32 = arith.constant dense<0.000000e+00> : vector<256x16xf32>
    %31 = tpu.matmul %28, %30, %cst_32 {dimension_numbers = #tpu.dot_dimension_numbers<[1], [0], [0], [1], [0, 0, 1, 1], [], []>} : vector<256x16xbf16>, vector<16x16xbf16>, vector<256x16xf32> -> vector<256x16xf32>
    %32 = arith.addf %24, %31 : vector<256x16xf32>
    %c0_33 = arith.constant 0 : index
    %c1_34 = arith.constant 1 : index
    %c1_35 = arith.constant 1 : index
    %c0_36 = arith.constant 0 : index
    %33 = vector.load %arg1[%c0_33, %c1_34, %c1_35, %c0_36] : memref<1x18x18x16xf32, #tpu.memory_space<vmem>>, vector<1x16x16x16xf32>
    %34 = vector.shape_cast %33 : vector<1x16x16x16xf32> to vector<16x16x16xf32>
    %35 = vector.shape_cast %34 : vector<16x16x16xf32> to vector<256x16xf32>
    %36 = arith.truncf %35 : vector<256x16xf32> to vector<256x16xbf16>
    %c1_37 = arith.constant 1 : index
    %c1_38 = arith.constant 1 : index
    %c0_39 = arith.constant 0 : index
    %c0_40 = arith.constant 0 : index
    %37 = vector.load %arg2[%c1_37, %c1_38, %c0_39, %c0_40] : memref<3x3x16x16xbf16, #tpu.memory_space<vmem>>, vector<1x1x16x16xbf16>
    %38 = vector.shape_cast %37 : vector<1x1x16x16xbf16> to vector<16x16xbf16>
    %cst_41 = arith.constant dense<0.000000e+00> : vector<256x16xf32>
    %39 = tpu.matmul %36, %38, %cst_41 {dimension_numbers = #tpu.dot_dimension_numbers<[1], [0], [0], [1], [0, 0, 1, 1], [], []>} : vector<256x16xbf16>, vector<16x16xbf16>, vector<256x16xf32> -> vector<256x16xf32>
    %40 = arith.addf %32, %39 : vector<256x16xf32>
    %c0_42 = arith.constant 0 : index
    %c1_43 = arith.constant 1 : index
    %c2_44 = arith.constant 2 : index
    %c0_45 = arith.constant 0 : index
    %41 = vector.load %arg1[%c0_42, %c1_43, %c2_44, %c0_45] : memref<1x18x18x16xf32, #tpu.memory_space<vmem>>, vector<1x16x16x16xf32>
    %42 = vector.shape_cast %41 : vector<1x16x16x16xf32> to vector<16x16x16xf32>
    %43 = vector.shape_cast %42 : vector<16x16x16xf32> to vector<256x16xf32>
    %44 = arith.truncf %43 : vector<256x16xf32> to vector<256x16xbf16>
    %c1_46 = arith.constant 1 : index
    %c2_47 = arith.constant 2 : index
    %c0_48 = arith.constant 0 : index
    %c0_49 = arith.constant 0 : index
    %45 = vector.load %arg2[%c1_46, %c2_47, %c0_48, %c0_49] : memref<3x3x16x16xbf16, #tpu.memory_space<vmem>>, vector<1x1x16x16xbf16>
    %46 = vector.shape_cast %45 : vector<1x1x16x16xbf16> to vector<16x16xbf16>
    %cst_50 = arith.constant dense<0.000000e+00> : vector<256x16xf32>
    %47 = tpu.matmul %44, %46, %cst_50 {dimension_numbers = #tpu.dot_dimension_numbers<[1], [0], [0], [1], [0, 0, 1, 1], [], []>} : vector<256x16xbf16>, vector<16x16xbf16>, vector<256x16xf32> -> vector<256x16xf32>
    %48 = arith.addf %40, %47 : vector<256x16xf32>
    %c0_51 = arith.constant 0 : index
    %c2_52 = arith.constant 2 : index
    %c0_53 = arith.constant 0 : index
    %c0_54 = arith.constant 0 : index
    %49 = vector.load %arg1[%c0_51, %c2_52, %c0_53, %c0_54] : memref<1x18x18x16xf32, #tpu.memory_space<vmem>>, vector<1x16x16x16xf32>
    %50 = vector.shape_cast %49 : vector<1x16x16x16xf32> to vector<16x16x16xf32>
    %51 = vector.shape_cast %50 : vector<16x16x16xf32> to vector<256x16xf32>
    %52 = arith.truncf %51 : vector<256x16xf32> to vector<256x16xbf16>
    %c2_55 = arith.constant 2 : index
    %c0_56 = arith.constant 0 : index
    %c0_57 = arith.constant 0 : index
    %c0_58 = arith.constant 0 : index
    %53 = vector.load %arg2[%c2_55, %c0_56, %c0_57, %c0_58] : memref<3x3x16x16xbf16, #tpu.memory_space<vmem>>, vector<1x1x16x16xbf16>
    %54 = vector.shape_cast %53 : vector<1x1x16x16xbf16> to vector<16x16xbf16>
    %cst_59 = arith.constant dense<0.000000e+00> : vector<256x16xf32>
    %55 = tpu.matmul %52, %54, %cst_59 {dimension_numbers = #tpu.dot_dimension_numbers<[1], [0], [0], [1], [0, 0, 1, 1], [], []>} : vector<256x16xbf16>, vector<16x16xbf16>, vector<256x16xf32> -> vector<256x16xf32>
    %56 = arith.addf %48, %55 : vector<256x16xf32>
    %c0_60 = arith.constant 0 : index
    %c2_61 = arith.constant 2 : index
    %c1_62 = arith.constant 1 : index
    %c0_63 = arith.constant 0 : index
    %57 = vector.load %arg1[%c0_60, %c2_61, %c1_62, %c0_63] : memref<1x18x18x16xf32, #tpu.memory_space<vmem>>, vector<1x16x16x16xf32>
    %58 = vector.shape_cast %57 : vector<1x16x16x16xf32> to vector<16x16x16xf32>
    %59 = vector.shape_cast %58 : vector<16x16x16xf32> to vector<256x16xf32>
    %60 = arith.truncf %59 : vector<256x16xf32> to vector<256x16xbf16>
    %c2_64 = arith.constant 2 : index
    %c1_65 = arith.constant 1 : index
    %c0_66 = arith.constant 0 : index
    %c0_67 = arith.constant 0 : index
    %61 = vector.load %arg2[%c2_64, %c1_65, %c0_66, %c0_67] : memref<3x3x16x16xbf16, #tpu.memory_space<vmem>>, vector<1x1x16x16xbf16>
    %62 = vector.shape_cast %61 : vector<1x1x16x16xbf16> to vector<16x16xbf16>
    %cst_68 = arith.constant dense<0.000000e+00> : vector<256x16xf32>
    %63 = tpu.matmul %60, %62, %cst_68 {dimension_numbers = #tpu.dot_dimension_numbers<[1], [0], [0], [1], [0, 0, 1, 1], [], []>} : vector<256x16xbf16>, vector<16x16xbf16>, vector<256x16xf32> -> vector<256x16xf32>
    %64 = arith.addf %56, %63 : vector<256x16xf32>
    %c0_69 = arith.constant 0 : index
    %c2_70 = arith.constant 2 : index
    %c2_71 = arith.constant 2 : index
    %c0_72 = arith.constant 0 : index
    %65 = vector.load %arg1[%c0_69, %c2_70, %c2_71, %c0_72] : memref<1x18x18x16xf32, #tpu.memory_space<vmem>>, vector<1x16x16x16xf32>
    %66 = vector.shape_cast %65 : vector<1x16x16x16xf32> to vector<16x16x16xf32>
    %67 = vector.shape_cast %66 : vector<16x16x16xf32> to vector<256x16xf32>
    %68 = arith.truncf %67 : vector<256x16xf32> to vector<256x16xbf16>
    %c2_73 = arith.constant 2 : index
    %c2_74 = arith.constant 2 : index
    %c0_75 = arith.constant 0 : index
    %c0_76 = arith.constant 0 : index
    %69 = vector.load %arg2[%c2_73, %c2_74, %c0_75, %c0_76] : memref<3x3x16x16xbf16, #tpu.memory_space<vmem>>, vector<1x1x16x16xbf16>
    %70 = vector.shape_cast %69 : vector<1x1x16x16xbf16> to vector<16x16xbf16>
    %cst_77 = arith.constant dense<0.000000e+00> : vector<256x16xf32>
    %71 = tpu.matmul %68, %70, %cst_77 {dimension_numbers = #tpu.dot_dimension_numbers<[1], [0], [0], [1], [0, 0, 1, 1], [], []>} : vector<256x16xbf16>, vector<16x16xbf16>, vector<256x16xf32> -> vector<256x16xf32>
    %72 = arith.addf %64, %71 : vector<256x16xf32>
    %c0_78 = arith.constant 0 : index
    %c0_79 = arith.constant 0 : index
    %73 = vector.load %arg3[%c0_78, %c0_79] : memref<1x16xf32, #tpu.memory_space<vmem>>, vector<1x16xf32>
    %74 = vector.broadcast %73 : vector<1x16xf32> to vector<256x16xf32>
    %75 = arith.mulf %72, %74 : vector<256x16xf32>
    %c0_80 = arith.constant 0 : index
    %c0_81 = arith.constant 0 : index
    %76 = vector.load %arg4[%c0_80, %c0_81] : memref<1x16xf32, #tpu.memory_space<vmem>>, vector<1x16xf32>
    %77 = vector.broadcast %76 : vector<1x16xf32> to vector<256x16xf32>
    %78 = arith.addf %75, %77 : vector<256x16xf32>
    %cst_82 = arith.constant 0.000000e+00 : f32
    %79 = vector.broadcast %cst_82 : f32 to vector<256x16xf32>
    %80 = arith.cmpf oge, %78, %79 : vector<256x16xf32>
    %cst_83 = arith.constant 2.000000e-01 : f32
    %81 = vector.broadcast %cst_83 : f32 to vector<256x16xf32>
    %82 = arith.mulf %81, %78 : vector<256x16xf32>
    %83 = arith.select %80, %78, %82 : vector<256x16xi1>, vector<256x16xf32>
    %84 = vector.shape_cast %83 : vector<256x16xf32> to vector<16x16x16xf32>
    %c0_84 = arith.constant 0 : index
    %c0_85 = arith.constant 0 : index
    %c0_86 = arith.constant 0 : index
    %c0_87 = arith.constant 0 : index
    %85 = vector.load %arg5[%c0_84, %c0_85, %c0_86, %c0_87] : memref<1x16x16x16xf32, #tpu.memory_space<vmem>>, vector<1x16x16x16xf32>
    %86 = vector.shape_cast %85 : vector<1x16x16x16xf32> to vector<16x16x16xf32>
    %87 = vector.shape_cast %84 : vector<16x16x16xf32> to vector<1x16x16x16xf32>
    tpu.vector_store %arg5[%c0_84, %c0_85, %c0_86, %c0_87], %87 {strides = array<i32>} : memref<1x16x16x16xf32, #tpu.memory_space<vmem>>, vector<1x16x16x16xf32>,
    return
  }
  func.func @transform_0(%arg0: i32) -> (i32, i32, i32, i32) {
    %c0_i32 = arith.constant 0 : i32
    %c0_i32_0 = arith.constant 0 : i32
    %c0_i32_1 = arith.constant 0 : i32
    %c0_i32_2 = arith.constant 0 : i32
    return %arg0, %c0_i32, %c0_i32_0, %c0_i32_1 : i32, i32, i32, i32
  }
  func.func @transform_1(%arg0: i32) -> (i32, i32, i32, i32) {
    %c0_i32 = arith.constant 0 : i32
    %c0_i32_0 = arith.constant 0 : i32
    %c0_i32_1 = arith.constant 0 : i32
    %c0_i32_2 = arith.constant 0 : i32
    %c0_i32_3 = arith.constant 0 : i32
    return %c0_i32, %c0_i32_0, %c0_i32_1, %c0_i32_2 : i32, i32, i32, i32
  }
  func.func @transform_2(%arg0: i32) -> (i32, i32) {
    %c0_i32 = arith.constant 0 : i32
    %c0_i32_0 = arith.constant 0 : i32
    %c0_i32_1 = arith.constant 0 : i32
    return %c0_i32, %c0_i32_0 : i32, i32
  }
  func.func @transform_3(%arg0: i32) -> (i32, i32) {
    %c0_i32 = arith.constant 0 : i32
    %c0_i32_0 = arith.constant 0 : i32
    %c0_i32_1 = arith.constant 0 : i32
    return %c0_i32, %c0_i32_0 : i32, i32
  }
  func.func @transform_4(%arg0: i32) -> (i32, i32, i32, i32) {
    %c0_i32 = arith.constant 0 : i32
    %c0_i32_0 = arith.constant 0 : i32
    %c0_i32_1 = arith.constant 0 : i32
    %c0_i32_2 = arith.constant 0 : i32
    return %arg0, %c0_i32, %c0_i32_0, %c0_i32_1 : i32, i32, i32, i32
  }
}

module attributes {stable_mosaic.version = 11 : i64} {
  func.func @_conv3x3_kernel(%arg0: i32, %arg1: memref<1x18x18x16xf32, #tpu.memory_space<vmem>>, %arg2: memref<3x3x16x16xbf16, #tpu.memory_space<vmem>>, %arg3: memref<1x16xf32, #tpu.memory_space<vmem>>, %arg4: memref<1x16xf32, #tpu.memory_space<vmem>>, %arg5: memref<1x16x16x16xf32, #tpu.memory_space<vmem>>, %arg6: memref<1x16x16x16xf32, #tpu.memory_space<vmem>>) attributes {dimension_semantics = [#tpu.dimension_semantics<parallel>], iteration_bounds = array<i64: 2>, scalar_prefetch = 0 : i64, scratch_operands = 0 : i64, tpu.core_type = #tpu.core_type<tc>, window_params = [{transform_indices = @transform_0, window_bounds = array<i64: 1, 18, 18, 16>}, {pipeline_mode = #tpu.pipeline_mode<synchronous>, transform_indices = @transform_1, window_bounds = array<i64: 3, 3, 16, 16>}, {pipeline_mode = #tpu.pipeline_mode<synchronous>, transform_indices = @transform_2, window_bounds = array<i64: 1, 16>}, {pipeline_mode = #tpu.pipeline_mode<synchronous>, transform_indices = @transform_3, window_bounds = array<i64: 1, 16>}, {transform_indices = @transform_4, window_bounds = array<i64: 1, 16, 16, 16>}, {transform_indices = @transform_5, window_bounds = array<i64: 1, 16, 16, 16>}]} {
    %cst = arith.constant 0.000000e+00 : f32
    %0 = vector.broadcast %cst : f32 to vector<256x16xf32>
    %c0 = arith.constant 0 : index
    %c0_0 = arith.constant 0 : index
    %c0_1 = arith.constant 0 : index
    %c0_2 = arith.constant 0 : index
    %1 = vector.load %arg1[%c0, %c0_0, %c0_1, %c0_2] : memref<1x18x18x16xf32, #tpu.memory_space<vmem>>, vector<1x16x16x16xf32>
    %2 = vector.shape_cast %1 : vector<1x16x16x16xf32> to vector<16x16x16xf32>
    %3 = vector.shape_cast %2 : vector<16x16x16xf32> to vector<256x16xf32>
    %4 = arith.truncf %3 : vector<256x16xf32> to vector<256x16xbf16>
    %c0_3 = arith.constant 0 : index
    %c0_4 = arith.constant 0 : index
    %c0_5 = arith.constant 0 : index
    %c0_6 = arith.constant 0 : index
    %5 = vector.load %arg2[%c0_3, %c0_4, %c0_5, %c0_6] : memref<3x3x16x16xbf16, #tpu.memory_space<vmem>>, vector<1x1x16x16xbf16>
    %6 = vector.shape_cast %5 : vector<1x1x16x16xbf16> to vector<16x16xbf16>
    %cst_7 = arith.constant dense<0.000000e+00> : vector<256x16xf32>
    %7 = tpu.matmul %4, %6, %cst_7 {dimension_numbers = #tpu.dot_dimension_numbers<[1], [0], [0], [1], [0, 0, 1, 1], [], []>} : vector<256x16xbf16>, vector<16x16xbf16>, vector<256x16xf32> -> vector<256x16xf32>
    %8 = arith.addf %0, %7 : vector<256x16xf32>
    %c0_8 = arith.constant 0 : index
    %c0_9 = arith.constant 0 : index
    %c1 = arith.constant 1 : index
    %c0_10 = arith.constant 0 : index
    %9 = vector.load %arg1[%c0_8, %c0_9, %c1, %c0_10] : memref<1x18x18x16xf32, #tpu.memory_space<vmem>>, vector<1x16x16x16xf32>
    %10 = vector.shape_cast %9 : vector<1x16x16x16xf32> to vector<16x16x16xf32>
    %11 = vector.shape_cast %10 : vector<16x16x16xf32> to vector<256x16xf32>
    %12 = arith.truncf %11 : vector<256x16xf32> to vector<256x16xbf16>
    %c0_11 = arith.constant 0 : index
    %c1_12 = arith.constant 1 : index
    %c0_13 = arith.constant 0 : index
    %c0_14 = arith.constant 0 : index
    %13 = vector.load %arg2[%c0_11, %c1_12, %c0_13, %c0_14] : memref<3x3x16x16xbf16, #tpu.memory_space<vmem>>, vector<1x1x16x16xbf16>
    %14 = vector.shape_cast %13 : vector<1x1x16x16xbf16> to vector<16x16xbf16>
    %cst_15 = arith.constant dense<0.000000e+00> : vector<256x16xf32>
    %15 = tpu.matmul %12, %14, %cst_15 {dimension_numbers = #tpu.dot_dimension_numbers<[1], [0], [0], [1], [0, 0, 1, 1], [], []>} : vector<256x16xbf16>, vector<16x16xbf16>, vector<256x16xf32> -> vector<256x16xf32>
    %16 = arith.addf %8, %15 : vector<256x16xf32>
    %c0_16 = arith.constant 0 : index
    %c0_17 = arith.constant 0 : index
    %c2 = arith.constant 2 : index
    %c0_18 = arith.constant 0 : index
    %17 = vector.load %arg1[%c0_16, %c0_17, %c2, %c0_18] : memref<1x18x18x16xf32, #tpu.memory_space<vmem>>, vector<1x16x16x16xf32>
    %18 = vector.shape_cast %17 : vector<1x16x16x16xf32> to vector<16x16x16xf32>
    %19 = vector.shape_cast %18 : vector<16x16x16xf32> to vector<256x16xf32>
    %20 = arith.truncf %19 : vector<256x16xf32> to vector<256x16xbf16>
    %c0_19 = arith.constant 0 : index
    %c2_20 = arith.constant 2 : index
    %c0_21 = arith.constant 0 : index
    %c0_22 = arith.constant 0 : index
    %21 = vector.load %arg2[%c0_19, %c2_20, %c0_21, %c0_22] : memref<3x3x16x16xbf16, #tpu.memory_space<vmem>>, vector<1x1x16x16xbf16>
    %22 = vector.shape_cast %21 : vector<1x1x16x16xbf16> to vector<16x16xbf16>
    %cst_23 = arith.constant dense<0.000000e+00> : vector<256x16xf32>
    %23 = tpu.matmul %20, %22, %cst_23 {dimension_numbers = #tpu.dot_dimension_numbers<[1], [0], [0], [1], [0, 0, 1, 1], [], []>} : vector<256x16xbf16>, vector<16x16xbf16>, vector<256x16xf32> -> vector<256x16xf32>
    %24 = arith.addf %16, %23 : vector<256x16xf32>
    %c0_24 = arith.constant 0 : index
    %c1_25 = arith.constant 1 : index
    %c0_26 = arith.constant 0 : index
    %c0_27 = arith.constant 0 : index
    %25 = vector.load %arg1[%c0_24, %c1_25, %c0_26, %c0_27] : memref<1x18x18x16xf32, #tpu.memory_space<vmem>>, vector<1x16x16x16xf32>
    %26 = vector.shape_cast %25 : vector<1x16x16x16xf32> to vector<16x16x16xf32>
    %27 = vector.shape_cast %26 : vector<16x16x16xf32> to vector<256x16xf32>
    %28 = arith.truncf %27 : vector<256x16xf32> to vector<256x16xbf16>
    %c1_28 = arith.constant 1 : index
    %c0_29 = arith.constant 0 : index
    %c0_30 = arith.constant 0 : index
    %c0_31 = arith.constant 0 : index
    %29 = vector.load %arg2[%c1_28, %c0_29, %c0_30, %c0_31] : memref<3x3x16x16xbf16, #tpu.memory_space<vmem>>, vector<1x1x16x16xbf16>
    %30 = vector.shape_cast %29 : vector<1x1x16x16xbf16> to vector<16x16xbf16>
    %cst_32 = arith.constant dense<0.000000e+00> : vector<256x16xf32>
    %31 = tpu.matmul %28, %30, %cst_32 {dimension_numbers = #tpu.dot_dimension_numbers<[1], [0], [0], [1], [0, 0, 1, 1], [], []>} : vector<256x16xbf16>, vector<16x16xbf16>, vector<256x16xf32> -> vector<256x16xf32>
    %32 = arith.addf %24, %31 : vector<256x16xf32>
    %c0_33 = arith.constant 0 : index
    %c1_34 = arith.constant 1 : index
    %c1_35 = arith.constant 1 : index
    %c0_36 = arith.constant 0 : index
    %33 = vector.load %arg1[%c0_33, %c1_34, %c1_35, %c0_36] : memref<1x18x18x16xf32, #tpu.memory_space<vmem>>, vector<1x16x16x16xf32>
    %34 = vector.shape_cast %33 : vector<1x16x16x16xf32> to vector<16x16x16xf32>
    %35 = vector.shape_cast %34 : vector<16x16x16xf32> to vector<256x16xf32>
    %36 = arith.truncf %35 : vector<256x16xf32> to vector<256x16xbf16>
    %c1_37 = arith.constant 1 : index
    %c1_38 = arith.constant 1 : index
    %c0_39 = arith.constant 0 : index
    %c0_40 = arith.constant 0 : index
    %37 = vector.load %arg2[%c1_37, %c1_38, %c0_39, %c0_40] : memref<3x3x16x16xbf16, #tpu.memory_space<vmem>>, vector<1x1x16x16xbf16>
    %38 = vector.shape_cast %37 : vector<1x1x16x16xbf16> to vector<16x16xbf16>
    %cst_41 = arith.constant dense<0.000000e+00> : vector<256x16xf32>
    %39 = tpu.matmul %36, %38, %cst_41 {dimension_numbers = #tpu.dot_dimension_numbers<[1], [0], [0], [1], [0, 0, 1, 1], [], []>} : vector<256x16xbf16>, vector<16x16xbf16>, vector<256x16xf32> -> vector<256x16xf32>
    %40 = arith.addf %32, %39 : vector<256x16xf32>
    %c0_42 = arith.constant 0 : index
    %c1_43 = arith.constant 1 : index
    %c2_44 = arith.constant 2 : index
    %c0_45 = arith.constant 0 : index
    %41 = vector.load %arg1[%c0_42, %c1_43, %c2_44, %c0_45] : memref<1x18x18x16xf32, #tpu.memory_space<vmem>>, vector<1x16x16x16xf32>
    %42 = vector.shape_cast %41 : vector<1x16x16x16xf32> to vector<16x16x16xf32>
    %43 = vector.shape_cast %42 : vector<16x16x16xf32> to vector<256x16xf32>
    %44 = arith.truncf %43 : vector<256x16xf32> to vector<256x16xbf16>
    %c1_46 = arith.constant 1 : index
    %c2_47 = arith.constant 2 : index
    %c0_48 = arith.constant 0 : index
    %c0_49 = arith.constant 0 : index
    %45 = vector.load %arg2[%c1_46, %c2_47, %c0_48, %c0_49] : memref<3x3x16x16xbf16, #tpu.memory_space<vmem>>, vector<1x1x16x16xbf16>
    %46 = vector.shape_cast %45 : vector<1x1x16x16xbf16> to vector<16x16xbf16>
    %cst_50 = arith.constant dense<0.000000e+00> : vector<256x16xf32>
    %47 = tpu.matmul %44, %46, %cst_50 {dimension_numbers = #tpu.dot_dimension_numbers<[1], [0], [0], [1], [0, 0, 1, 1], [], []>} : vector<256x16xbf16>, vector<16x16xbf16>, vector<256x16xf32> -> vector<256x16xf32>
    %48 = arith.addf %40, %47 : vector<256x16xf32>
    %c0_51 = arith.constant 0 : index
    %c2_52 = arith.constant 2 : index
    %c0_53 = arith.constant 0 : index
    %c0_54 = arith.constant 0 : index
    %49 = vector.load %arg1[%c0_51, %c2_52, %c0_53, %c0_54] : memref<1x18x18x16xf32, #tpu.memory_space<vmem>>, vector<1x16x16x16xf32>
    %50 = vector.shape_cast %49 : vector<1x16x16x16xf32> to vector<16x16x16xf32>
    %51 = vector.shape_cast %50 : vector<16x16x16xf32> to vector<256x16xf32>
    %52 = arith.truncf %51 : vector<256x16xf32> to vector<256x16xbf16>
    %c2_55 = arith.constant 2 : index
    %c0_56 = arith.constant 0 : index
    %c0_57 = arith.constant 0 : index
    %c0_58 = arith.constant 0 : index
    %53 = vector.load %arg2[%c2_55, %c0_56, %c0_57, %c0_58] : memref<3x3x16x16xbf16, #tpu.memory_space<vmem>>, vector<1x1x16x16xbf16>
    %54 = vector.shape_cast %53 : vector<1x1x16x16xbf16> to vector<16x16xbf16>
    %cst_59 = arith.constant dense<0.000000e+00> : vector<256x16xf32>
    %55 = tpu.matmul %52, %54, %cst_59 {dimension_numbers = #tpu.dot_dimension_numbers<[1], [0], [0], [1], [0, 0, 1, 1], [], []>} : vector<256x16xbf16>, vector<16x16xbf16>, vector<256x16xf32> -> vector<256x16xf32>
    %56 = arith.addf %48, %55 : vector<256x16xf32>
    %c0_60 = arith.constant 0 : index
    %c2_61 = arith.constant 2 : index
    %c1_62 = arith.constant 1 : index
    %c0_63 = arith.constant 0 : index
    %57 = vector.load %arg1[%c0_60, %c2_61, %c1_62, %c0_63] : memref<1x18x18x16xf32, #tpu.memory_space<vmem>>, vector<1x16x16x16xf32>
    %58 = vector.shape_cast %57 : vector<1x16x16x16xf32> to vector<16x16x16xf32>
    %59 = vector.shape_cast %58 : vector<16x16x16xf32> to vector<256x16xf32>
    %60 = arith.truncf %59 : vector<256x16xf32> to vector<256x16xbf16>
    %c2_64 = arith.constant 2 : index
    %c1_65 = arith.constant 1 : index
    %c0_66 = arith.constant 0 : index
    %c0_67 = arith.constant 0 : index
    %61 = vector.load %arg2[%c2_64, %c1_65, %c0_66, %c0_67] : memref<3x3x16x16xbf16, #tpu.memory_space<vmem>>, vector<1x1x16x16xbf16>
    %62 = vector.shape_cast %61 : vector<1x1x16x16xbf16> to vector<16x16xbf16>
    %cst_68 = arith.constant dense<0.000000e+00> : vector<256x16xf32>
    %63 = tpu.matmul %60, %62, %cst_68 {dimension_numbers = #tpu.dot_dimension_numbers<[1], [0], [0], [1], [0, 0, 1, 1], [], []>} : vector<256x16xbf16>, vector<16x16xbf16>, vector<256x16xf32> -> vector<256x16xf32>
    %64 = arith.addf %56, %63 : vector<256x16xf32>
    %c0_69 = arith.constant 0 : index
    %c2_70 = arith.constant 2 : index
    %c2_71 = arith.constant 2 : index
    %c0_72 = arith.constant 0 : index
    %65 = vector.load %arg1[%c0_69, %c2_70, %c2_71, %c0_72] : memref<1x18x18x16xf32, #tpu.memory_space<vmem>>, vector<1x16x16x16xf32>
    %66 = vector.shape_cast %65 : vector<1x16x16x16xf32> to vector<16x16x16xf32>
    %67 = vector.shape_cast %66 : vector<16x16x16xf32> to vector<256x16xf32>
    %68 = arith.truncf %67 : vector<256x16xf32> to vector<256x16xbf16>
    %c2_73 = arith.constant 2 : index
    %c2_74 = arith.constant 2 : index
    %c0_75 = arith.constant 0 : index
    %c0_76 = arith.constant 0 : index
    %69 = vector.load %arg2[%c2_73, %c2_74, %c0_75, %c0_76] : memref<3x3x16x16xbf16, #tpu.memory_space<vmem>>, vector<1x1x16x16xbf16>
    %70 = vector.shape_cast %69 : vector<1x1x16x16xbf16> to vector<16x16xbf16>
    %cst_77 = arith.constant dense<0.000000e+00> : vector<256x16xf32>
    %71 = tpu.matmul %68, %70, %cst_77 {dimension_numbers = #tpu.dot_dimension_numbers<[1], [0], [0], [1], [0, 0, 1, 1], [], []>} : vector<256x16xbf16>, vector<16x16xbf16>, vector<256x16xf32> -> vector<256x16xf32>
    %72 = arith.addf %64, %71 : vector<256x16xf32>
    %c0_78 = arith.constant 0 : index
    %c0_79 = arith.constant 0 : index
    %73 = vector.load %arg3[%c0_78, %c0_79] : memref<1x16xf32, #tpu.memory_space<vmem>>, vector<1x16xf32>
    %74 = vector.broadcast %73 : vector<1x16xf32> to vector<256x16xf32>
    %75 = arith.mulf %72, %74 : vector<256x16xf32>
    %c0_80 = arith.constant 0 : index
    %c0_81 = arith.constant 0 : index
    %76 = vector.load %arg4[%c0_80, %c0_81] : memref<1x16xf32, #tpu.memory_space<vmem>>, vector<1x16xf32>
    %77 = vector.broadcast %76 : vector<1x16xf32> to vector<256x16xf32>
    %78 = arith.addf %75, %77 : vector<256x16xf32>
    %cst_82 = arith.constant 0.000000e+00 : f32
    %79 = vector.broadcast %cst_82 : f32 to vector<256x16xf32>
    %80 = arith.cmpf oge, %78, %79 : vector<256x16xf32>
    %cst_83 = arith.constant 2.000000e-01 : f32
    %81 = vector.broadcast %cst_83 : f32 to vector<256x16xf32>
    %82 = arith.mulf %81, %78 : vector<256x16xf32>
    %83 = arith.select %80, %78, %82 : vector<256x16xi1>, vector<256x16xf32>
    %84 = vector.shape_cast %83 : vector<256x16xf32> to vector<16x16x16xf32>
    %c0_84 = arith.constant 0 : index
    %c0_85 = arith.constant 0 : index
    %c0_86 = arith.constant 0 : index
    %c0_87 = arith.constant 0 : index
    %85 = vector.load %arg5[%c0_84, %c0_85, %c0_86, %c0_87] : memref<1x16x16x16xf32, #tpu.memory_space<vmem>>, vector<1x16x16x16xf32>
    %86 = vector.shape_cast %85 : vector<1x16x16x16xf32> to vector<16x16x16xf32>
    %87 = arith.addf %84, %86 : vector<16x16x16xf32>
    %c0_88 = arith.constant 0 : index
    %c0_89 = arith.constant 0 : index
    %c0_90 = arith.constant 0 : index
    %c0_91 = arith.constant 0 : index
    %88 = vector.load %arg6[%c0_88, %c0_89, %c0_90, %c0_91] : memref<1x16x16x16xf32, #tpu.memory_space<vmem>>, vector<1x16x16x16xf32>
    %89 = vector.shape_cast %88 : vector<1x16x16x16xf32> to vector<16x16x16xf32>
    %90 = vector.shape_cast %87 : vector<16x16x16xf32> to vector<1x16x16x16xf32>
    tpu.vector_store %arg6[%c0_88, %c0_89, %c0_90, %c0_91], %90 {strides = array<i32>} : memref<1x16x16x16xf32, #tpu.memory_space<vmem>>, vector<1x16x16x16xf32>,
    return
  }
  func.func @transform_0(%arg0: i32) -> (i32, i32, i32, i32) {
    %c0_i32 = arith.constant 0 : i32
    %c0_i32_0 = arith.constant 0 : i32
    %c0_i32_1 = arith.constant 0 : i32
    %c0_i32_2 = arith.constant 0 : i32
    return %arg0, %c0_i32, %c0_i32_0, %c0_i32_1 : i32, i32, i32, i32
  }
  func.func @transform_1(%arg0: i32) -> (i32, i32, i32, i32) {
    %c0_i32 = arith.constant 0 : i32
    %c0_i32_0 = arith.constant 0 : i32
    %c0_i32_1 = arith.constant 0 : i32
    %c0_i32_2 = arith.constant 0 : i32
    %c0_i32_3 = arith.constant 0 : i32
    return %c0_i32, %c0_i32_0, %c0_i32_1, %c0_i32_2 : i32, i32, i32, i32
  }
  func.func @transform_2(%arg0: i32) -> (i32, i32) {
    %c0_i32 = arith.constant 0 : i32
    %c0_i32_0 = arith.constant 0 : i32
    %c0_i32_1 = arith.constant 0 : i32
    return %c0_i32, %c0_i32_0 : i32, i32
  }
  func.func @transform_3(%arg0: i32) -> (i32, i32) {
    %c0_i32 = arith.constant 0 : i32
    %c0_i32_0 = arith.constant 0 : i32
    %c0_i32_1 = arith.constant 0 : i32
    return %c0_i32, %c0_i32_0 : i32, i32
  }
  func.func @transform_4(%arg0: i32) -> (i32, i32, i32, i32) {
    %c0_i32 = arith.constant 0 : i32
    %c0_i32_0 = arith.constant 0 : i32
    %c0_i32_1 = arith.constant 0 : i32
    %c0_i32_2 = arith.constant 0 : i32
    return %arg0, %c0_i32, %c0_i32_0, %c0_i32_1 : i32, i32, i32, i32
  }
  func.func @transform_5(%arg0: i32) -> (i32, i32, i32, i32) {
    %c0_i32 = arith.constant 0 : i32
    %c0_i32_0 = arith.constant 0 : i32
    %c0_i32_1 = arith.constant 0 : i32
    %c0_i32_2 = arith.constant 0 : i32
    return %arg0, %c0_i32, %c0_i32_0, %c0_i32_1 : i32, i32, i32, i32
  }
}

</mosaic_0001>

<llo_original>
// kernel: transformer_forward.4
$region0: #{transformer_forward.4}
  #allocation0 [shape = 'u32[]', space=smem, size = 0x4, offset = 0x4, fixed_abs, tag = 'smem constant byte address 0x4 - core index']
  #allocation1 [shape = 'u32[144,128]{1,0:T(1,128)}', space=vmem, size = 0x12000, scoped, tag = 'internal scratch']
  %s0 = inlined_call_operand.vmem [shape: f32[512,16], index: 0, kind: input, shape index: {}]
  %s1 = inlined_call_operand.vmem [shape: f32[512,16], index: 1, kind: input, shape index: {}]
  %s2 = inlined_call_operand.vmem [shape: bf16[16,16], index: 2, kind: input, shape index: {}]
  %s3 = inlined_call_operand.vmem [shape: bf16[16,16], index: 3, kind: input, shape index: {}]
  %s4 = inlined_call_operand.vmem [shape: f32[1,16], index: 4, kind: input, shape index: {}]
  %s5 = inlined_call_operand.vmem [shape: f32[1,16], index: 5, kind: input, shape index: {}]
  %s6 = inlined_call_operand.vmem [shape: bf16[16,32], index: 6, kind: input, shape index: {}]
  %s7 = inlined_call_operand.vmem [shape: bf16[16,16], index: 7, kind: input, shape index: {}]
  %s8 = inlined_call_operand.vmem [shape: f32[512,16], index: 8, kind: output, shape index: {0}]
  %s9 = inlined_call_operand.vmem [shape: f32[512,16], index: 9, kind: output, shape index: {1}]
  %s10 = inlined_call_operand.vmem [shape: f32[512,16], index: 10, kind: output, shape index: {2}]
  %11 = xla_tuple %s8, %s9, %s10
  %s12 = sld [smem:[#allocation0]]
  $region81: #{transformer_forward.4} parent=0
    _
  %s14 = ssub.s32 1, %s12
  %s15 = scalar_select 0, %s14, %s12
  loop: start=0, step=1, limit=10
  $region2: #{transformer_forward.4} parent=0 // loop_pre_header
    _
  $region3: #{transformer_forward.4} parent=0 // loop_header
    %s17 = sphi 0, %s21
    %p18 = scmp.ge.s32.totalorder %s17, 10
    %s27 = sphi 0, %s29
    %s30 = sphi 0, %s27
    %s31 = sphi 0, %s30
    %s47 = sphi 0, %s31
    %s53 = sphi 0, %s55
    %s56 = sphi 0, %s53
    %s57 = sphi 0, %s56
    %s73 = sphi 0, %s57
    %s77 = sphi 0, %s77
    %s79 = sphi 0, %s77
    %s80 = sphi 0, %s79
    %s94 = sphi 0, %s80
    %s98 = sphi 0, %s98
    %s100 = sphi 0, %s98
    %s101 = sphi 0, %s100
    %s115 = sphi 0, %s101
    %s119 = sphi 0, %s119
    %s121 = sphi 0, %s119
    %s122 = sphi 0, %s121
    %s136 = sphi 0, %s122
    %s140 = sphi 0, %s140
    %s142 = sphi 0, %s140
    %s143 = sphi 0, %s142
    %s157 = sphi 0, %s143
    %s161 = sphi 0, %s161
    %s163 = sphi 0, %s161
    %s164 = sphi 0, %s163
    %s178 = sphi 0, %s164
    %s182 = sphi 0, %s182
    %s184 = sphi 0, %s182
    %s185 = sphi 0, %s184
    %s199 = sphi 0, %s185
    %s205 = sphi 0, %s207
    %s208 = sphi 0, %s205
    %s209 = sphi 0, %s208
    %s225 = sphi 0, %s209
    %s231 = sphi 0, %s233
    %s234 = sphi 0, %s231
    %s235 = sphi 0, %s234
    %s251 = sphi 0, %s235
    %s257 = sphi 0, %s259
    %s260 = sphi 0, %s257
    %s261 = sphi 0, %s260
    %s277 = sphi 0, %s261
  $region4: #{transformer_forward.4} parent=0 // loop_header_branch
    %20 = sbr.rel (%p18) target = $region8
  $region5: #{transformer_forward.4} parent=0 // loop_body
    %s22 = ssub.s32 %s17, 1
    %s23 = ssub.s32 %s17, 2
    %s24 = sadd.s32 %s17, 1
    %s25 = ssub.s32 %s17, %s24
    %p26 = scmp.eq.s32.totalorder %s25, 0
    %s28 = sadd.s32 %s27, 1
    %s29 = scalar_select %p26, %s27, %s28
    %p32 = pneg %p26
    %p33 = scmp.eq.s32.totalorder %s17, 7
    %p34 = por %p32, %p33
    %p35 = scmp.ne.s32.totalorder %s27, %s30
    %p36 = scmp.eq.s32.totalorder %s17, 0
    %p37 = por %p35, %p36
    %p38 = scmp.ne.s32.totalorder %s27, %s30
    %p39 = scmp.eq.s32.totalorder %s22, 7
    %p40 = por %p38, %p39
    %p41 = scmp.ne.s32.totalorder %s30, %s31
    %p42 = scmp.eq.s32.totalorder %s22, 0
    %p43 = por %p41, %p42
    %p44 = scmp.ne.s32.totalorder %s30, %s31
    %p45 = scmp.eq.s32.totalorder %s23, 7
    %p46 = por %p44, %p45
    %p48 = scmp.ne.s32.totalorder %s31, %s47
    %p49 = scmp.eq.s32.totalorder %s23, 0
    %p50 = por %p48, %p49
    %s51 = ssub.s32 %s17, %s24
    %p52 = scmp.eq.s32.totalorder %s51, 0
    %s54 = sadd.s32 %s53, 1
    %s55 = scalar_select %p52, %s53, %s54
    %p58 = pneg %p52
    %p59 = scmp.eq.s32.totalorder %s17, 7
    %p60 = por %p58, %p59
    %p61 = scmp.ne.s32.totalorder %s53, %s56
    %p62 = scmp.eq.s32.totalorder %s17, 0
    %p63 = por %p61, %p62
    %p64 = scmp.ne.s32.totalorder %s53, %s56
    %p65 = scmp.eq.s32.totalorder %s22, 7
    %p66 = por %p64, %p65
    %p67 = scmp.ne.s32.totalorder %s56, %s57
    %p68 = scmp.eq.s32.totalorder %s22, 0
    %p69 = por %p67, %p68
    %p70 = scmp.ne.s32.totalorder %s56, %s57
    %p71 = scmp.eq.s32.totalorder %s23, 7
    %p72 = por %p70, %p71
    %p74 = scmp.ne.s32.totalorder %s57, %s73
    %p75 = scmp.eq.s32.totalorder %s23, 0
    %p76 = por %p74, %p75
    %s78 = sadd.s32 %s77, 1
    %p81 = scmp.eq.s32.totalorder %s17, 7
    %p82 = scmp.ne.s32.totalorder %s77, %s79
    %p83 = scmp.eq.s32.totalorder %s17, 0
    %p84 = por %p82, %p83
    %p85 = scmp.ne.s32.totalorder %s77, %s79
    %p86 = scmp.eq.s32.totalorder %s22, 7
    %p87 = por %p85, %p86
    %p88 = scmp.ne.s32.totalorder %s79, %s80
    %p89 = scmp.eq.s32.totalorder %s22, 0
    %p90 = por %p88, %p89
    %p91 = scmp.ne.s32.totalorder %s79, %s80
    %p92 = scmp.eq.s32.totalorder %s23, 7
    %p93 = por %p91, %p92
    %p95 = scmp.ne.s32.totalorder %s80, %s94
    %p96 = scmp.eq.s32.totalorder %s23, 0
    %p97 = por %p95, %p96
    %s99 = sadd.s32 %s98, 1
    %p102 = scmp.eq.s32.totalorder %s17, 7
    %p103 = scmp.ne.s32.totalorder %s98, %s100
    %p104 = scmp.eq.s32.totalorder %s17, 0
    %p105 = por %p103, %p104
    %p106 = scmp.ne.s32.totalorder %s98, %s100
    %p107 = scmp.eq.s32.totalorder %s22, 7
    %p108 = por %p106, %p107
    %p109 = scmp.ne.s32.totalorder %s100, %s101
    %p110 = scmp.eq.s32.totalorder %s22, 0
    %p111 = por %p109, %p110
    %p112 = scmp.ne.s32.totalorder %s100, %s101
    %p113 = scmp.eq.s32.totalorder %s23, 7
    %p114 = por %p112, %p113
    %p116 = scmp.ne.s32.totalorder %s101, %s115
    %p117 = scmp.eq.s32.totalorder %s23, 0
    %p118 = por %p116, %p117
    %s120 = sadd.s32 %s119, 1
    %p123 = scmp.eq.s32.totalorder %s17, 7
    %p124 = scmp.ne.s32.totalorder %s119, %s121
    %p125 = scmp.eq.s32.totalorder %s17, 0
    %p126 = por %p124, %p125
    %p127 = scmp.ne.s32.totalorder %s119, %s121
    %p128 = scmp.eq.s32.totalorder %s22, 7
    %p129 = por %p127, %p128
    %p130 = scmp.ne.s32.totalorder %s121, %s122
    %p131 = scmp.eq.s32.totalorder %s22, 0
    %p132 = por %p130, %p131
    %p133 = scmp.ne.s32.totalorder %s121, %s122
    %p134 = scmp.eq.s32.totalorder %s23, 7
    %p135 = por %p133, %p134
    %p137 = scmp.ne.s32.totalorder %s122, %s136
    %p138 = scmp.eq.s32.totalorder %s23, 0
    %p139 = por %p137, %p138
    %s141 = sadd.s32 %s140, 1
    %p144 = scmp.eq.s32.totalorder %s17, 7
    %p145 = scmp.ne.s32.totalorder %s140, %s142
    %p146 = scmp.eq.s32.totalorder %s17, 0
    %p147 = por %p145, %p146
    %p148 = scmp.ne.s32.totalorder %s140, %s142
    %p149 = scmp.eq.s32.totalorder %s22, 7
    %p150 = por %p148, %p149
    %p151 = scmp.ne.s32.totalorder %s142, %s143
    %p152 = scmp.eq.s32.totalorder %s22, 0
    %p153 = por %p151, %p152
    %p154 = scmp.ne.s32.totalorder %s142, %s143
    %p155 = scmp.eq.s32.totalorder %s23, 7
    %p156 = por %p154, %p155
    %p158 = scmp.ne.s32.totalorder %s143, %s157
    %p159 = scmp.eq.s32.totalorder %s23, 0
    %p160 = por %p158, %p159
    %s162 = sadd.s32 %s161, 1
    %p165 = scmp.eq.s32.totalorder %s17, 7
    %p166 = scmp.ne.s32.totalorder %s161, %s163
    %p167 = scmp.eq.s32.totalorder %s17, 0
    %p168 = por %p166, %p167
    %p169 = scmp.ne.s32.totalorder %s161, %s163
    %p170 = scmp.eq.s32.totalorder %s22, 7
    %p171 = por %p169, %p170
    %p172 = scmp.ne.s32.totalorder %s163, %s164
    %p173 = scmp.eq.s32.totalorder %s22, 0
    %p174 = por %p172, %p173
    %p175 = scmp.ne.s32.totalorder %s163, %s164
    %p176 = scmp.eq.s32.totalorder %s23, 7
    %p177 = por %p175, %p176
    %p179 = scmp.ne.s32.totalorder %s164, %s178
    %p180 = scmp.eq.s32.totalorder %s23, 0
    %p181 = por %p179, %p180
    %s183 = sadd.s32 %s182, 1
    %p186 = scmp.eq.s32.totalorder %s17, 7
    %p187 = scmp.ne.s32.totalorder %s182, %s184
    %p188 = scmp.eq.s32.totalorder %s17, 0
    %p189 = por %p187, %p188
    %p190 = scmp.ne.s32.totalorder %s182, %s184
    %p191 = scmp.eq.s32.totalorder %s22, 7
    %p192 = por %p190, %p191
    %p193 = scmp.ne.s32.totalorder %s184, %s185
    %p194 = scmp.eq.s32.totalorder %s22, 0
    %p195 = por %p193, %p194
    %p196 = scmp.ne.s32.totalorder %s184, %s185
    %p197 = scmp.eq.s32.totalorder %s23, 7
    %p198 = por %p196, %p197
    %p200 = scmp.ne.s32.totalorder %s185, %s199
    %p201 = scmp.eq.s32.totalorder %s23, 0
    %p202 = por %p200, %p201
    %s203 = ssub.s32 %s17, %s24
    %p204 = scmp.eq.s32.totalorder %s203, 0
    %s206 = sadd.s32 %s205, 1
    %s207 = scalar_select %p204, %s205, %s206
    %p210 = pneg %p204
    %p211 = scmp.eq.s32.totalorder %s17, 7
    %p212 = por %p210, %p211
    %p213 = scmp.ne.s32.totalorder %s205, %s208
    %p214 = scmp.eq.s32.totalorder %s17, 0
    %p215 = por %p213, %p214
    %p216 = scmp.ne.s32.totalorder %s205, %s208
    %p217 = scmp.eq.s32.totalorder %s22, 7
    %p218 = por %p216, %p217
    %p219 = scmp.ne.s32.totalorder %s208, %s209
    %p220 = scmp.eq.s32.totalorder %s22, 0
    %p221 = por %p219, %p220
    %p222 = scmp.ne.s32.totalorder %s208, %s209
    %p223 = scmp.eq.s32.totalorder %s23, 7
    %p224 = por %p222, %p223
    %p226 = scmp.ne.s32.totalorder %s209, %s225
    %p227 = scmp.eq.s32.totalorder %s23, 0
    %p228 = por %p226, %p227
    %s229 = ssub.s32 %s17, %s24
    %p230 = scmp.eq.s32.totalorder %s229, 0
    %s232 = sadd.s32 %s231, 1
    %s233 = scalar_select %p230, %s231, %s232
    %p236 = pneg %p230
    %p237 = scmp.eq.s32.totalorder %s17, 7
    %p238 = por %p236, %p237
    %p239 = scmp.ne.s32.totalorder %s231, %s234
    %p240 = scmp.eq.s32.totalorder %s17, 0
    %p241 = por %p239, %p240
    %p242 = scmp.ne.s32.totalorder %s231, %s234
    %p243 = scmp.eq.s32.totalorder %s22, 7
    %p244 = por %p242, %p243
    %p245 = scmp.ne.s32.totalorder %s234, %s235
    %p246 = scmp.eq.s32.totalorder %s22, 0
    %p247 = por %p245, %p246
    %p248 = scmp.ne.s32.totalorder %s234, %s235
    %p249 = scmp.eq.s32.totalorder %s23, 7
    %p250 = por %p248, %p249
    %p252 = scmp.ne.s32.totalorder %s235, %s251
    %p253 = scmp.eq.s32.totalorder %s23, 0
    %p254 = por %p252, %p253
    %s255 = ssub.s32 %s17, %s24
    %p256 = scmp.eq.s32.totalorder %s255, 0
    %s258 = sadd.s32 %s257, 1
    %s259 = scalar_select %p256, %s257, %s258
    %p262 = pneg %p256
    %p263 = scmp.eq.s32.totalorder %s17, 7
    %p264 = por %p262, %p263
    %p265 = scmp.ne.s32.totalorder %s257, %s260
    %p266 = scmp.eq.s32.totalorder %s17, 0
    %p267 = por %p265, %p266
    %p268 = scmp.ne.s32.totalorder %s257, %s260
    %p269 = scmp.eq.s32.totalorder %s22, 7
    %p270 = por %p268, %p269
    %p271 = scmp.ne.s32.totalorder %s260, %s261
    %p272 = scmp.eq.s32.totalorder %s22, 0
    %p273 = por %p271, %p272
    %p274 = scmp.ne.s32.totalorder %s260, %s261
    %p275 = scmp.eq.s32.totalorder %s23, 7
    %p276 = por %p274, %p275
    %p278 = scmp.ne.s32.totalorder %s261, %s277
    %p279 = scmp.eq.s32.totalorder %s23, 0
    %p280 = por %p278, %p279
    %p281 = scmp.le.s32.totalorder 1, %s17
    %p282 = scmp.lt.s32.totalorder %s17, 9
    %p283 = pnand %p281, %p282
    %p284 = pneg %p283
    // Predicated region
    $region9: #{transformer_forward.4} parent=5 // pred_check
      _
    $region10: #{transformer_forward.4} parent=5 // pred_check_branch
      %286 = sbr.rel (%p283) target = $region12
    $region11: #{transformer_forward.4} parent=5 // pred_region
      %s287 = ssub.s32 %s17, 1
      // Predicated region
      $region13: #{transformer_forward.4} parent=11 // pred_check
        %p288 = pneg %p90
      $region14: #{transformer_forward.4} parent=11 // pred_check_branch
        %290 = sbr.rel (%p288) target = $region16
      $region15: #{transformer_forward.4} parent=11 // pred_region
        _
      $region16: #{transformer_forward.4} parent=11 // pred_fallthru
        _
      // Predicated region
      $region17: #{transformer_forward.4} parent=11 // pred_check
        %p291 = pneg %p111
      $region18: #{transformer_forward.4} parent=11 // pred_check_branch
        %293 = sbr.rel (%p291) target = $region20
      $region19: #{transformer_forward.4} parent=11 // pred_region
        _
      $region20: #{transformer_forward.4} parent=11 // pred_fallthru
        _
      // Predicated region
      $region21: #{transformer_forward.4} parent=11 // pred_check
        %p294 = pneg %p132
      $region22: #{transformer_forward.4} parent=11 // pred_check_branch
        %296 = sbr.rel (%p294) target = $region24
      $region23: #{transformer_forward.4} parent=11 // pred_region
        _
      $region24: #{transformer_forward.4} parent=11 // pred_fallthru
        _
      // Predicated region
      $region25: #{transformer_forward.4} parent=11 // pred_check
        %p297 = pneg %p153
      $region26: #{transformer_forward.4} parent=11 // pred_check_branch
        %299 = sbr.rel (%p297) target = $region28
      $region27: #{transformer_forward.4} parent=11 // pred_region
        _
      $region28: #{transformer_forward.4} parent=11 // pred_fallthru
        _
      // Predicated region
      $region29: #{transformer_forward.4} parent=11 // pred_check
        %p300 = pneg %p174
      $region30: #{transformer_forward.4} parent=11 // pred_check_branch
        %302 = sbr.rel (%p300) target = $region32
      $region31: #{transformer_forward.4} parent=11 // pred_region
        _
      $region32: #{transformer_forward.4} parent=11 // pred_fallthru
        _
      // Predicated region
      $region33: #{transformer_forward.4} parent=11 // pred_check
        %p303 = pneg %p195
      $region34: #{transformer_forward.4} parent=11 // pred_check_branch
        %305 = sbr.rel (%p303) target = $region36
      $region35: #{transformer_forward.4} parent=11 // pred_region
        _
      $region36: #{transformer_forward.4} parent=11 // pred_fallthru
        _
    $region12: #{transformer_forward.4} parent=5 // pred_fallthru
      _
    %p306 = scmp.lt.s32.totalorder %s17, 8
    // Predicated region
    $region37: #{transformer_forward.4} parent=5 // pred_check
      %p307 = pneg %p306
    $region38: #{transformer_forward.4} parent=5 // pred_check_branch
      %309 = sbr.rel (%p307) target = $region40
    $region39: #{transformer_forward.4} parent=5 // pred_region
      // Predicated region
      $region41: #{transformer_forward.4} parent=39 // pred_check
        %p310 = pneg %p37
      $region42: #{transformer_forward.4} parent=39 // pred_check_branch
        %312 = sbr.rel (%p310) target = $region44
      $region43: #{transformer_forward.4} parent=39 // pred_region
        %s313 = smul.u32 8, %s17
        %p314 = scmp.lt.s32.totalorder %s313, 63
        %s315 = scalar_select %p314, %s313, 63
        %s316 = smul.addr %s315, 8
        %s317 = scalar_lea.vmem %s0, %s316
        %s318 = smul.u32 8, %s17
      $region44: #{transformer_forward.4} parent=39 // pred_fallthru
        _
      // Predicated region
      $region45: #{transformer_forward.4} parent=39 // pred_check
        %p319 = pneg %p63
      $region46: #{transformer_forward.4} parent=39 // pred_check_branch
        %321 = sbr.rel (%p319) target = $region48
      $region47: #{transformer_forward.4} parent=39 // pred_region
        %s322 = smul.u32 8, %s17
        %p323 = scmp.lt.s32.totalorder %s322, 63
        %s324 = scalar_select %p323, %s322, 63
        %s325 = smul.addr %s324, 8
        %s326 = scalar_lea.vmem %s1, %s325
        %s327 = smul.u32 8, %s17
      $region48: #{transformer_forward.4} parent=39 // pred_fallthru
        _
    $region40: #{transformer_forward.4} parent=5 // pred_fallthru
      _
    %p328 = scmp.le.s32.totalorder 1, %s17
    %p329 = scmp.lt.s32.totalorder %s17, 9
    %p330 = pnand %p328, %p329
    %p331 = pneg %p330
    // Predicated region
    $region49: #{transformer_forward.4} parent=5 // pred_check
      _
    $region50: #{transformer_forward.4} parent=5 // pred_check_branch
      %333 = sbr.rel (%p330) target = $region52
    $region51: #{transformer_forward.4} parent=5 // pred_region
      %s334 = ssub.s32 %s17, 1
      %s335 = smul.u32 8, %s22
      %p336 = scmp.lt.s32.totalorder %s335, 63
      %s337 = scalar_select %p336, %s335, 63
      %s338 = smul.addr %s337, 8
      %s339 = scalar_lea.vmem %s0, %s338
      %p340 = pneg %p43
      %p341 = pneg %p40
      %s342 = smul.u32 8, %s22
      %p343 = scmp.lt.s32.totalorder %s342, 63
      %s344 = scalar_select %p343, %s342, 63
      %s345 = smul.addr %s344, 8
      %s346 = scalar_lea.vmem %s1, %s345
      %p347 = pneg %p69
      %p348 = pneg %p66
      %p349 = pneg %p90
      %p350 = pneg %p87
      %p351 = pneg %p111
      %p352 = pneg %p108
      %p353 = pneg %p132
      %p354 = pneg %p129
      %p355 = pneg %p153
      %p356 = pneg %p150
      %p357 = pneg %p174
      %p358 = pneg %p171
      %p359 = pneg %p195
      %p360 = pneg %p192
      %p361 = pneg %p221
      %p362 = pneg %p218
      %s363 = smul.u32 8, %s22
      %p364 = scmp.lt.s32.totalorder %s363, 63
      %s365 = scalar_select %p364, %s363, 63
      %s366 = smul.addr %s365, 8
      %s367 = scalar_lea.vmem %s8, %s366
      %p368 = pneg %p247
      %p369 = pneg %p244
      %s370 = smul.u32 8, %s22
      %p371 = scmp.lt.s32.totalorder %s370, 63
      %s372 = scalar_select %p371, %s370, 63
      %s373 = smul.addr %s372, 8
      %s374 = scalar_lea.vmem %s9, %s373
      %p375 = pneg %p273
      %p376 = pneg %p270
      %s377 = smul.u32 8, %s22
      %p378 = scmp.lt.s32.totalorder %s377, 63
      %s379 = scalar_select %p378, %s377, 63
      %s380 = smul.addr %s379, 8
      %s381 = scalar_lea.vmem %s10, %s380
      %s382 = smul.u32 8, %s22
      %p383 = scmp.lt.s32.totalorder %s382, 63
      %s384 = scalar_select %p383, %s382, 63
      %s385 = smul.addr %s384, 8
      %s386 = scalar_lea.vmem %s0, %s385
      %s387 = smul.u32 8, %s22
      %s388 = smul.u32 8, %s22
      %p389 = scmp.lt.s32.totalorder %s388, 63
      %s390 = scalar_select %p389, %s388, 63
      %s391 = smul.addr %s390, 8
      %s392 = scalar_lea.vmem %s1, %s391
      %s393 = smul.u32 8, %s22
      %s394 = smul.u32 8, %s22
      %p395 = scmp.lt.s32.totalorder %s394, 63
      %s396 = scalar_select %p395, %s394, 63
      %s397 = smul.addr %s396, 8
      %s398 = scalar_lea.vmem %s8, %s397
      %s399 = smul.u32 8, %s22
      %s400 = smul.u32 8, %s22
      %p401 = scmp.lt.s32.totalorder %s400, 63
      %s402 = scalar_select %p401, %s400, 63
      %s403 = smul.addr %s402, 8
      %s404 = scalar_lea.vmem %s9, %s403
      %s405 = smul.u32 8, %s22
      %s406 = smul.u32 8, %s22
      %p407 = scmp.lt.s32.totalorder %s406, 63
      %s408 = scalar_select %p407, %s406, 63
      %s409 = smul.addr %s408, 8
      %s410 = scalar_lea.vmem %s10, %s409
      %s411 = smul.u32 8, %s22
      %v413 = vld [vmem:[%s386] sm:$0xff]
      %v414 = vld [vmem:[%s386 + $0x8] sm:$0xff]
      %v415 = vld [vmem:[%s386 + $0x10] sm:$0xff]
      %v416 = vld [vmem:[%s386 + $0x18] sm:$0xff]
      %v417 = vld [vmem:[%s386 + $0x20] sm:$0xff]
      %v418 = vld [vmem:[%s386 + $0x28] sm:$0xff]
      %v419 = vld [vmem:[%s386 + $0x30] sm:$0xff]
      %v420 = vld [vmem:[%s386 + $0x38] sm:$0xff]
      %v421 = vpack.c.bf16 %v414, %v413
      %v422 = vpack.c.bf16 %v416, %v415
      %v423 = vpack.c.bf16 %v418, %v417
      %v424 = vpack.c.bf16 %v420, %v419
      %v425 = vld [vmem:[%s392] sm:$0xff]
      %v426 = vld [vmem:[%s392 + $0x8] sm:$0xff]
      %v427 = vld [vmem:[%s392 + $0x10] sm:$0xff]
      %v428 = vld [vmem:[%s392 + $0x18] sm:$0xff]
      %v429 = vld [vmem:[%s392 + $0x20] sm:$0xff]
      %v430 = vld [vmem:[%s392 + $0x28] sm:$0xff]
      %v431 = vld [vmem:[%s392 + $0x30] sm:$0xff]
      %v432 = vld [vmem:[%s392 + $0x38] sm:$0xff]
      %v433 = vpack.c.bf16 %v426, %v425
      %v434 = vpack.c.bf16 %v428, %v427
      %v435 = vpack.c.bf16 %v430, %v429
      %v436 = vpack.c.bf16 %v432, %v431
      %v437 = vld [vmem:[%s2] sm:$0xf]
      %v438 = vld [vmem:[%s2 + $0x4] sm:$0xf]
      %v439 = vld [vmem:[%s3] sm:$0xf]
      %v440 = vld [vmem:[%s3 + $0x4] sm:$0xf]
      %v443 = vunpack.c.l.b16 %v439
      %v444 = vunpack.c.l.b16 %v440
      %v445 = vpack.c.b16 %v444, %v443
      %vm447 = vcmask 130048
      %v449 = vsel %vm447, %v433, 0
      %v452 = vsel %vm447, %v434, 0
      %v455 = vsel %vm447, %v435, 0
      %v458 = vsel %vm447, %v436, 0
      %460 = vmatprep.subr.bf16.mxu0 0
      %461 = vmatpush1.bf16.msra.mxu0 %v445
      %462 = vmatprep.subr.bf16.mxu0 0
      %463 = vmatpush1.bf16.msra.mxu0 0
      %464 = vmatprep.subr.bf16.mxu0 0
      %465 = vmatpush1.bf16.msra.mxu0 0
      %466 = vmatprep.subr.bf16.mxu0 0
      %467 = vmatpush1.bf16.msra.mxu0 0
      %468 = vmatprep.subr.bf16.mxu0 0
      %469 = vmatpush1.bf16.msra.mxu0 0
      %470 = vmatprep.subr.bf16.mxu0 0
      %471 = vmatpush1.bf16.msra.mxu0 0
      %472 = vmatprep.subr.bf16.mxu0 0
      %473 = vmatpush1.bf16.msra.mxu0 0
      %474 = vmatprep.subr.bf16.mxu0 0
      %475 = vmatpush1.bf16.msra.mxu0 0
      %476 = vmatprep.subr.bf16.mxu0 0
      %477 = vmatpush1.bf16.msra.mxu0 0
      %478 = vmatprep.subr.bf16.mxu0 0
      %479 = vmatpush1.bf16.msra.mxu0 0
      %480 = vmatprep.subr.bf16.mxu0 0
      %481 = vmatpush1.bf16.msra.mxu0 0
      %482 = vmatprep.subr.bf16.mxu0 0
      %483 = vmatpush1.bf16.msra.mxu0 0
      %484 = vmatprep.subr.bf16.mxu0 0
      %485 = vmatpush1.bf16.msra.mxu0 0
      %486 = vmatprep.subr.bf16.mxu0 0
      %487 = vmatpush1.bf16.msra.mxu0 0
      %488 = vmatprep.subr.bf16.mxu0 0
      %489 = vmatpush1.bf16.msra.mxu0 0
      %490 = vmatprep.subr.bf16.mxu0 0
      %491 = vmatpush1.bf16.msra.mxu0 0
      %492 = vmatprep.mubr.bf16.mxu0 0
      %493 = vmatmul.mubr.bf16.gmra.mrb[0].mxu0 %v449
      %v494 = vpop.f32.mrb[0].mxu0
      %v495 = vadd.f32 0.0, %v494
      %v496 = vpop.f32.mrb[0].mxu0
      %v497 = vpop.f32.mrb[0].mxu0
      %v498 = vadd.f32 0.0, %v497
      %v499 = vpop.f32.mrb[0].mxu0
      %500 = vmatprep.mubr.bf16.mxu0 0
      %501 = vmatmul.mubr.bf16.gmra.mrb[0].mxu0 %v452
      %v502 = vpop.f32.mrb[0].mxu0
      %v503 = vadd.f32 0.0, %v502
      %v504 = vpop.f32.mrb[0].mxu0
      %v505 = vpop.f32.mrb[0].mxu0
      %v506 = vadd.f32 0.0, %v505
      %v507 = vpop.f32.mrb[0].mxu0
      %508 = vmatprep.mubr.bf16.mxu0 0
      %509 = vmatmul.mubr.bf16.gmra.mrb[0].mxu0 %v455
      %v510 = vpop.f32.mrb[0].mxu0
      %v511 = vadd.f32 0.0, %v510
      %v512 = vpop.f32.mrb[0].mxu0
      %v513 = vpop.f32.mrb[0].mxu0
      %v514 = vadd.f32 0.0, %v513
      %v515 = vpop.f32.mrb[0].mxu0
      %516 = vmatprep.mubr.bf16.mxu0 0
      %517 = vmatmul.mubr.bf16.gmra.mrb[0].mxu0 %v458
      %v518 = vpop.f32.mrb[0].mxu0
      %v519 = vadd.f32 0.0, %v518
      %v520 = vpop.f32.mrb[0].mxu0
      %v521 = vpop.f32.mrb[0].mxu0
      %v522 = vadd.f32 0.0, %v521
      %v523 = vpop.f32.mrb[0].mxu0
      %524 = vdwg.mxu0
      %v527 = vunpack.c.l.b16 %v437
      %v528 = vunpack.c.l.b16 %v438
      %v529 = vpack.c.b16 %v528, %v527
      %v532 = vsel %vm447, %v421, 0
      %v535 = vsel %vm447, %v422, 0
      %v538 = vsel %vm447, %v423, 0
      %v541 = vsel %vm447, %v424, 0
      %543 = vmatprep.subr.bf16.mxu0 0
      %544 = vmatpush1.bf16.msra.mxu0 %v529
      %545 = vmatprep.subr.bf16.mxu0 0
      %546 = vmatpush1.bf16.msra.mxu0 0
      %547 = vmatprep.subr.bf16.mxu0 0
      %548 = vmatpush1.bf16.msra.mxu0 0
      %549 = vmatprep.subr.bf16.mxu0 0
      %550 = vmatpush1.bf16.msra.mxu0 0
      %551 = vmatprep.subr.bf16.mxu0 0
      %552 = vmatpush1.bf16.msra.mxu0 0
      %553 = vmatprep.subr.bf16.mxu0 0
      %554 = vmatpush1.bf16.msra.mxu0 0
      %555 = vmatprep.subr.bf16.mxu0 0
      %556 = vmatpush1.bf16.msra.mxu0 0
      %557 = vmatprep.subr.bf16.mxu0 0
      %558 = vmatpush1.bf16.msra.mxu0 0
      %559 = vmatprep.subr.bf16.mxu0 0
      %560 = vmatpush1.bf16.msra.mxu0 0
      %561 = vmatprep.subr.bf16.mxu0 0
      %562 = vmatpush1.bf16.msra.mxu0 0
      %563 = vmatprep.subr.bf16.mxu0 0
      %564 = vmatpush1.bf16.msra.mxu0 0
      %565 = vmatprep.subr.bf16.mxu0 0
      %566 = vmatpush1.bf16.msra.mxu0 0
      %567 = vmatprep.subr.bf16.mxu0 0
      %568 = vmatpush1.bf16.msra.mxu0 0
      %569 = vmatprep.subr.bf16.mxu0 0
      %570 = vmatpush1.bf16.msra.mxu0 0
      %571 = vmatprep.subr.bf16.mxu0 0
      %572 = vmatpush1.bf16.msra.mxu0 0
      %573 = vmatprep.subr.bf16.mxu0 0
      %574 = vmatpush1.bf16.msra.mxu0 0
      %575 = vmatprep.mubr.bf16.mxu0 0
      %576 = vmatmul.mubr.bf16.gmra.mrb[0].mxu0 %v532
      %v577 = vpop.f32.mrb[0].mxu0
      %v578 = vadd.f32 %v495, %v577
      %v579 = vpop.f32.mrb[0].mxu0
      %v580 = vpop.f32.mrb[0].mxu0
      %v581 = vadd.f32 %v498, %v580
      %v582 = vpop.f32.mrb[0].mxu0
      %583 = vmatprep.mubr.bf16.mxu0 0
      %584 = vmatmul.mubr.bf16.gmra.mrb[0].mxu0 %v535
      %v585 = vpop.f32.mrb[0].mxu0
      %v586 = vadd.f32 %v503, %v585
      %v587 = vpop.f32.mrb[0].mxu0
      %v588 = vpop.f32.mrb[0].mxu0
      %v589 = vadd.f32 %v506, %v588
      %v590 = vpop.f32.mrb[0].mxu0
      %591 = vmatprep.mubr.bf16.mxu0 0
      %592 = vmatmul.mubr.bf16.gmra.mrb[0].mxu0 %v538
      %v593 = vpop.f32.mrb[0].mxu0
      %v594 = vadd.f32 %v511, %v593
      %v595 = vpop.f32.mrb[0].mxu0
      %v596 = vpop.f32.mrb[0].mxu0
      %v597 = vadd.f32 %v514, %v596
      %v598 = vpop.f32.mrb[0].mxu0
      %599 = vmatprep.mubr.bf16.mxu0 0
      %600 = vmatmul.mubr.bf16.gmra.mrb[0].mxu0 %v541
      %v601 = vpop.f32.mrb[0].mxu0
      %v602 = vadd.f32 %v519, %v601
      %v603 = vpop.f32.mrb[0].mxu0
      %v604 = vpop.f32.mrb[0].mxu0
      %v605 = vadd.f32 %v522, %v604
      %v606 = vpop.f32.mrb[0].mxu0
      %607 = vdwg.mxu0
      %v608 = vld [vmem:[%s4] sm:$0x1]
      %v610 = vlaneseq
      %v611 = vshrl.u32 %v610, 7
      %v612 = vsub.s32 0, %v611
      %v613 = vrot.slane %v608, %v612
      %v615 = vmul.f32 %v578, %v613
      %v616 = vmul.f32 %v581, %v613
      %v617 = vmul.f32 %v586, %v613
      %v618 = vmul.f32 %v589, %v613
      %v619 = vmul.f32 %v594, %v613
      %v620 = vmul.f32 %v597, %v613
      %v621 = vmul.f32 %v602, %v613
      %v622 = vmul.f32 %v605, %v613
      %v623 = vld [vmem:[%s5] sm:$0x1]
      %v625 = vlaneseq
      %v626 = vshrl.u32 %v625, 7
      %v627 = vsub.s32 0, %v626
      %v628 = vrot.slane %v623, %v627
      %v630 = vadd.f32 %v615, %v628
      %v631 = vadd.f32 %v616, %v628
      %v632 = vadd.f32 %v617, %v628
      %v633 = vadd.f32 %v618, %v628
      %v634 = vadd.f32 %v619, %v628
      %v635 = vadd.f32 %v620, %v628
      %v636 = vadd.f32 %v621, %v628
      %v637 = vadd.f32 %v622, %v628
      %vm638 = vcmp.ge.f32.partialorder %v630, 0.0
      %vm639 = vcmp.ge.f32.partialorder %v631, 0.0
      %vm640 = vcmp.ge.f32.partialorder %v632, 0.0
      %vm641 = vcmp.ge.f32.partialorder %v633, 0.0
      %vm642 = vcmp.ge.f32.partialorder %v634, 0.0
      %vm643 = vcmp.ge.f32.partialorder %v635, 0.0
      %vm644 = vcmp.ge.f32.partialorder %v636, 0.0
      %vm645 = vcmp.ge.f32.partialorder %v637, 0.0
      %v646 = vmul.f32 %v630, 0.2
      %v647 = vmul.f32 %v631, 0.2
      %v648 = vmul.f32 %v632, 0.2
      %v649 = vmul.f32 %v633, 0.2
      %v650 = vmul.f32 %v634, 0.2
      %v651 = vmul.f32 %v635, 0.2
      %v652 = vmul.f32 %v636, 0.2
      %v653 = vmul.f32 %v637, 0.2
      %v654 = vsel %vm638, %v630, %v646
      %v655 = vsel %vm639, %v631, %v647
      %v656 = vsel %vm640, %v632, %v648
      %v657 = vsel %vm641, %v633, %v649
      %v658 = vsel %vm642, %v634, %v650
      %v659 = vsel %vm643, %v635, %v651
      %v660 = vsel %vm644, %v636, %v652
      %v661 = vsel %vm645, %v637, %v653
      %v662 = vpack.c.bf16 %v655, %v654
      %v663 = vpack.c.bf16 %v657, %v656
      %v664 = vpack.c.bf16 %v659, %v658
      %v665 = vpack.c.bf16 %v661, %v660
      %v666 = vld [vmem:[%s6] sm:$0xf]
      %v667 = vld [vmem:[%s6 + $0x4] sm:$0xf]
      %v670 = vunpack.c.l.b16 %v666
      %v671 = vunpack.c.l.b16 %v667
      %v672 = vpack.c.b16 %v671, %v670
      %v675 = vsel %vm447, %v662, 0
      %v678 = vsel %vm447, %v663, 0
      %v681 = vsel %vm447, %v664, 0
      %v684 = vsel %vm447, %v665, 0
      %686 = vmatprep.subr.bf16.mxu0 0
      %687 = vmatpush1.bf16.msra.mxu0 %v672
      %688 = vmatprep.subr.bf16.mxu0 0
      %689 = vmatpush1.bf16.msra.mxu0 0
      %690 = vmatprep.subr.bf16.mxu0 0
      %691 = vmatpush1.bf16.msra.mxu0 0
      %692 = vmatprep.subr.bf16.mxu0 0
      %693 = vmatpush1.bf16.msra.mxu0 0
      %694 = vmatprep.subr.bf16.mxu0 0
      %695 = vmatpush1.bf16.msra.mxu0 0
      %696 = vmatprep.subr.bf16.mxu0 0
      %697 = vmatpush1.bf16.msra.mxu0 0
      %698 = vmatprep.subr.bf16.mxu0 0
      %699 = vmatpush1.bf16.msra.mxu0 0
      %700 = vmatprep.subr.bf16.mxu0 0
      %701 = vmatpush1.bf16.msra.mxu0 0
      %702 = vmatprep.subr.bf16.mxu0 0
      %703 = vmatpush1.bf16.msra.mxu0 0
      %704 = vmatprep.subr.bf16.mxu0 0
      %705 = vmatpush1.bf16.msra.mxu0 0
      %706 = vmatprep.subr.bf16.mxu0 0
      %707 = vmatpush1.bf16.msra.mxu0 0
      %708 = vmatprep.subr.bf16.mxu0 0
      %709 = vmatpush1.bf16.msra.mxu0 0
      %710 = vmatprep.subr.bf16.mxu0 0
      %711 = vmatpush1.bf16.msra.mxu0 0
      %712 = vmatprep.subr.bf16.mxu0 0
      %713 = vmatpush1.bf16.msra.mxu0 0
      %714 = vmatprep.subr.bf16.mxu0 0
      %715 = vmatpush1.bf16.msra.mxu0 0
      %716 = vmatprep.subr.bf16.mxu0 0
      %717 = vmatpush1.bf16.msra.mxu0 0
      %718 = vmatprep.mubr.bf16.mxu0 0
      %719 = vmatmul.mubr.bf16.gmra.mrb[0].mxu0 %v675
      %v720 = vpop.f32.mrb[0].mxu0
      %v721 = vadd.f32 0.0, %v720
      %v722 = vpop.f32.mrb[0].mxu0
      %v723 = vpop.f32.mrb[0].mxu0
      %v724 = vadd.f32 0.0, %v723
      %v725 = vpop.f32.mrb[0].mxu0
      %726 = vmatprep.mubr.bf16.mxu0 0
      %727 = vmatmul.mubr.bf16.gmra.mrb[0].mxu0 %v678
      %v728 = vpop.f32.mrb[0].mxu0
      %v729 = vadd.f32 0.0, %v728
      %v730 = vpop.f32.mrb[0].mxu0
      %v731 = vpop.f32.mrb[0].mxu0
      %v732 = vadd.f32 0.0, %v731
      %v733 = vpop.f32.mrb[0].mxu0
      %734 = vmatprep.mubr.bf16.mxu0 0
      %735 = vmatmul.mubr.bf16.gmra.mrb[0].mxu0 %v681
      %v736 = vpop.f32.mrb[0].mxu0
      %v737 = vadd.f32 0.0, %v736
      %v738 = vpop.f32.mrb[0].mxu0
      %v739 = vpop.f32.mrb[0].mxu0
      %v740 = vadd.f32 0.0, %v739
      %v741 = vpop.f32.mrb[0].mxu0
      %742 = vmatprep.mubr.bf16.mxu0 0
      %743 = vmatmul.mubr.bf16.gmra.mrb[0].mxu0 %v684
      %v744 = vpop.f32.mrb[0].mxu0
      %v745 = vadd.f32 0.0, %v744
      %v746 = vpop.f32.mrb[0].mxu0
      %v747 = vpop.f32.mrb[0].mxu0
      %v748 = vadd.f32 0.0, %v747
      %v749 = vpop.f32.mrb[0].mxu0
      %750 = vdwg.mxu0
      %751 = vst.msk [vmem:[%s398] sm:$0xff] %vm447, %v721
      %752 = vst.msk [vmem:[%s398 + $0x8] sm:$0xff] %vm447, %v724
      %753 = vst.msk [vmem:[%s398 + $0x10] sm:$0xff] %vm447, %v729
      %754 = vst.msk [vmem:[%s398 + $0x18] sm:$0xff] %vm447, %v732
      %755 = vst.msk [vmem:[%s398 + $0x20] sm:$0xff] %vm447, %v737
      %756 = vst.msk [vmem:[%s398 + $0x28] sm:$0xff] %vm447, %v740
      %757 = vst.msk [vmem:[%s398 + $0x30] sm:$0xff] %vm447, %v745
      %758 = vst.msk [vmem:[%s398 + $0x38] sm:$0xff] %vm447, %v748
      %767 = vrot.lane.b32.xlu0 %v721, 112
      %v768 = vpop.permute.xlu0 %767
      %769 = vrot.lane.b32.xlu0 %v724, 112
      %v770 = vpop.permute.xlu0 %769
      %771 = vrot.lane.b32.xlu0 %v729, 112
      %v772 = vpop.permute.xlu0 %771
      %773 = vrot.lane.b32.xlu0 %v732, 112
      %v774 = vpop.permute.xlu0 %773
      %775 = vrot.lane.b32.xlu0 %v737, 112
      %v776 = vpop.permute.xlu0 %775
      %777 = vrot.lane.b32.xlu0 %v740, 112
      %v778 = vpop.permute.xlu0 %777
      %779 = vrot.lane.b32.xlu0 %v745, 112
      %v780 = vpop.permute.xlu0 %779
      %781 = vrot.lane.b32.xlu0 %v748, 112
      %v782 = vpop.permute.xlu0 %781
      %791 = vst.msk [vmem:[%s404] sm:$0xff] %vm447, %v768
      %792 = vst.msk [vmem:[%s404 + $0x8] sm:$0xff] %vm447, %v770
      %793 = vst.msk [vmem:[%s404 + $0x10] sm:$0xff] %vm447, %v772
      %794 = vst.msk [vmem:[%s404 + $0x18] sm:$0xff] %vm447, %v774
      %795 = vst.msk [vmem:[%s404 + $0x20] sm:$0xff] %vm447, %v776
      %796 = vst.msk [vmem:[%s404 + $0x28] sm:$0xff] %vm447, %v778
      %797 = vst.msk [vmem:[%s404 + $0x30] sm:$0xff] %vm447, %v780
      %798 = vst.msk [vmem:[%s404 + $0x38] sm:$0xff] %vm447, %v782
      %v799 = vld [vmem:[%s7] sm:$0xf]
      %v800 = vld [vmem:[%s7 + $0x4] sm:$0xf]
      %v803 = vunpack.c.l.b16 %v799
      %v804 = vunpack.c.l.b16 %v800
      %v805 = vpack.c.b16 %v804, %v803
      %807 = vmatprep.subr.bf16.mxu0 0
      %808 = vmatpush1.bf16.msra.mxu0 %v805
      %809 = vmatprep.subr.bf16.mxu0 0
      %810 = vmatpush1.bf16.msra.mxu0 0
      %811 = vmatprep.subr.bf16.mxu0 0
      %812 = vmatpush1.bf16.msra.mxu0 0
      %813 = vmatprep.subr.bf16.mxu0 0
      %814 = vmatpush1.bf16.msra.mxu0 0
      %815 = vmatprep.subr.bf16.mxu0 0
      %816 = vmatpush1.bf16.msra.mxu0 0
      %817 = vmatprep.subr.bf16.mxu0 0
      %818 = vmatpush1.bf16.msra.mxu0 0
      %819 = vmatprep.subr.bf16.mxu0 0
      %820 = vmatpush1.bf16.msra.mxu0 0
      %821 = vmatprep.subr.bf16.mxu0 0
      %822 = vmatpush1.bf16.msra.mxu0 0
      %823 = vmatprep.subr.bf16.mxu0 0
      %824 = vmatpush1.bf16.msra.mxu0 0
      %825 = vmatprep.subr.bf16.mxu0 0
      %826 = vmatpush1.bf16.msra.mxu0 0
      %827 = vmatprep.subr.bf16.mxu0 0
      %828 = vmatpush1.bf16.msra.mxu0 0
      %829 = vmatprep.subr.bf16.mxu0 0
      %830 = vmatpush1.bf16.msra.mxu0 0
      %831 = vmatprep.subr.bf16.mxu0 0
      %832 = vmatpush1.bf16.msra.mxu0 0
      %833 = vmatprep.subr.bf16.mxu0 0
      %834 = vmatpush1.bf16.msra.mxu0 0
      %835 = vmatprep.subr.bf16.mxu0 0
      %836 = vmatpush1.bf16.msra.mxu0 0
      %837 = vmatprep.subr.bf16.mxu0 0
      %838 = vmatpush1.bf16.msra.mxu0 0
      %839 = vmatprep.mubr.bf16.mxu0 0
      %840 = vmatmul.mubr.bf16.gmra.mrb[0].mxu0 %v532
      %v841 = vpop.f32.mrb[0].mxu0
      %v842 = vadd.f32 0.0, %v841
      %v843 = vpop.f32.mrb[0].mxu0
      %v844 = vpop.f32.mrb[0].mxu0
      %v845 = vadd.f32 0.0, %v844
      %v846 = vpop.f32.mrb[0].mxu0
      %847 = vmatprep.mubr.bf16.mxu0 0
      %848 = vmatmul.mubr.bf16.gmra.mrb[0].mxu0 %v535
      %v849 = vpop.f32.mrb[0].mxu0
      %v850 = vadd.f32 0.0, %v849
      %v851 = vpop.f32.mrb[0].mxu0
      %v852 = vpop.f32.mrb[0].mxu0
      %v853 = vadd.f32 0.0, %v852
      %v854 = vpop.f32.mrb[0].mxu0
      %855 = vmatprep.mubr.bf16.mxu0 0
      %856 = vmatmul.mubr.bf16.gmra.mrb[0].mxu0 %v538
      %v857 = vpop.f32.mrb[0].mxu0
      %v858 = vadd.f32 0.0, %v857
      %v859 = vpop.f32.mrb[0].mxu0
      %v860 = vpop.f32.mrb[0].mxu0
      %v861 = vadd.f32 0.0, %v860
      %v862 = vpop.f32.mrb[0].mxu0
      %863 = vmatprep.mubr.bf16.mxu0 0
      %864 = vmatmul.mubr.bf16.gmra.mrb[0].mxu0 %v541
      %v865 = vpop.f32.mrb[0].mxu0
      %v866 = vadd.f32 0.0, %v865
      %v867 = vpop.f32.mrb[0].mxu0
      %v868 = vpop.f32.mrb[0].mxu0
      %v869 = vadd.f32 0.0, %v868
      %v870 = vpop.f32.mrb[0].mxu0
      %871 = vdwg.mxu0
      %872 = vst.msk [vmem:[%s410] sm:$0xff] %vm447, %v842
      %873 = vst.msk [vmem:[%s410 + $0x8] sm:$0xff] %vm447, %v845
      %874 = vst.msk [vmem:[%s410 + $0x10] sm:$0xff] %vm447, %v850
      %875 = vst.msk [vmem:[%s410 + $0x18] sm:$0xff] %vm447, %v853
      %876 = vst.msk [vmem:[%s410 + $0x20] sm:$0xff] %vm447, %v858
      %877 = vst.msk [vmem:[%s410 + $0x28] sm:$0xff] %vm447, %v861
      %878 = vst.msk [vmem:[%s410 + $0x30] sm:$0xff] %vm447, %v866
      %879 = vst.msk [vmem:[%s410 + $0x38] sm:$0xff] %vm447, %v869
      %s880 = smul.u32 8, %s22
      %p881 = scmp.lt.s32.totalorder %s880, 63
      %s882 = scalar_select %p881, %s880, 63
      %s883 = smul.addr %s882, 8
      %s884 = scalar_lea.vmem %s8, %s883
      %s885 = smul.u32 8, %s22
      %p886 = scmp.lt.s32.totalorder %s885, 63
      %s887 = scalar_select %p886, %s885, 63
      %s888 = smul.addr %s887, 8
      %s889 = scalar_lea.vmem %s9, %s888
      %s890 = smul.u32 8, %s22
      %p891 = scmp.lt.s32.totalorder %s890, 63
      %s892 = scalar_select %p891, %s890, 63
      %s893 = smul.addr %s892, 8
      %s894 = scalar_lea.vmem %s10, %s893
      // Predicated region
      $region53: #{transformer_forward.4} parent=51 // pred_check
        %p895 = pneg %p218
      $region54: #{transformer_forward.4} parent=51 // pred_check_branch
        %897 = sbr.rel (%p895) target = $region56
      $region55: #{transformer_forward.4} parent=51 // pred_region
        %s898 = smul.u32 8, %s22
      $region56: #{transformer_forward.4} parent=51 // pred_fallthru
        _
      // Predicated region
      $region57: #{transformer_forward.4} parent=51 // pred_check
        %p899 = pneg %p244
      $region58: #{transformer_forward.4} parent=51 // pred_check_branch
        %901 = sbr.rel (%p899) target = $region60
      $region59: #{transformer_forward.4} parent=51 // pred_region
        %s902 = smul.u32 8, %s22
      $region60: #{transformer_forward.4} parent=51 // pred_fallthru
        _
      // Predicated region
      $region61: #{transformer_forward.4} parent=51 // pred_check
        %p903 = pneg %p270
      $region62: #{transformer_forward.4} parent=51 // pred_check_branch
        %905 = sbr.rel (%p903) target = $region64
      $region63: #{transformer_forward.4} parent=51 // pred_region
        %s906 = smul.u32 8, %s22
      $region64: #{transformer_forward.4} parent=51 // pred_fallthru
        _
    $region52: #{transformer_forward.4} parent=5 // pred_fallthru
      _
    %p907 = scmp.le.s32.totalorder 2, %s17
    // Predicated region
    $region65: #{transformer_forward.4} parent=5 // pred_check
      %p908 = pneg %p907
    $region66: #{transformer_forward.4} parent=5 // pred_check_branch
      %910 = sbr.rel (%p908) target = $region68
    $region67: #{transformer_forward.4} parent=5 // pred_region
      %s911 = ssub.s32 %s17, 2
      // Predicated region
      $region69: #{transformer_forward.4} parent=67 // pred_check
        %p912 = pneg %p224
      $region70: #{transformer_forward.4} parent=67 // pred_check_branch
        %914 = sbr.rel (%p912) target = $region72
      $region71: #{transformer_forward.4} parent=67 // pred_region
        %s915 = smul.u32 8, %s23
        %p916 = scmp.lt.s32.totalorder %s915, 63
        %s917 = scalar_select %p916, %s915, 63
        %s918 = smul.addr %s917, 8
        %s919 = scalar_lea.vmem %s8, %s918
      $region72: #{transformer_forward.4} parent=67 // pred_fallthru
        _
      // Predicated region
      $region73: #{transformer_forward.4} parent=67 // pred_check
        %p920 = pneg %p250
      $region74: #{transformer_forward.4} parent=67 // pred_check_branch
        %922 = sbr.rel (%p920) target = $region76
      $region75: #{transformer_forward.4} parent=67 // pred_region
        %s923 = smul.u32 8, %s23
        %p924 = scmp.lt.s32.totalorder %s923, 63
        %s925 = scalar_select %p924, %s923, 63
        %s926 = smul.addr %s925, 8
        %s927 = scalar_lea.vmem %s9, %s926
      $region76: #{transformer_forward.4} parent=67 // pred_fallthru
        _
      // Predicated region
      $region77: #{transformer_forward.4} parent=67 // pred_check
        %p928 = pneg %p276
      $region78: #{transformer_forward.4} parent=67 // pred_check_branch
        %930 = sbr.rel (%p928) target = $region80
      $region79: #{transformer_forward.4} parent=67 // pred_region
        %s931 = smul.u32 8, %s23
        %p932 = scmp.lt.s32.totalorder %s931, 63
        %s933 = scalar_select %p932, %s931, 63
        %s934 = smul.addr %s933, 8
        %s935 = scalar_lea.vmem %s10, %s934
      $region80: #{transformer_forward.4} parent=67 // pred_fallthru
        _
    $region68: #{transformer_forward.4} parent=5 // pred_fallthru
      _
  $region6: #{transformer_forward.4} parent=0 // loop_footer
    %s21 = sadd.s32 1, %s17
  $region7: #{transformer_forward.4} parent=0 // loop_footer_branch
    %16 = sbr.rel target = $region3
  $region8: #{transformer_forward.4} parent=0 // loop_exit
    _

// kernel: transformer_forward.5
$region0: #{transformer_forward.5}
  #allocation0 [shape = 'u32[]', space=smem, size = 0x4, offset = 0x4, fixed_abs, tag = 'smem constant byte address 0x4 - core index']
  #allocation1 [shape = 'u32[144,128]{1,0:T(1,128)}', space=vmem, size = 0x12000, scoped, tag = 'internal scratch']
  %s0 = inlined_call_operand.vmem [shape: f32[2,16,16,16], index: 0, kind: input, shape index: {}]
  %s1 = inlined_call_operand.vmem [shape: f32[2,24,24,16], index: 1, kind: input, shape index: {}]
  %s2 = inlined_call_operand.vmem [shape: f32[2,24,24,16], index: 2, kind: input, shape index: {}]
  %s3 = inlined_call_operand.vmem [shape: f32[256,16], index: 3, kind: input, shape index: {}]
  %s4 = inlined_call_operand.vmem [shape: f32[1,256], index: 4, kind: input, shape index: {}]
  %s5 = inlined_call_operand.vmem [shape: f32[2,16,16,16], index: 5, kind: input, shape index: {}]
  %s6 = inlined_call_operand.vmem [shape: f32[2,16,16,16], index: 6, kind: output, shape index: {}]
  %s7 = sld [smem:[#allocation0]]
  $region167: #{transformer_forward.5} parent=0
    _
  %s9 = ssub.s32 1, %s7
  %s10 = scalar_select 0, %s9, %s7
  $region1: #{transformer_forward.5} parent=0
    #allocation2 [shape = 'u8[65536]{0}', space=vmem, size = 0x10000, scoped, tag = 'input window, operand 0']
    #allocation3 [shape = 'u8[65536]{0}', space=vmem, size = 0x10000, scoped, tag = 'input window, operand 5']
    #allocation4 [shape = 'u8[65536]{0}', space=vmem, size = 0x10000, scoped, tag = 'output window, operand 0']
    loop: start=0, step=1, limit=10
    $region2: #{transformer_forward.5} parent=1 // loop_pre_header
      _
    $region3: #{transformer_forward.5} parent=1 // loop_header
      %s12 = sphi 0, %s16
      %p13 = scmp.ge.s32.totalorder %s12, 10
      %s19 = sphi 0, %s38
      %s20 = sphi 0, %s34
      %s21 = sphi 0, %s30
      %s22 = sphi 0, %s19
      %s23 = sphi 0, %s20
      %s24 = sphi 0, %s21
      %s25 = sphi 0, %s22
      %s26 = sphi 0, %s23
      %s27 = sphi 0, %s24
      %s45 = sphi 0, %s47
      %s48 = sphi 0, %s45
      %s49 = sphi 0, %s48
      %s65 = sphi 0, %s49
      %s71 = sphi 0, %s73
      %s74 = sphi 0, %s71
      %s75 = sphi 0, %s74
      %s91 = sphi 0, %s75
      %s97 = sphi 0, %s99
      %s100 = sphi 0, %s97
      %s101 = sphi 0, %s100
      %s117 = sphi 0, %s101
      %s121 = sphi 0, %s121
      %s123 = sphi 0, %s121
      %s124 = sphi 0, %s123
      %s138 = sphi 0, %s124
      %s142 = sphi 0, %s142
      %s144 = sphi 0, %s142
      %s145 = sphi 0, %s144
      %s159 = sphi 0, %s145
      %s169 = sphi 0, %s171
      %s172 = sphi 0, %s169
      %s173 = sphi 0, %s172
      %s189 = sphi 0, %s173
      %s199 = sphi 0, %s201
      %s202 = sphi 0, %s199
      %s203 = sphi 0, %s202
      %s219 = sphi 0, %s203
    $region4: #{transformer_forward.5} parent=1 // loop_header_branch
      %15 = sbr.rel (%p13) target = $region8
    $region5: #{transformer_forward.5} parent=1 // loop_body
      %s17 = ssub.s32 %s12, 1
      %s18 = ssub.s32 %s12, 2
      %s28 = sadd.s32 1, %s21
      %p29 = scmp.ge.s32.totalorder %s28, 2
      %s30 = scalar_select %p29, 0, %s28
      %s31 = sadd.s32 1, %s20
      %s32 = scalar_select %p29, %s31, %s20
      %p33 = scmp.ge.s32.totalorder %s32, 2
      %s34 = scalar_select %p33, 0, %s32
      %s35 = sadd.s32 1, %s19
      %s36 = scalar_select %p33, %s35, %s19
      %p37 = scmp.ge.s32.totalorder %s36, 2
      %s38 = scalar_select %p37, 0, %s36
      %s39 = ssub.s32 %s19, %s38
      %s40 = ssub.s32 %s20, %s34
      %s41 = sor.u32 %s39, %s40
      %s42 = ssub.s32 %s21, %s30
      %s43 = sor.u32 %s41, %s42
      %p44 = scmp.eq.s32.totalorder %s43, 0
      %s46 = sadd.s32 %s45, 1
      %s47 = scalar_select %p44, %s45, %s46
      %p50 = pneg %p44
      %p51 = scmp.eq.s32.totalorder %s12, 7
      %p52 = por %p50, %p51
      %p53 = scmp.ne.s32.totalorder %s45, %s48
      %p54 = scmp.eq.s32.totalorder %s12, 0
      %p55 = por %p53, %p54
      %p56 = scmp.ne.s32.totalorder %s45, %s48
      %p57 = scmp.eq.s32.totalorder %s17, 7
      %p58 = por %p56, %p57
      %p59 = scmp.ne.s32.totalorder %s48, %s49
      %p60 = scmp.eq.s32.totalorder %s17, 0
      %p61 = por %p59, %p60
      %p62 = scmp.ne.s32.totalorder %s48, %s49
      %p63 = scmp.eq.s32.totalorder %s18, 7
      %p64 = por %p62, %p63
      %p66 = scmp.ne.s32.totalorder %s49, %s65
      %p67 = scmp.eq.s32.totalorder %s18, 0
      %p68 = por %p66, %p67
      %s69 = ssub.s32 %s19, %s38
      %p70 = scmp.eq.s32.totalorder %s69, 0
      %s72 = sadd.s32 %s71, 1
      %s73 = scalar_select %p70, %s71, %s72
      %p76 = pneg %p70
      %p77 = scmp.eq.s32.totalorder %s12, 7
      %p78 = por %p76, %p77
      %p79 = scmp.ne.s32.totalorder %s71, %s74
      %p80 = scmp.eq.s32.totalorder %s12, 0
      %p81 = por %p79, %p80
      %p82 = scmp.ne.s32.totalorder %s71, %s74
      %p83 = scmp.eq.s32.totalorder %s17, 7
      %p84 = por %p82, %p83
      %p85 = scmp.ne.s32.totalorder %s74, %s75
      %p86 = scmp.eq.s32.totalorder %s17, 0
      %p87 = por %p85, %p86
      %p88 = scmp.ne.s32.totalorder %s74, %s75
      %p89 = scmp.eq.s32.totalorder %s18, 7
      %p90 = por %p88, %p89
      %p92 = scmp.ne.s32.totalorder %s75, %s91
      %p93 = scmp.eq.s32.totalorder %s18, 0
      %p94 = por %p92, %p93
      %s95 = ssub.s32 %s19, %s38
      %p96 = scmp.eq.s32.totalorder %s95, 0
      %s98 = sadd.s32 %s97, 1
      %s99 = scalar_select %p96, %s97, %s98
      %p102 = pneg %p96
      %p103 = scmp.eq.s32.totalorder %s12, 7
      %p104 = por %p102, %p103
      %p105 = scmp.ne.s32.totalorder %s97, %s100
      %p106 = scmp.eq.s32.totalorder %s12, 0
      %p107 = por %p105, %p106
      %p108 = scmp.ne.s32.totalorder %s97, %s100
      %p109 = scmp.eq.s32.totalorder %s17, 7
      %p110 = por %p108, %p109
      %p111 = scmp.ne.s32.totalorder %s100, %s101
      %p112 = scmp.eq.s32.totalorder %s17, 0
      %p113 = por %p111, %p112
      %p114 = scmp.ne.s32.totalorder %s100, %s101
      %p115 = scmp.eq.s32.totalorder %s18, 7
      %p116 = por %p114, %p115
      %p118 = scmp.ne.s32.totalorder %s101, %s117
      %p119 = scmp.eq.s32.totalorder %s18, 0
      %p120 = por %p118, %p119
      %s122 = sadd.s32 %s121, 1
      %p125 = scmp.eq.s32.totalorder %s12, 7
      %p126 = scmp.ne.s32.totalorder %s121, %s123
      %p127 = scmp.eq.s32.totalorder %s12, 0
      %p128 = por %p126, %p127
      %p129 = scmp.ne.s32.totalorder %s121, %s123
      %p130 = scmp.eq.s32.totalorder %s17, 7
      %p131 = por %p129, %p130
      %p132 = scmp.ne.s32.totalorder %s123, %s124
      %p133 = scmp.eq.s32.totalorder %s17, 0
      %p134 = por %p132, %p133
      %p135 = scmp.ne.s32.totalorder %s123, %s124
      %p136 = scmp.eq.s32.totalorder %s18, 7
      %p137 = por %p135, %p136
      %p139 = scmp.ne.s32.totalorder %s124, %s138
      %p140 = scmp.eq.s32.totalorder %s18, 0
      %p141 = por %p139, %p140
      %s143 = sadd.s32 %s142, 1
      %p146 = scmp.eq.s32.totalorder %s12, 7
      %p147 = scmp.ne.s32.totalorder %s142, %s144
      %p148 = scmp.eq.s32.totalorder %s12, 0
      %p149 = por %p147, %p148
      %p150 = scmp.ne.s32.totalorder %s142, %s144
      %p151 = scmp.eq.s32.totalorder %s17, 7
      %p152 = por %p150, %p151
      %p153 = scmp.ne.s32.totalorder %s144, %s145
      %p154 = scmp.eq.s32.totalorder %s17, 0
      %p155 = por %p153, %p154
      %p156 = scmp.ne.s32.totalorder %s144, %s145
      %p157 = scmp.eq.s32.totalorder %s18, 7
      %p158 = por %p156, %p157
      %p160 = scmp.ne.s32.totalorder %s145, %s159
      %p161 = scmp.eq.s32.totalorder %s18, 0
      %p162 = por %p160, %p161
      %s163 = ssub.s32 %s19, %s38
      %s164 = ssub.s32 %s20, %s34
      %s165 = sor.u32 %s163, %s164
      %s166 = ssub.s32 %s21, %s30
      %s167 = sor.u32 %s165, %s166
      %p168 = scmp.eq.s32.totalorder %s167, 0
      %s170 = sadd.s32 %s169, 1
      %s171 = scalar_select %p168, %s169, %s170
      %p174 = pneg %p168
      %p175 = scmp.eq.s32.totalorder %s12, 7
      %p176 = por %p174, %p175
      %p177 = scmp.ne.s32.totalorder %s169, %s172
      %p178 = scmp.eq.s32.totalorder %s12, 0
      %p179 = por %p177, %p178
      %p180 = scmp.ne.s32.totalorder %s169, %s172
      %p181 = scmp.eq.s32.totalorder %s17, 7
      %p182 = por %p180, %p181
      %p183 = scmp.ne.s32.totalorder %s172, %s173
      %p184 = scmp.eq.s32.totalorder %s17, 0
      %p185 = por %p183, %p184
      %p186 = scmp.ne.s32.totalorder %s172, %s173
      %p187 = scmp.eq.s32.totalorder %s18, 7
      %p188 = por %p186, %p187
      %p190 = scmp.ne.s32.totalorder %s173, %s189
      %p191 = scmp.eq.s32.totalorder %s18, 0
      %p192 = por %p190, %p191
      %s193 = ssub.s32 %s19, %s38
      %s194 = ssub.s32 %s20, %s34
      %s195 = sor.u32 %s193, %s194
      %s196 = ssub.s32 %s21, %s30
      %s197 = sor.u32 %s195, %s196
      %p198 = scmp.eq.s32.totalorder %s197, 0
      %s200 = sadd.s32 %s199, 1
      %s201 = scalar_select %p198, %s199, %s200
      %p204 = pneg %p198
      %p205 = scmp.eq.s32.totalorder %s12, 7
      %p206 = por %p204, %p205
      %p207 = scmp.ne.s32.totalorder %s199, %s202
      %p208 = scmp.eq.s32.totalorder %s12, 0
      %p209 = por %p207, %p208
      %p210 = scmp.ne.s32.totalorder %s199, %s202
      %p211 = scmp.eq.s32.totalorder %s17, 7
      %p212 = por %p210, %p211
      %p213 = scmp.ne.s32.totalorder %s202, %s203
      %p214 = scmp.eq.s32.totalorder %s17, 0
      %p215 = por %p213, %p214
      %p216 = scmp.ne.s32.totalorder %s202, %s203
      %p217 = scmp.eq.s32.totalorder %s18, 7
      %p218 = por %p216, %p217
      %p220 = scmp.ne.s32.totalorder %s203, %s219
      %p221 = scmp.eq.s32.totalorder %s18, 0
      %p222 = por %p220, %p221
      %p223 = scmp.le.s32.totalorder 1, %s12
      %p224 = scmp.lt.s32.totalorder %s12, 9
      %p225 = pnand %p223, %p224
      %p226 = pneg %p225
      // Predicated region
      $region9: #{transformer_forward.5} parent=5 // pred_check
        _
      $region10: #{transformer_forward.5} parent=5 // pred_check_branch
        %228 = sbr.rel (%p225) target = $region12
      $region11: #{transformer_forward.5} parent=5 // pred_region
        %s229 = ssub.s32 %s12, 1
        // Predicated region
        $region13: #{transformer_forward.5} parent=11 // pred_check
          %p230 = pneg %p134
        $region14: #{transformer_forward.5} parent=11 // pred_check_branch
          %232 = sbr.rel (%p230) target = $region16
        $region15: #{transformer_forward.5} parent=11 // pred_region
          _
        $region16: #{transformer_forward.5} parent=11 // pred_fallthru
          _
        // Predicated region
        $region17: #{transformer_forward.5} parent=11 // pred_check
          %p233 = pneg %p155
        $region18: #{transformer_forward.5} parent=11 // pred_check_branch
          %235 = sbr.rel (%p233) target = $region20
        $region19: #{transformer_forward.5} parent=11 // pred_region
          _
        $region20: #{transformer_forward.5} parent=11 // pred_fallthru
          _
      $region12: #{transformer_forward.5} parent=5 // pred_fallthru
        _
      %p236 = scmp.lt.s32.totalorder %s12, 8
      // Predicated region
      $region21: #{transformer_forward.5} parent=5 // pred_check
        %p237 = pneg %p236
      $region22: #{transformer_forward.5} parent=5 // pred_check_branch
        %239 = sbr.rel (%p237) target = $region24
      $region23: #{transformer_forward.5} parent=5 // pred_region
        // Predicated region
        $region25: #{transformer_forward.5} parent=23 // pred_check
          %p240 = pneg %p55
        $region26: #{transformer_forward.5} parent=23 // pred_check_branch
          %242 = sbr.rel (%p240) target = $region28
        $region27: #{transformer_forward.5} parent=23 // pred_region
          %s243 = sand.u32 %s45, 1
          %s244 = sand.u32 %s45, 1
          %s245 = smul.addr %s244, 64
          %s246 = scalar_lea.vmem [#allocation2], %s245
          %s247 = smul.u32 8, %s20
          %s248 = smul.addr %s247, 2
          %s249 = sadd.s32 %s21, %s248
          %s250 = smul.addr %s19, 32
          %s251 = sadd.s32 %s249, %s250
          %s252 = smul.addr %s251, 8
          %s253 = scalar_lea.vmem %s0, %s252
          // Predicated region
          $region29: #{transformer_forward.5} parent=27 // pred_check
            _
          $region30: #{transformer_forward.5} parent=27 // pred_check_branch
            %255 = sbr.rel (0) target = $region32
          $region31: #{transformer_forward.5} parent=27 // pred_region
            // Predicated region
            $region33: #{transformer_forward.5} parent=31 // pred_check
              _
            $region34: #{transformer_forward.5} parent=31 // pred_check_branch
              %257 = sbr.rel (0) target = $region36
            $region35: #{transformer_forward.5} parent=31 // pred_region
              // Predicated region
              $region48: #{transformer_forward.5} parent=35 // pred_check
                _
              $region49: #{transformer_forward.5} parent=35 // pred_check_branch
                %286 = sbr.rel (0) target = $region51
              $region50: #{transformer_forward.5} parent=35 // pred_region
                loop: start=0, step=1, limit=1
                $region52: #{transformer_forward.5} parent=50 // loop_pre_header
                  _
                $region53: #{transformer_forward.5} parent=50 // loop_header
                  %s288 = sphi 0, %s292
                  %p289 = scmp.ge.s32.totalorder %s288, 1
                  %s293 = sphi %s253, %s253
                  %s294 = sphi %s246, %s246
                $region54: #{transformer_forward.5} parent=50 // loop_header_branch
                  %291 = sbr.rel (%p289) target = $region58
                $region55: #{transformer_forward.5} parent=50 // loop_body
                  %v295 = vld [vmem:[%s293] sm:$0xff]
                  %296 = vst [vmem:[%s294] sm:$0xff] %v295
                  %v297 = vld [vmem:[%s293 + $0x10] sm:$0xff]
                  %298 = vst [vmem:[%s294 + $0x8] sm:$0xff] %v297
                  %v299 = vld [vmem:[%s293 + $0x20] sm:$0xff]
                  %300 = vst [vmem:[%s294 + $0x10] sm:$0xff] %v299
                  %v301 = vld [vmem:[%s293 + $0x30] sm:$0xff]
                  %302 = vst [vmem:[%s294 + $0x18] sm:$0xff] %v301
                  %v303 = vld [vmem:[%s293 + $0x40] sm:$0xff]
                  %304 = vst [vmem:[%s294 + $0x20] sm:$0xff] %v303
                  %v305 = vld [vmem:[%s293 + $0x50] sm:$0xff]
                  %306 = vst [vmem:[%s294 + $0x28] sm:$0xff] %v305
                  %v307 = vld [vmem:[%s293 + $0x60] sm:$0xff]
                  %308 = vst [vmem:[%s294 + $0x30] sm:$0xff] %v307
                  %v309 = vld [vmem:[%s293 + $0x70] sm:$0xff]
                  %310 = vst [vmem:[%s294 + $0x38] sm:$0xff] %v309
                $region56: #{transformer_forward.5} parent=50 // loop_footer
                  %s292 = sadd.s32 1, %s288
                $region57: #{transformer_forward.5} parent=50 // loop_footer_branch
                  %287 = sbr.rel target = $region53
                $region58: #{transformer_forward.5} parent=50 // loop_exit
                  _
              $region51: #{transformer_forward.5} parent=35 // pred_fallthru
                _
              // Predicated region
              $region59: #{transformer_forward.5} parent=35 // pred_check
                _
              $region60: #{transformer_forward.5} parent=35 // pred_check_branch
                %312 = sbr.rel target = $region62
              $region61: #{transformer_forward.5} parent=35 // pred_region
                _
              $region62: #{transformer_forward.5} parent=35 // pred_fallthru
                _
            $region36: #{transformer_forward.5} parent=31 // pred_fallthru
              _
            // Predicated region
            $region37: #{transformer_forward.5} parent=31 // pred_check
              _
            $region38: #{transformer_forward.5} parent=31 // pred_check_branch
              %259 = sbr.rel target = $region40
            $region39: #{transformer_forward.5} parent=31 // pred_region
              loop: start=0, step=1, limit=1
              $region41: #{transformer_forward.5} parent=39 // loop_pre_header
                _
              $region42: #{transformer_forward.5} parent=39 // loop_header
                %s262 = sphi 0, %s266
                %p263 = scmp.ge.s32.totalorder %s262, 1
                %s267 = sphi %s253, %s253
                %s268 = sphi %s246, %s246
              $region43: #{transformer_forward.5} parent=39 // loop_header_branch
                %265 = sbr.rel (%p263) target = $region47
              $region44: #{transformer_forward.5} parent=39 // loop_body
                %v269 = vld [vmem:[%s267] sm:$0xff]
                %270 = vst [vmem:[%s268] sm:$0xff] %v269
                %v271 = vld [vmem:[%s267 + $0x10] sm:$0xff]
                %272 = vst [vmem:[%s268 + $0x8] sm:$0xff] %v271
                %v273 = vld [vmem:[%s267 + $0x20] sm:$0xff]
                %274 = vst [vmem:[%s268 + $0x10] sm:$0xff] %v273
                %v275 = vld [vmem:[%s267 + $0x30] sm:$0xff]
                %276 = vst [vmem:[%s268 + $0x18] sm:$0xff] %v275
                %v277 = vld [vmem:[%s267 + $0x40] sm:$0xff]
                %278 = vst [vmem:[%s268 + $0x20] sm:$0xff] %v277
                %v279 = vld [vmem:[%s267 + $0x50] sm:$0xff]
                %280 = vst [vmem:[%s268 + $0x28] sm:$0xff] %v279
                %v281 = vld [vmem:[%s267 + $0x60] sm:$0xff]
                %282 = vst [vmem:[%s268 + $0x30] sm:$0xff] %v281
                %v283 = vld [vmem:[%s267 + $0x70] sm:$0xff]
                %284 = vst [vmem:[%s268 + $0x38] sm:$0xff] %v283
              $region45: #{transformer_forward.5} parent=39 // loop_footer
                %s266 = sadd.s32 1, %s262
              $region46: #{transformer_forward.5} parent=39 // loop_footer_branch
                %261 = sbr.rel target = $region42
              $region47: #{transformer_forward.5} parent=39 // loop_exit
                _
            $region40: #{transformer_forward.5} parent=31 // pred_fallthru
              _
          $region32: #{transformer_forward.5} parent=27 // pred_fallthru
            _
          %313 = vnop
        $region28: #{transformer_forward.5} parent=23 // pred_fallthru
          _
        // Predicated region
        $region63: #{transformer_forward.5} parent=23 // pred_check
          %p314 = pneg %p81
        $region64: #{transformer_forward.5} parent=23 // pred_check_branch
          %316 = sbr.rel (%p314) target = $region66
        $region65: #{transformer_forward.5} parent=23 // pred_region
          %p317 = scmp.lt.s32.totalorder %s19, 1
          %s318 = scalar_select %p317, %s19, 1
          %s319 = smul.addr %s318, 72
          %s320 = smul.addr %s319, 8
          %s321 = scalar_lea.vmem %s1, %s320
        $region66: #{transformer_forward.5} parent=23 // pred_fallthru
          _
        // Predicated region
        $region67: #{transformer_forward.5} parent=23 // pred_check
          %p322 = pneg %p107
        $region68: #{transformer_forward.5} parent=23 // pred_check_branch
          %324 = sbr.rel (%p322) target = $region70
        $region69: #{transformer_forward.5} parent=23 // pred_region
          %p325 = scmp.lt.s32.totalorder %s19, 1
          %s326 = scalar_select %p325, %s19, 1
          %s327 = smul.addr %s326, 72
          %s328 = smul.addr %s327, 8
          %s329 = scalar_lea.vmem %s2, %s328
        $region70: #{transformer_forward.5} parent=23 // pred_fallthru
          _
        // Predicated region
        $region71: #{transformer_forward.5} parent=23 // pred_check
          %p330 = pneg %p179
        $region72: #{transformer_forward.5} parent=23 // pred_check_branch
          %332 = sbr.rel (%p330) target = $region74
        $region73: #{transformer_forward.5} parent=23 // pred_region
          %s333 = sand.u32 %s169, 1
          %s334 = sand.u32 %s169, 1
          %s335 = smul.addr %s334, 64
          %s336 = scalar_lea.vmem [#allocation3], %s335
          %s337 = smul.u32 8, %s20
          %s338 = smul.addr %s337, 2
          %s339 = sadd.s32 %s21, %s338
          %s340 = smul.addr %s19, 32
          %s341 = sadd.s32 %s339, %s340
          %s342 = smul.addr %s341, 8
          %s343 = scalar_lea.vmem %s5, %s342
          // Predicated region
          $region75: #{transformer_forward.5} parent=73 // pred_check
            _
          $region76: #{transformer_forward.5} parent=73 // pred_check_branch
            %345 = sbr.rel (0) target = $region78
          $region77: #{transformer_forward.5} parent=73 // pred_region
            // Predicated region
            $region79: #{transformer_forward.5} parent=77 // pred_check
              _
            $region80: #{transformer_forward.5} parent=77 // pred_check_branch
              %347 = sbr.rel (0) target = $region82
            $region81: #{transformer_forward.5} parent=77 // pred_region
              // Predicated region
              $region94: #{transformer_forward.5} parent=81 // pred_check
                _
              $region95: #{transformer_forward.5} parent=81 // pred_check_branch
                %376 = sbr.rel (0) target = $region97
              $region96: #{transformer_forward.5} parent=81 // pred_region
                loop: start=0, step=1, limit=1
                $region98: #{transformer_forward.5} parent=96 // loop_pre_header
                  _
                $region99: #{transformer_forward.5} parent=96 // loop_header
                  %s378 = sphi 0, %s382
                  %p379 = scmp.ge.s32.totalorder %s378, 1
                  %s383 = sphi %s343, %s343
                  %s384 = sphi %s336, %s336
                $region100: #{transformer_forward.5} parent=96 // loop_header_branch
                  %381 = sbr.rel (%p379) target = $region104
                $region101: #{transformer_forward.5} parent=96 // loop_body
                  %v385 = vld [vmem:[%s383] sm:$0xff]
                  %386 = vst [vmem:[%s384] sm:$0xff] %v385
                  %v387 = vld [vmem:[%s383 + $0x10] sm:$0xff]
                  %388 = vst [vmem:[%s384 + $0x8] sm:$0xff] %v387
                  %v389 = vld [vmem:[%s383 + $0x20] sm:$0xff]
                  %390 = vst [vmem:[%s384 + $0x10] sm:$0xff] %v389
                  %v391 = vld [vmem:[%s383 + $0x30] sm:$0xff]
                  %392 = vst [vmem:[%s384 + $0x18] sm:$0xff] %v391
                  %v393 = vld [vmem:[%s383 + $0x40] sm:$0xff]
                  %394 = vst [vmem:[%s384 + $0x20] sm:$0xff] %v393
                  %v395 = vld [vmem:[%s383 + $0x50] sm:$0xff]
                  %396 = vst [vmem:[%s384 + $0x28] sm:$0xff] %v395
                  %v397 = vld [vmem:[%s383 + $0x60] sm:$0xff]
                  %398 = vst [vmem:[%s384 + $0x30] sm:$0xff] %v397
                  %v399 = vld [vmem:[%s383 + $0x70] sm:$0xff]
                  %400 = vst [vmem:[%s384 + $0x38] sm:$0xff] %v399
                $region102: #{transformer_forward.5} parent=96 // loop_footer
                  %s382 = sadd.s32 1, %s378
                $region103: #{transformer_forward.5} parent=96 // loop_footer_branch
                  %377 = sbr.rel target = $region99
                $region104: #{transformer_forward.5} parent=96 // loop_exit
                  _
              $region97: #{transformer_forward.5} parent=81 // pred_fallthru
                _
              // Predicated region
              $region105: #{transformer_forward.5} parent=81 // pred_check
                _
              $region106: #{transformer_forward.5} parent=81 // pred_check_branch
                %402 = sbr.rel target = $region108
              $region107: #{transformer_forward.5} parent=81 // pred_region
                _
              $region108: #{transformer_forward.5} parent=81 // pred_fallthru
                _
            $region82: #{transformer_forward.5} parent=77 // pred_fallthru
              _
            // Predicated region
            $region83: #{transformer_forward.5} parent=77 // pred_check
              _
            $region84: #{transformer_forward.5} parent=77 // pred_check_branch
              %349 = sbr.rel target = $region86
            $region85: #{transformer_forward.5} parent=77 // pred_region
              loop: start=0, step=1, limit=1
              $region87: #{transformer_forward.5} parent=85 // loop_pre_header
                _
              $region88: #{transformer_forward.5} parent=85 // loop_header
                %s352 = sphi 0, %s356
                %p353 = scmp.ge.s32.totalorder %s352, 1
                %s357 = sphi %s343, %s343
                %s358 = sphi %s336, %s336
              $region89: #{transformer_forward.5} parent=85 // loop_header_branch
                %355 = sbr.rel (%p353) target = $region93
              $region90: #{transformer_forward.5} parent=85 // loop_body
                %v359 = vld [vmem:[%s357] sm:$0xff]
                %360 = vst [vmem:[%s358] sm:$0xff] %v359
                %v361 = vld [vmem:[%s357 + $0x10] sm:$0xff]
                %362 = vst [vmem:[%s358 + $0x8] sm:$0xff] %v361
                %v363 = vld [vmem:[%s357 + $0x20] sm:$0xff]
                %364 = vst [vmem:[%s358 + $0x10] sm:$0xff] %v363
                %v365 = vld [vmem:[%s357 + $0x30] sm:$0xff]
                %366 = vst [vmem:[%s358 + $0x18] sm:$0xff] %v365
                %v367 = vld [vmem:[%s357 + $0x40] sm:$0xff]
                %368 = vst [vmem:[%s358 + $0x20] sm:$0xff] %v367
                %v369 = vld [vmem:[%s357 + $0x50] sm:$0xff]
                %370 = vst [vmem:[%s358 + $0x28] sm:$0xff] %v369
                %v371 = vld [vmem:[%s357 + $0x60] sm:$0xff]
                %372 = vst [vmem:[%s358 + $0x30] sm:$0xff] %v371
                %v373 = vld [vmem:[%s357 + $0x70] sm:$0xff]
                %374 = vst [vmem:[%s358 + $0x38] sm:$0xff] %v373
              $region91: #{transformer_forward.5} parent=85 // loop_footer
                %s356 = sadd.s32 1, %s352
              $region92: #{transformer_forward.5} parent=85 // loop_footer_branch
                %351 = sbr.rel target = $region88
              $region93: #{transformer_forward.5} parent=85 // loop_exit
                _
            $region86: #{transformer_forward.5} parent=77 // pred_fallthru
              _
          $region78: #{transformer_forward.5} parent=73 // pred_fallthru
            _
          %403 = vnop
        $region74: #{transformer_forward.5} parent=23 // pred_fallthru
          _
      $region24: #{transformer_forward.5} parent=5 // pred_fallthru
        _
      %p404 = scmp.le.s32.totalorder 1, %s12
      %p405 = scmp.lt.s32.totalorder %s12, 9
      %p406 = pnand %p404, %p405
      %p407 = pneg %p406
      // Predicated region
      $region109: #{transformer_forward.5} parent=5 // pred_check
        _
      $region110: #{transformer_forward.5} parent=5 // pred_check_branch
        %409 = sbr.rel (%p406) target = $region112
      $region111: #{transformer_forward.5} parent=5 // pred_region
        %s410 = ssub.s32 %s12, 1
        %s411 = sand.u32 %s48, 1
        %s412 = sand.u32 %s48, 1
        %s413 = smul.addr %s412, 64
        %s414 = scalar_lea.vmem [#allocation2], %s413
        // Predicated region
        $region113: #{transformer_forward.5} parent=111 // pred_check
          %p415 = pneg %p61
        $region114: #{transformer_forward.5} parent=111 // pred_check_branch
          %417 = sbr.rel (%p415) target = $region116
        $region115: #{transformer_forward.5} parent=111 // pred_region
          _
        $region116: #{transformer_forward.5} parent=111 // pred_fallthru
          _
        %s418 = sand.u32 %s172, 1
        %s419 = sand.u32 %s172, 1
        %s420 = smul.addr %s419, 64
        %s421 = scalar_lea.vmem [#allocation3], %s420
        // Predicated region
        $region117: #{transformer_forward.5} parent=111 // pred_check
          %p422 = pneg %p185
        $region118: #{transformer_forward.5} parent=111 // pred_check_branch
          %424 = sbr.rel (%p422) target = $region120
        $region119: #{transformer_forward.5} parent=111 // pred_region
          _
        $region120: #{transformer_forward.5} parent=111 // pred_fallthru
          _
        %s425 = sand.u32 %s48, 1
        %s426 = sand.u32 %s48, 1
        %s427 = smul.addr %s426, 64
        %s428 = scalar_lea.vmem [#allocation2], %s427
        %p429 = pneg %p61
        %p430 = pneg %p58
        %p431 = scmp.lt.s32.totalorder %s22, 1
        %s432 = scalar_select %p431, %s22, 1
        %s433 = smul.addr %s432, 72
        %s434 = smul.addr %s433, 8
        %s435 = scalar_lea.vmem %s1, %s434
        %p436 = pneg %p87
        %p437 = pneg %p84
        %p438 = scmp.lt.s32.totalorder %s22, 1
        %s439 = scalar_select %p438, %s22, 1
        %s440 = smul.addr %s439, 72
        %s441 = smul.addr %s440, 8
        %s442 = scalar_lea.vmem %s2, %s441
        %p443 = pneg %p113
        %p444 = pneg %p110
        %p445 = pneg %p134
        %p446 = pneg %p131
        %p447 = pneg %p155
        %p448 = pneg %p152
        %s449 = sand.u32 %s172, 1
        %s450 = sand.u32 %s172, 1
        %s451 = smul.addr %s450, 64
        %s452 = scalar_lea.vmem [#allocation3], %s451
        %p453 = pneg %p185
        %p454 = pneg %p182
        %p455 = pneg %p215
        %p456 = pneg %p212
        %s457 = sand.u32 %s202, 1
        %s458 = sand.u32 %s202, 1
        %s459 = smul.addr %s458, 64
        %s460 = scalar_lea.vmem [#allocation4], %s459
        %s461 = smul.u32 8, %s23
        %p462 = scmp.lt.s32.totalorder %s22, 1
        %s463 = scalar_select %p462, %s22, 1
        %s464 = smul.addr %s463, 72
        %s465 = smul.addr %s464, 8
        %s466 = scalar_lea.vmem %s1, %s465
        %p467 = scmp.lt.s32.totalorder %s22, 1
        %s468 = scalar_select %p467, %s22, 1
        %s469 = smul.addr %s468, 72
        %s470 = smul.addr %s469, 8
        %s471 = scalar_lea.vmem %s2, %s470
        %s472 = smul.u32 8, %s23
        %s473 = smul.u32 8, %s23
        %s475 = smul.u32 %s23, 8
        %s476 = smul.u32 %s24, 8
        %v477 = vld [vmem:[%s414] sm:$0xff]
        %v478 = vld [vmem:[%s414 + $0x8] sm:$0xff]
        %v479 = vld [vmem:[%s414 + $0x10] sm:$0xff]
        %v480 = vld [vmem:[%s414 + $0x18] sm:$0xff]
        %v481 = vld [vmem:[%s414 + $0x20] sm:$0xff]
        %v482 = vld [vmem:[%s414 + $0x28] sm:$0xff]
        %v483 = vld [vmem:[%s414 + $0x30] sm:$0xff]
        %v484 = vld [vmem:[%s414 + $0x38] sm:$0xff]
        %v485 = vpack.c.bf16 %v478, %v477
        %v486 = vpack.c.bf16 %v480, %v479
        %v487 = vpack.c.bf16 %v482, %v481
        %v488 = vpack.c.bf16 %v484, %v483
        %s489 = smul.u32 %s475, 24
        %s490 = sadd.s32 %s476, %s489
        %s491 = scalar_lea.vmem %s466, %s490
        %v492 = vld [vmem:[%s491] sm:$0xff]
        %v493 = vld [vmem:[%s491 + $0x8] sm:$0xff]
        %v494 = vld [vmem:[%s491 + $0x18] sm:$0xff]
        %v495 = vld [vmem:[%s491 + $0x20] sm:$0xff]
        %v496 = vld [vmem:[%s491 + $0x30] sm:$0xff]
        %v497 = vld [vmem:[%s491 + $0x38] sm:$0xff]
        %v498 = vld [vmem:[%s491 + $0x48] sm:$0xff]
        %v499 = vld [vmem:[%s491 + $0x50] sm:$0xff]
        %v500 = vld [vmem:[%s491 + $0x60] sm:$0xff]
        %v501 = vld [vmem:[%s491 + $0x68] sm:$0xff]
        %v502 = vld [vmem:[%s491 + $0x78] sm:$0xff]
        %v503 = vld [vmem:[%s491 + $0x80] sm:$0xff]
        %v504 = vld [vmem:[%s491 + $0x90] sm:$0xff]
        %v505 = vld [vmem:[%s491 + $0x98] sm:$0xff]
        %v506 = vld [vmem:[%s491 + $0xa8] sm:$0xff]
        %v507 = vld [vmem:[%s491 + $0xb0] sm:$0xff]
        %v508 = vld [vmem:[%s491 + $0xc0] sm:$0xff]
        %v509 = vld [vmem:[%s491 + $0xc8] sm:$0xff]
        %v510 = vld [vmem:[%s491 + $0xd8] sm:$0xff]
        %v511 = vld [vmem:[%s491 + $0xe0] sm:$0xff]
        %v512 = vld [vmem:[%s491 + $0xf0] sm:$0xff]
        %v513 = vld [vmem:[%s491 + $0xf8] sm:$0xff]
        %v514 = vld [vmem:[%s491 + $0x108] sm:$0xff]
        %v515 = vld [vmem:[%s491 + $0x110] sm:$0xff]
        %v516 = vld [vmem:[%s491 + $0x120] sm:$0xff]
        %v517 = vld [vmem:[%s491 + $0x128] sm:$0xff]
        %v518 = vld [vmem:[%s491 + $0x138] sm:$0xff]
        %v519 = vld [vmem:[%s491 + $0x140] sm:$0xff]
        %v520 = vld [vmem:[%s491 + $0x150] sm:$0xff]
        %v521 = vld [vmem:[%s491 + $0x158] sm:$0xff]
        %v522 = vld [vmem:[%s491 + $0x168] sm:$0xff]
        %v523 = vld [vmem:[%s491 + $0x170] sm:$0xff]
        %s524 = scalar_lea.vmem %s471, %s490
        %v525 = vld [vmem:[%s524] sm:$0xff]
        %v526 = vld [vmem:[%s524 + $0x8] sm:$0xff]
        %v527 = vld [vmem:[%s524 + $0x18] sm:$0xff]
        %v528 = vld [vmem:[%s524 + $0x20] sm:$0xff]
        %v529 = vld [vmem:[%s524 + $0x30] sm:$0xff]
        %v530 = vld [vmem:[%s524 + $0x38] sm:$0xff]
        %v531 = vld [vmem:[%s524 + $0x48] sm:$0xff]
        %v532 = vld [vmem:[%s524 + $0x50] sm:$0xff]
        %v533 = vld [vmem:[%s524 + $0x60] sm:$0xff]
        %v534 = vld [vmem:[%s524 + $0x68] sm:$0xff]
        %v535 = vld [vmem:[%s524 + $0x78] sm:$0xff]
        %v536 = vld [vmem:[%s524 + $0x80] sm:$0xff]
        %v537 = vld [vmem:[%s524 + $0x90] sm:$0xff]
        %v538 = vld [vmem:[%s524 + $0x98] sm:$0xff]
        %v539 = vld [vmem:[%s524 + $0xa8] sm:$0xff]
        %v540 = vld [vmem:[%s524 + $0xb0] sm:$0xff]
        %v541 = vld [vmem:[%s524 + $0xc0] sm:$0xff]
        %v542 = vld [vmem:[%s524 + $0xc8] sm:$0xff]
        %v543 = vld [vmem:[%s524 + $0xd8] sm:$0xff]
        %v544 = vld [vmem:[%s524 + $0xe0] sm:$0xff]
        %v545 = vld [vmem:[%s524 + $0xf0] sm:$0xff]
        %v546 = vld [vmem:[%s524 + $0xf8] sm:$0xff]
        %v547 = vld [vmem:[%s524 + $0x108] sm:$0xff]
        %v548 = vld [vmem:[%s524 + $0x110] sm:$0xff]
        %v549 = vld [vmem:[%s524 + $0x120] sm:$0xff]
        %v550 = vld [vmem:[%s524 + $0x128] sm:$0xff]
        %v551 = vld [vmem:[%s524 + $0x138] sm:$0xff]
        %v552 = vld [vmem:[%s524 + $0x140] sm:$0xff]
        %v553 = vld [vmem:[%s524 + $0x150] sm:$0xff]
        %v554 = vld [vmem:[%s524 + $0x158] sm:$0xff]
        %v555 = vld [vmem:[%s524 + $0x168] sm:$0xff]
        %v556 = vld [vmem:[%s524 + $0x170] sm:$0xff]
        %v557 = vld [vmem:[%s3] sm:$0xff]
        %v558 = vld [vmem:[%s3 + $0x8] sm:$0xff]
        %v559 = vld [vmem:[%s3 + $0x10] sm:$0xff]
        %v560 = vld [vmem:[%s3 + $0x18] sm:$0xff]
        %v561 = vld [vmem:[%s3 + $0x20] sm:$0xff]
        %v562 = vld [vmem:[%s3 + $0x28] sm:$0xff]
        %v563 = vld [vmem:[%s3 + $0x30] sm:$0xff]
        %v564 = vld [vmem:[%s3 + $0x38] sm:$0xff]
        %v565 = vld [vmem:[%s3 + $0x40] sm:$0xff]
        %v566 = vld [vmem:[%s3 + $0x48] sm:$0xff]
        %v567 = vld [vmem:[%s3 + $0x50] sm:$0xff]
        %v568 = vld [vmem:[%s3 + $0x58] sm:$0xff]
        %v569 = vld [vmem:[%s3 + $0x60] sm:$0xff]
        %v570 = vld [vmem:[%s3 + $0x68] sm:$0xff]
        %v571 = vld [vmem:[%s3 + $0x70] sm:$0xff]
        %v572 = vld [vmem:[%s3 + $0x78] sm:$0xff]
        %v573 = vld [vmem:[%s3 + $0x80] sm:$0xff]
        %v574 = vld [vmem:[%s3 + $0x88] sm:$0xff]
        %v575 = vld [vmem:[%s3 + $0x90] sm:$0xff]
        %v576 = vld [vmem:[%s3 + $0x98] sm:$0xff]
        %v577 = vld [vmem:[%s3 + $0xa0] sm:$0xff]
        %v578 = vld [vmem:[%s3 + $0xa8] sm:$0xff]
        %v579 = vld [vmem:[%s3 + $0xb0] sm:$0xff]
        %v580 = vld [vmem:[%s3 + $0xb8] sm:$0xff]
        %v581 = vld [vmem:[%s3 + $0xc0] sm:$0xff]
        %v582 = vld [vmem:[%s3 + $0xc8] sm:$0xff]
        %v583 = vld [vmem:[%s3 + $0xd0] sm:$0xff]
        %v584 = vld [vmem:[%s3 + $0xd8] sm:$0xff]
        %v585 = vld [vmem:[%s3 + $0xe0] sm:$0xff]
        %v586 = vld [vmem:[%s3 + $0xe8] sm:$0xff]
        %v587 = vld [vmem:[%s3 + $0xf0] sm:$0xff]
        %v588 = vld [vmem:[%s3 + $0xf8] sm:$0xff]
        %v589 = vadd.f32 %v492, %v557
        %v590 = vadd.f32 %v493, %v558
        %v591 = vadd.f32 %v494, %v559
        %v592 = vadd.f32 %v495, %v560
        %v593 = vadd.f32 %v496, %v561
        %v594 = vadd.f32 %v497, %v562
        %v595 = vadd.f32 %v498, %v563
        %v596 = vadd.f32 %v499, %v564
        %v597 = vadd.f32 %v500, %v565
        %v598 = vadd.f32 %v501, %v566
        %v599 = vadd.f32 %v502, %v567
        %v600 = vadd.f32 %v503, %v568
        %v601 = vadd.f32 %v504, %v569
        %v602 = vadd.f32 %v505, %v570
        %v603 = vadd.f32 %v506, %v571
        %v604 = vadd.f32 %v507, %v572
        %v605 = vadd.f32 %v508, %v573
        %v606 = vadd.f32 %v509, %v574
        %v607 = vadd.f32 %v510, %v575
        %v608 = vadd.f32 %v511, %v576
        %v609 = vadd.f32 %v512, %v577
        %v610 = vadd.f32 %v513, %v578
        %v611 = vadd.f32 %v514, %v579
        %v612 = vadd.f32 %v515, %v580
        %v613 = vadd.f32 %v516, %v581
        %v614 = vadd.f32 %v517, %v582
        %v615 = vadd.f32 %v518, %v583
        %v616 = vadd.f32 %v519, %v584
        %v617 = vadd.f32 %v520, %v585
        %v618 = vadd.f32 %v521, %v586
        %v619 = vadd.f32 %v522, %v587
        %v620 = vadd.f32 %v523, %v588
        %v621 = vpack.c.bf16 %v590, %v589
        %v622 = vpack.c.bf16 %v592, %v591
        %v623 = vpack.c.bf16 %v594, %v593
        %v624 = vpack.c.bf16 %v596, %v595
        %v625 = vpack.c.bf16 %v598, %v597
        %v626 = vpack.c.bf16 %v600, %v599
        %v627 = vpack.c.bf16 %v602, %v601
        %v628 = vpack.c.bf16 %v604, %v603
        %v629 = vpack.c.bf16 %v606, %v605
        %v630 = vpack.c.bf16 %v608, %v607
        %v631 = vpack.c.bf16 %v610, %v609
        %v632 = vpack.c.bf16 %v612, %v611
        %v633 = vpack.c.bf16 %v614, %v613
        %v634 = vpack.c.bf16 %v616, %v615
        %v635 = vpack.c.bf16 %v618, %v617
        %v636 = vpack.c.bf16 %v620, %v619
        %v637 = vpack.c.bf16 %v526, %v525
        %v638 = vpack.c.bf16 %v528, %v527
        %v639 = vpack.c.bf16 %v530, %v529
        %v640 = vpack.c.bf16 %v532, %v531
        %v641 = vpack.c.bf16 %v534, %v533
        %v642 = vpack.c.bf16 %v536, %v535
        %v643 = vpack.c.bf16 %v538, %v537
        %v644 = vpack.c.bf16 %v540, %v539
        %v645 = vpack.c.bf16 %v542, %v541
        %v646 = vpack.c.bf16 %v544, %v543
        %v647 = vpack.c.bf16 %v546, %v545
        %v648 = vpack.c.bf16 %v548, %v547
        %v649 = vpack.c.bf16 %v550, %v549
        %v650 = vpack.c.bf16 %v552, %v551
        %v651 = vpack.c.bf16 %v554, %v553
        %v652 = vpack.c.bf16 %v556, %v555
        %v653 = vld [vmem:[%s4] sm:$0x3]
        %v655 = vlaneseq
        %v656 = vshrl.u32 %v655, 7
        %v657 = vsub.s32 0, %v656
        %v658 = vrot.slane %v653, %v657
        %v659 = vlaneseq
        %v660 = vshrl.u32 %v659, 7
        %v661 = vsub.s32 1, %v660
        %v662 = vrot.slane %v653, %v661
        %vm665 = vcmask 31744
        %v667 = vsel %vm665, %v485, 0
        %v670 = vsel %vm665, %v486, 0
        %v673 = vsel %vm665, %v487, 0
        %v676 = vsel %vm665, %v488, 0
        %v679 = vsel %vm665, %v621, 0
        %v682 = vsel %vm665, %v622, 0
        %v685 = vsel %vm665, %v623, 0
        %v688 = vsel %vm665, %v624, 0
        %v691 = vsel %vm665, %v625, 0
        %v694 = vsel %vm665, %v626, 0
        %v697 = vsel %vm665, %v627, 0
        %v700 = vsel %vm665, %v628, 0
        %v703 = vsel %vm665, %v629, 0
        %v706 = vsel %vm665, %v630, 0
        %v709 = vsel %vm665, %v631, 0
        %v712 = vsel %vm665, %v632, 0
        %v715 = vsel %vm665, %v633, 0
        %v718 = vsel %vm665, %v634, 0
        %v721 = vsel %vm665, %v635, 0
        %v724 = vsel %vm665, %v636, 0
        %726 = vmatprep.subr.bf16.mxu0 0
        %727 = vmatpush1.bf16.xpose.msra.mxu0 %v679
        %728 = vmatprep.subr.bf16.mxu0 0
        %729 = vmatpush1.bf16.xpose.msra.mxu0 %v682
        %730 = vmatprep.subr.bf16.mxu0 0
        %731 = vmatpush1.bf16.xpose.msra.mxu0 %v685
        %732 = vmatprep.subr.bf16.mxu0 0
        %733 = vmatpush1.bf16.xpose.msra.mxu0 %v688
        %734 = vmatprep.subr.bf16.mxu0 0
        %735 = vmatpush1.bf16.xpose.msra.mxu0 %v691
        %736 = vmatprep.subr.bf16.mxu0 0
        %737 = vmatpush1.bf16.xpose.msra.mxu0 %v694
        %738 = vmatprep.subr.bf16.mxu0 0
        %739 = vmatpush1.bf16.xpose.msra.mxu0 %v697
        %740 = vmatprep.subr.bf16.mxu0 0
        %741 = vmatpush1.bf16.xpose.msra.mxu0 %v700
        %742 = vmatprep.subr.bf16.mxu0 0
        %743 = vmatpush1.bf16.xpose.msra.mxu0 %v703
        %744 = vmatprep.subr.bf16.mxu0 0
        %745 = vmatpush1.bf16.xpose.msra.mxu0 %v706
        %746 = vmatprep.subr.bf16.mxu0 0
        %747 = vmatpush1.bf16.xpose.msra.mxu0 %v709
        %748 = vmatprep.subr.bf16.mxu0 0
        %749 = vmatpush1.bf16.xpose.msra.mxu0 %v712
        %750 = vmatprep.subr.bf16.mxu0 0
        %751 = vmatpush1.bf16.xpose.msra.mxu0 %v715
        %752 = vmatprep.subr.bf16.mxu0 0
        %753 = vmatpush1.bf16.xpose.msra.mxu0 %v718
        %754 = vmatprep.subr.bf16.mxu0 0
        %755 = vmatpush1.bf16.xpose.msra.mxu0 %v721
        %756 = vmatprep.subr.bf16.mxu0 0
        %757 = vmatpush1.bf16.xpose.msra.mxu0 %v724
        %758 = vmatprep.mubr.bf16.mxu0 0
        %759 = vmatmul.mubr.bf16.gmra.mrb[0].mxu0 %v667
        %v760 = vpop.f32.mrb[0].mxu0
        %v761 = vadd.f32 %v658, %v760
        %v762 = vpop.f32.mrb[0].mxu0
        %v763 = vadd.f32 %v662, %v762
        %v764 = vpop.f32.mrb[0].mxu0
        %v765 = vadd.f32 %v658, %v764
        %v766 = vpop.f32.mrb[0].mxu0
        %v767 = vadd.f32 %v662, %v766
        %768 = vmatprep.mubr.bf16.mxu0 0
        %769 = vmatmul.mubr.bf16.gmra.mrb[0].mxu0 %v670
        %v770 = vpop.f32.mrb[0].mxu0
        %v771 = vadd.f32 %v658, %v770
        %v772 = vpop.f32.mrb[0].mxu0
        %v773 = vadd.f32 %v662, %v772
        %v774 = vpop.f32.mrb[0].mxu0
        %v775 = vadd.f32 %v658, %v774
        %v776 = vpop.f32.mrb[0].mxu0
        %v777 = vadd.f32 %v662, %v776
        %778 = vmatprep.mubr.bf16.mxu0 0
        %779 = vmatmul.mubr.bf16.gmra.mrb[0].mxu0 %v673
        %v780 = vpop.f32.mrb[0].mxu0
        %v781 = vadd.f32 %v658, %v780
        %v782 = vpop.f32.mrb[0].mxu0
        %v783 = vadd.f32 %v662, %v782
        %v784 = vpop.f32.mrb[0].mxu0
        %v785 = vadd.f32 %v658, %v784
        %v786 = vpop.f32.mrb[0].mxu0
        %v787 = vadd.f32 %v662, %v786
        %788 = vmatprep.mubr.bf16.mxu0 0
        %789 = vmatmul.mubr.bf16.gmra.mrb[0].mxu0 %v676
        %v790 = vpop.f32.mrb[0].mxu0
        %v791 = vadd.f32 %v658, %v790
        %v792 = vpop.f32.mrb[0].mxu0
        %v793 = vadd.f32 %v662, %v792
        %v794 = vpop.f32.mrb[0].mxu0
        %v795 = vadd.f32 %v658, %v794
        %v796 = vpop.f32.mrb[0].mxu0
        %v797 = vadd.f32 %v662, %v796
        %798 = vdwg.mxu0
        %v799 = vmax.f32 %v761, %v763
        %800 = vmax.xlane.f32.xlu0 %v799
        %v801 = vpop.xlane.xlu0 %800
        %v802 = vmax.f32 %v765, %v767
        %803 = vmax.xlane.f32.xlu0 %v802
        %v804 = vpop.xlane.xlu0 %803
        %v805 = vmax.f32 %v771, %v773
        %806 = vmax.xlane.f32.xlu0 %v805
        %v807 = vpop.xlane.xlu0 %806
        %v808 = vmax.f32 %v775, %v777
        %809 = vmax.xlane.f32.xlu0 %v808
        %v810 = vpop.xlane.xlu0 %809
        %v811 = vmax.f32 %v781, %v783
        %812 = vmax.xlane.f32.xlu0 %v811
        %v813 = vpop.xlane.xlu0 %812
        %v814 = vmax.f32 %v785, %v787
        %815 = vmax.xlane.f32.xlu0 %v814
        %v816 = vpop.xlane.xlu0 %815
        %v817 = vmax.f32 %v791, %v793
        %818 = vmax.xlane.f32.xlu0 %v817
        %v819 = vpop.xlane.xlu0 %818
        %v820 = vmax.f32 %v795, %v797
        %821 = vmax.xlane.f32.xlu0 %v820
        %v822 = vpop.xlane.xlu0 %821
        %v823 = vsub.f32 %v761, %v801
        %v824 = vsub.f32 %v763, %v801
        %v825 = vsub.f32 %v765, %v804
        %v826 = vsub.f32 %v767, %v804
        %v827 = vsub.f32 %v771, %v807
        %v828 = vsub.f32 %v773, %v807
        %v829 = vsub.f32 %v775, %v810
        %v830 = vsub.f32 %v777, %v810
        %v831 = vsub.f32 %v781, %v813
        %v832 = vsub.f32 %v783, %v813
        %v833 = vsub.f32 %v785, %v816
        %v834 = vsub.f32 %v787, %v816
        %v835 = vsub.f32 %v791, %v819
        %v836 = vsub.f32 %v793, %v819
        %v837 = vsub.f32 %v795, %v822
        %v838 = vsub.f32 %v797, %v822
        %v839 = vmul.f32 %v823, 1.442695
        %v840 = vpow.pop %v839
        %v841 = vmul.f32 %v824, 1.442695
        %v842 = vpow.pop %v841
        %v843 = vmul.f32 %v825, 1.442695
        %v844 = vpow.pop %v843
        %v845 = vmul.f32 %v826, 1.442695
        %v846 = vpow.pop %v845
        %v847 = vmul.f32 %v827, 1.442695
        %v848 = vpow.pop %v847
        %v849 = vmul.f32 %v828, 1.442695
        %v850 = vpow.pop %v849
        %v851 = vmul.f32 %v829, 1.442695
        %v852 = vpow.pop %v851
        %v853 = vmul.f32 %v830, 1.442695
        %v854 = vpow.pop %v853
        %v855 = vmul.f32 %v831, 1.442695
        %v856 = vpow.pop %v855
        %v857 = vmul.f32 %v832, 1.442695
        %v858 = vpow.pop %v857
        %v859 = vmul.f32 %v833, 1.442695
        %v860 = vpow.pop %v859
        %v861 = vmul.f32 %v834, 1.442695
        %v862 = vpow.pop %v861
        %v863 = vmul.f32 %v835, 1.442695
        %v864 = vpow.pop %v863
        %v865 = vmul.f32 %v836, 1.442695
        %v866 = vpow.pop %v865
        %v867 = vmul.f32 %v837, 1.442695
        %v868 = vpow.pop %v867
        %v869 = vmul.f32 %v838, 1.442695
        %v870 = vpow.pop %v869
        %v871 = vadd.f32 %v840, %v842
        %872 = vadd.xlane.f32.xlu0 %v871
        %v873 = vpop.xlane.xlu0 %872
        %v874 = vadd.f32 %v844, %v846
        %875 = vadd.xlane.f32.xlu0 %v874
        %v876 = vpop.xlane.xlu0 %875
        %v877 = vadd.f32 %v848, %v850
        %878 = vadd.xlane.f32.xlu0 %v877
        %v879 = vpop.xlane.xlu0 %878
        %v880 = vadd.f32 %v852, %v854
        %881 = vadd.xlane.f32.xlu0 %v880
        %v882 = vpop.xlane.xlu0 %881
        %v883 = vadd.f32 %v856, %v858
        %884 = vadd.xlane.f32.xlu0 %v883
        %v885 = vpop.xlane.xlu0 %884
        %v886 = vadd.f32 %v860, %v862
        %887 = vadd.xlane.f32.xlu0 %v886
        %v888 = vpop.xlane.xlu0 %887
        %v889 = vadd.f32 %v864, %v866
        %890 = vadd.xlane.f32.xlu0 %v889
        %v891 = vpop.xlane.xlu0 %890
        %v892 = vadd.f32 %v868, %v870
        %893 = vadd.xlane.f32.xlu0 %v892
        %v894 = vpop.xlane.xlu0 %893
        %v895 = vpack.c.bf16 %v844, %v840
        %v896 = vpack.c.bf16 %v846, %v842
        %v897 = vpack.c.bf16 %v852, %v848
        %v898 = vpack.c.bf16 %v854, %v850
        %v899 = vpack.c.bf16 %v860, %v856
        %v900 = vpack.c.bf16 %v862, %v858
        %v901 = vpack.c.bf16 %v868, %v864
        %v902 = vpack.c.bf16 %v870, %v866
        %903 = vmatprep.subr.bf16.mxu0 0
        %904 = vmatpush1.bf16.msra.mxu0 %v637
        %905 = vmatprep.subr.bf16.mxu0 0
        %906 = vmatpush1.bf16.msra.mxu0 %v638
        %907 = vmatprep.subr.bf16.mxu0 0
        %908 = vmatpush1.bf16.msra.mxu0 %v639
        %909 = vmatprep.subr.bf16.mxu0 0
        %910 = vmatpush1.bf16.msra.mxu0 %v640
        %911 = vmatprep.subr.bf16.mxu0 0
        %912 = vmatpush1.bf16.msra.mxu0 %v641
        %913 = vmatprep.subr.bf16.mxu0 0
        %914 = vmatpush1.bf16.msra.mxu0 %v642
        %915 = vmatprep.subr.bf16.mxu0 0
        %916 = vmatpush1.bf16.msra.mxu0 %v643
        %917 = vmatprep.subr.bf16.mxu0 0
        %918 = vmatpush1.bf16.msra.mxu0 %v644
        %919 = vmatprep.subr.bf16.mxu0 0
        %920 = vmatpush1.bf16.msra.mxu0 %v645
        %921 = vmatprep.subr.bf16.mxu0 0
        %922 = vmatpush1.bf16.msra.mxu0 %v646
        %923 = vmatprep.subr.bf16.mxu0 0
        %924 = vmatpush1.bf16.msra.mxu0 %v647
        %925 = vmatprep.subr.bf16.mxu0 0
        %926 = vmatpush1.bf16.msra.mxu0 %v648
        %927 = vmatprep.subr.bf16.mxu0 0
        %928 = vmatpush1.bf16.msra.mxu0 %v649
        %929 = vmatprep.subr.bf16.mxu0 0
        %930 = vmatpush1.bf16.msra.mxu0 %v650
        %931 = vmatprep.subr.bf16.mxu0 0
        %932 = vmatpush1.bf16.msra.mxu0 %v651
        %933 = vmatprep.subr.bf16.mxu0 0
        %934 = vmatpush1.bf16.msra.mxu0 %v652
        %935 = vmatprep.mubr.bf16.mxu0 %v896
        %936 = vmatmul.mubr.bf16.gmra.mrb[0].mxu0 %v895
        %v937 = vpop.f32.mrb[0].mxu0
        %v938 = vadd.f32 0.0, %v937
        %v939 = vpop.f32.mrb[0].mxu0
        %v940 = vpop.f32.mrb[0].mxu0
        %v941 = vadd.f32 0.0, %v940
        %v942 = vpop.f32.mrb[0].mxu0
        %943 = vmatprep.mubr.bf16.mxu0 %v898
        %944 = vmatmul.mubr.bf16.gmra.mrb[0].mxu0 %v897
        %v945 = vpop.f32.mrb[0].mxu0
        %v946 = vadd.f32 0.0, %v945
        %v947 = vpop.f32.mrb[0].mxu0
        %v948 = vpop.f32.mrb[0].mxu0
        %v949 = vadd.f32 0.0, %v948
        %v950 = vpop.f32.mrb[0].mxu0
        %951 = vmatprep.mubr.bf16.mxu0 %v900
        %952 = vmatmul.mubr.bf16.gmra.mrb[0].mxu0 %v899
        %v953 = vpop.f32.mrb[0].mxu0
        %v954 = vadd.f32 0.0, %v953
        %v955 = vpop.f32.mrb[0].mxu0
        %v956 = vpop.f32.mrb[0].mxu0
        %v957 = vadd.f32 0.0, %v956
        %v958 = vpop.f32.mrb[0].mxu0
        %959 = vmatprep.mubr.bf16.mxu0 %v902
        %960 = vmatmul.mubr.bf16.gmra.mrb[0].mxu0 %v901
        %v961 = vpop.f32.mrb[0].mxu0
        %v962 = vadd.f32 0.0, %v961
        %v963 = vpop.f32.mrb[0].mxu0
        %v964 = vpop.f32.mrb[0].mxu0
        %v965 = vadd.f32 0.0, %v964
        %v966 = vpop.f32.mrb[0].mxu0
        %967 = vdwg.mxu0
        %v968 = vrcp.pop %v873
        %v969 = vrcp.pop %v876
        %v970 = vrcp.pop %v879
        %v971 = vrcp.pop %v882
        %v972 = vrcp.pop %v885
        %v973 = vrcp.pop %v888
        %v974 = vrcp.pop %v891
        %v975 = vrcp.pop %v894
        %v976 = vmul.f32 %v938, %v968
        %v977 = vmul.f32 %v941, %v969
        %v978 = vmul.f32 %v946, %v970
        %v979 = vmul.f32 %v949, %v971
        %v980 = vmul.f32 %v954, %v972
        %v981 = vmul.f32 %v957, %v973
        %v982 = vmul.f32 %v962, %v974
        %v983 = vmul.f32 %v965, %v975
        %988 = vrot.lane.b32.xlu0 %v485, 124
        %v989 = vpop.permute.xlu0 %988
        %990 = vrot.lane.b32.xlu0 %v486, 124
        %v991 = vpop.permute.xlu0 %990
        %992 = vrot.lane.b32.xlu0 %v487, 124
        %v993 = vpop.permute.xlu0 %992
        %994 = vrot.lane.b32.xlu0 %v488, 124
        %v995 = vpop.permute.xlu0 %994
        %1012 = vrot.lane.b32.xlu0 %v621, 124
        %v1013 = vpop.permute.xlu0 %1012
        %1014 = vrot.lane.b32.xlu0 %v622, 124
        %v1015 = vpop.permute.xlu0 %1014
        %1016 = vrot.lane.b32.xlu0 %v623, 124
        %v1017 = vpop.permute.xlu0 %1016
        %1018 = vrot.lane.b32.xlu0 %v624, 124
        %v1019 = vpop.permute.xlu0 %1018
        %1020 = vrot.lane.b32.xlu0 %v625, 124
        %v1021 = vpop.permute.xlu0 %1020
        %1022 = vrot.lane.b32.xlu0 %v626, 124
        %v1023 = vpop.permute.xlu0 %1022
        %1024 = vrot.lane.b32.xlu0 %v627, 124
        %v1025 = vpop.permute.xlu0 %1024
        %1026 = vrot.lane.b32.xlu0 %v628, 124
        %v1027 = vpop.permute.xlu0 %1026
        %1028 = vrot.lane.b32.xlu0 %v629, 124
        %v1029 = vpop.permute.xlu0 %1028
        %1030 = vrot.lane.b32.xlu0 %v630, 124
        %v1031 = vpop.permute.xlu0 %1030
        %1032 = vrot.lane.b32.xlu0 %v631, 124
        %v1033 = vpop.permute.xlu0 %1032
        %1034 = vrot.lane.b32.xlu0 %v632, 124
        %v1035 = vpop.permute.xlu0 %1034
        %1036 = vrot.lane.b32.xlu0 %v633, 124
        %v1037 = vpop.permute.xlu0 %1036
        %1038 = vrot.lane.b32.xlu0 %v634, 124
        %v1039 = vpop.permute.xlu0 %1038
        %1040 = vrot.lane.b32.xlu0 %v635, 124
        %v1041 = vpop.permute.xlu0 %1040
        %1042 = vrot.lane.b32.xlu0 %v636, 124
        %v1043 = vpop.permute.xlu0 %1042
        %v1045 = vsel %vm665, %v989, 0
        %v1048 = vsel %vm665, %v991, 0
        %v1051 = vsel %vm665, %v993, 0
        %v1054 = vsel %vm665, %v995, 0
        %v1057 = vsel %vm665, %v1013, 0
        %v1060 = vsel %vm665, %v1015, 0
        %v1063 = vsel %vm665, %v1017, 0
        %v1066 = vsel %vm665, %v1019, 0
        %v1069 = vsel %vm665, %v1021, 0
        %v1072 = vsel %vm665, %v1023, 0
        %v1075 = vsel %vm665, %v1025, 0
        %v1078 = vsel %vm665, %v1027, 0
        %v1081 = vsel %vm665, %v1029, 0
        %v1084 = vsel %vm665, %v1031, 0
        %v1087 = vsel %vm665, %v1033, 0
        %v1090 = vsel %vm665, %v1035, 0
        %v1093 = vsel %vm665, %v1037, 0
        %v1096 = vsel %vm665, %v1039, 0
        %v1099 = vsel %vm665, %v1041, 0
        %v1102 = vsel %vm665, %v1043, 0
        %1104 = vmatprep.subr.bf16.mxu0 0
        %1105 = vmatpush1.bf16.xpose.msra.mxu0 %v1057
        %1106 = vmatprep.subr.bf16.mxu0 0
        %1107 = vmatpush1.bf16.xpose.msra.mxu0 %v1060
        %1108 = vmatprep.subr.bf16.mxu0 0
        %1109 = vmatpush1.bf16.xpose.msra.mxu0 %v1063
        %1110 = vmatprep.subr.bf16.mxu0 0
        %1111 = vmatpush1.bf16.xpose.msra.mxu0 %v1066
        %1112 = vmatprep.subr.bf16.mxu0 0
        %1113 = vmatpush1.bf16.xpose.msra.mxu0 %v1069
        %1114 = vmatprep.subr.bf16.mxu0 0
        %1115 = vmatpush1.bf16.xpose.msra.mxu0 %v1072
        %1116 = vmatprep.subr.bf16.mxu0 0
        %1117 = vmatpush1.bf16.xpose.msra.mxu0 %v1075
        %1118 = vmatprep.subr.bf16.mxu0 0
        %1119 = vmatpush1.bf16.xpose.msra.mxu0 %v1078
        %1120 = vmatprep.subr.bf16.mxu0 0
        %1121 = vmatpush1.bf16.xpose.msra.mxu0 %v1081
        %1122 = vmatprep.subr.bf16.mxu0 0
        %1123 = vmatpush1.bf16.xpose.msra.mxu0 %v1084
        %1124 = vmatprep.subr.bf16.mxu0 0
        %1125 = vmatpush1.bf16.xpose.msra.mxu0 %v1087
        %1126 = vmatprep.subr.bf16.mxu0 0
        %1127 = vmatpush1.bf16.xpose.msra.mxu0 %v1090
        %1128 = vmatprep.subr.bf16.mxu0 0
        %1129 = vmatpush1.bf16.xpose.msra.mxu0 %v1093
        %1130 = vmatprep.subr.bf16.mxu0 0
        %1131 = vmatpush1.bf16.xpose.msra.mxu0 %v1096
        %1132 = vmatprep.subr.bf16.mxu0 0
        %1133 = vmatpush1.bf16.xpose.msra.mxu0 %v1099
        %1134 = vmatprep.subr.bf16.mxu0 0
        %1135 = vmatpush1.bf16.xpose.msra.mxu0 %v1102
        %1136 = vmatprep.mubr.bf16.mxu0 0
        %1137 = vmatmul.mubr.bf16.gmra.mrb[0].mxu0 %v1045
        %v1138 = vpop.f32.mrb[0].mxu0
        %v1139 = vadd.f32 %v658, %v1138
        %v1140 = vpop.f32.mrb[0].mxu0
        %v1141 = vadd.f32 %v662, %v1140
        %v1142 = vpop.f32.mrb[0].mxu0
        %v1143 = vadd.f32 %v658, %v1142
        %v1144 = vpop.f32.mrb[0].mxu0
        %v1145 = vadd.f32 %v662, %v1144
        %1146 = vmatprep.mubr.bf16.mxu0 0
        %1147 = vmatmul.mubr.bf16.gmra.mrb[0].mxu0 %v1048
        %v1148 = vpop.f32.mrb[0].mxu0
        %v1149 = vadd.f32 %v658, %v1148
        %v1150 = vpop.f32.mrb[0].mxu0
        %v1151 = vadd.f32 %v662, %v1150
        %v1152 = vpop.f32.mrb[0].mxu0
        %v1153 = vadd.f32 %v658, %v1152
        %v1154 = vpop.f32.mrb[0].mxu0
        %v1155 = vadd.f32 %v662, %v1154
        %1156 = vmatprep.mubr.bf16.mxu0 0
        %1157 = vmatmul.mubr.bf16.gmra.mrb[0].mxu0 %v1051
        %v1158 = vpop.f32.mrb[0].mxu0
        %v1159 = vadd.f32 %v658, %v1158
        %v1160 = vpop.f32.mrb[0].mxu0
        %v1161 = vadd.f32 %v662, %v1160
        %v1162 = vpop.f32.mrb[0].mxu0
        %v1163 = vadd.f32 %v658, %v1162
        %v1164 = vpop.f32.mrb[0].mxu0
        %v1165 = vadd.f32 %v662, %v1164
        %1166 = vmatprep.mubr.bf16.mxu0 0
        %1167 = vmatmul.mubr.bf16.gmra.mrb[0].mxu0 %v1054
        %v1168 = vpop.f32.mrb[0].mxu0
        %v1169 = vadd.f32 %v658, %v1168
        %v1170 = vpop.f32.mrb[0].mxu0
        %v1171 = vadd.f32 %v662, %v1170
        %v1172 = vpop.f32.mrb[0].mxu0
        %v1173 = vadd.f32 %v658, %v1172
        %v1174 = vpop.f32.mrb[0].mxu0
        %v1175 = vadd.f32 %v662, %v1174
        %1176 = vdwg.mxu0
        %v1177 = vmax.f32 %v1139, %v1141
        %1178 = vmax.xlane.f32.xlu0 %v1177
        %v1179 = vpop.xlane.xlu0 %1178
        %v1180 = vmax.f32 %v1143, %v1145
        %1181 = vmax.xlane.f32.xlu0 %v1180
        %v1182 = vpop.xlane.xlu0 %1181
        %v1183 = vmax.f32 %v1149, %v1151
        %1184 = vmax.xlane.f32.xlu0 %v1183
        %v1185 = vpop.xlane.xlu0 %1184
        %v1186 = vmax.f32 %v1153, %v1155
        %1187 = vmax.xlane.f32.xlu0 %v1186
        %v1188 = vpop.xlane.xlu0 %1187
        %v1189 = vmax.f32 %v1159, %v1161
        %1190 = vmax.xlane.f32.xlu0 %v1189
        %v1191 = vpop.xlane.xlu0 %1190
        %v1192 = vmax.f32 %v1163, %v1165
        %1193 = vmax.xlane.f32.xlu0 %v1192
        %v1194 = vpop.xlane.xlu0 %1193
        %v1195 = vmax.f32 %v1169, %v1171
        %1196 = vmax.xlane.f32.xlu0 %v1195
        %v1197 = vpop.xlane.xlu0 %1196
        %v1198 = vmax.f32 %v1173, %v1175
        %1199 = vmax.xlane.f32.xlu0 %v1198
        %v1200 = vpop.xlane.xlu0 %1199
        %v1201 = vsub.f32 %v1139, %v1179
        %v1202 = vsub.f32 %v1141, %v1179
        %v1203 = vsub.f32 %v1143, %v1182
        %v1204 = vsub.f32 %v1145, %v1182
        %v1205 = vsub.f32 %v1149, %v1185
        %v1206 = vsub.f32 %v1151, %v1185
        %v1207 = vsub.f32 %v1153, %v1188
        %v1208 = vsub.f32 %v1155, %v1188
        %v1209 = vsub.f32 %v1159, %v1191
        %v1210 = vsub.f32 %v1161, %v1191
        %v1211 = vsub.f32 %v1163, %v1194
        %v1212 = vsub.f32 %v1165, %v1194
        %v1213 = vsub.f32 %v1169, %v1197
        %v1214 = vsub.f32 %v1171, %v1197
        %v1215 = vsub.f32 %v1173, %v1200
        %v1216 = vsub.f32 %v1175, %v1200
        %v1217 = vmul.f32 %v1201, 1.442695
        %v1218 = vpow.pop %v1217
        %v1219 = vmul.f32 %v1202, 1.442695
        %v1220 = vpow.pop %v1219
        %v1221 = vmul.f32 %v1203, 1.442695
        %v1222 = vpow.pop %v1221
        %v1223 = vmul.f32 %v1204, 1.442695
        %v1224 = vpow.pop %v1223
        %v1225 = vmul.f32 %v1205, 1.442695
        %v1226 = vpow.pop %v1225
        %v1227 = vmul.f32 %v1206, 1.442695
        %v1228 = vpow.pop %v1227
        %v1229 = vmul.f32 %v1207, 1.442695
        %v1230 = vpow.pop %v1229
        %v1231 = vmul.f32 %v1208, 1.442695
        %v1232 = vpow.pop %v1231
        %v1233 = vmul.f32 %v1209, 1.442695
        %v1234 = vpow.pop %v1233
        %v1235 = vmul.f32 %v1210, 1.442695
        %v1236 = vpow.pop %v1235
        %v1237 = vmul.f32 %v1211, 1.442695
        %v1238 = vpow.pop %v1237
        %v1239 = vmul.f32 %v1212, 1.442695
        %v1240 = vpow.pop %v1239
        %v1241 = vmul.f32 %v1213, 1.442695
        %v1242 = vpow.pop %v1241
        %v1243 = vmul.f32 %v1214, 1.442695
        %v1244 = vpow.pop %v1243
        %v1245 = vmul.f32 %v1215, 1.442695
        %v1246 = vpow.pop %v1245
        %v1247 = vmul.f32 %v1216, 1.442695
        %v1248 = vpow.pop %v1247
        %v1249 = vadd.f32 %v1218, %v1220
        %1250 = vadd.xlane.f32.xlu0 %v1249
        %v1251 = vpop.xlane.xlu0 %1250
        %v1252 = vadd.f32 %v1222, %v1224
        %1253 = vadd.xlane.f32.xlu0 %v1252
        %v1254 = vpop.xlane.xlu0 %1253
        %v1255 = vadd.f32 %v1226, %v1228
        %1256 = vadd.xlane.f32.xlu0 %v1255
        %v1257 = vpop.xlane.xlu0 %1256
        %v1258 = vadd.f32 %v1230, %v1232
        %1259 = vadd.xlane.f32.xlu0 %v1258
        %v1260 = vpop.xlane.xlu0 %1259
        %v1261 = vadd.f32 %v1234, %v1236
        %1262 = vadd.xlane.f32.xlu0 %v1261
        %v1263 = vpop.xlane.xlu0 %1262
        %v1264 = vadd.f32 %v1238, %v1240
        %1265 = vadd.xlane.f32.xlu0 %v1264
        %v1266 = vpop.xlane.xlu0 %1265
        %v1267 = vadd.f32 %v1242, %v1244
        %1268 = vadd.xlane.f32.xlu0 %v1267
        %v1269 = vpop.xlane.xlu0 %1268
        %v1270 = vadd.f32 %v1246, %v1248
        %1271 = vadd.xlane.f32.xlu0 %v1270
        %v1272 = vpop.xlane.xlu0 %1271
        %v1273 = vpack.c.bf16 %v1222, %v1218
        %v1274 = vpack.c.bf16 %v1224, %v1220
        %v1275 = vpack.c.bf16 %v1230, %v1226
        %v1276 = vpack.c.bf16 %v1232, %v1228
        %v1277 = vpack.c.bf16 %v1238, %v1234
        %v1278 = vpack.c.bf16 %v1240, %v1236
        %v1279 = vpack.c.bf16 %v1246, %v1242
        %v1280 = vpack.c.bf16 %v1248, %v1244
        %1297 = vrot.lane.b32.xlu0 %v637, 124
        %v1298 = vpop.permute.xlu0 %1297
        %1299 = vrot.lane.b32.xlu0 %v638, 124
        %v1300 = vpop.permute.xlu0 %1299
        %1301 = vrot.lane.b32.xlu0 %v639, 124
        %v1302 = vpop.permute.xlu0 %1301
        %1303 = vrot.lane.b32.xlu0 %v640, 124
        %v1304 = vpop.permute.xlu0 %1303
        %1305 = vrot.lane.b32.xlu0 %v641, 124
        %v1306 = vpop.permute.xlu0 %1305
        %1307 = vrot.lane.b32.xlu0 %v642, 124
        %v1308 = vpop.permute.xlu0 %1307
        %1309 = vrot.lane.b32.xlu0 %v643, 124
        %v1310 = vpop.permute.xlu0 %1309
        %1311 = vrot.lane.b32.xlu0 %v644, 124
        %v1312 = vpop.permute.xlu0 %1311
        %1313 = vrot.lane.b32.xlu0 %v645, 124
        %v1314 = vpop.permute.xlu0 %1313
        %1315 = vrot.lane.b32.xlu0 %v646, 124
        %v1316 = vpop.permute.xlu0 %1315
        %1317 = vrot.lane.b32.xlu0 %v647, 124
        %v1318 = vpop.permute.xlu0 %1317
        %1319 = vrot.lane.b32.xlu0 %v648, 124
        %v1320 = vpop.permute.xlu0 %1319
        %1321 = vrot.lane.b32.xlu0 %v649, 124
        %v1322 = vpop.permute.xlu0 %1321
        %1323 = vrot.lane.b32.xlu0 %v650, 124
        %v1324 = vpop.permute.xlu0 %1323
        %1325 = vrot.lane.b32.xlu0 %v651, 124
        %v1326 = vpop.permute.xlu0 %1325
        %1327 = vrot.lane.b32.xlu0 %v652, 124
        %v1328 = vpop.permute.xlu0 %1327
        %1345 = vmatprep.subr.bf16.mxu0 0
        %1346 = vmatpush1.bf16.msra.mxu0 %v1298
        %1347 = vmatprep.subr.bf16.mxu0 0
        %1348 = vmatpush1.bf16.msra.mxu0 %v1300
        %1349 = vmatprep.subr.bf16.mxu0 0
        %1350 = vmatpush1.bf16.msra.mxu0 %v1302
        %1351 = vmatprep.subr.bf16.mxu0 0
        %1352 = vmatpush1.bf16.msra.mxu0 %v1304
        %1353 = vmatprep.subr.bf16.mxu0 0
        %1354 = vmatpush1.bf16.msra.mxu0 %v1306
        %1355 = vmatprep.subr.bf16.mxu0 0
        %1356 = vmatpush1.bf16.msra.mxu0 %v1308
        %1357 = vmatprep.subr.bf16.mxu0 0
        %1358 = vmatpush1.bf16.msra.mxu0 %v1310
        %1359 = vmatprep.subr.bf16.mxu0 0
        %1360 = vmatpush1.bf16.msra.mxu0 %v1312
        %1361 = vmatprep.subr.bf16.mxu0 0
        %1362 = vmatpush1.bf16.msra.mxu0 %v1314
        %1363 = vmatprep.subr.bf16.mxu0 0
        %1364 = vmatpush1.bf16.msra.mxu0 %v1316
        %1365 = vmatprep.subr.bf16.mxu0 0
        %1366 = vmatpush1.bf16.msra.mxu0 %v1318
        %1367 = vmatprep.subr.bf16.mxu0 0
        %1368 = vmatpush1.bf16.msra.mxu0 %v1320
        %1369 = vmatprep.subr.bf16.mxu0 0
        %1370 = vmatpush1.bf16.msra.mxu0 %v1322
        %1371 = vmatprep.subr.bf16.mxu0 0
        %1372 = vmatpush1.bf16.msra.mxu0 %v1324
        %1373 = vmatprep.subr.bf16.mxu0 0
        %1374 = vmatpush1.bf16.msra.mxu0 %v1326
        %1375 = vmatprep.subr.bf16.mxu0 0
        %1376 = vmatpush1.bf16.msra.mxu0 %v1328
        %1377 = vmatprep.mubr.bf16.mxu0 %v1274
        %1378 = vmatmul.mubr.bf16.gmra.mrb[0].mxu0 %v1273
        %v1379 = vpop.f32.mrb[0].mxu0
        %v1380 = vadd.f32 0.0, %v1379
        %v1381 = vpop.f32.mrb[0].mxu0
        %v1382 = vpop.f32.mrb[0].mxu0
        %v1383 = vadd.f32 0.0, %v1382
        %v1384 = vpop.f32.mrb[0].mxu0
        %1385 = vmatprep.mubr.bf16.mxu0 %v1276
        %1386 = vmatmul.mubr.bf16.gmra.mrb[0].mxu0 %v1275
        %v1387 = vpop.f32.mrb[0].mxu0
        %v1388 = vadd.f32 0.0, %v1387
        %v1389 = vpop.f32.mrb[0].mxu0
        %v1390 = vpop.f32.mrb[0].mxu0
        %v1391 = vadd.f32 0.0, %v1390
        %v1392 = vpop.f32.mrb[0].mxu0
        %1393 = vmatprep.mubr.bf16.mxu0 %v1278
        %1394 = vmatmul.mubr.bf16.gmra.mrb[0].mxu0 %v1277
        %v1395 = vpop.f32.mrb[0].mxu0
        %v1396 = vadd.f32 0.0, %v1395
        %v1397 = vpop.f32.mrb[0].mxu0
        %v1398 = vpop.f32.mrb[0].mxu0
        %v1399 = vadd.f32 0.0, %v1398
        %v1400 = vpop.f32.mrb[0].mxu0
        %1401 = vmatprep.mubr.bf16.mxu0 %v1280
        %1402 = vmatmul.mubr.bf16.gmra.mrb[0].mxu0 %v1279
        %v1403 = vpop.f32.mrb[0].mxu0
        %v1404 = vadd.f32 0.0, %v1403
        %v1405 = vpop.f32.mrb[0].mxu0
        %v1406 = vpop.f32.mrb[0].mxu0
        %v1407 = vadd.f32 0.0, %v1406
        %v1408 = vpop.f32.mrb[0].mxu0
        %1409 = vdwg.mxu0
        %v1410 = vrcp.pop %v1251
        %v1411 = vrcp.pop %v1254
        %v1412 = vrcp.pop %v1257
        %v1413 = vrcp.pop %v1260
        %v1414 = vrcp.pop %v1263
        %v1415 = vrcp.pop %v1266
        %v1416 = vrcp.pop %v1269
        %v1417 = vrcp.pop %v1272
        %v1418 = vmul.f32 %v1380, %v1410
        %v1419 = vmul.f32 %v1383, %v1411
        %v1420 = vmul.f32 %v1388, %v1412
        %v1421 = vmul.f32 %v1391, %v1413
        %v1422 = vmul.f32 %v1396, %v1414
        %v1423 = vmul.f32 %v1399, %v1415
        %v1424 = vmul.f32 %v1404, %v1416
        %v1425 = vmul.f32 %v1407, %v1417
        %1426 = vrot.lane.b32.xlu0 %v485, 120
        %v1427 = vpop.permute.xlu0 %1426
        %1428 = vrot.lane.b32.xlu0 %v486, 120
        %v1429 = vpop.permute.xlu0 %1428
        %1430 = vrot.lane.b32.xlu0 %v487, 120
        %v1431 = vpop.permute.xlu0 %1430
        %1432 = vrot.lane.b32.xlu0 %v488, 120
        %v1433 = vpop.permute.xlu0 %1432
        %1434 = vrot.lane.b32.xlu0 %v621, 120
        %v1435 = vpop.permute.xlu0 %1434
        %1436 = vrot.lane.b32.xlu0 %v622, 120
        %v1437 = vpop.permute.xlu0 %1436
        %1438 = vrot.lane.b32.xlu0 %v623, 120
        %v1439 = vpop.permute.xlu0 %1438
        %1440 = vrot.lane.b32.xlu0 %v624, 120
        %v1441 = vpop.permute.xlu0 %1440
        %1442 = vrot.lane.b32.xlu0 %v625, 120
        %v1443 = vpop.permute.xlu0 %1442
        %1444 = vrot.lane.b32.xlu0 %v626, 120
        %v1445 = vpop.permute.xlu0 %1444
        %1446 = vrot.lane.b32.xlu0 %v627, 120
        %v1447 = vpop.permute.xlu0 %1446
        %1448 = vrot.lane.b32.xlu0 %v628, 120
        %v1449 = vpop.permute.xlu0 %1448
        %1450 = vrot.lane.b32.xlu0 %v629, 120
        %v1451 = vpop.permute.xlu0 %1450
        %1452 = vrot.lane.b32.xlu0 %v630, 120
        %v1453 = vpop.permute.xlu0 %1452
        %1454 = vrot.lane.b32.xlu0 %v631, 120
        %v1455 = vpop.permute.xlu0 %1454
        %1456 = vrot.lane.b32.xlu0 %v632, 120
        %v1457 = vpop.permute.xlu0 %1456
        %1458 = vrot.lane.b32.xlu0 %v633, 120
        %v1459 = vpop.permute.xlu0 %1458
        %1460 = vrot.lane.b32.xlu0 %v634, 120
        %v1461 = vpop.permute.xlu0 %1460
        %1462 = vrot.lane.b32.xlu0 %v635, 120
        %v1463 = vpop.permute.xlu0 %1462
        %1464 = vrot.lane.b32.xlu0 %v636, 120
        %v1465 = vpop.permute.xlu0 %1464
        %v1467 = vsel %vm665, %v1427, 0
        %v1470 = vsel %vm665, %v1429, 0
        %v1473 = vsel %vm665, %v1431, 0
        %v1476 = vsel %vm665, %v1433, 0
        %v1479 = vsel %vm665, %v1435, 0
        %v1482 = vsel %vm665, %v1437, 0
        %v1485 = vsel %vm665, %v1439, 0
        %v1488 = vsel %vm665, %v1441, 0
        %v1491 = vsel %vm665, %v1443, 0
        %v1494 = vsel %vm665, %v1445, 0
        %v1497 = vsel %vm665, %v1447, 0
        %v1500 = vsel %vm665, %v1449, 0
        %v1503 = vsel %vm665, %v1451, 0
        %v1506 = vsel %vm665, %v1453, 0
        %v1509 = vsel %vm665, %v1455, 0
        %v1512 = vsel %vm665, %v1457, 0
        %v1515 = vsel %vm665, %v1459, 0
        %v1518 = vsel %vm665, %v1461, 0
        %v1521 = vsel %vm665, %v1463, 0
        %v1524 = vsel %vm665, %v1465, 0
        %1526 = vmatprep.subr.bf16.mxu0 0
        %1527 = vmatpush1.bf16.xpose.msra.mxu0 %v1479
        %1528 = vmatprep.subr.bf16.mxu0 0
        %1529 = vmatpush1.bf16.xpose.msra.mxu0 %v1482
        %1530 = vmatprep.subr.bf16.mxu0 0
        %1531 = vmatpush1.bf16.xpose.msra.mxu0 %v1485
        %1532 = vmatprep.subr.bf16.mxu0 0
        %1533 = vmatpush1.bf16.xpose.msra.mxu0 %v1488
        %1534 = vmatprep.subr.bf16.mxu0 0
        %1535 = vmatpush1.bf16.xpose.msra.mxu0 %v1491
        %1536 = vmatprep.subr.bf16.mxu0 0
        %1537 = vmatpush1.bf16.xpose.msra.mxu0 %v1494
        %1538 = vmatprep.subr.bf16.mxu0 0
        %1539 = vmatpush1.bf16.xpose.msra.mxu0 %v1497
        %1540 = vmatprep.subr.bf16.mxu0 0
        %1541 = vmatpush1.bf16.xpose.msra.mxu0 %v1500
        %1542 = vmatprep.subr.bf16.mxu0 0
        %1543 = vmatpush1.bf16.xpose.msra.mxu0 %v1503
        %1544 = vmatprep.subr.bf16.mxu0 0
        %1545 = vmatpush1.bf16.xpose.msra.mxu0 %v1506
        %1546 = vmatprep.subr.bf16.mxu0 0
        %1547 = vmatpush1.bf16.xpose.msra.mxu0 %v1509
        %1548 = vmatprep.subr.bf16.mxu0 0
        %1549 = vmatpush1.bf16.xpose.msra.mxu0 %v1512
        %1550 = vmatprep.subr.bf16.mxu0 0
        %1551 = vmatpush1.bf16.xpose.msra.mxu0 %v1515
        %1552 = vmatprep.subr.bf16.mxu0 0
        %1553 = vmatpush1.bf16.xpose.msra.mxu0 %v1518
        %1554 = vmatprep.subr.bf16.mxu0 0
        %1555 = vmatpush1.bf16.xpose.msra.mxu0 %v1521
        %1556 = vmatprep.subr.bf16.mxu0 0
        %1557 = vmatpush1.bf16.xpose.msra.mxu0 %v1524
        %1558 = vmatprep.mubr.bf16.mxu0 0
        %1559 = vmatmul.mubr.bf16.gmra.mrb[0].mxu0 %v1467
        %v1560 = vpop.f32.mrb[0].mxu0
        %v1561 = vadd.f32 %v658, %v1560
        %v1562 = vpop.f32.mrb[0].mxu0
        %v1563 = vadd.f32 %v662, %v1562
        %v1564 = vpop.f32.mrb[0].mxu0
        %v1565 = vadd.f32 %v658, %v1564
        %v1566 = vpop.f32.mrb[0].mxu0
        %v1567 = vadd.f32 %v662, %v1566
        %1568 = vmatprep.mubr.bf16.mxu0 0
        %1569 = vmatmul.mubr.bf16.gmra.mrb[0].mxu0 %v1470
        %v1570 = vpop.f32.mrb[0].mxu0
        %v1571 = vadd.f32 %v658, %v1570
        %v1572 = vpop.f32.mrb[0].mxu0
        %v1573 = vadd.f32 %v662, %v1572
        %v1574 = vpop.f32.mrb[0].mxu0
        %v1575 = vadd.f32 %v658, %v1574
        %v1576 = vpop.f32.mrb[0].mxu0
        %v1577 = vadd.f32 %v662, %v1576
        %1578 = vmatprep.mubr.bf16.mxu0 0
        %1579 = vmatmul.mubr.bf16.gmra.mrb[0].mxu0 %v1473
        %v1580 = vpop.f32.mrb[0].mxu0
        %v1581 = vadd.f32 %v658, %v1580
        %v1582 = vpop.f32.mrb[0].mxu0
        %v1583 = vadd.f32 %v662, %v1582
        %v1584 = vpop.f32.mrb[0].mxu0
        %v1585 = vadd.f32 %v658, %v1584
        %v1586 = vpop.f32.mrb[0].mxu0
        %v1587 = vadd.f32 %v662, %v1586
        %1588 = vmatprep.mubr.bf16.mxu0 0
        %1589 = vmatmul.mubr.bf16.gmra.mrb[0].mxu0 %v1476
        %v1590 = vpop.f32.mrb[0].mxu0
        %v1591 = vadd.f32 %v658, %v1590
        %v1592 = vpop.f32.mrb[0].mxu0
        %v1593 = vadd.f32 %v662, %v1592
        %v1594 = vpop.f32.mrb[0].mxu0
        %v1595 = vadd.f32 %v658, %v1594
        %v1596 = vpop.f32.mrb[0].mxu0
        %v1597 = vadd.f32 %v662, %v1596
        %1598 = vdwg.mxu0
        %v1599 = vmax.f32 %v1561, %v1563
        %1600 = vmax.xlane.f32.xlu0 %v1599
        %v1601 = vpop.xlane.xlu0 %1600
        %v1602 = vmax.f32 %v1565, %v1567
        %1603 = vmax.xlane.f32.xlu0 %v1602
        %v1604 = vpop.xlane.xlu0 %1603
        %v1605 = vmax.f32 %v1571, %v1573
        %1606 = vmax.xlane.f32.xlu0 %v1605
        %v1607 = vpop.xlane.xlu0 %1606
        %v1608 = vmax.f32 %v1575, %v1577
        %1609 = vmax.xlane.f32.xlu0 %v1608
        %v1610 = vpop.xlane.xlu0 %1609
        %v1611 = vmax.f32 %v1581, %v1583
        %1612 = vmax.xlane.f32.xlu0 %v1611
        %v1613 = vpop.xlane.xlu0 %1612
        %v1614 = vmax.f32 %v1585, %v1587
        %1615 = vmax.xlane.f32.xlu0 %v1614
        %v1616 = vpop.xlane.xlu0 %1615
        %v1617 = vmax.f32 %v1591, %v1593
        %1618 = vmax.xlane.f32.xlu0 %v1617
        %v1619 = vpop.xlane.xlu0 %1618
        %v1620 = vmax.f32 %v1595, %v1597
        %1621 = vmax.xlane.f32.xlu0 %v1620
        %v1622 = vpop.xlane.xlu0 %1621
        %v1623 = vsub.f32 %v1561, %v1601
        %v1624 = vsub.f32 %v1563, %v1601
        %v1625 = vsub.f32 %v1565, %v1604
        %v1626 = vsub.f32 %v1567, %v1604
        %v1627 = vsub.f32 %v1571, %v1607
        %v1628 = vsub.f32 %v1573, %v1607
        %v1629 = vsub.f32 %v1575, %v1610
        %v1630 = vsub.f32 %v1577, %v1610
        %v1631 = vsub.f32 %v1581, %v1613
        %v1632 = vsub.f32 %v1583, %v1613
        %v1633 = vsub.f32 %v1585, %v1616
        %v1634 = vsub.f32 %v1587, %v1616
        %v1635 = vsub.f32 %v1591, %v1619
        %v1636 = vsub.f32 %v1593, %v1619
        %v1637 = vsub.f32 %v1595, %v1622
        %v1638 = vsub.f32 %v1597, %v1622
        %v1639 = vmul.f32 %v1623, 1.442695
        %v1640 = vpow.pop %v1639
        %v1641 = vmul.f32 %v1624, 1.442695
        %v1642 = vpow.pop %v1641
        %v1643 = vmul.f32 %v1625, 1.442695
        %v1644 = vpow.pop %v1643
        %v1645 = vmul.f32 %v1626, 1.442695
        %v1646 = vpow.pop %v1645
        %v1647 = vmul.f32 %v1627, 1.442695
        %v1648 = vpow.pop %v1647
        %v1649 = vmul.f32 %v1628, 1.442695
        %v1650 = vpow.pop %v1649
        %v1651 = vmul.f32 %v1629, 1.442695
        %v1652 = vpow.pop %v1651
        %v1653 = vmul.f32 %v1630, 1.442695
        %v1654 = vpow.pop %v1653
        %v1655 = vmul.f32 %v1631, 1.442695
        %v1656 = vpow.pop %v1655
        %v1657 = vmul.f32 %v1632, 1.442695
        %v1658 = vpow.pop %v1657
        %v1659 = vmul.f32 %v1633, 1.442695
        %v1660 = vpow.pop %v1659
        %v1661 = vmul.f32 %v1634, 1.442695
        %v1662 = vpow.pop %v1661
        %v1663 = vmul.f32 %v1635, 1.442695
        %v1664 = vpow.pop %v1663
        %v1665 = vmul.f32 %v1636, 1.442695
        %v1666 = vpow.pop %v1665
        %v1667 = vmul.f32 %v1637, 1.442695
        %v1668 = vpow.pop %v1667
        %v1669 = vmul.f32 %v1638, 1.442695
        %v1670 = vpow.pop %v1669
        %v1671 = vadd.f32 %v1640, %v1642
        %1672 = vadd.xlane.f32.xlu0 %v1671
        %v1673 = vpop.xlane.xlu0 %1672
        %v1674 = vadd.f32 %v1644, %v1646
        %1675 = vadd.xlane.f32.xlu0 %v1674
        %v1676 = vpop.xlane.xlu0 %1675
        %v1677 = vadd.f32 %v1648, %v1650
        %1678 = vadd.xlane.f32.xlu0 %v1677
        %v1679 = vpop.xlane.xlu0 %1678
        %v1680 = vadd.f32 %v1652, %v1654
        %1681 = vadd.xlane.f32.xlu0 %v1680
        %v1682 = vpop.xlane.xlu0 %1681
        %v1683 = vadd.f32 %v1656, %v1658
        %1684 = vadd.xlane.f32.xlu0 %v1683
        %v1685 = vpop.xlane.xlu0 %1684
        %v1686 = vadd.f32 %v1660, %v1662
        %1687 = vadd.xlane.f32.xlu0 %v1686
        %v1688 = vpop.xlane.xlu0 %1687
        %v1689 = vadd.f32 %v1664, %v1666
        %1690 = vadd.xlane.f32.xlu0 %v1689
        %v1691 = vpop.xlane.xlu0 %1690
        %v1692 = vadd.f32 %v1668, %v1670
        %1693 = vadd.xlane.f32.xlu0 %v1692
        %v1694 = vpop.xlane.xlu0 %1693
        %v1695 = vpack.c.bf16 %v1644, %v1640
        %v1696 = vpack.c.bf16 %v1646, %v1642
        %v1697 = vpack.c.bf16 %v1652, %v1648
        %v1698 = vpack.c.bf16 %v1654, %v1650
        %v1699 = vpack.c.bf16 %v1660, %v1656
        %v1700 = vpack.c.bf16 %v1662, %v1658
        %v1701 = vpack.c.bf16 %v1668, %v1664
        %v1702 = vpack.c.bf16 %v1670, %v1666
        %1703 = vrot.lane.b32.xlu0 %v637, 120
        %v1704 = vpop.permute.xlu0 %1703
        %1705 = vrot.lane.b32.xlu0 %v638, 120
        %v1706 = vpop.permute.xlu0 %1705
        %1707 = vrot.lane.b32.xlu0 %v639, 120
        %v1708 = vpop.permute.xlu0 %1707
        %1709 = vrot.lane.b32.xlu0 %v640, 120
        %v1710 = vpop.permute.xlu0 %1709
        %1711 = vrot.lane.b32.xlu0 %v641, 120
        %v1712 = vpop.permute.xlu0 %1711
        %1713 = vrot.lane.b32.xlu0 %v642, 120
        %v1714 = vpop.permute.xlu0 %1713
        %1715 = vrot.lane.b32.xlu0 %v643, 120
        %v1716 = vpop.permute.xlu0 %1715
        %1717 = vrot.lane.b32.xlu0 %v644, 120
        %v1718 = vpop.permute.xlu0 %1717
        %1719 = vrot.lane.b32.xlu0 %v645, 120
        %v1720 = vpop.permute.xlu0 %1719
        %1721 = vrot.lane.b32.xlu0 %v646, 120
        %v1722 = vpop.permute.xlu0 %1721
        %1723 = vrot.lane.b32.xlu0 %v647, 120
        %v1724 = vpop.permute.xlu0 %1723
        %1725 = vrot.lane.b32.xlu0 %v648, 120
        %v1726 = vpop.permute.xlu0 %1725
        %1727 = vrot.lane.b32.xlu0 %v649, 120
        %v1728 = vpop.permute.xlu0 %1727
        %1729 = vrot.lane.b32.xlu0 %v650, 120
        %v1730 = vpop.permute.xlu0 %1729
        %1731 = vrot.lane.b32.xlu0 %v651, 120
        %v1732 = vpop.permute.xlu0 %1731
        %1733 = vrot.lane.b32.xlu0 %v652, 120
        %v1734 = vpop.permute.xlu0 %1733
        %1751 = vmatprep.subr.bf16.mxu0 0
        %1752 = vmatpush1.bf16.msra.mxu0 %v1704
        %1753 = vmatprep.subr.bf16.mxu0 0
        %1754 = vmatpush1.bf16.msra.mxu0 %v1706
        %1755 = vmatprep.subr.bf16.mxu0 0
        %1756 = vmatpush1.bf16.msra.mxu0 %v1708
        %1757 = vmatprep.subr.bf16.mxu0 0
        %1758 = vmatpush1.bf16.msra.mxu0 %v1710
        %1759 = vmatprep.subr.bf16.mxu0 0
        %1760 = vmatpush1.bf16.msra.mxu0 %v1712
        %1761 = vmatprep.subr.bf16.mxu0 0
        %1762 = vmatpush1.bf16.msra.mxu0 %v1714
        %1763 = vmatprep.subr.bf16.mxu0 0
        %1764 = vmatpush1.bf16.msra.mxu0 %v1716
        %1765 = vmatprep.subr.bf16.mxu0 0
        %1766 = vmatpush1.bf16.msra.mxu0 %v1718
        %1767 = vmatprep.subr.bf16.mxu0 0
        %1768 = vmatpush1.bf16.msra.mxu0 %v1720
        %1769 = vmatprep.subr.bf16.mxu0 0
        %1770 = vmatpush1.bf16.msra.mxu0 %v1722
        %1771 = vmatprep.subr.bf16.mxu0 0
        %1772 = vmatpush1.bf16.msra.mxu0 %v1724
        %1773 = vmatprep.subr.bf16.mxu0 0
        %1774 = vmatpush1.bf16.msra.mxu0 %v1726
        %1775 = vmatprep.subr.bf16.mxu0 0
        %1776 = vmatpush1.bf16.msra.mxu0 %v1728
        %1777 = vmatprep.subr.bf16.mxu0 0
        %1778 = vmatpush1.bf16.msra.mxu0 %v1730
        %1779 = vmatprep.subr.bf16.mxu0 0
        %1780 = vmatpush1.bf16.msra.mxu0 %v1732
        %1781 = vmatprep.subr.bf16.mxu0 0
        %1782 = vmatpush1.bf16.msra.mxu0 %v1734
        %1783 = vmatprep.mubr.bf16.mxu0 %v1696
        %1784 = vmatmul.mubr.bf16.gmra.mrb[0].mxu0 %v1695
        %v1785 = vpop.f32.mrb[0].mxu0
        %v1786 = vadd.f32 0.0, %v1785
        %v1787 = vpop.f32.mrb[0].mxu0
        %v1788 = vpop.f32.mrb[0].mxu0
        %v1789 = vadd.f32 0.0, %v1788
        %v1790 = vpop.f32.mrb[0].mxu0
        %1791 = vmatprep.mubr.bf16.mxu0 %v1698
        %1792 = vmatmul.mubr.bf16.gmra.mrb[0].mxu0 %v1697
        %v1793 = vpop.f32.mrb[0].mxu0
        %v1794 = vadd.f32 0.0, %v1793
        %v1795 = vpop.f32.mrb[0].mxu0
        %v1796 = vpop.f32.mrb[0].mxu0
        %v1797 = vadd.f32 0.0, %v1796
        %v1798 = vpop.f32.mrb[0].mxu0
        %1799 = vmatprep.mubr.bf16.mxu0 %v1700
        %1800 = vmatmul.mubr.bf16.gmra.mrb[0].mxu0 %v1699
        %v1801 = vpop.f32.mrb[0].mxu0
        %v1802 = vadd.f32 0.0, %v1801
        %v1803 = vpop.f32.mrb[0].mxu0
        %v1804 = vpop.f32.mrb[0].mxu0
        %v1805 = vadd.f32 0.0, %v1804
        %v1806 = vpop.f32.mrb[0].mxu0
        %1807 = vmatprep.mubr.bf16.mxu0 %v1702
        %1808 = vmatmul.mubr.bf16.gmra.mrb[0].mxu0 %v1701
        %v1809 = vpop.f32.mrb[0].mxu0
        %v1810 = vadd.f32 0.0, %v1809
        %v1811 = vpop.f32.mrb[0].mxu0
        %v1812 = vpop.f32.mrb[0].mxu0
        %v1813 = vadd.f32 0.0, %v1812
        %v1814 = vpop.f32.mrb[0].mxu0
        %1815 = vdwg.mxu0
        %v1816 = vrcp.pop %v1673
        %v1817 = vrcp.pop %v1676
        %v1818 = vrcp.pop %v1679
        %v1819 = vrcp.pop %v1682
        %v1820 = vrcp.pop %v1685
        %v1821 = vrcp.pop %v1688
        %v1822 = vrcp.pop %v1691
        %v1823 = vrcp.pop %v1694
        %v1824 = vmul.f32 %v1786, %v1816
        %v1825 = vmul.f32 %v1789, %v1817
        %v1826 = vmul.f32 %v1794, %v1818
        %v1827 = vmul.f32 %v1797, %v1819
        %v1828 = vmul.f32 %v1802, %v1820
        %v1829 = vmul.f32 %v1805, %v1821
        %v1830 = vmul.f32 %v1810, %v1822
        %v1831 = vmul.f32 %v1813, %v1823
        %1832 = vrot.lane.b32.xlu0 %v485, 116
        %v1833 = vpop.permute.xlu0 %1832
        %1834 = vrot.lane.b32.xlu0 %v486, 116
        %v1835 = vpop.permute.xlu0 %1834
        %1836 = vrot.lane.b32.xlu0 %v487, 116
        %v1837 = vpop.permute.xlu0 %1836
        %1838 = vrot.lane.b32.xlu0 %v488, 116
        %v1839 = vpop.permute.xlu0 %1838
        %1840 = vrot.lane.b32.xlu0 %v621, 116
        %v1841 = vpop.permute.xlu0 %1840
        %1842 = vrot.lane.b32.xlu0 %v622, 116
        %v1843 = vpop.permute.xlu0 %1842
        %1844 = vrot.lane.b32.xlu0 %v623, 116
        %v1845 = vpop.permute.xlu0 %1844
        %1846 = vrot.lane.b32.xlu0 %v624, 116
        %v1847 = vpop.permute.xlu0 %1846
        %1848 = vrot.lane.b32.xlu0 %v625, 116
        %v1849 = vpop.permute.xlu0 %1848
        %1850 = vrot.lane.b32.xlu0 %v626, 116
        %v1851 = vpop.permute.xlu0 %1850
        %1852 = vrot.lane.b32.xlu0 %v627, 116
        %v1853 = vpop.permute.xlu0 %1852
        %1854 = vrot.lane.b32.xlu0 %v628, 116
        %v1855 = vpop.permute.xlu0 %1854
        %1856 = vrot.lane.b32.xlu0 %v629, 116
        %v1857 = vpop.permute.xlu0 %1856
        %1858 = vrot.lane.b32.xlu0 %v630, 116
        %v1859 = vpop.permute.xlu0 %1858
        %1860 = vrot.lane.b32.xlu0 %v631, 116
        %v1861 = vpop.permute.xlu0 %1860
        %1862 = vrot.lane.b32.xlu0 %v632, 116
        %v1863 = vpop.permute.xlu0 %1862
        %1864 = vrot.lane.b32.xlu0 %v633, 116
        %v1865 = vpop.permute.xlu0 %1864
        %1866 = vrot.lane.b32.xlu0 %v634, 116
        %v1867 = vpop.permute.xlu0 %1866
        %1868 = vrot.lane.b32.xlu0 %v635, 116
        %v1869 = vpop.permute.xlu0 %1868
        %1870 = vrot.lane.b32.xlu0 %v636, 116
        %v1871 = vpop.permute.xlu0 %1870
        %v1873 = vsel %vm665, %v1833, 0
        %v1876 = vsel %vm665, %v1835, 0
        %v1879 = vsel %vm665, %v1837, 0
        %v1882 = vsel %vm665, %v1839, 0
        %v1885 = vsel %vm665, %v1841, 0
        %v1888 = vsel %vm665, %v1843, 0
        %v1891 = vsel %vm665, %v1845, 0
        %v1894 = vsel %vm665, %v1847, 0
        %v1897 = vsel %vm665, %v1849, 0
        %v1900 = vsel %vm665, %v1851, 0
        %v1903 = vsel %vm665, %v1853, 0
        %v1906 = vsel %vm665, %v1855, 0
        %v1909 = vsel %vm665, %v1857, 0
        %v1912 = vsel %vm665, %v1859, 0
        %v1915 = vsel %vm665, %v1861, 0
        %v1918 = vsel %vm665, %v1863, 0
        %v1921 = vsel %vm665, %v1865, 0
        %v1924 = vsel %vm665, %v1867, 0
        %v1927 = vsel %vm665, %v1869, 0
        %v1930 = vsel %vm665, %v1871, 0
        %1932 = vmatprep.subr.bf16.mxu0 0
        %1933 = vmatpush1.bf16.xpose.msra.mxu0 %v1885
        %1934 = vmatprep.subr.bf16.mxu0 0
        %1935 = vmatpush1.bf16.xpose.msra.mxu0 %v1888
        %1936 = vmatprep.subr.bf16.mxu0 0
        %1937 = vmatpush1.bf16.xpose.msra.mxu0 %v1891
        %1938 = vmatprep.subr.bf16.mxu0 0
        %1939 = vmatpush1.bf16.xpose.msra.mxu0 %v1894
        %1940 = vmatprep.subr.bf16.mxu0 0
        %1941 = vmatpush1.bf16.xpose.msra.mxu0 %v1897
        %1942 = vmatprep.subr.bf16.mxu0 0
        %1943 = vmatpush1.bf16.xpose.msra.mxu0 %v1900
        %1944 = vmatprep.subr.bf16.mxu0 0
        %1945 = vmatpush1.bf16.xpose.msra.mxu0 %v1903
        %1946 = vmatprep.subr.bf16.mxu0 0
        %1947 = vmatpush1.bf16.xpose.msra.mxu0 %v1906
        %1948 = vmatprep.subr.bf16.mxu0 0
        %1949 = vmatpush1.bf16.xpose.msra.mxu0 %v1909
        %1950 = vmatprep.subr.bf16.mxu0 0
        %1951 = vmatpush1.bf16.xpose.msra.mxu0 %v1912
        %1952 = vmatprep.subr.bf16.mxu0 0
        %1953 = vmatpush1.bf16.xpose.msra.mxu0 %v1915
        %1954 = vmatprep.subr.bf16.mxu0 0
        %1955 = vmatpush1.bf16.xpose.msra.mxu0 %v1918
        %1956 = vmatprep.subr.bf16.mxu0 0
        %1957 = vmatpush1.bf16.xpose.msra.mxu0 %v1921
        %1958 = vmatprep.subr.bf16.mxu0 0
        %1959 = vmatpush1.bf16.xpose.msra.mxu0 %v1924
        %1960 = vmatprep.subr.bf16.mxu0 0
        %1961 = vmatpush1.bf16.xpose.msra.mxu0 %v1927
        %1962 = vmatprep.subr.bf16.mxu0 0
        %1963 = vmatpush1.bf16.xpose.msra.mxu0 %v1930
        %1964 = vmatprep.mubr.bf16.mxu0 0
        %1965 = vmatmul.mubr.bf16.gmra.mrb[0].mxu0 %v1873
        %v1966 = vpop.f32.mrb[0].mxu0
        %v1967 = vadd.f32 %v658, %v1966
        %v1968 = vpop.f32.mrb[0].mxu0
        %v1969 = vadd.f32 %v662, %v1968
        %v1970 = vpop.f32.mrb[0].mxu0
        %v1971 = vadd.f32 %v658, %v1970
        %v1972 = vpop.f32.mrb[0].mxu0
        %v1973 = vadd.f32 %v662, %v1972
        %1974 = vmatprep.mubr.bf16.mxu0 0
        %1975 = vmatmul.mubr.bf16.gmra.mrb[0].mxu0 %v1876
        %v1976 = vpop.f32.mrb[0].mxu0
        %v1977 = vadd.f32 %v658, %v1976
        %v1978 = vpop.f32.mrb[0].mxu0
        %v1979 = vadd.f32 %v662, %v1978
        %v1980 = vpop.f32.mrb[0].mxu0
        %v1981 = vadd.f32 %v658, %v1980
        %v1982 = vpop.f32.mrb[0].mxu0
        %v1983 = vadd.f32 %v662, %v1982
        %1984 = vmatprep.mubr.bf16.mxu0 0
        %1985 = vmatmul.mubr.bf16.gmra.mrb[0].mxu0 %v1879
        %v1986 = vpop.f32.mrb[0].mxu0
        %v1987 = vadd.f32 %v658, %v1986
        %v1988 = vpop.f32.mrb[0].mxu0
        %v1989 = vadd.f32 %v662, %v1988
        %v1990 = vpop.f32.mrb[0].mxu0
        %v1991 = vadd.f32 %v658, %v1990
        %v1992 = vpop.f32.mrb[0].mxu0
        %v1993 = vadd.f32 %v662, %v1992
        %1994 = vmatprep.mubr.bf16.mxu0 0
        %1995 = vmatmul.mubr.bf16.gmra.mrb[0].mxu0 %v1882
        %v1996 = vpop.f32.mrb[0].mxu0
        %v1997 = vadd.f32 %v658, %v1996
        %v1998 = vpop.f32.mrb[0].mxu0
        %v1999 = vadd.f32 %v662, %v1998
        %v2000 = vpop.f32.mrb[0].mxu0
        %v2001 = vadd.f32 %v658, %v2000
        %v2002 = vpop.f32.mrb[0].mxu0
        %v2003 = vadd.f32 %v662, %v2002
        %2004 = vdwg.mxu0
        %v2005 = vmax.f32 %v1967, %v1969
        %2006 = vmax.xlane.f32.xlu0 %v2005
        %v2007 = vpop.xlane.xlu0 %2006
        %v2008 = vmax.f32 %v1971, %v1973
        %2009 = vmax.xlane.f32.xlu0 %v2008
        %v2010 = vpop.xlane.xlu0 %2009
        %v2011 = vmax.f32 %v1977, %v1979
        %2012 = vmax.xlane.f32.xlu0 %v2011
        %v2013 = vpop.xlane.xlu0 %2012
        %v2014 = vmax.f32 %v1981, %v1983
        %2015 = vmax.xlane.f32.xlu0 %v2014
        %v2016 = vpop.xlane.xlu0 %2015
        %v2017 = vmax.f32 %v1987, %v1989
        %2018 = vmax.xlane.f32.xlu0 %v2017
        %v2019 = vpop.xlane.xlu0 %2018
        %v2020 = vmax.f32 %v1991, %v1993
        %2021 = vmax.xlane.f32.xlu0 %v2020
        %v2022 = vpop.xlane.xlu0 %2021
        %v2023 = vmax.f32 %v1997, %v1999
        %2024 = vmax.xlane.f32.xlu0 %v2023
        %v2025 = vpop.xlane.xlu0 %2024
        %v2026 = vmax.f32 %v2001, %v2003
        %2027 = vmax.xlane.f32.xlu0 %v2026
        %v2028 = vpop.xlane.xlu0 %2027
        %v2029 = vsub.f32 %v1967, %v2007
        %v2030 = vsub.f32 %v1969, %v2007
        %v2031 = vsub.f32 %v1971, %v2010
        %v2032 = vsub.f32 %v1973, %v2010
        %v2033 = vsub.f32 %v1977, %v2013
        %v2034 = vsub.f32 %v1979, %v2013
        %v2035 = vsub.f32 %v1981, %v2016
        %v2036 = vsub.f32 %v1983, %v2016
        %v2037 = vsub.f32 %v1987, %v2019
        %v2038 = vsub.f32 %v1989, %v2019
        %v2039 = vsub.f32 %v1991, %v2022
        %v2040 = vsub.f32 %v1993, %v2022
        %v2041 = vsub.f32 %v1997, %v2025
        %v2042 = vsub.f32 %v1999, %v2025
        %v2043 = vsub.f32 %v2001, %v2028
        %v2044 = vsub.f32 %v2003, %v2028
        %v2045 = vmul.f32 %v2029, 1.442695
        %v2046 = vpow.pop %v2045
        %v2047 = vmul.f32 %v2030, 1.442695
        %v2048 = vpow.pop %v2047
        %v2049 = vmul.f32 %v2031, 1.442695
        %v2050 = vpow.pop %v2049
        %v2051 = vmul.f32 %v2032, 1.442695
        %v2052 = vpow.pop %v2051
        %v2053 = vmul.f32 %v2033, 1.442695
        %v2054 = vpow.pop %v2053
        %v2055 = vmul.f32 %v2034, 1.442695
        %v2056 = vpow.pop %v2055
        %v2057 = vmul.f32 %v2035, 1.442695
        %v2058 = vpow.pop %v2057
        %v2059 = vmul.f32 %v2036, 1.442695
        %v2060 = vpow.pop %v2059
        %v2061 = vmul.f32 %v2037, 1.442695
        %v2062 = vpow.pop %v2061
        %v2063 = vmul.f32 %v2038, 1.442695
        %v2064 = vpow.pop %v2063
        %v2065 = vmul.f32 %v2039, 1.442695
        %v2066 = vpow.pop %v2065
        %v2067 = vmul.f32 %v2040, 1.442695
        %v2068 = vpow.pop %v2067
        %v2069 = vmul.f32 %v2041, 1.442695
        %v2070 = vpow.pop %v2069
        %v2071 = vmul.f32 %v2042, 1.442695
        %v2072 = vpow.pop %v2071
        %v2073 = vmul.f32 %v2043, 1.442695
        %v2074 = vpow.pop %v2073
        %v2075 = vmul.f32 %v2044, 1.442695
        %v2076 = vpow.pop %v2075
        %v2077 = vadd.f32 %v2046, %v2048
        %2078 = vadd.xlane.f32.xlu0 %v2077
        %v2079 = vpop.xlane.xlu0 %2078
        %v2080 = vadd.f32 %v2050, %v2052
        %2081 = vadd.xlane.f32.xlu0 %v2080
        %v2082 = vpop.xlane.xlu0 %2081
        %v2083 = vadd.f32 %v2054, %v2056
        %2084 = vadd.xlane.f32.xlu0 %v2083
        %v2085 = vpop.xlane.xlu0 %2084
        %v2086 = vadd.f32 %v2058, %v2060
        %2087 = vadd.xlane.f32.xlu0 %v2086
        %v2088 = vpop.xlane.xlu0 %2087
        %v2089 = vadd.f32 %v2062, %v2064
        %2090 = vadd.xlane.f32.xlu0 %v2089
        %v2091 = vpop.xlane.xlu0 %2090
        %v2092 = vadd.f32 %v2066, %v2068
        %2093 = vadd.xlane.f32.xlu0 %v2092
        %v2094 = vpop.xlane.xlu0 %2093
        %v2095 = vadd.f32 %v2070, %v2072
        %2096 = vadd.xlane.f32.xlu0 %v2095
        %v2097 = vpop.xlane.xlu0 %2096
        %v2098 = vadd.f32 %v2074, %v2076
        %2099 = vadd.xlane.f32.xlu0 %v2098
        %v2100 = vpop.xlane.xlu0 %2099
        %v2101 = vpack.c.bf16 %v2050, %v2046
        %v2102 = vpack.c.bf16 %v2052, %v2048
        %v2103 = vpack.c.bf16 %v2058, %v2054
        %v2104 = vpack.c.bf16 %v2060, %v2056
        %v2105 = vpack.c.bf16 %v2066, %v2062
        %v2106 = vpack.c.bf16 %v2068, %v2064
        %v2107 = vpack.c.bf16 %v2074, %v2070
        %v2108 = vpack.c.bf16 %v2076, %v2072
        %2109 = vrot.lane.b32.xlu0 %v637, 116
        %v2110 = vpop.permute.xlu0 %2109
        %2111 = vrot.lane.b32.xlu0 %v638, 116
        %v2112 = vpop.permute.xlu0 %2111
        %2113 = vrot.lane.b32.xlu0 %v639, 116
        %v2114 = vpop.permute.xlu0 %2113
        %2115 = vrot.lane.b32.xlu0 %v640, 116
        %v2116 = vpop.permute.xlu0 %2115
        %2117 = vrot.lane.b32.xlu0 %v641, 116
        %v2118 = vpop.permute.xlu0 %2117
        %2119 = vrot.lane.b32.xlu0 %v642, 116
        %v2120 = vpop.permute.xlu0 %2119
        %2121 = vrot.lane.b32.xlu0 %v643, 116
        %v2122 = vpop.permute.xlu0 %2121
        %2123 = vrot.lane.b32.xlu0 %v644, 116
        %v2124 = vpop.permute.xlu0 %2123
        %2125 = vrot.lane.b32.xlu0 %v645, 116
        %v2126 = vpop.permute.xlu0 %2125
        %2127 = vrot.lane.b32.xlu0 %v646, 116
        %v2128 = vpop.permute.xlu0 %2127
        %2129 = vrot.lane.b32.xlu0 %v647, 116
        %v2130 = vpop.permute.xlu0 %2129
        %2131 = vrot.lane.b32.xlu0 %v648, 116
        %v2132 = vpop.permute.xlu0 %2131
        %2133 = vrot.lane.b32.xlu0 %v649, 116
        %v2134 = vpop.permute.xlu0 %2133
        %2135 = vrot.lane.b32.xlu0 %v650, 116
        %v2136 = vpop.permute.xlu0 %2135
        %2137 = vrot.lane.b32.xlu0 %v651, 116
        %v2138 = vpop.permute.xlu0 %2137
        %2139 = vrot.lane.b32.xlu0 %v652, 116
        %v2140 = vpop.permute.xlu0 %2139
        %2157 = vmatprep.subr.bf16.mxu0 0
        %2158 = vmatpush1.bf16.msra.mxu0 %v2110
        %2159 = vmatprep.subr.bf16.mxu0 0
        %2160 = vmatpush1.bf16.msra.mxu0 %v2112
        %2161 = vmatprep.subr.bf16.mxu0 0
        %2162 = vmatpush1.bf16.msra.mxu0 %v2114
        %2163 = vmatprep.subr.bf16.mxu0 0
        %2164 = vmatpush1.bf16.msra.mxu0 %v2116
        %2165 = vmatprep.subr.bf16.mxu0 0
        %2166 = vmatpush1.bf16.msra.mxu0 %v2118
        %2167 = vmatprep.subr.bf16.mxu0 0
        %2168 = vmatpush1.bf16.msra.mxu0 %v2120
        %2169 = vmatprep.subr.bf16.mxu0 0
        %2170 = vmatpush1.bf16.msra.mxu0 %v2122
        %2171 = vmatprep.subr.bf16.mxu0 0
        %2172 = vmatpush1.bf16.msra.mxu0 %v2124
        %2173 = vmatprep.subr.bf16.mxu0 0
        %2174 = vmatpush1.bf16.msra.mxu0 %v2126
        %2175 = vmatprep.subr.bf16.mxu0 0
        %2176 = vmatpush1.bf16.msra.mxu0 %v2128
        %2177 = vmatprep.subr.bf16.mxu0 0
        %2178 = vmatpush1.bf16.msra.mxu0 %v2130
        %2179 = vmatprep.subr.bf16.mxu0 0
        %2180 = vmatpush1.bf16.msra.mxu0 %v2132
        %2181 = vmatprep.subr.bf16.mxu0 0
        %2182 = vmatpush1.bf16.msra.mxu0 %v2134
        %2183 = vmatprep.subr.bf16.mxu0 0
        %2184 = vmatpush1.bf16.msra.mxu0 %v2136
        %2185 = vmatprep.subr.bf16.mxu0 0
        %2186 = vmatpush1.bf16.msra.mxu0 %v2138
        %2187 = vmatprep.subr.bf16.mxu0 0
        %2188 = vmatpush1.bf16.msra.mxu0 %v2140
        %2189 = vmatprep.mubr.bf16.mxu0 %v2102
        %2190 = vmatmul.mubr.bf16.gmra.mrb[0].mxu0 %v2101
        %v2191 = vpop.f32.mrb[0].mxu0
        %v2192 = vadd.f32 0.0, %v2191
        %v2193 = vpop.f32.mrb[0].mxu0
        %v2194 = vpop.f32.mrb[0].mxu0
        %v2195 = vadd.f32 0.0, %v2194
        %v2196 = vpop.f32.mrb[0].mxu0
        %2197 = vmatprep.mubr.bf16.mxu0 %v2104
        %2198 = vmatmul.mubr.bf16.gmra.mrb[0].mxu0 %v2103
        %v2199 = vpop.f32.mrb[0].mxu0
        %v2200 = vadd.f32 0.0, %v2199
        %v2201 = vpop.f32.mrb[0].mxu0
        %v2202 = vpop.f32.mrb[0].mxu0
        %v2203 = vadd.f32 0.0, %v2202
        %v2204 = vpop.f32.mrb[0].mxu0
        %2205 = vmatprep.mubr.bf16.mxu0 %v2106
        %2206 = vmatmul.mubr.bf16.gmra.mrb[0].mxu0 %v2105
        %v2207 = vpop.f32.mrb[0].mxu0
        %v2208 = vadd.f32 0.0, %v2207
        %v2209 = vpop.f32.mrb[0].mxu0
        %v2210 = vpop.f32.mrb[0].mxu0
        %v2211 = vadd.f32 0.0, %v2210
        %v2212 = vpop.f32.mrb[0].mxu0
        %2213 = vmatprep.mubr.bf16.mxu0 %v2108
        %2214 = vmatmul.mubr.bf16.gmra.mrb[0].mxu0 %v2107
        %v2215 = vpop.f32.mrb[0].mxu0
        %v2216 = vadd.f32 0.0, %v2215
        %v2217 = vpop.f32.mrb[0].mxu0
        %v2218 = vpop.f32.mrb[0].mxu0
        %v2219 = vadd.f32 0.0, %v2218
        %v2220 = vpop.f32.mrb[0].mxu0
        %2221 = vdwg.mxu0
        %v2222 = vrcp.pop %v2079
        %v2223 = vrcp.pop %v2082
        %v2224 = vrcp.pop %v2085
        %v2225 = vrcp.pop %v2088
        %v2226 = vrcp.pop %v2091
        %v2227 = vrcp.pop %v2094
        %v2228 = vrcp.pop %v2097
        %v2229 = vrcp.pop %v2100
        %v2230 = vmul.f32 %v2192, %v2222
        %v2231 = vmul.f32 %v2195, %v2223
        %v2232 = vmul.f32 %v2200, %v2224
        %v2233 = vmul.f32 %v2203, %v2225
        %v2234 = vmul.f32 %v2208, %v2226
        %v2235 = vmul.f32 %v2211, %v2227
        %v2236 = vmul.f32 %v2216, %v2228
        %v2237 = vmul.f32 %v2219, %v2229
        %2246 = vrot.lane.b32.xlu0 %v1418, 4
        %v2247 = vpop.permute.xlu0 %2246
        %2248 = vrot.lane.b32.xlu0 %v1419, 4
        %v2249 = vpop.permute.xlu0 %2248
        %2250 = vrot.lane.b32.xlu0 %v1420, 4
        %v2251 = vpop.permute.xlu0 %2250
        %2252 = vrot.lane.b32.xlu0 %v1421, 4
        %v2253 = vpop.permute.xlu0 %2252
        %2254 = vrot.lane.b32.xlu0 %v1422, 4
        %v2255 = vpop.permute.xlu0 %2254
        %2256 = vrot.lane.b32.xlu0 %v1423, 4
        %v2257 = vpop.permute.xlu0 %2256
        %2258 = vrot.lane.b32.xlu0 %v1424, 4
        %v2259 = vpop.permute.xlu0 %2258
        %2260 = vrot.lane.b32.xlu0 %v1425, 4
        %v2261 = vpop.permute.xlu0 %2260
        %2278 = vrot.lane.b32.xlu0 %v1824, 8
        %v2279 = vpop.permute.xlu0 %2278
        %2280 = vrot.lane.b32.xlu0 %v1825, 8
        %v2281 = vpop.permute.xlu0 %2280
        %2282 = vrot.lane.b32.xlu0 %v1826, 8
        %v2283 = vpop.permute.xlu0 %2282
        %2284 = vrot.lane.b32.xlu0 %v1827, 8
        %v2285 = vpop.permute.xlu0 %2284
        %2286 = vrot.lane.b32.xlu0 %v1828, 8
        %v2287 = vpop.permute.xlu0 %2286
        %2288 = vrot.lane.b32.xlu0 %v1829, 8
        %v2289 = vpop.permute.xlu0 %2288
        %2290 = vrot.lane.b32.xlu0 %v1830, 8
        %v2291 = vpop.permute.xlu0 %2290
        %2292 = vrot.lane.b32.xlu0 %v1831, 8
        %v2293 = vpop.permute.xlu0 %2292
        %2310 = vrot.lane.b32.xlu0 %v2230, 12
        %v2311 = vpop.permute.xlu0 %2310
        %2312 = vrot.lane.b32.xlu0 %v2231, 12
        %v2313 = vpop.permute.xlu0 %2312
        %2314 = vrot.lane.b32.xlu0 %v2232, 12
        %v2315 = vpop.permute.xlu0 %2314
        %2316 = vrot.lane.b32.xlu0 %v2233, 12
        %v2317 = vpop.permute.xlu0 %2316
        %2318 = vrot.lane.b32.xlu0 %v2234, 12
        %v2319 = vpop.permute.xlu0 %2318
        %2320 = vrot.lane.b32.xlu0 %v2235, 12
        %v2321 = vpop.permute.xlu0 %2320
        %2322 = vrot.lane.b32.xlu0 %v2236, 12
        %v2323 = vpop.permute.xlu0 %2322
        %2324 = vrot.lane.b32.xlu0 %v2237, 12
        %v2325 = vpop.permute.xlu0 %2324
        %v2334 = vsel %vm665, %v976, %v2247
        %v2335 = vsel %vm665, %v977, %v2249
        %v2336 = vsel %vm665, %v978, %v2251
        %v2337 = vsel %vm665, %v979, %v2253
        %v2338 = vsel %vm665, %v980, %v2255
        %v2339 = vsel %vm665, %v981, %v2257
        %v2340 = vsel %vm665, %v982, %v2259
        %v2341 = vsel %vm665, %v983, %v2261
        %vm2342 = vcmask 64512
        %v2343 = vsel %vm2342, %v2334, %v2279
        %v2344 = vsel %vm2342, %v2335, %v2281
        %v2345 = vsel %vm2342, %v2336, %v2283
        %v2346 = vsel %vm2342, %v2337, %v2285
        %v2347 = vsel %vm2342, %v2338, %v2287
        %v2348 = vsel %vm2342, %v2339, %v2289
        %v2349 = vsel %vm2342, %v2340, %v2291
        %v2350 = vsel %vm2342, %v2341, %v2293
        %vm2351 = vcmask 97280
        %v2352 = vsel %vm2351, %v2343, %v2311
        %v2353 = vsel %vm2351, %v2344, %v2313
        %v2354 = vsel %vm2351, %v2345, %v2315
        %v2355 = vsel %vm2351, %v2346, %v2317
        %v2356 = vsel %vm2351, %v2347, %v2319
        %v2357 = vsel %vm2351, %v2348, %v2321
        %v2358 = vsel %vm2351, %v2349, %v2323
        %v2359 = vsel %vm2351, %v2350, %v2325
        %v2360 = vld [vmem:[%s421] sm:$0xff]
        %v2361 = vld [vmem:[%s421 + $0x8] sm:$0xff]
        %v2362 = vld [vmem:[%s421 + $0x10] sm:$0xff]
        %v2363 = vld [vmem:[%s421 + $0x18] sm:$0xff]
        %v2364 = vld [vmem:[%s421 + $0x20] sm:$0xff]
        %v2365 = vld [vmem:[%s421 + $0x28] sm:$0xff]
        %v2366 = vld [vmem:[%s421 + $0x30] sm:$0xff]
        %v2367 = vld [vmem:[%s421 + $0x38] sm:$0xff]
        %v2368 = vadd.f32 %v2360, %v2352
        %v2369 = vadd.f32 %v2361, %v2353
        %v2370 = vadd.f32 %v2362, %v2354
        %v2371 = vadd.f32 %v2363, %v2355
        %v2372 = vadd.f32 %v2364, %v2356
        %v2373 = vadd.f32 %v2365, %v2357
        %v2374 = vadd.f32 %v2366, %v2358
        %v2375 = vadd.f32 %v2367, %v2359
        %vm2376 = vcmask 130048
        %2377 = vst.msk [vmem:[%s460] sm:$0xff] %vm2376, %v2368
        %2378 = vst.msk [vmem:[%s460 + $0x8] sm:$0xff] %vm2376, %v2369
        %2379 = vst.msk [vmem:[%s460 + $0x10] sm:$0xff] %vm2376, %v2370
        %2380 = vst.msk [vmem:[%s460 + $0x18] sm:$0xff] %vm2376, %v2371
        %2381 = vst.msk [vmem:[%s460 + $0x20] sm:$0xff] %vm2376, %v2372
        %2382 = vst.msk [vmem:[%s460 + $0x28] sm:$0xff] %vm2376, %v2373
        %2383 = vst.msk [vmem:[%s460 + $0x30] sm:$0xff] %vm2376, %v2374
        %2384 = vst.msk [vmem:[%s460 + $0x38] sm:$0xff] %vm2376, %v2375
        %s2385 = sand.u32 %s202, 1
        %s2386 = sand.u32 %s202, 1
        %s2387 = smul.addr %s2386, 64
        %s2388 = scalar_lea.vmem [#allocation4], %s2387
        // Predicated region
        $region121: #{transformer_forward.5} parent=111 // pred_check
          %p2389 = pneg %p212
        $region122: #{transformer_forward.5} parent=111 // pred_check_branch
          %2391 = sbr.rel (%p2389) target = $region124
        $region123: #{transformer_forward.5} parent=111 // pred_region
          %s2392 = smul.u32 8, %s23
          %s2393 = smul.addr %s2392, 2
          %s2394 = sadd.s32 %s24, %s2393
          %s2395 = smul.addr %s22, 32
          %s2396 = sadd.s32 %s2394, %s2395
          %s2397 = smul.addr %s2396, 8
          %s2398 = scalar_lea.vmem %s6, %s2397
          // Predicated region
          $region125: #{transformer_forward.5} parent=123 // pred_check
            _
          $region126: #{transformer_forward.5} parent=123 // pred_check_branch
            %2400 = sbr.rel (0) target = $region128
          $region127: #{transformer_forward.5} parent=123 // pred_region
            // Predicated region
            $region129: #{transformer_forward.5} parent=127 // pred_check
              _
            $region130: #{transformer_forward.5} parent=127 // pred_check_branch
              %2402 = sbr.rel (0) target = $region132
            $region131: #{transformer_forward.5} parent=127 // pred_region
              // Predicated region
              $region144: #{transformer_forward.5} parent=131 // pred_check
                _
              $region145: #{transformer_forward.5} parent=131 // pred_check_branch
                %2431 = sbr.rel (0) target = $region147
              $region146: #{transformer_forward.5} parent=131 // pred_region
                loop: start=0, step=1, limit=1
                $region148: #{transformer_forward.5} parent=146 // loop_pre_header
                  _
                $region149: #{transformer_forward.5} parent=146 // loop_header
                  %s2433 = sphi 0, %s2437
                  %p2434 = scmp.ge.s32.totalorder %s2433, 1
                  %s2438 = sphi %s2388, %s2388
                  %s2439 = sphi %s2398, %s2398
                $region150: #{transformer_forward.5} parent=146 // loop_header_branch
                  %2436 = sbr.rel (%p2434) target = $region154
                $region151: #{transformer_forward.5} parent=146 // loop_body
                  %v2440 = vld [vmem:[%s2438] sm:$0xff]
                  %2441 = vst [vmem:[%s2439] sm:$0xff] %v2440
                  %v2442 = vld [vmem:[%s2438 + $0x8] sm:$0xff]
                  %2443 = vst [vmem:[%s2439 + $0x10] sm:$0xff] %v2442
                  %v2444 = vld [vmem:[%s2438 + $0x10] sm:$0xff]
                  %2445 = vst [vmem:[%s2439 + $0x20] sm:$0xff] %v2444
                  %v2446 = vld [vmem:[%s2438 + $0x18] sm:$0xff]
                  %2447 = vst [vmem:[%s2439 + $0x30] sm:$0xff] %v2446
                  %v2448 = vld [vmem:[%s2438 + $0x20] sm:$0xff]
                  %2449 = vst [vmem:[%s2439 + $0x40] sm:$0xff] %v2448
                  %v2450 = vld [vmem:[%s2438 + $0x28] sm:$0xff]
                  %2451 = vst [vmem:[%s2439 + $0x50] sm:$0xff] %v2450
                  %v2452 = vld [vmem:[%s2438 + $0x30] sm:$0xff]
                  %2453 = vst [vmem:[%s2439 + $0x60] sm:$0xff] %v2452
                  %v2454 = vld [vmem:[%s2438 + $0x38] sm:$0xff]
                  %2455 = vst [vmem:[%s2439 + $0x70] sm:$0xff] %v2454
                $region152: #{transformer_forward.5} parent=146 // loop_footer
                  %s2437 = sadd.s32 1, %s2433
                $region153: #{transformer_forward.5} parent=146 // loop_footer_branch
                  %2432 = sbr.rel target = $region149
                $region154: #{transformer_forward.5} parent=146 // loop_exit
                  _
              $region147: #{transformer_forward.5} parent=131 // pred_fallthru
                _
              // Predicated region
              $region155: #{transformer_forward.5} parent=131 // pred_check
                _
              $region156: #{transformer_forward.5} parent=131 // pred_check_branch
                %2457 = sbr.rel target = $region158
              $region157: #{transformer_forward.5} parent=131 // pred_region
                _
              $region158: #{transformer_forward.5} parent=131 // pred_fallthru
                _
            $region132: #{transformer_forward.5} parent=127 // pred_fallthru
              _
            // Predicated region
            $region133: #{transformer_forward.5} parent=127 // pred_check
              _
            $region134: #{transformer_forward.5} parent=127 // pred_check_branch
              %2404 = sbr.rel target = $region136
            $region135: #{transformer_forward.5} parent=127 // pred_region
              loop: start=0, step=1, limit=1
              $region137: #{transformer_forward.5} parent=135 // loop_pre_header
                _
              $region138: #{transformer_forward.5} parent=135 // loop_header
                %s2407 = sphi 0, %s2411
                %p2408 = scmp.ge.s32.totalorder %s2407, 1
                %s2412 = sphi %s2388, %s2388
                %s2413 = sphi %s2398, %s2398
              $region139: #{transformer_forward.5} parent=135 // loop_header_branch
                %2410 = sbr.rel (%p2408) target = $region143
              $region140: #{transformer_forward.5} parent=135 // loop_body
                %v2414 = vld [vmem:[%s2412] sm:$0xff]
                %2415 = vst [vmem:[%s2413] sm:$0xff] %v2414
                %v2416 = vld [vmem:[%s2412 + $0x8] sm:$0xff]
                %2417 = vst [vmem:[%s2413 + $0x10] sm:$0xff] %v2416
                %v2418 = vld [vmem:[%s2412 + $0x10] sm:$0xff]
                %2419 = vst [vmem:[%s2413 + $0x20] sm:$0xff] %v2418
                %v2420 = vld [vmem:[%s2412 + $0x18] sm:$0xff]
                %2421 = vst [vmem:[%s2413 + $0x30] sm:$0xff] %v2420
                %v2422 = vld [vmem:[%s2412 + $0x20] sm:$0xff]
                %2423 = vst [vmem:[%s2413 + $0x40] sm:$0xff] %v2422
                %v2424 = vld [vmem:[%s2412 + $0x28] sm:$0xff]
                %2425 = vst [vmem:[%s2413 + $0x50] sm:$0xff] %v2424
                %v2426 = vld [vmem:[%s2412 + $0x30] sm:$0xff]
                %2427 = vst [vmem:[%s2413 + $0x60] sm:$0xff] %v2426
                %v2428 = vld [vmem:[%s2412 + $0x38] sm:$0xff]
                %2429 = vst [vmem:[%s2413 + $0x70] sm:$0xff] %v2428
              $region141: #{transformer_forward.5} parent=135 // loop_footer
                %s2411 = sadd.s32 1, %s2407
              $region142: #{transformer_forward.5} parent=135 // loop_footer_branch
                %2406 = sbr.rel target = $region138
              $region143: #{transformer_forward.5} parent=135 // loop_exit
                _
            $region136: #{transformer_forward.5} parent=127 // pred_fallthru
              _
          $region128: #{transformer_forward.5} parent=123 // pred_fallthru
            _
          %2458 = vnop
        $region124: #{transformer_forward.5} parent=111 // pred_fallthru
          _
      $region112: #{transformer_forward.5} parent=5 // pred_fallthru
        _
      %p2459 = scmp.le.s32.totalorder 2, %s12
      // Predicated region
      $region159: #{transformer_forward.5} parent=5 // pred_check
        %p2460 = pneg %p2459
      $region160: #{transformer_forward.5} parent=5 // pred_check_branch
        %2462 = sbr.rel (%p2460) target = $region162
      $region161: #{transformer_forward.5} parent=5 // pred_region
        %s2463 = ssub.s32 %s12, 2
        // Predicated region
        $region163: #{transformer_forward.5} parent=161 // pred_check
          %p2464 = pneg %p218
        $region164: #{transformer_forward.5} parent=161 // pred_check_branch
          %2466 = sbr.rel (%p2464) target = $region166
        $region165: #{transformer_forward.5} parent=161 // pred_region
          %s2467 = sand.u32 %s203, 1
          %s2468 = sand.u32 %s203, 1
          %s2469 = smul.addr %s2468, 64
          %s2470 = scalar_lea.vmem [#allocation4], %s2469
        $region166: #{transformer_forward.5} parent=161 // pred_fallthru
          _
      $region162: #{transformer_forward.5} parent=5 // pred_fallthru
        _
    $region6: #{transformer_forward.5} parent=1 // loop_footer
      %s16 = sadd.s32 1, %s12
    $region7: #{transformer_forward.5} parent=1 // loop_footer_branch
      %11 = sbr.rel target = $region3
    $region8: #{transformer_forward.5} parent=1 // loop_exit
      _

// kernel: transformer_forward.6
$region0: #{transformer_forward.6}
  #allocation0 [shape = 'u32[]', space=smem, size = 0x4, offset = 0x4, fixed_abs, tag = 'smem constant byte address 0x4 - core index']
  #allocation1 [shape = 'u32[144,128]{1,0:T(1,128)}', space=vmem, size = 0x12000, scoped, tag = 'internal scratch']
  %s0 = inlined_call_operand.vmem [shape: f32[2,18,18,16], index: 0, kind: input, shape index: {}]
  %s1 = inlined_call_operand.vmem [shape: bf16[3,3,16,16], index: 1, kind: input, shape index: {}]
  %s2 = inlined_call_operand.vmem [shape: f32[1,16], index: 2, kind: input, shape index: {}]
  %s3 = inlined_call_operand.vmem [shape: f32[1,16], index: 3, kind: input, shape index: {}]
  %s4 = inlined_call_operand.vmem [shape: f32[2,16,16,16], index: 4, kind: output, shape index: {}]
  %s5 = sld [smem:[#allocation0]]
  $region49: #{transformer_forward.6} parent=0
    _
  %s7 = ssub.s32 1, %s5
  %s8 = scalar_select 0, %s7, %s5
  loop: start=0, step=1, limit=4
  $region2: #{transformer_forward.6} parent=0 // loop_pre_header
    _
  $region3: #{transformer_forward.6} parent=0 // loop_header
    %s10 = sphi 0, %s14
    %p11 = scmp.ge.s32.totalorder %s10, 4
    %s20 = sphi 0, %s22
    %s23 = sphi 0, %s20
    %s24 = sphi 0, %s23
    %s40 = sphi 0, %s24
    %s44 = sphi 0, %s44
    %s46 = sphi 0, %s44
    %s47 = sphi 0, %s46
    %s61 = sphi 0, %s47
    %s65 = sphi 0, %s65
    %s67 = sphi 0, %s65
    %s68 = sphi 0, %s67
    %s82 = sphi 0, %s68
    %s86 = sphi 0, %s86
    %s88 = sphi 0, %s86
    %s89 = sphi 0, %s88
    %s103 = sphi 0, %s89
    %s109 = sphi 0, %s111
    %s112 = sphi 0, %s109
    %s113 = sphi 0, %s112
    %s129 = sphi 0, %s113
  $region4: #{transformer_forward.6} parent=0 // loop_header_branch
    %13 = sbr.rel (%p11) target = $region8
  $region5: #{transformer_forward.6} parent=0 // loop_body
    %s15 = ssub.s32 %s10, 1
    %s16 = ssub.s32 %s10, 2
    %s17 = sadd.s32 %s10, 1
    %s18 = ssub.s32 %s10, %s17
    %p19 = scmp.eq.s32.totalorder %s18, 0
    %s21 = sadd.s32 %s20, 1
    %s22 = scalar_select %p19, %s20, %s21
    %p25 = pneg %p19
    %p26 = scmp.eq.s32.totalorder %s10, 1
    %p27 = por %p25, %p26
    %p28 = scmp.ne.s32.totalorder %s20, %s23
    %p29 = scmp.eq.s32.totalorder %s10, 0
    %p30 = por %p28, %p29
    %p31 = scmp.ne.s32.totalorder %s20, %s23
    %p32 = scmp.eq.s32.totalorder %s15, 1
    %p33 = por %p31, %p32
    %p34 = scmp.ne.s32.totalorder %s23, %s24
    %p35 = scmp.eq.s32.totalorder %s15, 0
    %p36 = por %p34, %p35
    %p37 = scmp.ne.s32.totalorder %s23, %s24
    %p38 = scmp.eq.s32.totalorder %s16, 1
    %p39 = por %p37, %p38
    %p41 = scmp.ne.s32.totalorder %s24, %s40
    %p42 = scmp.eq.s32.totalorder %s16, 0
    %p43 = por %p41, %p42
    %s45 = sadd.s32 %s44, 1
    %p48 = scmp.eq.s32.totalorder %s10, 1
    %p49 = scmp.ne.s32.totalorder %s44, %s46
    %p50 = scmp.eq.s32.totalorder %s10, 0
    %p51 = por %p49, %p50
    %p52 = scmp.ne.s32.totalorder %s44, %s46
    %p53 = scmp.eq.s32.totalorder %s15, 1
    %p54 = por %p52, %p53
    %p55 = scmp.ne.s32.totalorder %s46, %s47
    %p56 = scmp.eq.s32.totalorder %s15, 0
    %p57 = por %p55, %p56
    %p58 = scmp.ne.s32.totalorder %s46, %s47
    %p59 = scmp.eq.s32.totalorder %s16, 1
    %p60 = por %p58, %p59
    %p62 = scmp.ne.s32.totalorder %s47, %s61
    %p63 = scmp.eq.s32.totalorder %s16, 0
    %p64 = por %p62, %p63
    %s66 = sadd.s32 %s65, 1
    %p69 = scmp.eq.s32.totalorder %s10, 1
    %p70 = scmp.ne.s32.totalorder %s65, %s67
    %p71 = scmp.eq.s32.totalorder %s10, 0
    %p72 = por %p70, %p71
    %p73 = scmp.ne.s32.totalorder %s65, %s67
    %p74 = scmp.eq.s32.totalorder %s15, 1
    %p75 = por %p73, %p74
    %p76 = scmp.ne.s32.totalorder %s67, %s68
    %p77 = scmp.eq.s32.totalorder %s15, 0
    %p78 = por %p76, %p77
    %p79 = scmp.ne.s32.totalorder %s67, %s68
    %p80 = scmp.eq.s32.totalorder %s16, 1
    %p81 = por %p79, %p80
    %p83 = scmp.ne.s32.totalorder %s68, %s82
    %p84 = scmp.eq.s32.totalorder %s16, 0
    %p85 = por %p83, %p84
    %s87 = sadd.s32 %s86, 1
    %p90 = scmp.eq.s32.totalorder %s10, 1
    %p91 = scmp.ne.s32.totalorder %s86, %s88
    %p92 = scmp.eq.s32.totalorder %s10, 0
    %p93 = por %p91, %p92
    %p94 = scmp.ne.s32.totalorder %s86, %s88
    %p95 = scmp.eq.s32.totalorder %s15, 1
    %p96 = por %p94, %p95
    %p97 = scmp.ne.s32.totalorder %s88, %s89
    %p98 = scmp.eq.s32.totalorder %s15, 0
    %p99 = por %p97, %p98
    %p100 = scmp.ne.s32.totalorder %s88, %s89
    %p101 = scmp.eq.s32.totalorder %s16, 1
    %p102 = por %p100, %p101
    %p104 = scmp.ne.s32.totalorder %s89, %s103
    %p105 = scmp.eq.s32.totalorder %s16, 0
    %p106 = por %p104, %p105
    %s107 = ssub.s32 %s10, %s17
    %p108 = scmp.eq.s32.totalorder %s107, 0
    %s110 = sadd.s32 %s109, 1
    %s111 = scalar_select %p108, %s109, %s110
    %p114 = pneg %p108
    %p115 = scmp.eq.s32.totalorder %s10, 1
    %p116 = por %p114, %p115
    %p117 = scmp.ne.s32.totalorder %s109, %s112
    %p118 = scmp.eq.s32.totalorder %s10, 0
    %p119 = por %p117, %p118
    %p120 = scmp.ne.s32.totalorder %s109, %s112
    %p121 = scmp.eq.s32.totalorder %s15, 1
    %p122 = por %p120, %p121
    %p123 = scmp.ne.s32.totalorder %s112, %s113
    %p124 = scmp.eq.s32.totalorder %s15, 0
    %p125 = por %p123, %p124
    %p126 = scmp.ne.s32.totalorder %s112, %s113
    %p127 = scmp.eq.s32.totalorder %s16, 1
    %p128 = por %p126, %p127
    %p130 = scmp.ne.s32.totalorder %s113, %s129
    %p131 = scmp.eq.s32.totalorder %s16, 0
    %p132 = por %p130, %p131
    %p133 = scmp.le.s32.totalorder 1, %s10
    %p134 = scmp.lt.s32.totalorder %s10, 3
    %p135 = pnand %p133, %p134
    %p136 = pneg %p135
    // Predicated region
    $region9: #{transformer_forward.6} parent=5 // pred_check
      _
    $region10: #{transformer_forward.6} parent=5 // pred_check_branch
      %138 = sbr.rel (%p135) target = $region12
    $region11: #{transformer_forward.6} parent=5 // pred_region
      %s139 = ssub.s32 %s10, 1
      // Predicated region
      $region13: #{transformer_forward.6} parent=11 // pred_check
        %p140 = pneg %p57
      $region14: #{transformer_forward.6} parent=11 // pred_check_branch
        %142 = sbr.rel (%p140) target = $region16
      $region15: #{transformer_forward.6} parent=11 // pred_region
        _
      $region16: #{transformer_forward.6} parent=11 // pred_fallthru
        _
      // Predicated region
      $region17: #{transformer_forward.6} parent=11 // pred_check
        %p143 = pneg %p78
      $region18: #{transformer_forward.6} parent=11 // pred_check_branch
        %145 = sbr.rel (%p143) target = $region20
      $region19: #{transformer_forward.6} parent=11 // pred_region
        _
      $region20: #{transformer_forward.6} parent=11 // pred_fallthru
        _
      // Predicated region
      $region21: #{transformer_forward.6} parent=11 // pred_check
        %p146 = pneg %p99
      $region22: #{transformer_forward.6} parent=11 // pred_check_branch
        %148 = sbr.rel (%p146) target = $region24
      $region23: #{transformer_forward.6} parent=11 // pred_region
        _
      $region24: #{transformer_forward.6} parent=11 // pred_fallthru
        _
    $region12: #{transformer_forward.6} parent=5 // pred_fallthru
      _
    %p149 = scmp.lt.s32.totalorder %s10, 2
    // Predicated region
    $region25: #{transformer_forward.6} parent=5 // pred_check
      %p150 = pneg %p149
    $region26: #{transformer_forward.6} parent=5 // pred_check_branch
      %152 = sbr.rel (%p150) target = $region28
    $region27: #{transformer_forward.6} parent=5 // pred_region
      // Predicated region
      $region29: #{transformer_forward.6} parent=27 // pred_check
        %p153 = pneg %p30
      $region30: #{transformer_forward.6} parent=27 // pred_check_branch
        %155 = sbr.rel (%p153) target = $region32
      $region31: #{transformer_forward.6} parent=27 // pred_region
        %p156 = scmp.lt.s32.totalorder %s10, 1
        %s157 = scalar_select %p156, %s10, 1
        %s158 = smul.addr %s157, 54
        %s159 = smul.addr %s158, 8
        %s160 = scalar_lea.vmem %s0, %s159
      $region32: #{transformer_forward.6} parent=27 // pred_fallthru
        _
    $region28: #{transformer_forward.6} parent=5 // pred_fallthru
      _
    %p161 = scmp.le.s32.totalorder 1, %s10
    %p162 = scmp.lt.s32.totalorder %s10, 3
    %p163 = pnand %p161, %p162
    %p164 = pneg %p163
    // Predicated region
    $region33: #{transformer_forward.6} parent=5 // pred_check
      _
    $region34: #{transformer_forward.6} parent=5 // pred_check_branch
      %166 = sbr.rel (%p163) target = $region36
    $region35: #{transformer_forward.6} parent=5 // pred_region
      %s167 = ssub.s32 %s10, 1
      %p168 = scmp.lt.s32.totalorder %s15, 1
      %s169 = scalar_select %p168, %s15, 1
      %s170 = smul.addr %s169, 54
      %s171 = smul.addr %s170, 8
      %s172 = scalar_lea.vmem %s0, %s171
      %p173 = pneg %p36
      %p174 = pneg %p33
      %p175 = pneg %p57
      %p176 = pneg %p54
      %p177 = pneg %p78
      %p178 = pneg %p75
      %p179 = pneg %p99
      %p180 = pneg %p96
      %p181 = pneg %p125
      %p182 = pneg %p122
      %p183 = scmp.lt.s32.totalorder %s15, 1
      %s184 = scalar_select %p183, %s15, 1
      %s185 = smul.addr %s184, 32
      %s186 = smul.addr %s185, 8
      %s187 = scalar_lea.vmem %s4, %s186
      %p188 = scmp.lt.s32.totalorder %s15, 1
      %s189 = scalar_select %p188, %s15, 1
      %s190 = smul.addr %s189, 54
      %s191 = smul.addr %s190, 8
      %s192 = scalar_lea.vmem %s0, %s191
      %p193 = scmp.lt.s32.totalorder %s15, 1
      %s194 = scalar_select %p193, %s15, 1
      %s195 = smul.addr %s194, 32
      %s196 = smul.addr %s195, 8
      %s197 = scalar_lea.vmem %s4, %s196
      %v199 = vld [vmem:[%s192] sm:$0xff]
      %v200 = vld [vmem:[%s192 + $0x8] sm:$0xff]
      %v201 = vld [vmem:[%s192 + $0x18] sm:$0xff]
      %v202 = vld [vmem:[%s192 + $0x20] sm:$0xff]
      %v203 = vld [vmem:[%s192 + $0x30] sm:$0xff]
      %v204 = vld [vmem:[%s192 + $0x38] sm:$0xff]
      %v205 = vld [vmem:[%s192 + $0x48] sm:$0xff]
      %v206 = vld [vmem:[%s192 + $0x50] sm:$0xff]
      %v207 = vld [vmem:[%s192 + $0x60] sm:$0xff]
      %v208 = vld [vmem:[%s192 + $0x68] sm:$0xff]
      %v209 = vld [vmem:[%s192 + $0x78] sm:$0xff]
      %v210 = vld [vmem:[%s192 + $0x80] sm:$0xff]
      %v211 = vld [vmem:[%s192 + $0x90] sm:$0xff]
      %v212 = vld [vmem:[%s192 + $0x98] sm:$0xff]
      %v213 = vld [vmem:[%s192 + $0xa8] sm:$0xff]
      %v214 = vld [vmem:[%s192 + $0xb0] sm:$0xff]
      %v215 = vld [vmem:[%s192 + $0xc0] sm:$0xff]
      %v216 = vld [vmem:[%s192 + $0xc8] sm:$0xff]
      %v217 = vld [vmem:[%s192 + $0xd8] sm:$0xff]
      %v218 = vld [vmem:[%s192 + $0xe0] sm:$0xff]
      %v219 = vld [vmem:[%s192 + $0xf0] sm:$0xff]
      %v220 = vld [vmem:[%s192 + $0xf8] sm:$0xff]
      %v221 = vld [vmem:[%s192 + $0x108] sm:$0xff]
      %v222 = vld [vmem:[%s192 + $0x110] sm:$0xff]
      %v223 = vld [vmem:[%s192 + $0x120] sm:$0xff]
      %v224 = vld [vmem:[%s192 + $0x128] sm:$0xff]
      %v225 = vld [vmem:[%s192 + $0x138] sm:$0xff]
      %v226 = vld [vmem:[%s192 + $0x140] sm:$0xff]
      %v227 = vld [vmem:[%s192 + $0x150] sm:$0xff]
      %v228 = vld [vmem:[%s192 + $0x158] sm:$0xff]
      %v229 = vld [vmem:[%s192 + $0x168] sm:$0xff]
      %v230 = vld [vmem:[%s192 + $0x170] sm:$0xff]
      %v231 = vpack.c.bf16 %v200, %v199
      %v232 = vpack.c.bf16 %v202, %v201
      %v233 = vpack.c.bf16 %v204, %v203
      %v234 = vpack.c.bf16 %v206, %v205
      %v235 = vpack.c.bf16 %v208, %v207
      %v236 = vpack.c.bf16 %v210, %v209
      %v237 = vpack.c.bf16 %v212, %v211
      %v238 = vpack.c.bf16 %v214, %v213
      %v239 = vpack.c.bf16 %v216, %v215
      %v240 = vpack.c.bf16 %v218, %v217
      %v241 = vpack.c.bf16 %v220, %v219
      %v242 = vpack.c.bf16 %v222, %v221
      %v243 = vpack.c.bf16 %v224, %v223
      %v244 = vpack.c.bf16 %v226, %v225
      %v245 = vpack.c.bf16 %v228, %v227
      %v246 = vpack.c.bf16 %v230, %v229
      %v247 = vld [vmem:[%s1] sm:$0xf]
      %v248 = vld [vmem:[%s1 + $0x4] sm:$0xf]
      %v249 = vld [vmem:[%s192 + $0x1] sm:$0xff]
      %v250 = vld [vmem:[%s192 + $0x9] sm:$0xff]
      %v251 = vld [vmem:[%s192 + $0x19] sm:$0xff]
      %v252 = vld [vmem:[%s192 + $0x21] sm:$0xff]
      %v253 = vld [vmem:[%s192 + $0x31] sm:$0xff]
      %v254 = vld [vmem:[%s192 + $0x39] sm:$0xff]
      %v255 = vld [vmem:[%s192 + $0x49] sm:$0xff]
      %v256 = vld [vmem:[%s192 + $0x51] sm:$0xff]
      %v257 = vld [vmem:[%s192 + $0x61] sm:$0xff]
      %v258 = vld [vmem:[%s192 + $0x69] sm:$0xff]
      %v259 = vld [vmem:[%s192 + $0x79] sm:$0xff]
      %v260 = vld [vmem:[%s192 + $0x81] sm:$0xff]
      %v261 = vld [vmem:[%s192 + $0x91] sm:$0xff]
      %v262 = vld [vmem:[%s192 + $0x99] sm:$0xff]
      %v263 = vld [vmem:[%s192 + $0xa9] sm:$0xff]
      %v264 = vld [vmem:[%s192 + $0xb1] sm:$0xff]
      %v265 = vld [vmem:[%s192 + $0xc1] sm:$0xff]
      %v266 = vld [vmem:[%s192 + $0xc9] sm:$0xff]
      %v267 = vld [vmem:[%s192 + $0xd9] sm:$0xff]
      %v268 = vld [vmem:[%s192 + $0xe1] sm:$0xff]
      %v269 = vld [vmem:[%s192 + $0xf1] sm:$0xff]
      %v270 = vld [vmem:[%s192 + $0xf9] sm:$0xff]
      %v271 = vld [vmem:[%s192 + $0x109] sm:$0xff]
      %v272 = vld [vmem:[%s192 + $0x111] sm:$0xff]
      %v273 = vld [vmem:[%s192 + $0x121] sm:$0xff]
      %v274 = vld [vmem:[%s192 + $0x129] sm:$0xff]
      %v275 = vld [vmem:[%s192 + $0x139] sm:$0xff]
      %v276 = vld [vmem:[%s192 + $0x141] sm:$0xff]
      %v277 = vld [vmem:[%s192 + $0x151] sm:$0xff]
      %v278 = vld [vmem:[%s192 + $0x159] sm:$0xff]
      %v279 = vld [vmem:[%s192 + $0x169] sm:$0xff]
      %v280 = vld [vmem:[%s192 + $0x171] sm:$0xff]
      %v281 = vpack.c.bf16 %v250, %v249
      %v282 = vpack.c.bf16 %v252, %v251
      %v283 = vpack.c.bf16 %v254, %v253
      %v284 = vpack.c.bf16 %v256, %v255
      %v285 = vpack.c.bf16 %v258, %v257
      %v286 = vpack.c.bf16 %v260, %v259
      %v287 = vpack.c.bf16 %v262, %v261
      %v288 = vpack.c.bf16 %v264, %v263
      %v289 = vpack.c.bf16 %v266, %v265
      %v290 = vpack.c.bf16 %v268, %v267
      %v291 = vpack.c.bf16 %v270, %v269
      %v292 = vpack.c.bf16 %v272, %v271
      %v293 = vpack.c.bf16 %v274, %v273
      %v294 = vpack.c.bf16 %v276, %v275
      %v295 = vpack.c.bf16 %v278, %v277
      %v296 = vpack.c.bf16 %v280, %v279
      %s297 = scalar_lea.vmem %s1, 8
      %v298 = vld [vmem:[%s297] sm:$0xf]
      %v299 = vld [vmem:[%s297 + $0x4] sm:$0xf]
      %v302 = vunpack.c.l.b16 %v298
      %v303 = vunpack.c.l.b16 %v299
      %v304 = vpack.c.b16 %v303, %v302
      %vm306 = vcmask 130048
      %v308 = vsel %vm306, %v281, 0
      %v311 = vsel %vm306, %v282, 0
      %v314 = vsel %vm306, %v283, 0
      %v317 = vsel %vm306, %v284, 0
      %v320 = vsel %vm306, %v285, 0
      %v323 = vsel %vm306, %v286, 0
      %v326 = vsel %vm306, %v287, 0
      %v329 = vsel %vm306, %v288, 0
      %v332 = vsel %vm306, %v289, 0
      %v335 = vsel %vm306, %v290, 0
      %v338 = vsel %vm306, %v291, 0
      %v341 = vsel %vm306, %v292, 0
      %v344 = vsel %vm306, %v293, 0
      %v347 = vsel %vm306, %v294, 0
      %v350 = vsel %vm306, %v295, 0
      %v353 = vsel %vm306, %v296, 0
      %355 = vmatprep.subr.bf16.mxu0 0
      %356 = vmatpush1.bf16.msra.mxu0 %v304
      %357 = vmatprep.subr.bf16.mxu0 0
      %358 = vmatpush1.bf16.msra.mxu0 0
      %359 = vmatprep.subr.bf16.mxu0 0
      %360 = vmatpush1.bf16.msra.mxu0 0
      %361 = vmatprep.subr.bf16.mxu0 0
      %362 = vmatpush1.bf16.msra.mxu0 0
      %363 = vmatprep.subr.bf16.mxu0 0
      %364 = vmatpush1.bf16.msra.mxu0 0
      %365 = vmatprep.subr.bf16.mxu0 0
      %366 = vmatpush1.bf16.msra.mxu0 0
      %367 = vmatprep.subr.bf16.mxu0 0
      %368 = vmatpush1.bf16.msra.mxu0 0
      %369 = vmatprep.subr.bf16.mxu0 0
      %370 = vmatpush1.bf16.msra.mxu0 0
      %371 = vmatprep.subr.bf16.mxu0 0
      %372 = vmatpush1.bf16.msra.mxu0 0
      %373 = vmatprep.subr.bf16.mxu0 0
      %374 = vmatpush1.bf16.msra.mxu0 0
      %375 = vmatprep.subr.bf16.mxu0 0
      %376 = vmatpush1.bf16.msra.mxu0 0
      %377 = vmatprep.subr.bf16.mxu0 0
      %378 = vmatpush1.bf16.msra.mxu0 0
      %379 = vmatprep.subr.bf16.mxu0 0
      %380 = vmatpush1.bf16.msra.mxu0 0
      %381 = vmatprep.subr.bf16.mxu0 0
      %382 = vmatpush1.bf16.msra.mxu0 0
      %383 = vmatprep.subr.bf16.mxu0 0
      %384 = vmatpush1.bf16.msra.mxu0 0
      %385 = vmatprep.subr.bf16.mxu0 0
      %386 = vmatpush1.bf16.msra.mxu0 0
      %387 = vmatprep.mubr.bf16.mxu0 0
      %388 = vmatmul.mubr.bf16.gmra.mrb[0].mxu0 %v308
      %v389 = vpop.f32.mrb[0].mxu0
      %v390 = vadd.f32 0.0, %v389
      %v391 = vpop.f32.mrb[0].mxu0
      %v392 = vpop.f32.mrb[0].mxu0
      %v393 = vadd.f32 0.0, %v392
      %v394 = vpop.f32.mrb[0].mxu0
      %395 = vmatprep.mubr.bf16.mxu0 0
      %396 = vmatmul.mubr.bf16.gmra.mrb[0].mxu0 %v311
      %v397 = vpop.f32.mrb[0].mxu0
      %v398 = vadd.f32 0.0, %v397
      %v399 = vpop.f32.mrb[0].mxu0
      %v400 = vpop.f32.mrb[0].mxu0
      %v401 = vadd.f32 0.0, %v400
      %v402 = vpop.f32.mrb[0].mxu0
      %403 = vmatprep.mubr.bf16.mxu0 0
      %404 = vmatmul.mubr.bf16.gmra.mrb[0].mxu0 %v314
      %v405 = vpop.f32.mrb[0].mxu0
      %v406 = vadd.f32 0.0, %v405
      %v407 = vpop.f32.mrb[0].mxu0
      %v408 = vpop.f32.mrb[0].mxu0
      %v409 = vadd.f32 0.0, %v408
      %v410 = vpop.f32.mrb[0].mxu0
      %411 = vmatprep.mubr.bf16.mxu0 0
      %412 = vmatmul.mubr.bf16.gmra.mrb[0].mxu0 %v317
      %v413 = vpop.f32.mrb[0].mxu0
      %v414 = vadd.f32 0.0, %v413
      %v415 = vpop.f32.mrb[0].mxu0
      %v416 = vpop.f32.mrb[0].mxu0
      %v417 = vadd.f32 0.0, %v416
      %v418 = vpop.f32.mrb[0].mxu0
      %419 = vmatprep.mubr.bf16.mxu0 0
      %420 = vmatmul.mubr.bf16.gmra.mrb[0].mxu0 %v320
      %v421 = vpop.f32.mrb[0].mxu0
      %v422 = vadd.f32 0.0, %v421
      %v423 = vpop.f32.mrb[0].mxu0
      %v424 = vpop.f32.mrb[0].mxu0
      %v425 = vadd.f32 0.0, %v424
      %v426 = vpop.f32.mrb[0].mxu0
      %427 = vmatprep.mubr.bf16.mxu0 0
      %428 = vmatmul.mubr.bf16.gmra.mrb[0].mxu0 %v323
      %v429 = vpop.f32.mrb[0].mxu0
      %v430 = vadd.f32 0.0, %v429
      %v431 = vpop.f32.mrb[0].mxu0
      %v432 = vpop.f32.mrb[0].mxu0
      %v433 = vadd.f32 0.0, %v432
      %v434 = vpop.f32.mrb[0].mxu0
      %435 = vmatprep.mubr.bf16.mxu0 0
      %436 = vmatmul.mubr.bf16.gmra.mrb[0].mxu0 %v326
      %v437 = vpop.f32.mrb[0].mxu0
      %v438 = vadd.f32 0.0, %v437
      %v439 = vpop.f32.mrb[0].mxu0
      %v440 = vpop.f32.mrb[0].mxu0
      %v441 = vadd.f32 0.0, %v440
      %v442 = vpop.f32.mrb[0].mxu0
      %443 = vmatprep.mubr.bf16.mxu0 0
      %444 = vmatmul.mubr.bf16.gmra.mrb[0].mxu0 %v329
      %v445 = vpop.f32.mrb[0].mxu0
      %v446 = vadd.f32 0.0, %v445
      %v447 = vpop.f32.mrb[0].mxu0
      %v448 = vpop.f32.mrb[0].mxu0
      %v449 = vadd.f32 0.0, %v448
      %v450 = vpop.f32.mrb[0].mxu0
      %451 = vmatprep.mubr.bf16.mxu0 0
      %452 = vmatmul.mubr.bf16.gmra.mrb[0].mxu0 %v332
      %v453 = vpop.f32.mrb[0].mxu0
      %v454 = vadd.f32 0.0, %v453
      %v455 = vpop.f32.mrb[0].mxu0
      %v456 = vpop.f32.mrb[0].mxu0
      %v457 = vadd.f32 0.0, %v456
      %v458 = vpop.f32.mrb[0].mxu0
      %459 = vmatprep.mubr.bf16.mxu0 0
      %460 = vmatmul.mubr.bf16.gmra.mrb[0].mxu0 %v335
      %v461 = vpop.f32.mrb[0].mxu0
      %v462 = vadd.f32 0.0, %v461
      %v463 = vpop.f32.mrb[0].mxu0
      %v464 = vpop.f32.mrb[0].mxu0
      %v465 = vadd.f32 0.0, %v464
      %v466 = vpop.f32.mrb[0].mxu0
      %467 = vmatprep.mubr.bf16.mxu0 0
      %468 = vmatmul.mubr.bf16.gmra.mrb[0].mxu0 %v338
      %v469 = vpop.f32.mrb[0].mxu0
      %v470 = vadd.f32 0.0, %v469
      %v471 = vpop.f32.mrb[0].mxu0
      %v472 = vpop.f32.mrb[0].mxu0
      %v473 = vadd.f32 0.0, %v472
      %v474 = vpop.f32.mrb[0].mxu0
      %475 = vmatprep.mubr.bf16.mxu0 0
      %476 = vmatmul.mubr.bf16.gmra.mrb[0].mxu0 %v341
      %v477 = vpop.f32.mrb[0].mxu0
      %v478 = vadd.f32 0.0, %v477
      %v479 = vpop.f32.mrb[0].mxu0
      %v480 = vpop.f32.mrb[0].mxu0
      %v481 = vadd.f32 0.0, %v480
      %v482 = vpop.f32.mrb[0].mxu0
      %483 = vmatprep.mubr.bf16.mxu0 0
      %484 = vmatmul.mubr.bf16.gmra.mrb[0].mxu0 %v344
      %v485 = vpop.f32.mrb[0].mxu0
      %v486 = vadd.f32 0.0, %v485
      %v487 = vpop.f32.mrb[0].mxu0
      %v488 = vpop.f32.mrb[0].mxu0
      %v489 = vadd.f32 0.0, %v488
      %v490 = vpop.f32.mrb[0].mxu0
      %491 = vmatprep.mubr.bf16.mxu0 0
      %492 = vmatmul.mubr.bf16.gmra.mrb[0].mxu0 %v347
      %v493 = vpop.f32.mrb[0].mxu0
      %v494 = vadd.f32 0.0, %v493
      %v495 = vpop.f32.mrb[0].mxu0
      %v496 = vpop.f32.mrb[0].mxu0
      %v497 = vadd.f32 0.0, %v496
      %v498 = vpop.f32.mrb[0].mxu0
      %499 = vmatprep.mubr.bf16.mxu0 0
      %500 = vmatmul.mubr.bf16.gmra.mrb[0].mxu0 %v350
      %v501 = vpop.f32.mrb[0].mxu0
      %v502 = vadd.f32 0.0, %v501
      %v503 = vpop.f32.mrb[0].mxu0
      %v504 = vpop.f32.mrb[0].mxu0
      %v505 = vadd.f32 0.0, %v504
      %v506 = vpop.f32.mrb[0].mxu0
      %507 = vmatprep.mubr.bf16.mxu0 0
      %508 = vmatmul.mubr.bf16.gmra.mrb[0].mxu0 %v353
      %v509 = vpop.f32.mrb[0].mxu0
      %v510 = vadd.f32 0.0, %v509
      %v511 = vpop.f32.mrb[0].mxu0
      %v512 = vpop.f32.mrb[0].mxu0
      %v513 = vadd.f32 0.0, %v512
      %v514 = vpop.f32.mrb[0].mxu0
      %515 = vdwg.mxu0
      %v518 = vunpack.c.l.b16 %v247
      %v519 = vunpack.c.l.b16 %v248
      %v520 = vpack.c.b16 %v519, %v518
      %v523 = vsel %vm306, %v231, 0
      %v526 = vsel %vm306, %v232, 0
      %v529 = vsel %vm306, %v233, 0
      %v532 = vsel %vm306, %v234, 0
      %v535 = vsel %vm306, %v235, 0
      %v538 = vsel %vm306, %v236, 0
      %v541 = vsel %vm306, %v237, 0
      %v544 = vsel %vm306, %v238, 0
      %v547 = vsel %vm306, %v239, 0
      %v550 = vsel %vm306, %v240, 0
      %v553 = vsel %vm306, %v241, 0
      %v556 = vsel %vm306, %v242, 0
      %v559 = vsel %vm306, %v243, 0
      %v562 = vsel %vm306, %v244, 0
      %v565 = vsel %vm306, %v245, 0
      %v568 = vsel %vm306, %v246, 0
      %570 = vmatprep.subr.bf16.mxu0 0
      %571 = vmatpush1.bf16.msra.mxu0 %v520
      %572 = vmatprep.subr.bf16.mxu0 0
      %573 = vmatpush1.bf16.msra.mxu0 0
      %574 = vmatprep.subr.bf16.mxu0 0
      %575 = vmatpush1.bf16.msra.mxu0 0
      %576 = vmatprep.subr.bf16.mxu0 0
      %577 = vmatpush1.bf16.msra.mxu0 0
      %578 = vmatprep.subr.bf16.mxu0 0
      %579 = vmatpush1.bf16.msra.mxu0 0
      %580 = vmatprep.subr.bf16.mxu0 0
      %581 = vmatpush1.bf16.msra.mxu0 0
      %582 = vmatprep.subr.bf16.mxu0 0
      %583 = vmatpush1.bf16.msra.mxu0 0
      %584 = vmatprep.subr.bf16.mxu0 0
      %585 = vmatpush1.bf16.msra.mxu0 0
      %586 = vmatprep.subr.bf16.mxu0 0
      %587 = vmatpush1.bf16.msra.mxu0 0
      %588 = vmatprep.subr.bf16.mxu0 0
      %589 = vmatpush1.bf16.msra.mxu0 0
      %590 = vmatprep.subr.bf16.mxu0 0
      %591 = vmatpush1.bf16.msra.mxu0 0
      %592 = vmatprep.subr.bf16.mxu0 0
      %593 = vmatpush1.bf16.msra.mxu0 0
      %594 = vmatprep.subr.bf16.mxu0 0
      %595 = vmatpush1.bf16.msra.mxu0 0
      %596 = vmatprep.subr.bf16.mxu0 0
      %597 = vmatpush1.bf16.msra.mxu0 0
      %598 = vmatprep.subr.bf16.mxu0 0
      %599 = vmatpush1.bf16.msra.mxu0 0
      %600 = vmatprep.subr.bf16.mxu0 0
      %601 = vmatpush1.bf16.msra.mxu0 0
      %602 = vmatprep.mubr.bf16.mxu0 0
      %603 = vmatmul.mubr.bf16.gmra.mrb[0].mxu0 %v523
      %v604 = vpop.f32.mrb[0].mxu0
      %v605 = vadd.f32 %v390, %v604
      %v606 = vpop.f32.mrb[0].mxu0
      %v607 = vpop.f32.mrb[0].mxu0
      %v608 = vadd.f32 %v393, %v607
      %v609 = vpop.f32.mrb[0].mxu0
      %610 = vmatprep.mubr.bf16.mxu0 0
      %611 = vmatmul.mubr.bf16.gmra.mrb[0].mxu0 %v526
      %v612 = vpop.f32.mrb[0].mxu0
      %v613 = vadd.f32 %v398, %v612
      %v614 = vpop.f32.mrb[0].mxu0
      %v615 = vpop.f32.mrb[0].mxu0
      %v616 = vadd.f32 %v401, %v615
      %v617 = vpop.f32.mrb[0].mxu0
      %618 = vmatprep.mubr.bf16.mxu0 0
      %619 = vmatmul.mubr.bf16.gmra.mrb[0].mxu0 %v529
      %v620 = vpop.f32.mrb[0].mxu0
      %v621 = vadd.f32 %v406, %v620
      %v622 = vpop.f32.mrb[0].mxu0
      %v623 = vpop.f32.mrb[0].mxu0
      %v624 = vadd.f32 %v409, %v623
      %v625 = vpop.f32.mrb[0].mxu0
      %626 = vmatprep.mubr.bf16.mxu0 0
      %627 = vmatmul.mubr.bf16.gmra.mrb[0].mxu0 %v532
      %v628 = vpop.f32.mrb[0].mxu0
      %v629 = vadd.f32 %v414, %v628
      %v630 = vpop.f32.mrb[0].mxu0
      %v631 = vpop.f32.mrb[0].mxu0
      %v632 = vadd.f32 %v417, %v631
      %v633 = vpop.f32.mrb[0].mxu0
      %634 = vmatprep.mubr.bf16.mxu0 0
      %635 = vmatmul.mubr.bf16.gmra.mrb[0].mxu0 %v535
      %v636 = vpop.f32.mrb[0].mxu0
      %v637 = vadd.f32 %v422, %v636
      %v638 = vpop.f32.mrb[0].mxu0
      %v639 = vpop.f32.mrb[0].mxu0
      %v640 = vadd.f32 %v425, %v639
      %v641 = vpop.f32.mrb[0].mxu0
      %642 = vmatprep.mubr.bf16.mxu0 0
      %643 = vmatmul.mubr.bf16.gmra.mrb[0].mxu0 %v538
      %v644 = vpop.f32.mrb[0].mxu0
      %v645 = vadd.f32 %v430, %v644
      %v646 = vpop.f32.mrb[0].mxu0
      %v647 = vpop.f32.mrb[0].mxu0
      %v648 = vadd.f32 %v433, %v647
      %v649 = vpop.f32.mrb[0].mxu0
      %650 = vmatprep.mubr.bf16.mxu0 0
      %651 = vmatmul.mubr.bf16.gmra.mrb[0].mxu0 %v541
      %v652 = vpop.f32.mrb[0].mxu0
      %v653 = vadd.f32 %v438, %v652
      %v654 = vpop.f32.mrb[0].mxu0
      %v655 = vpop.f32.mrb[0].mxu0
      %v656 = vadd.f32 %v441, %v655
      %v657 = vpop.f32.mrb[0].mxu0
      %658 = vmatprep.mubr.bf16.mxu0 0
      %659 = vmatmul.mubr.bf16.gmra.mrb[0].mxu0 %v544
      %v660 = vpop.f32.mrb[0].mxu0
      %v661 = vadd.f32 %v446, %v660
      %v662 = vpop.f32.mrb[0].mxu0
      %v663 = vpop.f32.mrb[0].mxu0
      %v664 = vadd.f32 %v449, %v663
      %v665 = vpop.f32.mrb[0].mxu0
      %666 = vmatprep.mubr.bf16.mxu0 0
      %667 = vmatmul.mubr.bf16.gmra.mrb[0].mxu0 %v547
      %v668 = vpop.f32.mrb[0].mxu0
      %v669 = vadd.f32 %v454, %v668
      %v670 = vpop.f32.mrb[0].mxu0
      %v671 = vpop.f32.mrb[0].mxu0
      %v672 = vadd.f32 %v457, %v671
      %v673 = vpop.f32.mrb[0].mxu0
      %674 = vmatprep.mubr.bf16.mxu0 0
      %675 = vmatmul.mubr.bf16.gmra.mrb[0].mxu0 %v550
      %v676 = vpop.f32.mrb[0].mxu0
      %v677 = vadd.f32 %v462, %v676
      %v678 = vpop.f32.mrb[0].mxu0
      %v679 = vpop.f32.mrb[0].mxu0
      %v680 = vadd.f32 %v465, %v679
      %v681 = vpop.f32.mrb[0].mxu0
      %682 = vmatprep.mubr.bf16.mxu0 0
      %683 = vmatmul.mubr.bf16.gmra.mrb[0].mxu0 %v553
      %v684 = vpop.f32.mrb[0].mxu0
      %v685 = vadd.f32 %v470, %v684
      %v686 = vpop.f32.mrb[0].mxu0
      %v687 = vpop.f32.mrb[0].mxu0
      %v688 = vadd.f32 %v473, %v687
      %v689 = vpop.f32.mrb[0].mxu0
      %690 = vmatprep.mubr.bf16.mxu0 0
      %691 = vmatmul.mubr.bf16.gmra.mrb[0].mxu0 %v556
      %v692 = vpop.f32.mrb[0].mxu0
      %v693 = vadd.f32 %v478, %v692
      %v694 = vpop.f32.mrb[0].mxu0
      %v695 = vpop.f32.mrb[0].mxu0
      %v696 = vadd.f32 %v481, %v695
      %v697 = vpop.f32.mrb[0].mxu0
      %698 = vmatprep.mubr.bf16.mxu0 0
      %699 = vmatmul.mubr.bf16.gmra.mrb[0].mxu0 %v559
      %v700 = vpop.f32.mrb[0].mxu0
      %v701 = vadd.f32 %v486, %v700
      %v702 = vpop.f32.mrb[0].mxu0
      %v703 = vpop.f32.mrb[0].mxu0
      %v704 = vadd.f32 %v489, %v703
      %v705 = vpop.f32.mrb[0].mxu0
      %706 = vmatprep.mubr.bf16.mxu0 0
      %707 = vmatmul.mubr.bf16.gmra.mrb[0].mxu0 %v562
      %v708 = vpop.f32.mrb[0].mxu0
      %v709 = vadd.f32 %v494, %v708
      %v710 = vpop.f32.mrb[0].mxu0
      %v711 = vpop.f32.mrb[0].mxu0
      %v712 = vadd.f32 %v497, %v711
      %v713 = vpop.f32.mrb[0].mxu0
      %714 = vmatprep.mubr.bf16.mxu0 0
      %715 = vmatmul.mubr.bf16.gmra.mrb[0].mxu0 %v565
      %v716 = vpop.f32.mrb[0].mxu0
      %v717 = vadd.f32 %v502, %v716
      %v718 = vpop.f32.mrb[0].mxu0
      %v719 = vpop.f32.mrb[0].mxu0
      %v720 = vadd.f32 %v505, %v719
      %v721 = vpop.f32.mrb[0].mxu0
      %722 = vmatprep.mubr.bf16.mxu0 0
      %723 = vmatmul.mubr.bf16.gmra.mrb[0].mxu0 %v568
      %v724 = vpop.f32.mrb[0].mxu0
      %v725 = vadd.f32 %v510, %v724
      %v726 = vpop.f32.mrb[0].mxu0
      %v727 = vpop.f32.mrb[0].mxu0
      %v728 = vadd.f32 %v513, %v727
      %v729 = vpop.f32.mrb[0].mxu0
      %730 = vdwg.mxu0
      %v731 = vld [vmem:[%s192 + $0x2] sm:$0xff]
      %v732 = vld [vmem:[%s192 + $0xa] sm:$0xff]
      %v733 = vld [vmem:[%s192 + $0x1a] sm:$0xff]
      %v734 = vld [vmem:[%s192 + $0x22] sm:$0xff]
      %v735 = vld [vmem:[%s192 + $0x32] sm:$0xff]
      %v736 = vld [vmem:[%s192 + $0x3a] sm:$0xff]
      %v737 = vld [vmem:[%s192 + $0x4a] sm:$0xff]
      %v738 = vld [vmem:[%s192 + $0x52] sm:$0xff]
      %v739 = vld [vmem:[%s192 + $0x62] sm:$0xff]
      %v740 = vld [vmem:[%s192 + $0x6a] sm:$0xff]
      %v741 = vld [vmem:[%s192 + $0x7a] sm:$0xff]
      %v742 = vld [vmem:[%s192 + $0x82] sm:$0xff]
      %v743 = vld [vmem:[%s192 + $0x92] sm:$0xff]
      %v744 = vld [vmem:[%s192 + $0x9a] sm:$0xff]
      %v745 = vld [vmem:[%s192 + $0xaa] sm:$0xff]
      %v746 = vld [vmem:[%s192 + $0xb2] sm:$0xff]
      %v747 = vld [vmem:[%s192 + $0xc2] sm:$0xff]
      %v748 = vld [vmem:[%s192 + $0xca] sm:$0xff]
      %v749 = vld [vmem:[%s192 + $0xda] sm:$0xff]
      %v750 = vld [vmem:[%s192 + $0xe2] sm:$0xff]
      %v751 = vld [vmem:[%s192 + $0xf2] sm:$0xff]
      %v752 = vld [vmem:[%s192 + $0xfa] sm:$0xff]
      %v753 = vld [vmem:[%s192 + $0x10a] sm:$0xff]
      %v754 = vld [vmem:[%s192 + $0x112] sm:$0xff]
      %v755 = vld [vmem:[%s192 + $0x122] sm:$0xff]
      %v756 = vld [vmem:[%s192 + $0x12a] sm:$0xff]
      %v757 = vld [vmem:[%s192 + $0x13a] sm:$0xff]
      %v758 = vld [vmem:[%s192 + $0x142] sm:$0xff]
      %v759 = vld [vmem:[%s192 + $0x152] sm:$0xff]
      %v760 = vld [vmem:[%s192 + $0x15a] sm:$0xff]
      %v761 = vld [vmem:[%s192 + $0x16a] sm:$0xff]
      %v762 = vld [vmem:[%s192 + $0x172] sm:$0xff]
      %v763 = vpack.c.bf16 %v732, %v731
      %v764 = vpack.c.bf16 %v734, %v733
      %v765 = vpack.c.bf16 %v736, %v735
      %v766 = vpack.c.bf16 %v738, %v737
      %v767 = vpack.c.bf16 %v740, %v739
      %v768 = vpack.c.bf16 %v742, %v741
      %v769 = vpack.c.bf16 %v744, %v743
      %v770 = vpack.c.bf16 %v746, %v745
      %v771 = vpack.c.bf16 %v748, %v747
      %v772 = vpack.c.bf16 %v750, %v749
      %v773 = vpack.c.bf16 %v752, %v751
      %v774 = vpack.c.bf16 %v754, %v753
      %v775 = vpack.c.bf16 %v756, %v755
      %v776 = vpack.c.bf16 %v758, %v757
      %v777 = vpack.c.bf16 %v760, %v759
      %v778 = vpack.c.bf16 %v762, %v761
      %s779 = scalar_lea.vmem %s1, 16
      %v780 = vld [vmem:[%s779] sm:$0xf]
      %v781 = vld [vmem:[%s779 + $0x4] sm:$0xf]
      %v784 = vunpack.c.l.b16 %v780
      %v785 = vunpack.c.l.b16 %v781
      %v786 = vpack.c.b16 %v785, %v784
      %v789 = vsel %vm306, %v763, 0
      %v792 = vsel %vm306, %v764, 0
      %v795 = vsel %vm306, %v765, 0
      %v798 = vsel %vm306, %v766, 0
      %v801 = vsel %vm306, %v767, 0
      %v804 = vsel %vm306, %v768, 0
      %v807 = vsel %vm306, %v769, 0
      %v810 = vsel %vm306, %v770, 0
      %v813 = vsel %vm306, %v771, 0
      %v816 = vsel %vm306, %v772, 0
      %v819 = vsel %vm306, %v773, 0
      %v822 = vsel %vm306, %v774, 0
      %v825 = vsel %vm306, %v775, 0
      %v828 = vsel %vm306, %v776, 0
      %v831 = vsel %vm306, %v777, 0
      %v834 = vsel %vm306, %v778, 0
      %836 = vmatprep.subr.bf16.mxu0 0
      %837 = vmatpush1.bf16.msra.mxu0 %v786
      %838 = vmatprep.subr.bf16.mxu0 0
      %839 = vmatpush1.bf16.msra.mxu0 0
      %840 = vmatprep.subr.bf16.mxu0 0
      %841 = vmatpush1.bf16.msra.mxu0 0
      %842 = vmatprep.subr.bf16.mxu0 0
      %843 = vmatpush1.bf16.msra.mxu0 0
      %844 = vmatprep.subr.bf16.mxu0 0
      %845 = vmatpush1.bf16.msra.mxu0 0
      %846 = vmatprep.subr.bf16.mxu0 0
      %847 = vmatpush1.bf16.msra.mxu0 0
      %848 = vmatprep.subr.bf16.mxu0 0
      %849 = vmatpush1.bf16.msra.mxu0 0
      %850 = vmatprep.subr.bf16.mxu0 0
      %851 = vmatpush1.bf16.msra.mxu0 0
      %852 = vmatprep.subr.bf16.mxu0 0
      %853 = vmatpush1.bf16.msra.mxu0 0
      %854 = vmatprep.subr.bf16.mxu0 0
      %855 = vmatpush1.bf16.msra.mxu0 0
      %856 = vmatprep.subr.bf16.mxu0 0
      %857 = vmatpush1.bf16.msra.mxu0 0
      %858 = vmatprep.subr.bf16.mxu0 0
      %859 = vmatpush1.bf16.msra.mxu0 0
      %860 = vmatprep.subr.bf16.mxu0 0
      %861 = vmatpush1.bf16.msra.mxu0 0
      %862 = vmatprep.subr.bf16.mxu0 0
      %863 = vmatpush1.bf16.msra.mxu0 0
      %864 = vmatprep.subr.bf16.mxu0 0
      %865 = vmatpush1.bf16.msra.mxu0 0
      %866 = vmatprep.subr.bf16.mxu0 0
      %867 = vmatpush1.bf16.msra.mxu0 0
      %868 = vmatprep.mubr.bf16.mxu0 0
      %869 = vmatmul.mubr.bf16.gmra.mrb[0].mxu0 %v789
      %v870 = vpop.f32.mrb[0].mxu0
      %v871 = vadd.f32 0.0, %v870
      %v872 = vpop.f32.mrb[0].mxu0
      %v873 = vpop.f32.mrb[0].mxu0
      %v874 = vadd.f32 0.0, %v873
      %v875 = vpop.f32.mrb[0].mxu0
      %876 = vmatprep.mubr.bf16.mxu0 0
      %877 = vmatmul.mubr.bf16.gmra.mrb[0].mxu0 %v792
      %v878 = vpop.f32.mrb[0].mxu0
      %v879 = vadd.f32 0.0, %v878
      %v880 = vpop.f32.mrb[0].mxu0
      %v881 = vpop.f32.mrb[0].mxu0
      %v882 = vadd.f32 0.0, %v881
      %v883 = vpop.f32.mrb[0].mxu0
      %884 = vmatprep.mubr.bf16.mxu0 0
      %885 = vmatmul.mubr.bf16.gmra.mrb[0].mxu0 %v795
      %v886 = vpop.f32.mrb[0].mxu0
      %v887 = vadd.f32 0.0, %v886
      %v888 = vpop.f32.mrb[0].mxu0
      %v889 = vpop.f32.mrb[0].mxu0
      %v890 = vadd.f32 0.0, %v889
      %v891 = vpop.f32.mrb[0].mxu0
      %892 = vmatprep.mubr.bf16.mxu0 0
      %893 = vmatmul.mubr.bf16.gmra.mrb[0].mxu0 %v798
      %v894 = vpop.f32.mrb[0].mxu0
      %v895 = vadd.f32 0.0, %v894
      %v896 = vpop.f32.mrb[0].mxu0
      %v897 = vpop.f32.mrb[0].mxu0
      %v898 = vadd.f32 0.0, %v897
      %v899 = vpop.f32.mrb[0].mxu0
      %900 = vmatprep.mubr.bf16.mxu0 0
      %901 = vmatmul.mubr.bf16.gmra.mrb[0].mxu0 %v801
      %v902 = vpop.f32.mrb[0].mxu0
      %v903 = vadd.f32 0.0, %v902
      %v904 = vpop.f32.mrb[0].mxu0
      %v905 = vpop.f32.mrb[0].mxu0
      %v906 = vadd.f32 0.0, %v905
      %v907 = vpop.f32.mrb[0].mxu0
      %908 = vmatprep.mubr.bf16.mxu0 0
      %909 = vmatmul.mubr.bf16.gmra.mrb[0].mxu0 %v804
      %v910 = vpop.f32.mrb[0].mxu0
      %v911 = vadd.f32 0.0, %v910
      %v912 = vpop.f32.mrb[0].mxu0
      %v913 = vpop.f32.mrb[0].mxu0
      %v914 = vadd.f32 0.0, %v913
      %v915 = vpop.f32.mrb[0].mxu0
      %916 = vmatprep.mubr.bf16.mxu0 0
      %917 = vmatmul.mubr.bf16.gmra.mrb[0].mxu0 %v807
      %v918 = vpop.f32.mrb[0].mxu0
      %v919 = vadd.f32 0.0, %v918
      %v920 = vpop.f32.mrb[0].mxu0
      %v921 = vpop.f32.mrb[0].mxu0
      %v922 = vadd.f32 0.0, %v921
      %v923 = vpop.f32.mrb[0].mxu0
      %924 = vmatprep.mubr.bf16.mxu0 0
      %925 = vmatmul.mubr.bf16.gmra.mrb[0].mxu0 %v810
      %v926 = vpop.f32.mrb[0].mxu0
      %v927 = vadd.f32 0.0, %v926
      %v928 = vpop.f32.mrb[0].mxu0
      %v929 = vpop.f32.mrb[0].mxu0
      %v930 = vadd.f32 0.0, %v929
      %v931 = vpop.f32.mrb[0].mxu0
      %932 = vmatprep.mubr.bf16.mxu0 0
      %933 = vmatmul.mubr.bf16.gmra.mrb[0].mxu0 %v813
      %v934 = vpop.f32.mrb[0].mxu0
      %v935 = vadd.f32 0.0, %v934
      %v936 = vpop.f32.mrb[0].mxu0
      %v937 = vpop.f32.mrb[0].mxu0
      %v938 = vadd.f32 0.0, %v937
      %v939 = vpop.f32.mrb[0].mxu0
      %940 = vmatprep.mubr.bf16.mxu0 0
      %941 = vmatmul.mubr.bf16.gmra.mrb[0].mxu0 %v816
      %v942 = vpop.f32.mrb[0].mxu0
      %v943 = vadd.f32 0.0, %v942
      %v944 = vpop.f32.mrb[0].mxu0
      %v945 = vpop.f32.mrb[0].mxu0
      %v946 = vadd.f32 0.0, %v945
      %v947 = vpop.f32.mrb[0].mxu0
      %948 = vmatprep.mubr.bf16.mxu0 0
      %949 = vmatmul.mubr.bf16.gmra.mrb[0].mxu0 %v819
      %v950 = vpop.f32.mrb[0].mxu0
      %v951 = vadd.f32 0.0, %v950
      %v952 = vpop.f32.mrb[0].mxu0
      %v953 = vpop.f32.mrb[0].mxu0
      %v954 = vadd.f32 0.0, %v953
      %v955 = vpop.f32.mrb[0].mxu0
      %956 = vmatprep.mubr.bf16.mxu0 0
      %957 = vmatmul.mubr.bf16.gmra.mrb[0].mxu0 %v822
      %v958 = vpop.f32.mrb[0].mxu0
      %v959 = vadd.f32 0.0, %v958
      %v960 = vpop.f32.mrb[0].mxu0
      %v961 = vpop.f32.mrb[0].mxu0
      %v962 = vadd.f32 0.0, %v961
      %v963 = vpop.f32.mrb[0].mxu0
      %964 = vmatprep.mubr.bf16.mxu0 0
      %965 = vmatmul.mubr.bf16.gmra.mrb[0].mxu0 %v825
      %v966 = vpop.f32.mrb[0].mxu0
      %v967 = vadd.f32 0.0, %v966
      %v968 = vpop.f32.mrb[0].mxu0
      %v969 = vpop.f32.mrb[0].mxu0
      %v970 = vadd.f32 0.0, %v969
      %v971 = vpop.f32.mrb[0].mxu0
      %972 = vmatprep.mubr.bf16.mxu0 0
      %973 = vmatmul.mubr.bf16.gmra.mrb[0].mxu0 %v828
      %v974 = vpop.f32.mrb[0].mxu0
      %v975 = vadd.f32 0.0, %v974
      %v976 = vpop.f32.mrb[0].mxu0
      %v977 = vpop.f32.mrb[0].mxu0
      %v978 = vadd.f32 0.0, %v977
      %v979 = vpop.f32.mrb[0].mxu0
      %980 = vmatprep.mubr.bf16.mxu0 0
      %981 = vmatmul.mubr.bf16.gmra.mrb[0].mxu0 %v831
      %v982 = vpop.f32.mrb[0].mxu0
      %v983 = vadd.f32 0.0, %v982
      %v984 = vpop.f32.mrb[0].mxu0
      %v985 = vpop.f32.mrb[0].mxu0
      %v986 = vadd.f32 0.0, %v985
      %v987 = vpop.f32.mrb[0].mxu0
      %988 = vmatprep.mubr.bf16.mxu0 0
      %989 = vmatmul.mubr.bf16.gmra.mrb[0].mxu0 %v834
      %v990 = vpop.f32.mrb[0].mxu0
      %v991 = vadd.f32 0.0, %v990
      %v992 = vpop.f32.mrb[0].mxu0
      %v993 = vpop.f32.mrb[0].mxu0
      %v994 = vadd.f32 0.0, %v993
      %v995 = vpop.f32.mrb[0].mxu0
      %996 = vdwg.mxu0
      %v997 = vadd.f32 %v605, %v871
      %v998 = vadd.f32 %v608, %v874
      %v999 = vadd.f32 %v613, %v879
      %v1000 = vadd.f32 %v616, %v882
      %v1001 = vadd.f32 %v621, %v887
      %v1002 = vadd.f32 %v624, %v890
      %v1003 = vadd.f32 %v629, %v895
      %v1004 = vadd.f32 %v632, %v898
      %v1005 = vadd.f32 %v637, %v903
      %v1006 = vadd.f32 %v640, %v906
      %v1007 = vadd.f32 %v645, %v911
      %v1008 = vadd.f32 %v648, %v914
      %v1009 = vadd.f32 %v653, %v919
      %v1010 = vadd.f32 %v656, %v922
      %v1011 = vadd.f32 %v661, %v927
      %v1012 = vadd.f32 %v664, %v930
      %v1013 = vadd.f32 %v669, %v935
      %v1014 = vadd.f32 %v672, %v938
      %v1015 = vadd.f32 %v677, %v943
      %v1016 = vadd.f32 %v680, %v946
      %v1017 = vadd.f32 %v685, %v951
      %v1018 = vadd.f32 %v688, %v954
      %v1019 = vadd.f32 %v693, %v959
      %v1020 = vadd.f32 %v696, %v962
      %v1021 = vadd.f32 %v701, %v967
      %v1022 = vadd.f32 %v704, %v970
      %v1023 = vadd.f32 %v709, %v975
      %v1024 = vadd.f32 %v712, %v978
      %v1025 = vadd.f32 %v717, %v983
      %v1026 = vadd.f32 %v720, %v986
      %v1027 = vadd.f32 %v725, %v991
      %v1028 = vadd.f32 %v728, %v994
      %s1029 = scalar_lea.vmem %s192, 24
      %v1030 = vld [vmem:[%s1029] sm:$0xff]
      %v1031 = vld [vmem:[%s1029 + $0x8] sm:$0xff]
      %v1032 = vld [vmem:[%s1029 + $0x18] sm:$0xff]
      %v1033 = vld [vmem:[%s1029 + $0x20] sm:$0xff]
      %v1034 = vld [vmem:[%s1029 + $0x30] sm:$0xff]
      %v1035 = vld [vmem:[%s1029 + $0x38] sm:$0xff]
      %v1036 = vld [vmem:[%s1029 + $0x48] sm:$0xff]
      %v1037 = vld [vmem:[%s1029 + $0x50] sm:$0xff]
      %v1038 = vld [vmem:[%s1029 + $0x60] sm:$0xff]
      %v1039 = vld [vmem:[%s1029 + $0x68] sm:$0xff]
      %v1040 = vld [vmem:[%s1029 + $0x78] sm:$0xff]
      %v1041 = vld [vmem:[%s1029 + $0x80] sm:$0xff]
      %v1042 = vld [vmem:[%s1029 + $0x90] sm:$0xff]
      %v1043 = vld [vmem:[%s1029 + $0x98] sm:$0xff]
      %v1044 = vld [vmem:[%s1029 + $0xa8] sm:$0xff]
      %v1045 = vld [vmem:[%s1029 + $0xb0] sm:$0xff]
      %v1046 = vld [vmem:[%s1029 + $0xc0] sm:$0xff]
      %v1047 = vld [vmem:[%s1029 + $0xc8] sm:$0xff]
      %v1048 = vld [vmem:[%s1029 + $0xd8] sm:$0xff]
      %v1049 = vld [vmem:[%s1029 + $0xe0] sm:$0xff]
      %v1050 = vld [vmem:[%s1029 + $0xf0] sm:$0xff]
      %v1051 = vld [vmem:[%s1029 + $0xf8] sm:$0xff]
      %v1052 = vld [vmem:[%s1029 + $0x108] sm:$0xff]
      %v1053 = vld [vmem:[%s1029 + $0x110] sm:$0xff]
      %v1054 = vld [vmem:[%s1029 + $0x120] sm:$0xff]
      %v1055 = vld [vmem:[%s1029 + $0x128] sm:$0xff]
      %v1056 = vld [vmem:[%s1029 + $0x138] sm:$0xff]
      %v1057 = vld [vmem:[%s1029 + $0x140] sm:$0xff]
      %v1058 = vld [vmem:[%s1029 + $0x150] sm:$0xff]
      %v1059 = vld [vmem:[%s1029 + $0x158] sm:$0xff]
      %v1060 = vld [vmem:[%s1029 + $0x168] sm:$0xff]
      %v1061 = vld [vmem:[%s1029 + $0x170] sm:$0xff]
      %v1062 = vpack.c.bf16 %v1031, %v1030
      %v1063 = vpack.c.bf16 %v1033, %v1032
      %v1064 = vpack.c.bf16 %v1035, %v1034
      %v1065 = vpack.c.bf16 %v1037, %v1036
      %v1066 = vpack.c.bf16 %v1039, %v1038
      %v1067 = vpack.c.bf16 %v1041, %v1040
      %v1068 = vpack.c.bf16 %v1043, %v1042
      %v1069 = vpack.c.bf16 %v1045, %v1044
      %v1070 = vpack.c.bf16 %v1047, %v1046
      %v1071 = vpack.c.bf16 %v1049, %v1048
      %v1072 = vpack.c.bf16 %v1051, %v1050
      %v1073 = vpack.c.bf16 %v1053, %v1052
      %v1074 = vpack.c.bf16 %v1055, %v1054
      %v1075 = vpack.c.bf16 %v1057, %v1056
      %v1076 = vpack.c.bf16 %v1059, %v1058
      %v1077 = vpack.c.bf16 %v1061, %v1060
      %s1078 = scalar_lea.vmem %s1, 24
      %v1079 = vld [vmem:[%s1078] sm:$0xf]
      %v1080 = vld [vmem:[%s1078 + $0x4] sm:$0xf]
      %v1083 = vunpack.c.l.b16 %v1079
      %v1084 = vunpack.c.l.b16 %v1080
      %v1085 = vpack.c.b16 %v1084, %v1083
      %v1088 = vsel %vm306, %v1062, 0
      %v1091 = vsel %vm306, %v1063, 0
      %v1094 = vsel %vm306, %v1064, 0
      %v1097 = vsel %vm306, %v1065, 0
      %v1100 = vsel %vm306, %v1066, 0
      %v1103 = vsel %vm306, %v1067, 0
      %v1106 = vsel %vm306, %v1068, 0
      %v1109 = vsel %vm306, %v1069, 0
      %v1112 = vsel %vm306, %v1070, 0
      %v1115 = vsel %vm306, %v1071, 0
      %v1118 = vsel %vm306, %v1072, 0
      %v1121 = vsel %vm306, %v1073, 0
      %v1124 = vsel %vm306, %v1074, 0
      %v1127 = vsel %vm306, %v1075, 0
      %v1130 = vsel %vm306, %v1076, 0
      %v1133 = vsel %vm306, %v1077, 0
      %1135 = vmatprep.subr.bf16.mxu0 0
      %1136 = vmatpush1.bf16.msra.mxu0 %v1085
      %1137 = vmatprep.subr.bf16.mxu0 0
      %1138 = vmatpush1.bf16.msra.mxu0 0
      %1139 = vmatprep.subr.bf16.mxu0 0
      %1140 = vmatpush1.bf16.msra.mxu0 0
      %1141 = vmatprep.subr.bf16.mxu0 0
      %1142 = vmatpush1.bf16.msra.mxu0 0
      %1143 = vmatprep.subr.bf16.mxu0 0
      %1144 = vmatpush1.bf16.msra.mxu0 0
      %1145 = vmatprep.subr.bf16.mxu0 0
      %1146 = vmatpush1.bf16.msra.mxu0 0
      %1147 = vmatprep.subr.bf16.mxu0 0
      %1148 = vmatpush1.bf16.msra.mxu0 0
      %1149 = vmatprep.subr.bf16.mxu0 0
      %1150 = vmatpush1.bf16.msra.mxu0 0
      %1151 = vmatprep.subr.bf16.mxu0 0
      %1152 = vmatpush1.bf16.msra.mxu0 0
      %1153 = vmatprep.subr.bf16.mxu0 0
      %1154 = vmatpush1.bf16.msra.mxu0 0
      %1155 = vmatprep.subr.bf16.mxu0 0
      %1156 = vmatpush1.bf16.msra.mxu0 0
      %1157 = vmatprep.subr.bf16.mxu0 0
      %1158 = vmatpush1.bf16.msra.mxu0 0
      %1159 = vmatprep.subr.bf16.mxu0 0
      %1160 = vmatpush1.bf16.msra.mxu0 0
      %1161 = vmatprep.subr.bf16.mxu0 0
      %1162 = vmatpush1.bf16.msra.mxu0 0
      %1163 = vmatprep.subr.bf16.mxu0 0
      %1164 = vmatpush1.bf16.msra.mxu0 0
      %1165 = vmatprep.subr.bf16.mxu0 0
      %1166 = vmatpush1.bf16.msra.mxu0 0
      %1167 = vmatprep.mubr.bf16.mxu0 0
      %1168 = vmatmul.mubr.bf16.gmra.mrb[0].mxu0 %v1088
      %v1169 = vpop.f32.mrb[0].mxu0
      %v1170 = vadd.f32 0.0, %v1169
      %v1171 = vpop.f32.mrb[0].mxu0
      %v1172 = vpop.f32.mrb[0].mxu0
      %v1173 = vadd.f32 0.0, %v1172
      %v1174 = vpop.f32.mrb[0].mxu0
      %1175 = vmatprep.mubr.bf16.mxu0 0
      %1176 = vmatmul.mubr.bf16.gmra.mrb[0].mxu0 %v1091
      %v1177 = vpop.f32.mrb[0].mxu0
      %v1178 = vadd.f32 0.0, %v1177
      %v1179 = vpop.f32.mrb[0].mxu0
      %v1180 = vpop.f32.mrb[0].mxu0
      %v1181 = vadd.f32 0.0, %v1180
      %v1182 = vpop.f32.mrb[0].mxu0
      %1183 = vmatprep.mubr.bf16.mxu0 0
      %1184 = vmatmul.mubr.bf16.gmra.mrb[0].mxu0 %v1094
      %v1185 = vpop.f32.mrb[0].mxu0
      %v1186 = vadd.f32 0.0, %v1185
      %v1187 = vpop.f32.mrb[0].mxu0
      %v1188 = vpop.f32.mrb[0].mxu0
      %v1189 = vadd.f32 0.0, %v1188
      %v1190 = vpop.f32.mrb[0].mxu0
      %1191 = vmatprep.mubr.bf16.mxu0 0
      %1192 = vmatmul.mubr.bf16.gmra.mrb[0].mxu0 %v1097
      %v1193 = vpop.f32.mrb[0].mxu0
      %v1194 = vadd.f32 0.0, %v1193
      %v1195 = vpop.f32.mrb[0].mxu0
      %v1196 = vpop.f32.mrb[0].mxu0
      %v1197 = vadd.f32 0.0, %v1196
      %v1198 = vpop.f32.mrb[0].mxu0
      %1199 = vmatprep.mubr.bf16.mxu0 0
      %1200 = vmatmul.mubr.bf16.gmra.mrb[0].mxu0 %v1100
      %v1201 = vpop.f32.mrb[0].mxu0
      %v1202 = vadd.f32 0.0, %v1201
      %v1203 = vpop.f32.mrb[0].mxu0
      %v1204 = vpop.f32.mrb[0].mxu0
      %v1205 = vadd.f32 0.0, %v1204
      %v1206 = vpop.f32.mrb[0].mxu0
      %1207 = vmatprep.mubr.bf16.mxu0 0
      %1208 = vmatmul.mubr.bf16.gmra.mrb[0].mxu0 %v1103
      %v1209 = vpop.f32.mrb[0].mxu0
      %v1210 = vadd.f32 0.0, %v1209
      %v1211 = vpop.f32.mrb[0].mxu0
      %v1212 = vpop.f32.mrb[0].mxu0
      %v1213 = vadd.f32 0.0, %v1212
      %v1214 = vpop.f32.mrb[0].mxu0
      %1215 = vmatprep.mubr.bf16.mxu0 0
      %1216 = vmatmul.mubr.bf16.gmra.mrb[0].mxu0 %v1106
      %v1217 = vpop.f32.mrb[0].mxu0
      %v1218 = vadd.f32 0.0, %v1217
      %v1219 = vpop.f32.mrb[0].mxu0
      %v1220 = vpop.f32.mrb[0].mxu0
      %v1221 = vadd.f32 0.0, %v1220
      %v1222 = vpop.f32.mrb[0].mxu0
      %1223 = vmatprep.mubr.bf16.mxu0 0
      %1224 = vmatmul.mubr.bf16.gmra.mrb[0].mxu0 %v1109
      %v1225 = vpop.f32.mrb[0].mxu0
      %v1226 = vadd.f32 0.0, %v1225
      %v1227 = vpop.f32.mrb[0].mxu0
      %v1228 = vpop.f32.mrb[0].mxu0
      %v1229 = vadd.f32 0.0, %v1228
      %v1230 = vpop.f32.mrb[0].mxu0
      %1231 = vmatprep.mubr.bf16.mxu0 0
      %1232 = vmatmul.mubr.bf16.gmra.mrb[0].mxu0 %v1112
      %v1233 = vpop.f32.mrb[0].mxu0
      %v1234 = vadd.f32 0.0, %v1233
      %v1235 = vpop.f32.mrb[0].mxu0
      %v1236 = vpop.f32.mrb[0].mxu0
      %v1237 = vadd.f32 0.0, %v1236
      %v1238 = vpop.f32.mrb[0].mxu0
      %1239 = vmatprep.mubr.bf16.mxu0 0
      %1240 = vmatmul.mubr.bf16.gmra.mrb[0].mxu0 %v1115
      %v1241 = vpop.f32.mrb[0].mxu0
      %v1242 = vadd.f32 0.0, %v1241
      %v1243 = vpop.f32.mrb[0].mxu0
      %v1244 = vpop.f32.mrb[0].mxu0
      %v1245 = vadd.f32 0.0, %v1244
      %v1246 = vpop.f32.mrb[0].mxu0
      %1247 = vmatprep.mubr.bf16.mxu0 0
      %1248 = vmatmul.mubr.bf16.gmra.mrb[0].mxu0 %v1118
      %v1249 = vpop.f32.mrb[0].mxu0
      %v1250 = vadd.f32 0.0, %v1249
      %v1251 = vpop.f32.mrb[0].mxu0
      %v1252 = vpop.f32.mrb[0].mxu0
      %v1253 = vadd.f32 0.0, %v1252
      %v1254 = vpop.f32.mrb[0].mxu0
      %1255 = vmatprep.mubr.bf16.mxu0 0
      %1256 = vmatmul.mubr.bf16.gmra.mrb[0].mxu0 %v1121
      %v1257 = vpop.f32.mrb[0].mxu0
      %v1258 = vadd.f32 0.0, %v1257
      %v1259 = vpop.f32.mrb[0].mxu0
      %v1260 = vpop.f32.mrb[0].mxu0
      %v1261 = vadd.f32 0.0, %v1260
      %v1262 = vpop.f32.mrb[0].mxu0
      %1263 = vmatprep.mubr.bf16.mxu0 0
      %1264 = vmatmul.mubr.bf16.gmra.mrb[0].mxu0 %v1124
      %v1265 = vpop.f32.mrb[0].mxu0
      %v1266 = vadd.f32 0.0, %v1265
      %v1267 = vpop.f32.mrb[0].mxu0
      %v1268 = vpop.f32.mrb[0].mxu0
      %v1269 = vadd.f32 0.0, %v1268
      %v1270 = vpop.f32.mrb[0].mxu0
      %1271 = vmatprep.mubr.bf16.mxu0 0
      %1272 = vmatmul.mubr.bf16.gmra.mrb[0].mxu0 %v1127
      %v1273 = vpop.f32.mrb[0].mxu0
      %v1274 = vadd.f32 0.0, %v1273
      %v1275 = vpop.f32.mrb[0].mxu0
      %v1276 = vpop.f32.mrb[0].mxu0
      %v1277 = vadd.f32 0.0, %v1276
      %v1278 = vpop.f32.mrb[0].mxu0
      %1279 = vmatprep.mubr.bf16.mxu0 0
      %1280 = vmatmul.mubr.bf16.gmra.mrb[0].mxu0 %v1130
      %v1281 = vpop.f32.mrb[0].mxu0
      %v1282 = vadd.f32 0.0, %v1281
      %v1283 = vpop.f32.mrb[0].mxu0
      %v1284 = vpop.f32.mrb[0].mxu0
      %v1285 = vadd.f32 0.0, %v1284
      %v1286 = vpop.f32.mrb[0].mxu0
      %1287 = vmatprep.mubr.bf16.mxu0 0
      %1288 = vmatmul.mubr.bf16.gmra.mrb[0].mxu0 %v1133
      %v1289 = vpop.f32.mrb[0].mxu0
      %v1290 = vadd.f32 0.0, %v1289
      %v1291 = vpop.f32.mrb[0].mxu0
      %v1292 = vpop.f32.mrb[0].mxu0
      %v1293 = vadd.f32 0.0, %v1292
      %v1294 = vpop.f32.mrb[0].mxu0
      %1295 = vdwg.mxu0
      %v1296 = vadd.f32 %v997, %v1170
      %v1297 = vadd.f32 %v998, %v1173
      %v1298 = vadd.f32 %v999, %v1178
      %v1299 = vadd.f32 %v1000, %v1181
      %v1300 = vadd.f32 %v1001, %v1186
      %v1301 = vadd.f32 %v1002, %v1189
      %v1302 = vadd.f32 %v1003, %v1194
      %v1303 = vadd.f32 %v1004, %v1197
      %v1304 = vadd.f32 %v1005, %v1202
      %v1305 = vadd.f32 %v1006, %v1205
      %v1306 = vadd.f32 %v1007, %v1210
      %v1307 = vadd.f32 %v1008, %v1213
      %v1308 = vadd.f32 %v1009, %v1218
      %v1309 = vadd.f32 %v1010, %v1221
      %v1310 = vadd.f32 %v1011, %v1226
      %v1311 = vadd.f32 %v1012, %v1229
      %v1312 = vadd.f32 %v1013, %v1234
      %v1313 = vadd.f32 %v1014, %v1237
      %v1314 = vadd.f32 %v1015, %v1242
      %v1315 = vadd.f32 %v1016, %v1245
      %v1316 = vadd.f32 %v1017, %v1250
      %v1317 = vadd.f32 %v1018, %v1253
      %v1318 = vadd.f32 %v1019, %v1258
      %v1319 = vadd.f32 %v1020, %v1261
      %v1320 = vadd.f32 %v1021, %v1266
      %v1321 = vadd.f32 %v1022, %v1269
      %v1322 = vadd.f32 %v1023, %v1274
      %v1323 = vadd.f32 %v1024, %v1277
      %v1324 = vadd.f32 %v1025, %v1282
      %v1325 = vadd.f32 %v1026, %v1285
      %v1326 = vadd.f32 %v1027, %v1290
      %v1327 = vadd.f32 %v1028, %v1293
      %v1328 = vld [vmem:[%s1029 + $0x1] sm:$0xff]
      %v1329 = vld [vmem:[%s1029 + $0x9] sm:$0xff]
      %v1330 = vld [vmem:[%s1029 + $0x19] sm:$0xff]
      %v1331 = vld [vmem:[%s1029 + $0x21] sm:$0xff]
      %v1332 = vld [vmem:[%s1029 + $0x31] sm:$0xff]
      %v1333 = vld [vmem:[%s1029 + $0x39] sm:$0xff]
      %v1334 = vld [vmem:[%s1029 + $0x49] sm:$0xff]
      %v1335 = vld [vmem:[%s1029 + $0x51] sm:$0xff]
      %v1336 = vld [vmem:[%s1029 + $0x61] sm:$0xff]
      %v1337 = vld [vmem:[%s1029 + $0x69] sm:$0xff]
      %v1338 = vld [vmem:[%s1029 + $0x79] sm:$0xff]
      %v1339 = vld [vmem:[%s1029 + $0x81] sm:$0xff]
      %v1340 = vld [vmem:[%s1029 + $0x91] sm:$0xff]
      %v1341 = vld [vmem:[%s1029 + $0x99] sm:$0xff]
      %v1342 = vld [vmem:[%s1029 + $0xa9] sm:$0xff]
      %v1343 = vld [vmem:[%s1029 + $0xb1] sm:$0xff]
      %v1344 = vld [vmem:[%s1029 + $0xc1] sm:$0xff]
      %v1345 = vld [vmem:[%s1029 + $0xc9] sm:$0xff]
      %v1346 = vld [vmem:[%s1029 + $0xd9] sm:$0xff]
      %v1347 = vld [vmem:[%s1029 + $0xe1] sm:$0xff]
      %v1348 = vld [vmem:[%s1029 + $0xf1] sm:$0xff]
      %v1349 = vld [vmem:[%s1029 + $0xf9] sm:$0xff]
      %v1350 = vld [vmem:[%s1029 + $0x109] sm:$0xff]
      %v1351 = vld [vmem:[%s1029 + $0x111] sm:$0xff]
      %v1352 = vld [vmem:[%s1029 + $0x121] sm:$0xff]
      %v1353 = vld [vmem:[%s1029 + $0x129] sm:$0xff]
      %v1354 = vld [vmem:[%s1029 + $0x139] sm:$0xff]
      %v1355 = vld [vmem:[%s1029 + $0x141] sm:$0xff]
      %v1356 = vld [vmem:[%s1029 + $0x151] sm:$0xff]
      %v1357 = vld [vmem:[%s1029 + $0x159] sm:$0xff]
      %v1358 = vld [vmem:[%s1029 + $0x169] sm:$0xff]
      %v1359 = vld [vmem:[%s1029 + $0x171] sm:$0xff]
      %v1360 = vpack.c.bf16 %v1329, %v1328
      %v1361 = vpack.c.bf16 %v1331, %v1330
      %v1362 = vpack.c.bf16 %v1333, %v1332
      %v1363 = vpack.c.bf16 %v1335, %v1334
      %v1364 = vpack.c.bf16 %v1337, %v1336
      %v1365 = vpack.c.bf16 %v1339, %v1338
      %v1366 = vpack.c.bf16 %v1341, %v1340
      %v1367 = vpack.c.bf16 %v1343, %v1342
      %v1368 = vpack.c.bf16 %v1345, %v1344
      %v1369 = vpack.c.bf16 %v1347, %v1346
      %v1370 = vpack.c.bf16 %v1349, %v1348
      %v1371 = vpack.c.bf16 %v1351, %v1350
      %v1372 = vpack.c.bf16 %v1353, %v1352
      %v1373 = vpack.c.bf16 %v1355, %v1354
      %v1374 = vpack.c.bf16 %v1357, %v1356
      %v1375 = vpack.c.bf16 %v1359, %v1358
      %s1376 = scalar_lea.vmem %s1, 32
      %v1377 = vld [vmem:[%s1376] sm:$0xf]
      %v1378 = vld [vmem:[%s1376 + $0x4] sm:$0xf]
      %v1381 = vunpack.c.l.b16 %v1377
      %v1382 = vunpack.c.l.b16 %v1378
      %v1383 = vpack.c.b16 %v1382, %v1381
      %v1386 = vsel %vm306, %v1360, 0
      %v1389 = vsel %vm306, %v1361, 0
      %v1392 = vsel %vm306, %v1362, 0
      %v1395 = vsel %vm306, %v1363, 0
      %v1398 = vsel %vm306, %v1364, 0
      %v1401 = vsel %vm306, %v1365, 0
      %v1404 = vsel %vm306, %v1366, 0
      %v1407 = vsel %vm306, %v1367, 0
      %v1410 = vsel %vm306, %v1368, 0
      %v1413 = vsel %vm306, %v1369, 0
      %v1416 = vsel %vm306, %v1370, 0
      %v1419 = vsel %vm306, %v1371, 0
      %v1422 = vsel %vm306, %v1372, 0
      %v1425 = vsel %vm306, %v1373, 0
      %v1428 = vsel %vm306, %v1374, 0
      %v1431 = vsel %vm306, %v1375, 0
      %1433 = vmatprep.subr.bf16.mxu0 0
      %1434 = vmatpush1.bf16.msra.mxu0 %v1383
      %1435 = vmatprep.subr.bf16.mxu0 0
      %1436 = vmatpush1.bf16.msra.mxu0 0
      %1437 = vmatprep.subr.bf16.mxu0 0
      %1438 = vmatpush1.bf16.msra.mxu0 0
      %1439 = vmatprep.subr.bf16.mxu0 0
      %1440 = vmatpush1.bf16.msra.mxu0 0
      %1441 = vmatprep.subr.bf16.mxu0 0
      %1442 = vmatpush1.bf16.msra.mxu0 0
      %1443 = vmatprep.subr.bf16.mxu0 0
      %1444 = vmatpush1.bf16.msra.mxu0 0
      %1445 = vmatprep.subr.bf16.mxu0 0
      %1446 = vmatpush1.bf16.msra.mxu0 0
      %1447 = vmatprep.subr.bf16.mxu0 0
      %1448 = vmatpush1.bf16.msra.mxu0 0
      %1449 = vmatprep.subr.bf16.mxu0 0
      %1450 = vmatpush1.bf16.msra.mxu0 0
      %1451 = vmatprep.subr.bf16.mxu0 0
      %1452 = vmatpush1.bf16.msra.mxu0 0
      %1453 = vmatprep.subr.bf16.mxu0 0
      %1454 = vmatpush1.bf16.msra.mxu0 0
      %1455 = vmatprep.subr.bf16.mxu0 0
      %1456 = vmatpush1.bf16.msra.mxu0 0
      %1457 = vmatprep.subr.bf16.mxu0 0
      %1458 = vmatpush1.bf16.msra.mxu0 0
      %1459 = vmatprep.subr.bf16.mxu0 0
      %1460 = vmatpush1.bf16.msra.mxu0 0
      %1461 = vmatprep.subr.bf16.mxu0 0
      %1462 = vmatpush1.bf16.msra.mxu0 0
      %1463 = vmatprep.subr.bf16.mxu0 0
      %1464 = vmatpush1.bf16.msra.mxu0 0
      %1465 = vmatprep.mubr.bf16.mxu0 0
      %1466 = vmatmul.mubr.bf16.gmra.mrb[0].mxu0 %v1386
      %v1467 = vpop.f32.mrb[0].mxu0
      %v1468 = vadd.f32 0.0, %v1467
      %v1469 = vpop.f32.mrb[0].mxu0
      %v1470 = vpop.f32.mrb[0].mxu0
      %v1471 = vadd.f32 0.0, %v1470
      %v1472 = vpop.f32.mrb[0].mxu0
      %1473 = vmatprep.mubr.bf16.mxu0 0
      %1474 = vmatmul.mubr.bf16.gmra.mrb[0].mxu0 %v1389
      %v1475 = vpop.f32.mrb[0].mxu0
      %v1476 = vadd.f32 0.0, %v1475
      %v1477 = vpop.f32.mrb[0].mxu0
      %v1478 = vpop.f32.mrb[0].mxu0
      %v1479 = vadd.f32 0.0, %v1478
      %v1480 = vpop.f32.mrb[0].mxu0
      %1481 = vmatprep.mubr.bf16.mxu0 0
      %1482 = vmatmul.mubr.bf16.gmra.mrb[0].mxu0 %v1392
      %v1483 = vpop.f32.mrb[0].mxu0
      %v1484 = vadd.f32 0.0, %v1483
      %v1485 = vpop.f32.mrb[0].mxu0
      %v1486 = vpop.f32.mrb[0].mxu0
      %v1487 = vadd.f32 0.0, %v1486
      %v1488 = vpop.f32.mrb[0].mxu0
      %1489 = vmatprep.mubr.bf16.mxu0 0
      %1490 = vmatmul.mubr.bf16.gmra.mrb[0].mxu0 %v1395
      %v1491 = vpop.f32.mrb[0].mxu0
      %v1492 = vadd.f32 0.0, %v1491
      %v1493 = vpop.f32.mrb[0].mxu0
      %v1494 = vpop.f32.mrb[0].mxu0
      %v1495 = vadd.f32 0.0, %v1494
      %v1496 = vpop.f32.mrb[0].mxu0
      %1497 = vmatprep.mubr.bf16.mxu0 0
      %1498 = vmatmul.mubr.bf16.gmra.mrb[0].mxu0 %v1398
      %v1499 = vpop.f32.mrb[0].mxu0
      %v1500 = vadd.f32 0.0, %v1499
      %v1501 = vpop.f32.mrb[0].mxu0
      %v1502 = vpop.f32.mrb[0].mxu0
      %v1503 = vadd.f32 0.0, %v1502
      %v1504 = vpop.f32.mrb[0].mxu0
      %1505 = vmatprep.mubr.bf16.mxu0 0
      %1506 = vmatmul.mubr.bf16.gmra.mrb[0].mxu0 %v1401
      %v1507 = vpop.f32.mrb[0].mxu0
      %v1508 = vadd.f32 0.0, %v1507
      %v1509 = vpop.f32.mrb[0].mxu0
      %v1510 = vpop.f32.mrb[0].mxu0
      %v1511 = vadd.f32 0.0, %v1510
      %v1512 = vpop.f32.mrb[0].mxu0
      %1513 = vmatprep.mubr.bf16.mxu0 0
      %1514 = vmatmul.mubr.bf16.gmra.mrb[0].mxu0 %v1404
      %v1515 = vpop.f32.mrb[0].mxu0
      %v1516 = vadd.f32 0.0, %v1515
      %v1517 = vpop.f32.mrb[0].mxu0
      %v1518 = vpop.f32.mrb[0].mxu0
      %v1519 = vadd.f32 0.0, %v1518
      %v1520 = vpop.f32.mrb[0].mxu0
      %1521 = vmatprep.mubr.bf16.mxu0 0
      %1522 = vmatmul.mubr.bf16.gmra.mrb[0].mxu0 %v1407
      %v1523 = vpop.f32.mrb[0].mxu0
      %v1524 = vadd.f32 0.0, %v1523
      %v1525 = vpop.f32.mrb[0].mxu0
      %v1526 = vpop.f32.mrb[0].mxu0
      %v1527 = vadd.f32 0.0, %v1526
      %v1528 = vpop.f32.mrb[0].mxu0
      %1529 = vmatprep.mubr.bf16.mxu0 0
      %1530 = vmatmul.mubr.bf16.gmra.mrb[0].mxu0 %v1410
      %v1531 = vpop.f32.mrb[0].mxu0
      %v1532 = vadd.f32 0.0, %v1531
      %v1533 = vpop.f32.mrb[0].mxu0
      %v1534 = vpop.f32.mrb[0].mxu0
      %v1535 = vadd.f32 0.0, %v1534
      %v1536 = vpop.f32.mrb[0].mxu0
      %1537 = vmatprep.mubr.bf16.mxu0 0
      %1538 = vmatmul.mubr.bf16.gmra.mrb[0].mxu0 %v1413
      %v1539 = vpop.f32.mrb[0].mxu0
      %v1540 = vadd.f32 0.0, %v1539
      %v1541 = vpop.f32.mrb[0].mxu0
      %v1542 = vpop.f32.mrb[0].mxu0
      %v1543 = vadd.f32 0.0, %v1542
      %v1544 = vpop.f32.mrb[0].mxu0
      %1545 = vmatprep.mubr.bf16.mxu0 0
      %1546 = vmatmul.mubr.bf16.gmra.mrb[0].mxu0 %v1416
      %v1547 = vpop.f32.mrb[0].mxu0
      %v1548 = vadd.f32 0.0, %v1547
      %v1549 = vpop.f32.mrb[0].mxu0
      %v1550 = vpop.f32.mrb[0].mxu0
      %v1551 = vadd.f32 0.0, %v1550
      %v1552 = vpop.f32.mrb[0].mxu0
      %1553 = vmatprep.mubr.bf16.mxu0 0
      %1554 = vmatmul.mubr.bf16.gmra.mrb[0].mxu0 %v1419
      %v1555 = vpop.f32.mrb[0].mxu0
      %v1556 = vadd.f32 0.0, %v1555
      %v1557 = vpop.f32.mrb[0].mxu0
      %v1558 = vpop.f32.mrb[0].mxu0
      %v1559 = vadd.f32 0.0, %v1558
      %v1560 = vpop.f32.mrb[0].mxu0
      %1561 = vmatprep.mubr.bf16.mxu0 0
      %1562 = vmatmul.mubr.bf16.gmra.mrb[0].mxu0 %v1422
      %v1563 = vpop.f32.mrb[0].mxu0
      %v1564 = vadd.f32 0.0, %v1563
      %v1565 = vpop.f32.mrb[0].mxu0
      %v1566 = vpop.f32.mrb[0].mxu0
      %v1567 = vadd.f32 0.0, %v1566
      %v1568 = vpop.f32.mrb[0].mxu0
      %1569 = vmatprep.mubr.bf16.mxu0 0
      %1570 = vmatmul.mubr.bf16.gmra.mrb[0].mxu0 %v1425
      %v1571 = vpop.f32.mrb[0].mxu0
      %v1572 = vadd.f32 0.0, %v1571
      %v1573 = vpop.f32.mrb[0].mxu0
      %v1574 = vpop.f32.mrb[0].mxu0
      %v1575 = vadd.f32 0.0, %v1574
      %v1576 = vpop.f32.mrb[0].mxu0
      %1577 = vmatprep.mubr.bf16.mxu0 0
      %1578 = vmatmul.mubr.bf16.gmra.mrb[0].mxu0 %v1428
      %v1579 = vpop.f32.mrb[0].mxu0
      %v1580 = vadd.f32 0.0, %v1579
      %v1581 = vpop.f32.mrb[0].mxu0
      %v1582 = vpop.f32.mrb[0].mxu0
      %v1583 = vadd.f32 0.0, %v1582
      %v1584 = vpop.f32.mrb[0].mxu0
      %1585 = vmatprep.mubr.bf16.mxu0 0
      %1586 = vmatmul.mubr.bf16.gmra.mrb[0].mxu0 %v1431
      %v1587 = vpop.f32.mrb[0].mxu0
      %v1588 = vadd.f32 0.0, %v1587
      %v1589 = vpop.f32.mrb[0].mxu0
      %v1590 = vpop.f32.mrb[0].mxu0
      %v1591 = vadd.f32 0.0, %v1590
      %v1592 = vpop.f32.mrb[0].mxu0
      %1593 = vdwg.mxu0
      %v1594 = vadd.f32 %v1296, %v1468
      %v1595 = vadd.f32 %v1297, %v1471
      %v1596 = vadd.f32 %v1298, %v1476
      %v1597 = vadd.f32 %v1299, %v1479
      %v1598 = vadd.f32 %v1300, %v1484
      %v1599 = vadd.f32 %v1301, %v1487
      %v1600 = vadd.f32 %v1302, %v1492
      %v1601 = vadd.f32 %v1303, %v1495
      %v1602 = vadd.f32 %v1304, %v1500
      %v1603 = vadd.f32 %v1305, %v1503
      %v1604 = vadd.f32 %v1306, %v1508
      %v1605 = vadd.f32 %v1307, %v1511
      %v1606 = vadd.f32 %v1308, %v1516
      %v1607 = vadd.f32 %v1309, %v1519
      %v1608 = vadd.f32 %v1310, %v1524
      %v1609 = vadd.f32 %v1311, %v1527
      %v1610 = vadd.f32 %v1312, %v1532
      %v1611 = vadd.f32 %v1313, %v1535
      %v1612 = vadd.f32 %v1314, %v1540
      %v1613 = vadd.f32 %v1315, %v1543
      %v1614 = vadd.f32 %v1316, %v1548
      %v1615 = vadd.f32 %v1317, %v1551
      %v1616 = vadd.f32 %v1318, %v1556
      %v1617 = vadd.f32 %v1319, %v1559
      %v1618 = vadd.f32 %v1320, %v1564
      %v1619 = vadd.f32 %v1321, %v1567
      %v1620 = vadd.f32 %v1322, %v1572
      %v1621 = vadd.f32 %v1323, %v1575
      %v1622 = vadd.f32 %v1324, %v1580
      %v1623 = vadd.f32 %v1325, %v1583
      %v1624 = vadd.f32 %v1326, %v1588
      %v1625 = vadd.f32 %v1327, %v1591
      %v1626 = vld [vmem:[%s1029 + $0x2] sm:$0xff]
      %v1627 = vld [vmem:[%s1029 + $0xa] sm:$0xff]
      %v1628 = vld [vmem:[%s1029 + $0x1a] sm:$0xff]
      %v1629 = vld [vmem:[%s1029 + $0x22] sm:$0xff]
      %v1630 = vld [vmem:[%s1029 + $0x32] sm:$0xff]
      %v1631 = vld [vmem:[%s1029 + $0x3a] sm:$0xff]
      %v1632 = vld [vmem:[%s1029 + $0x4a] sm:$0xff]
      %v1633 = vld [vmem:[%s1029 + $0x52] sm:$0xff]
      %v1634 = vld [vmem:[%s1029 + $0x62] sm:$0xff]
      %v1635 = vld [vmem:[%s1029 + $0x6a] sm:$0xff]
      %v1636 = vld [vmem:[%s1029 + $0x7a] sm:$0xff]
      %v1637 = vld [vmem:[%s1029 + $0x82] sm:$0xff]
      %v1638 = vld [vmem:[%s1029 + $0x92] sm:$0xff]
      %v1639 = vld [vmem:[%s1029 + $0x9a] sm:$0xff]
      %v1640 = vld [vmem:[%s1029 + $0xaa] sm:$0xff]
      %v1641 = vld [vmem:[%s1029 + $0xb2] sm:$0xff]
      %v1642 = vld [vmem:[%s1029 + $0xc2] sm:$0xff]
      %v1643 = vld [vmem:[%s1029 + $0xca] sm:$0xff]
      %v1644 = vld [vmem:[%s1029 + $0xda] sm:$0xff]
      %v1645 = vld [vmem:[%s1029 + $0xe2] sm:$0xff]
      %v1646 = vld [vmem:[%s1029 + $0xf2] sm:$0xff]
      %v1647 = vld [vmem:[%s1029 + $0xfa] sm:$0xff]
      %v1648 = vld [vmem:[%s1029 + $0x10a] sm:$0xff]
      %v1649 = vld [vmem:[%s1029 + $0x112] sm:$0xff]
      %v1650 = vld [vmem:[%s1029 + $0x122] sm:$0xff]
      %v1651 = vld [vmem:[%s1029 + $0x12a] sm:$0xff]
      %v1652 = vld [vmem:[%s1029 + $0x13a] sm:$0xff]
      %v1653 = vld [vmem:[%s1029 + $0x142] sm:$0xff]
      %v1654 = vld [vmem:[%s1029 + $0x152] sm:$0xff]
      %v1655 = vld [vmem:[%s1029 + $0x15a] sm:$0xff]
      %v1656 = vld [vmem:[%s1029 + $0x16a] sm:$0xff]
      %v1657 = vld [vmem:[%s1029 + $0x172] sm:$0xff]
      %v1658 = vpack.c.bf16 %v1627, %v1626
      %v1659 = vpack.c.bf16 %v1629, %v1628
      %v1660 = vpack.c.bf16 %v1631, %v1630
      %v1661 = vpack.c.bf16 %v1633, %v1632
      %v1662 = vpack.c.bf16 %v1635, %v1634
      %v1663 = vpack.c.bf16 %v1637, %v1636
      %v1664 = vpack.c.bf16 %v1639, %v1638
      %v1665 = vpack.c.bf16 %v1641, %v1640
      %v1666 = vpack.c.bf16 %v1643, %v1642
      %v1667 = vpack.c.bf16 %v1645, %v1644
      %v1668 = vpack.c.bf16 %v1647, %v1646
      %v1669 = vpack.c.bf16 %v1649, %v1648
      %v1670 = vpack.c.bf16 %v1651, %v1650
      %v1671 = vpack.c.bf16 %v1653, %v1652
      %v1672 = vpack.c.bf16 %v1655, %v1654
      %v1673 = vpack.c.bf16 %v1657, %v1656
      %s1674 = scalar_lea.vmem %s1, 40
      %v1675 = vld [vmem:[%s1674] sm:$0xf]
      %v1676 = vld [vmem:[%s1674 + $0x4] sm:$0xf]
      %v1679 = vunpack.c.l.b16 %v1675
      %v1680 = vunpack.c.l.b16 %v1676
      %v1681 = vpack.c.b16 %v1680, %v1679
      %v1684 = vsel %vm306, %v1658, 0
      %v1687 = vsel %vm306, %v1659, 0
      %v1690 = vsel %vm306, %v1660, 0
      %v1693 = vsel %vm306, %v1661, 0
      %v1696 = vsel %vm306, %v1662, 0
      %v1699 = vsel %vm306, %v1663, 0
      %v1702 = vsel %vm306, %v1664, 0
      %v1705 = vsel %vm306, %v1665, 0
      %v1708 = vsel %vm306, %v1666, 0
      %v1711 = vsel %vm306, %v1667, 0
      %v1714 = vsel %vm306, %v1668, 0
      %v1717 = vsel %vm306, %v1669, 0
      %v1720 = vsel %vm306, %v1670, 0
      %v1723 = vsel %vm306, %v1671, 0
      %v1726 = vsel %vm306, %v1672, 0
      %v1729 = vsel %vm306, %v1673, 0
      %1731 = vmatprep.subr.bf16.mxu0 0
      %1732 = vmatpush1.bf16.msra.mxu0 %v1681
      %1733 = vmatprep.subr.bf16.mxu0 0
      %1734 = vmatpush1.bf16.msra.mxu0 0
      %1735 = vmatprep.subr.bf16.mxu0 0
      %1736 = vmatpush1.bf16.msra.mxu0 0
      %1737 = vmatprep.subr.bf16.mxu0 0
      %1738 = vmatpush1.bf16.msra.mxu0 0
      %1739 = vmatprep.subr.bf16.mxu0 0
      %1740 = vmatpush1.bf16.msra.mxu0 0
      %1741 = vmatprep.subr.bf16.mxu0 0
      %1742 = vmatpush1.bf16.msra.mxu0 0
      %1743 = vmatprep.subr.bf16.mxu0 0
      %1744 = vmatpush1.bf16.msra.mxu0 0
      %1745 = vmatprep.subr.bf16.mxu0 0
      %1746 = vmatpush1.bf16.msra.mxu0 0
      %1747 = vmatprep.subr.bf16.mxu0 0
      %1748 = vmatpush1.bf16.msra.mxu0 0
      %1749 = vmatprep.subr.bf16.mxu0 0
      %1750 = vmatpush1.bf16.msra.mxu0 0
      %1751 = vmatprep.subr.bf16.mxu0 0
      %1752 = vmatpush1.bf16.msra.mxu0 0
      %1753 = vmatprep.subr.bf16.mxu0 0
      %1754 = vmatpush1.bf16.msra.mxu0 0
      %1755 = vmatprep.subr.bf16.mxu0 0
      %1756 = vmatpush1.bf16.msra.mxu0 0
      %1757 = vmatprep.subr.bf16.mxu0 0
      %1758 = vmatpush1.bf16.msra.mxu0 0
      %1759 = vmatprep.subr.bf16.mxu0 0
      %1760 = vmatpush1.bf16.msra.mxu0 0
      %1761 = vmatprep.subr.bf16.mxu0 0
      %1762 = vmatpush1.bf16.msra.mxu0 0
      %1763 = vmatprep.mubr.bf16.mxu0 0
      %1764 = vmatmul.mubr.bf16.gmra.mrb[0].mxu0 %v1684
      %v1765 = vpop.f32.mrb[0].mxu0
      %v1766 = vadd.f32 0.0, %v1765
      %v1767 = vpop.f32.mrb[0].mxu0
      %v1768 = vpop.f32.mrb[0].mxu0
      %v1769 = vadd.f32 0.0, %v1768
      %v1770 = vpop.f32.mrb[0].mxu0
      %1771 = vmatprep.mubr.bf16.mxu0 0
      %1772 = vmatmul.mubr.bf16.gmra.mrb[0].mxu0 %v1687
      %v1773 = vpop.f32.mrb[0].mxu0
      %v1774 = vadd.f32 0.0, %v1773
      %v1775 = vpop.f32.mrb[0].mxu0
      %v1776 = vpop.f32.mrb[0].mxu0
      %v1777 = vadd.f32 0.0, %v1776
      %v1778 = vpop.f32.mrb[0].mxu0
      %1779 = vmatprep.mubr.bf16.mxu0 0
      %1780 = vmatmul.mubr.bf16.gmra.mrb[0].mxu0 %v1690
      %v1781 = vpop.f32.mrb[0].mxu0
      %v1782 = vadd.f32 0.0, %v1781
      %v1783 = vpop.f32.mrb[0].mxu0
      %v1784 = vpop.f32.mrb[0].mxu0
      %v1785 = vadd.f32 0.0, %v1784
      %v1786 = vpop.f32.mrb[0].mxu0
      %1787 = vmatprep.mubr.bf16.mxu0 0
      %1788 = vmatmul.mubr.bf16.gmra.mrb[0].mxu0 %v1693
      %v1789 = vpop.f32.mrb[0].mxu0
      %v1790 = vadd.f32 0.0, %v1789
      %v1791 = vpop.f32.mrb[0].mxu0
      %v1792 = vpop.f32.mrb[0].mxu0
      %v1793 = vadd.f32 0.0, %v1792
      %v1794 = vpop.f32.mrb[0].mxu0
      %1795 = vmatprep.mubr.bf16.mxu0 0
      %1796 = vmatmul.mubr.bf16.gmra.mrb[0].mxu0 %v1696
      %v1797 = vpop.f32.mrb[0].mxu0
      %v1798 = vadd.f32 0.0, %v1797
      %v1799 = vpop.f32.mrb[0].mxu0
      %v1800 = vpop.f32.mrb[0].mxu0
      %v1801 = vadd.f32 0.0, %v1800
      %v1802 = vpop.f32.mrb[0].mxu0
      %1803 = vmatprep.mubr.bf16.mxu0 0
      %1804 = vmatmul.mubr.bf16.gmra.mrb[0].mxu0 %v1699
      %v1805 = vpop.f32.mrb[0].mxu0
      %v1806 = vadd.f32 0.0, %v1805
      %v1807 = vpop.f32.mrb[0].mxu0
      %v1808 = vpop.f32.mrb[0].mxu0
      %v1809 = vadd.f32 0.0, %v1808
      %v1810 = vpop.f32.mrb[0].mxu0
      %1811 = vmatprep.mubr.bf16.mxu0 0
      %1812 = vmatmul.mubr.bf16.gmra.mrb[0].mxu0 %v1702
      %v1813 = vpop.f32.mrb[0].mxu0
      %v1814 = vadd.f32 0.0, %v1813
      %v1815 = vpop.f32.mrb[0].mxu0
      %v1816 = vpop.f32.mrb[0].mxu0
      %v1817 = vadd.f32 0.0, %v1816
      %v1818 = vpop.f32.mrb[0].mxu0
      %1819 = vmatprep.mubr.bf16.mxu0 0
      %1820 = vmatmul.mubr.bf16.gmra.mrb[0].mxu0 %v1705
      %v1821 = vpop.f32.mrb[0].mxu0
      %v1822 = vadd.f32 0.0, %v1821
      %v1823 = vpop.f32.mrb[0].mxu0
      %v1824 = vpop.f32.mrb[0].mxu0
      %v1825 = vadd.f32 0.0, %v1824
      %v1826 = vpop.f32.mrb[0].mxu0
      %1827 = vmatprep.mubr.bf16.mxu0 0
      %1828 = vmatmul.mubr.bf16.gmra.mrb[0].mxu0 %v1708
      %v1829 = vpop.f32.mrb[0].mxu0
      %v1830 = vadd.f32 0.0, %v1829
      %v1831 = vpop.f32.mrb[0].mxu0
      %v1832 = vpop.f32.mrb[0].mxu0
      %v1833 = vadd.f32 0.0, %v1832
      %v1834 = vpop.f32.mrb[0].mxu0
      %1835 = vmatprep.mubr.bf16.mxu0 0
      %1836 = vmatmul.mubr.bf16.gmra.mrb[0].mxu0 %v1711
      %v1837 = vpop.f32.mrb[0].mxu0
      %v1838 = vadd.f32 0.0, %v1837
      %v1839 = vpop.f32.mrb[0].mxu0
      %v1840 = vpop.f32.mrb[0].mxu0
      %v1841 = vadd.f32 0.0, %v1840
      %v1842 = vpop.f32.mrb[0].mxu0
      %1843 = vmatprep.mubr.bf16.mxu0 0
      %1844 = vmatmul.mubr.bf16.gmra.mrb[0].mxu0 %v1714
      %v1845 = vpop.f32.mrb[0].mxu0
      %v1846 = vadd.f32 0.0, %v1845
      %v1847 = vpop.f32.mrb[0].mxu0
      %v1848 = vpop.f32.mrb[0].mxu0
      %v1849 = vadd.f32 0.0, %v1848
      %v1850 = vpop.f32.mrb[0].mxu0
      %1851 = vmatprep.mubr.bf16.mxu0 0
      %1852 = vmatmul.mubr.bf16.gmra.mrb[0].mxu0 %v1717
      %v1853 = vpop.f32.mrb[0].mxu0
      %v1854 = vadd.f32 0.0, %v1853
      %v1855 = vpop.f32.mrb[0].mxu0
      %v1856 = vpop.f32.mrb[0].mxu0
      %v1857 = vadd.f32 0.0, %v1856
      %v1858 = vpop.f32.mrb[0].mxu0
      %1859 = vmatprep.mubr.bf16.mxu0 0
      %1860 = vmatmul.mubr.bf16.gmra.mrb[0].mxu0 %v1720
      %v1861 = vpop.f32.mrb[0].mxu0
      %v1862 = vadd.f32 0.0, %v1861
      %v1863 = vpop.f32.mrb[0].mxu0
      %v1864 = vpop.f32.mrb[0].mxu0
      %v1865 = vadd.f32 0.0, %v1864
      %v1866 = vpop.f32.mrb[0].mxu0
      %1867 = vmatprep.mubr.bf16.mxu0 0
      %1868 = vmatmul.mubr.bf16.gmra.mrb[0].mxu0 %v1723
      %v1869 = vpop.f32.mrb[0].mxu0
      %v1870 = vadd.f32 0.0, %v1869
      %v1871 = vpop.f32.mrb[0].mxu0
      %v1872 = vpop.f32.mrb[0].mxu0
      %v1873 = vadd.f32 0.0, %v1872
      %v1874 = vpop.f32.mrb[0].mxu0
      %1875 = vmatprep.mubr.bf16.mxu0 0
      %1876 = vmatmul.mubr.bf16.gmra.mrb[0].mxu0 %v1726
      %v1877 = vpop.f32.mrb[0].mxu0
      %v1878 = vadd.f32 0.0, %v1877
      %v1879 = vpop.f32.mrb[0].mxu0
      %v1880 = vpop.f32.mrb[0].mxu0
      %v1881 = vadd.f32 0.0, %v1880
      %v1882 = vpop.f32.mrb[0].mxu0
      %1883 = vmatprep.mubr.bf16.mxu0 0
      %1884 = vmatmul.mubr.bf16.gmra.mrb[0].mxu0 %v1729
      %v1885 = vpop.f32.mrb[0].mxu0
      %v1886 = vadd.f32 0.0, %v1885
      %v1887 = vpop.f32.mrb[0].mxu0
      %v1888 = vpop.f32.mrb[0].mxu0
      %v1889 = vadd.f32 0.0, %v1888
      %v1890 = vpop.f32.mrb[0].mxu0
      %1891 = vdwg.mxu0
      %v1892 = vadd.f32 %v1594, %v1766
      %v1893 = vadd.f32 %v1595, %v1769
      %v1894 = vadd.f32 %v1596, %v1774
      %v1895 = vadd.f32 %v1597, %v1777
      %v1896 = vadd.f32 %v1598, %v1782
      %v1897 = vadd.f32 %v1599, %v1785
      %v1898 = vadd.f32 %v1600, %v1790
      %v1899 = vadd.f32 %v1601, %v1793
      %v1900 = vadd.f32 %v1602, %v1798
      %v1901 = vadd.f32 %v1603, %v1801
      %v1902 = vadd.f32 %v1604, %v1806
      %v1903 = vadd.f32 %v1605, %v1809
      %v1904 = vadd.f32 %v1606, %v1814
      %v1905 = vadd.f32 %v1607, %v1817
      %v1906 = vadd.f32 %v1608, %v1822
      %v1907 = vadd.f32 %v1609, %v1825
      %v1908 = vadd.f32 %v1610, %v1830
      %v1909 = vadd.f32 %v1611, %v1833
      %v1910 = vadd.f32 %v1612, %v1838
      %v1911 = vadd.f32 %v1613, %v1841
      %v1912 = vadd.f32 %v1614, %v1846
      %v1913 = vadd.f32 %v1615, %v1849
      %v1914 = vadd.f32 %v1616, %v1854
      %v1915 = vadd.f32 %v1617, %v1857
      %v1916 = vadd.f32 %v1618, %v1862
      %v1917 = vadd.f32 %v1619, %v1865
      %v1918 = vadd.f32 %v1620, %v1870
      %v1919 = vadd.f32 %v1621, %v1873
      %v1920 = vadd.f32 %v1622, %v1878
      %v1921 = vadd.f32 %v1623, %v1881
      %v1922 = vadd.f32 %v1624, %v1886
      %v1923 = vadd.f32 %v1625, %v1889
      %s1924 = scalar_lea.vmem %s192, 48
      %v1925 = vld [vmem:[%s1924] sm:$0xff]
      %v1926 = vld [vmem:[%s1924 + $0x8] sm:$0xff]
      %v1927 = vld [vmem:[%s1924 + $0x18] sm:$0xff]
      %v1928 = vld [vmem:[%s1924 + $0x20] sm:$0xff]
      %v1929 = vld [vmem:[%s1924 + $0x30] sm:$0xff]
      %v1930 = vld [vmem:[%s1924 + $0x38] sm:$0xff]
      %v1931 = vld [vmem:[%s1924 + $0x48] sm:$0xff]
      %v1932 = vld [vmem:[%s1924 + $0x50] sm:$0xff]
      %v1933 = vld [vmem:[%s1924 + $0x60] sm:$0xff]
      %v1934 = vld [vmem:[%s1924 + $0x68] sm:$0xff]
      %v1935 = vld [vmem:[%s1924 + $0x78] sm:$0xff]
      %v1936 = vld [vmem:[%s1924 + $0x80] sm:$0xff]
      %v1937 = vld [vmem:[%s1924 + $0x90] sm:$0xff]
      %v1938 = vld [vmem:[%s1924 + $0x98] sm:$0xff]
      %v1939 = vld [vmem:[%s1924 + $0xa8] sm:$0xff]
      %v1940 = vld [vmem:[%s1924 + $0xb0] sm:$0xff]
      %v1941 = vld [vmem:[%s1924 + $0xc0] sm:$0xff]
      %v1942 = vld [vmem:[%s1924 + $0xc8] sm:$0xff]
      %v1943 = vld [vmem:[%s1924 + $0xd8] sm:$0xff]
      %v1944 = vld [vmem:[%s1924 + $0xe0] sm:$0xff]
      %v1945 = vld [vmem:[%s1924 + $0xf0] sm:$0xff]
      %v1946 = vld [vmem:[%s1924 + $0xf8] sm:$0xff]
      %v1947 = vld [vmem:[%s1924 + $0x108] sm:$0xff]
      %v1948 = vld [vmem:[%s1924 + $0x110] sm:$0xff]
      %v1949 = vld [vmem:[%s1924 + $0x120] sm:$0xff]
      %v1950 = vld [vmem:[%s1924 + $0x128] sm:$0xff]
      %v1951 = vld [vmem:[%s1924 + $0x138] sm:$0xff]
      %v1952 = vld [vmem:[%s1924 + $0x140] sm:$0xff]
      %v1953 = vld [vmem:[%s1924 + $0x150] sm:$0xff]
      %v1954 = vld [vmem:[%s1924 + $0x158] sm:$0xff]
      %v1955 = vld [vmem:[%s1924 + $0x168] sm:$0xff]
      %v1956 = vld [vmem:[%s1924 + $0x170] sm:$0xff]
      %v1957 = vpack.c.bf16 %v1926, %v1925
      %v1958 = vpack.c.bf16 %v1928, %v1927
      %v1959 = vpack.c.bf16 %v1930, %v1929
      %v1960 = vpack.c.bf16 %v1932, %v1931
      %v1961 = vpack.c.bf16 %v1934, %v1933
      %v1962 = vpack.c.bf16 %v1936, %v1935
      %v1963 = vpack.c.bf16 %v1938, %v1937
      %v1964 = vpack.c.bf16 %v1940, %v1939
      %v1965 = vpack.c.bf16 %v1942, %v1941
      %v1966 = vpack.c.bf16 %v1944, %v1943
      %v1967 = vpack.c.bf16 %v1946, %v1945
      %v1968 = vpack.c.bf16 %v1948, %v1947
      %v1969 = vpack.c.bf16 %v1950, %v1949
      %v1970 = vpack.c.bf16 %v1952, %v1951
      %v1971 = vpack.c.bf16 %v1954, %v1953
      %v1972 = vpack.c.bf16 %v1956, %v1955
      %s1973 = scalar_lea.vmem %s1, 48
      %v1974 = vld [vmem:[%s1973] sm:$0xf]
      %v1975 = vld [vmem:[%s1973 + $0x4] sm:$0xf]
      %v1978 = vunpack.c.l.b16 %v1974
      %v1979 = vunpack.c.l.b16 %v1975
      %v1980 = vpack.c.b16 %v1979, %v1978
      %v1983 = vsel %vm306, %v1957, 0
      %v1986 = vsel %vm306, %v1958, 0
      %v1989 = vsel %vm306, %v1959, 0
      %v1992 = vsel %vm306, %v1960, 0
      %v1995 = vsel %vm306, %v1961, 0
      %v1998 = vsel %vm306, %v1962, 0
      %v2001 = vsel %vm306, %v1963, 0
      %v2004 = vsel %vm306, %v1964, 0
      %v2007 = vsel %vm306, %v1965, 0
      %v2010 = vsel %vm306, %v1966, 0
      %v2013 = vsel %vm306, %v1967, 0
      %v2016 = vsel %vm306, %v1968, 0
      %v2019 = vsel %vm306, %v1969, 0
      %v2022 = vsel %vm306, %v1970, 0
      %v2025 = vsel %vm306, %v1971, 0
      %v2028 = vsel %vm306, %v1972, 0
      %2030 = vmatprep.subr.bf16.mxu0 0
      %2031 = vmatpush1.bf16.msra.mxu0 %v1980
      %2032 = vmatprep.subr.bf16.mxu0 0
      %2033 = vmatpush1.bf16.msra.mxu0 0
      %2034 = vmatprep.subr.bf16.mxu0 0
      %2035 = vmatpush1.bf16.msra.mxu0 0
      %2036 = vmatprep.subr.bf16.mxu0 0
      %2037 = vmatpush1.bf16.msra.mxu0 0
      %2038 = vmatprep.subr.bf16.mxu0 0
      %2039 = vmatpush1.bf16.msra.mxu0 0
      %2040 = vmatprep.subr.bf16.mxu0 0
      %2041 = vmatpush1.bf16.msra.mxu0 0
      %2042 = vmatprep.subr.bf16.mxu0 0
      %2043 = vmatpush1.bf16.msra.mxu0 0
      %2044 = vmatprep.subr.bf16.mxu0 0
      %2045 = vmatpush1.bf16.msra.mxu0 0
      %2046 = vmatprep.subr.bf16.mxu0 0
      %2047 = vmatpush1.bf16.msra.mxu0 0
      %2048 = vmatprep.subr.bf16.mxu0 0
      %2049 = vmatpush1.bf16.msra.mxu0 0
      %2050 = vmatprep.subr.bf16.mxu0 0
      %2051 = vmatpush1.bf16.msra.mxu0 0
      %2052 = vmatprep.subr.bf16.mxu0 0
      %2053 = vmatpush1.bf16.msra.mxu0 0
      %2054 = vmatprep.subr.bf16.mxu0 0
      %2055 = vmatpush1.bf16.msra.mxu0 0
      %2056 = vmatprep.subr.bf16.mxu0 0
      %2057 = vmatpush1.bf16.msra.mxu0 0
      %2058 = vmatprep.subr.bf16.mxu0 0
      %2059 = vmatpush1.bf16.msra.mxu0 0
      %2060 = vmatprep.subr.bf16.mxu0 0
      %2061 = vmatpush1.bf16.msra.mxu0 0
      %2062 = vmatprep.mubr.bf16.mxu0 0
      %2063 = vmatmul.mubr.bf16.gmra.mrb[0].mxu0 %v1983
      %v2064 = vpop.f32.mrb[0].mxu0
      %v2065 = vadd.f32 0.0, %v2064
      %v2066 = vpop.f32.mrb[0].mxu0
      %v2067 = vpop.f32.mrb[0].mxu0
      %v2068 = vadd.f32 0.0, %v2067
      %v2069 = vpop.f32.mrb[0].mxu0
      %2070 = vmatprep.mubr.bf16.mxu0 0
      %2071 = vmatmul.mubr.bf16.gmra.mrb[0].mxu0 %v1986
      %v2072 = vpop.f32.mrb[0].mxu0
      %v2073 = vadd.f32 0.0, %v2072
      %v2074 = vpop.f32.mrb[0].mxu0
      %v2075 = vpop.f32.mrb[0].mxu0
      %v2076 = vadd.f32 0.0, %v2075
      %v2077 = vpop.f32.mrb[0].mxu0
      %2078 = vmatprep.mubr.bf16.mxu0 0
      %2079 = vmatmul.mubr.bf16.gmra.mrb[0].mxu0 %v1989
      %v2080 = vpop.f32.mrb[0].mxu0
      %v2081 = vadd.f32 0.0, %v2080
      %v2082 = vpop.f32.mrb[0].mxu0
      %v2083 = vpop.f32.mrb[0].mxu0
      %v2084 = vadd.f32 0.0, %v2083
      %v2085 = vpop.f32.mrb[0].mxu0
      %2086 = vmatprep.mubr.bf16.mxu0 0
      %2087 = vmatmul.mubr.bf16.gmra.mrb[0].mxu0 %v1992
      %v2088 = vpop.f32.mrb[0].mxu0
      %v2089 = vadd.f32 0.0, %v2088
      %v2090 = vpop.f32.mrb[0].mxu0
      %v2091 = vpop.f32.mrb[0].mxu0
      %v2092 = vadd.f32 0.0, %v2091
      %v2093 = vpop.f32.mrb[0].mxu0
      %2094 = vmatprep.mubr.bf16.mxu0 0
      %2095 = vmatmul.mubr.bf16.gmra.mrb[0].mxu0 %v1995
      %v2096 = vpop.f32.mrb[0].mxu0
      %v2097 = vadd.f32 0.0, %v2096
      %v2098 = vpop.f32.mrb[0].mxu0
      %v2099 = vpop.f32.mrb[0].mxu0
      %v2100 = vadd.f32 0.0, %v2099
      %v2101 = vpop.f32.mrb[0].mxu0
      %2102 = vmatprep.mubr.bf16.mxu0 0
      %2103 = vmatmul.mubr.bf16.gmra.mrb[0].mxu0 %v1998
      %v2104 = vpop.f32.mrb[0].mxu0
      %v2105 = vadd.f32 0.0, %v2104
      %v2106 = vpop.f32.mrb[0].mxu0
      %v2107 = vpop.f32.mrb[0].mxu0
      %v2108 = vadd.f32 0.0, %v2107
      %v2109 = vpop.f32.mrb[0].mxu0
      %2110 = vmatprep.mubr.bf16.mxu0 0
      %2111 = vmatmul.mubr.bf16.gmra.mrb[0].mxu0 %v2001
      %v2112 = vpop.f32.mrb[0].mxu0
      %v2113 = vadd.f32 0.0, %v2112
      %v2114 = vpop.f32.mrb[0].mxu0
      %v2115 = vpop.f32.mrb[0].mxu0
      %v2116 = vadd.f32 0.0, %v2115
      %v2117 = vpop.f32.mrb[0].mxu0
      %2118 = vmatprep.mubr.bf16.mxu0 0
      %2119 = vmatmul.mubr.bf16.gmra.mrb[0].mxu0 %v2004
      %v2120 = vpop.f32.mrb[0].mxu0
      %v2121 = vadd.f32 0.0, %v2120
      %v2122 = vpop.f32.mrb[0].mxu0
      %v2123 = vpop.f32.mrb[0].mxu0
      %v2124 = vadd.f32 0.0, %v2123
      %v2125 = vpop.f32.mrb[0].mxu0
      %2126 = vmatprep.mubr.bf16.mxu0 0
      %2127 = vmatmul.mubr.bf16.gmra.mrb[0].mxu0 %v2007
      %v2128 = vpop.f32.mrb[0].mxu0
      %v2129 = vadd.f32 0.0, %v2128
      %v2130 = vpop.f32.mrb[0].mxu0
      %v2131 = vpop.f32.mrb[0].mxu0
      %v2132 = vadd.f32 0.0, %v2131
      %v2133 = vpop.f32.mrb[0].mxu0
      %2134 = vmatprep.mubr.bf16.mxu0 0
      %2135 = vmatmul.mubr.bf16.gmra.mrb[0].mxu0 %v2010
      %v2136 = vpop.f32.mrb[0].mxu0
      %v2137 = vadd.f32 0.0, %v2136
      %v2138 = vpop.f32.mrb[0].mxu0
      %v2139 = vpop.f32.mrb[0].mxu0
      %v2140 = vadd.f32 0.0, %v2139
      %v2141 = vpop.f32.mrb[0].mxu0
      %2142 = vmatprep.mubr.bf16.mxu0 0
      %2143 = vmatmul.mubr.bf16.gmra.mrb[0].mxu0 %v2013
      %v2144 = vpop.f32.mrb[0].mxu0
      %v2145 = vadd.f32 0.0, %v2144
      %v2146 = vpop.f32.mrb[0].mxu0
      %v2147 = vpop.f32.mrb[0].mxu0
      %v2148 = vadd.f32 0.0, %v2147
      %v2149 = vpop.f32.mrb[0].mxu0
      %2150 = vmatprep.mubr.bf16.mxu0 0
      %2151 = vmatmul.mubr.bf16.gmra.mrb[0].mxu0 %v2016
      %v2152 = vpop.f32.mrb[0].mxu0
      %v2153 = vadd.f32 0.0, %v2152
      %v2154 = vpop.f32.mrb[0].mxu0
      %v2155 = vpop.f32.mrb[0].mxu0
      %v2156 = vadd.f32 0.0, %v2155
      %v2157 = vpop.f32.mrb[0].mxu0
      %2158 = vmatprep.mubr.bf16.mxu0 0
      %2159 = vmatmul.mubr.bf16.gmra.mrb[0].mxu0 %v2019
      %v2160 = vpop.f32.mrb[0].mxu0
      %v2161 = vadd.f32 0.0, %v2160
      %v2162 = vpop.f32.mrb[0].mxu0
      %v2163 = vpop.f32.mrb[0].mxu0
      %v2164 = vadd.f32 0.0, %v2163
      %v2165 = vpop.f32.mrb[0].mxu0
      %2166 = vmatprep.mubr.bf16.mxu0 0
      %2167 = vmatmul.mubr.bf16.gmra.mrb[0].mxu0 %v2022
      %v2168 = vpop.f32.mrb[0].mxu0
      %v2169 = vadd.f32 0.0, %v2168
      %v2170 = vpop.f32.mrb[0].mxu0
      %v2171 = vpop.f32.mrb[0].mxu0
      %v2172 = vadd.f32 0.0, %v2171
      %v2173 = vpop.f32.mrb[0].mxu0
      %2174 = vmatprep.mubr.bf16.mxu0 0
      %2175 = vmatmul.mubr.bf16.gmra.mrb[0].mxu0 %v2025
      %v2176 = vpop.f32.mrb[0].mxu0
      %v2177 = vadd.f32 0.0, %v2176
      %v2178 = vpop.f32.mrb[0].mxu0
      %v2179 = vpop.f32.mrb[0].mxu0
      %v2180 = vadd.f32 0.0, %v2179
      %v2181 = vpop.f32.mrb[0].mxu0
      %2182 = vmatprep.mubr.bf16.mxu0 0
      %2183 = vmatmul.mubr.bf16.gmra.mrb[0].mxu0 %v2028
      %v2184 = vpop.f32.mrb[0].mxu0
      %v2185 = vadd.f32 0.0, %v2184
      %v2186 = vpop.f32.mrb[0].mxu0
      %v2187 = vpop.f32.mrb[0].mxu0
      %v2188 = vadd.f32 0.0, %v2187
      %v2189 = vpop.f32.mrb[0].mxu0
      %2190 = vdwg.mxu0
      %v2191 = vadd.f32 %v1892, %v2065
      %v2192 = vadd.f32 %v1893, %v2068
      %v2193 = vadd.f32 %v1894, %v2073
      %v2194 = vadd.f32 %v1895, %v2076
      %v2195 = vadd.f32 %v1896, %v2081
      %v2196 = vadd.f32 %v1897, %v2084
      %v2197 = vadd.f32 %v1898, %v2089
      %v2198 = vadd.f32 %v1899, %v2092
      %v2199 = vadd.f32 %v1900, %v2097
      %v2200 = vadd.f32 %v1901, %v2100
      %v2201 = vadd.f32 %v1902, %v2105
      %v2202 = vadd.f32 %v1903, %v2108
      %v2203 = vadd.f32 %v1904, %v2113
      %v2204 = vadd.f32 %v1905, %v2116
      %v2205 = vadd.f32 %v1906, %v2121
      %v2206 = vadd.f32 %v1907, %v2124
      %v2207 = vadd.f32 %v1908, %v2129
      %v2208 = vadd.f32 %v1909, %v2132
      %v2209 = vadd.f32 %v1910, %v2137
      %v2210 = vadd.f32 %v1911, %v2140
      %v2211 = vadd.f32 %v1912, %v2145
      %v2212 = vadd.f32 %v1913, %v2148
      %v2213 = vadd.f32 %v1914, %v2153
      %v2214 = vadd.f32 %v1915, %v2156
      %v2215 = vadd.f32 %v1916, %v2161
      %v2216 = vadd.f32 %v1917, %v2164
      %v2217 = vadd.f32 %v1918, %v2169
      %v2218 = vadd.f32 %v1919, %v2172
      %v2219 = vadd.f32 %v1920, %v2177
      %v2220 = vadd.f32 %v1921, %v2180
      %v2221 = vadd.f32 %v1922, %v2185
      %v2222 = vadd.f32 %v1923, %v2188
      %v2223 = vld [vmem:[%s1924 + $0x1] sm:$0xff]
      %v2224 = vld [vmem:[%s1924 + $0x9] sm:$0xff]
      %v2225 = vld [vmem:[%s1924 + $0x19] sm:$0xff]
      %v2226 = vld [vmem:[%s1924 + $0x21] sm:$0xff]
      %v2227 = vld [vmem:[%s1924 + $0x31] sm:$0xff]
      %v2228 = vld [vmem:[%s1924 + $0x39] sm:$0xff]
      %v2229 = vld [vmem:[%s1924 + $0x49] sm:$0xff]
      %v2230 = vld [vmem:[%s1924 + $0x51] sm:$0xff]
      %v2231 = vld [vmem:[%s1924 + $0x61] sm:$0xff]
      %v2232 = vld [vmem:[%s1924 + $0x69] sm:$0xff]
      %v2233 = vld [vmem:[%s1924 + $0x79] sm:$0xff]
      %v2234 = vld [vmem:[%s1924 + $0x81] sm:$0xff]
      %v2235 = vld [vmem:[%s1924 + $0x91] sm:$0xff]
      %v2236 = vld [vmem:[%s1924 + $0x99] sm:$0xff]
      %v2237 = vld [vmem:[%s1924 + $0xa9] sm:$0xff]
      %v2238 = vld [vmem:[%s1924 + $0xb1] sm:$0xff]
      %v2239 = vld [vmem:[%s1924 + $0xc1] sm:$0xff]
      %v2240 = vld [vmem:[%s1924 + $0xc9] sm:$0xff]
      %v2241 = vld [vmem:[%s1924 + $0xd9] sm:$0xff]
      %v2242 = vld [vmem:[%s1924 + $0xe1] sm:$0xff]
      %v2243 = vld [vmem:[%s1924 + $0xf1] sm:$0xff]
      %v2244 = vld [vmem:[%s1924 + $0xf9] sm:$0xff]
      %v2245 = vld [vmem:[%s1924 + $0x109] sm:$0xff]
      %v2246 = vld [vmem:[%s1924 + $0x111] sm:$0xff]
      %v2247 = vld [vmem:[%s1924 + $0x121] sm:$0xff]
      %v2248 = vld [vmem:[%s1924 + $0x129] sm:$0xff]
      %v2249 = vld [vmem:[%s1924 + $0x139] sm:$0xff]
      %v2250 = vld [vmem:[%s1924 + $0x141] sm:$0xff]
      %v2251 = vld [vmem:[%s1924 + $0x151] sm:$0xff]
      %v2252 = vld [vmem:[%s1924 + $0x159] sm:$0xff]
      %v2253 = vld [vmem:[%s1924 + $0x169] sm:$0xff]
      %v2254 = vld [vmem:[%s1924 + $0x171] sm:$0xff]
      %v2255 = vpack.c.bf16 %v2224, %v2223
      %v2256 = vpack.c.bf16 %v2226, %v2225
      %v2257 = vpack.c.bf16 %v2228, %v2227
      %v2258 = vpack.c.bf16 %v2230, %v2229
      %v2259 = vpack.c.bf16 %v2232, %v2231
      %v2260 = vpack.c.bf16 %v2234, %v2233
      %v2261 = vpack.c.bf16 %v2236, %v2235
      %v2262 = vpack.c.bf16 %v2238, %v2237
      %v2263 = vpack.c.bf16 %v2240, %v2239
      %v2264 = vpack.c.bf16 %v2242, %v2241
      %v2265 = vpack.c.bf16 %v2244, %v2243
      %v2266 = vpack.c.bf16 %v2246, %v2245
      %v2267 = vpack.c.bf16 %v2248, %v2247
      %v2268 = vpack.c.bf16 %v2250, %v2249
      %v2269 = vpack.c.bf16 %v2252, %v2251
      %v2270 = vpack.c.bf16 %v2254, %v2253
      %s2271 = scalar_lea.vmem %s1, 56
      %v2272 = vld [vmem:[%s2271] sm:$0xf]
      %v2273 = vld [vmem:[%s2271 + $0x4] sm:$0xf]
      %v2276 = vunpack.c.l.b16 %v2272
      %v2277 = vunpack.c.l.b16 %v2273
      %v2278 = vpack.c.b16 %v2277, %v2276
      %v2281 = vsel %vm306, %v2255, 0
      %v2284 = vsel %vm306, %v2256, 0
      %v2287 = vsel %vm306, %v2257, 0
      %v2290 = vsel %vm306, %v2258, 0
      %v2293 = vsel %vm306, %v2259, 0
      %v2296 = vsel %vm306, %v2260, 0
      %v2299 = vsel %vm306, %v2261, 0
      %v2302 = vsel %vm306, %v2262, 0
      %v2305 = vsel %vm306, %v2263, 0
      %v2308 = vsel %vm306, %v2264, 0
      %v2311 = vsel %vm306, %v2265, 0
      %v2314 = vsel %vm306, %v2266, 0
      %v2317 = vsel %vm306, %v2267, 0
      %v2320 = vsel %vm306, %v2268, 0
      %v2323 = vsel %vm306, %v2269, 0
      %v2326 = vsel %vm306, %v2270, 0
      %2328 = vmatprep.subr.bf16.mxu0 0
      %2329 = vmatpush1.bf16.msra.mxu0 %v2278
      %2330 = vmatprep.subr.bf16.mxu0 0
      %2331 = vmatpush1.bf16.msra.mxu0 0
      %2332 = vmatprep.subr.bf16.mxu0 0
      %2333 = vmatpush1.bf16.msra.mxu0 0
      %2334 = vmatprep.subr.bf16.mxu0 0
      %2335 = vmatpush1.bf16.msra.mxu0 0
      %2336 = vmatprep.subr.bf16.mxu0 0
      %2337 = vmatpush1.bf16.msra.mxu0 0
      %2338 = vmatprep.subr.bf16.mxu0 0
      %2339 = vmatpush1.bf16.msra.mxu0 0
      %2340 = vmatprep.subr.bf16.mxu0 0
      %2341 = vmatpush1.bf16.msra.mxu0 0
      %2342 = vmatprep.subr.bf16.mxu0 0
      %2343 = vmatpush1.bf16.msra.mxu0 0
      %2344 = vmatprep.subr.bf16.mxu0 0
      %2345 = vmatpush1.bf16.msra.mxu0 0
      %2346 = vmatprep.subr.bf16.mxu0 0
      %2347 = vmatpush1.bf16.msra.mxu0 0
      %2348 = vmatprep.subr.bf16.mxu0 0
      %2349 = vmatpush1.bf16.msra.mxu0 0
      %2350 = vmatprep.subr.bf16.mxu0 0
      %2351 = vmatpush1.bf16.msra.mxu0 0
      %2352 = vmatprep.subr.bf16.mxu0 0
      %2353 = vmatpush1.bf16.msra.mxu0 0
      %2354 = vmatprep.subr.bf16.mxu0 0
      %2355 = vmatpush1.bf16.msra.mxu0 0
      %2356 = vmatprep.subr.bf16.mxu0 0
      %2357 = vmatpush1.bf16.msra.mxu0 0
      %2358 = vmatprep.subr.bf16.mxu0 0
      %2359 = vmatpush1.bf16.msra.mxu0 0
      %2360 = vmatprep.mubr.bf16.mxu0 0
      %2361 = vmatmul.mubr.bf16.gmra.mrb[0].mxu0 %v2281
      %v2362 = vpop.f32.mrb[0].mxu0
      %v2363 = vadd.f32 0.0, %v2362
      %v2364 = vpop.f32.mrb[0].mxu0
      %v2365 = vpop.f32.mrb[0].mxu0
      %v2366 = vadd.f32 0.0, %v2365
      %v2367 = vpop.f32.mrb[0].mxu0
      %2368 = vmatprep.mubr.bf16.mxu0 0
      %2369 = vmatmul.mubr.bf16.gmra.mrb[0].mxu0 %v2284
      %v2370 = vpop.f32.mrb[0].mxu0
      %v2371 = vadd.f32 0.0, %v2370
      %v2372 = vpop.f32.mrb[0].mxu0
      %v2373 = vpop.f32.mrb[0].mxu0
      %v2374 = vadd.f32 0.0, %v2373
      %v2375 = vpop.f32.mrb[0].mxu0
      %2376 = vmatprep.mubr.bf16.mxu0 0
      %2377 = vmatmul.mubr.bf16.gmra.mrb[0].mxu0 %v2287
      %v2378 = vpop.f32.mrb[0].mxu0
      %v2379 = vadd.f32 0.0, %v2378
      %v2380 = vpop.f32.mrb[0].mxu0
      %v2381 = vpop.f32.mrb[0].mxu0
      %v2382 = vadd.f32 0.0, %v2381
      %v2383 = vpop.f32.mrb[0].mxu0
      %2384 = vmatprep.mubr.bf16.mxu0 0
      %2385 = vmatmul.mubr.bf16.gmra.mrb[0].mxu0 %v2290
      %v2386 = vpop.f32.mrb[0].mxu0
      %v2387 = vadd.f32 0.0, %v2386
      %v2388 = vpop.f32.mrb[0].mxu0
      %v2389 = vpop.f32.mrb[0].mxu0
      %v2390 = vadd.f32 0.0, %v2389
      %v2391 = vpop.f32.mrb[0].mxu0
      %2392 = vmatprep.mubr.bf16.mxu0 0
      %2393 = vmatmul.mubr.bf16.gmra.mrb[0].mxu0 %v2293
      %v2394 = vpop.f32.mrb[0].mxu0
      %v2395 = vadd.f32 0.0, %v2394
      %v2396 = vpop.f32.mrb[0].mxu0
      %v2397 = vpop.f32.mrb[0].mxu0
      %v2398 = vadd.f32 0.0, %v2397
      %v2399 = vpop.f32.mrb[0].mxu0
      %2400 = vmatprep.mubr.bf16.mxu0 0
      %2401 = vmatmul.mubr.bf16.gmra.mrb[0].mxu0 %v2296
      %v2402 = vpop.f32.mrb[0].mxu0
      %v2403 = vadd.f32 0.0, %v2402
      %v2404 = vpop.f32.mrb[0].mxu0
      %v2405 = vpop.f32.mrb[0].mxu0
      %v2406 = vadd.f32 0.0, %v2405
      %v2407 = vpop.f32.mrb[0].mxu0
      %2408 = vmatprep.mubr.bf16.mxu0 0
      %2409 = vmatmul.mubr.bf16.gmra.mrb[0].mxu0 %v2299
      %v2410 = vpop.f32.mrb[0].mxu0
      %v2411 = vadd.f32 0.0, %v2410
      %v2412 = vpop.f32.mrb[0].mxu0
      %v2413 = vpop.f32.mrb[0].mxu0
      %v2414 = vadd.f32 0.0, %v2413
      %v2415 = vpop.f32.mrb[0].mxu0
      %2416 = vmatprep.mubr.bf16.mxu0 0
      %2417 = vmatmul.mubr.bf16.gmra.mrb[0].mxu0 %v2302
      %v2418 = vpop.f32.mrb[0].mxu0
      %v2419 = vadd.f32 0.0, %v2418
      %v2420 = vpop.f32.mrb[0].mxu0
      %v2421 = vpop.f32.mrb[0].mxu0
      %v2422 = vadd.f32 0.0, %v2421
      %v2423 = vpop.f32.mrb[0].mxu0
      %2424 = vmatprep.mubr.bf16.mxu0 0
      %2425 = vmatmul.mubr.bf16.gmra.mrb[0].mxu0 %v2305
      %v2426 = vpop.f32.mrb[0].mxu0
      %v2427 = vadd.f32 0.0, %v2426
      %v2428 = vpop.f32.mrb[0].mxu0
      %v2429 = vpop.f32.mrb[0].mxu0
      %v2430 = vadd.f32 0.0, %v2429
      %v2431 = vpop.f32.mrb[0].mxu0
      %2432 = vmatprep.mubr.bf16.mxu0 0
      %2433 = vmatmul.mubr.bf16.gmra.mrb[0].mxu0 %v2308
      %v2434 = vpop.f32.mrb[0].mxu0
      %v2435 = vadd.f32 0.0, %v2434
      %v2436 = vpop.f32.mrb[0].mxu0
      %v2437 = vpop.f32.mrb[0].mxu0
      %v2438 = vadd.f32 0.0, %v2437
      %v2439 = vpop.f32.mrb[0].mxu0
      %2440 = vmatprep.mubr.bf16.mxu0 0
      %2441 = vmatmul.mubr.bf16.gmra.mrb[0].mxu0 %v2311
      %v2442 = vpop.f32.mrb[0].mxu0
      %v2443 = vadd.f32 0.0, %v2442
      %v2444 = vpop.f32.mrb[0].mxu0
      %v2445 = vpop.f32.mrb[0].mxu0
      %v2446 = vadd.f32 0.0, %v2445
      %v2447 = vpop.f32.mrb[0].mxu0
      %2448 = vmatprep.mubr.bf16.mxu0 0
      %2449 = vmatmul.mubr.bf16.gmra.mrb[0].mxu0 %v2314
      %v2450 = vpop.f32.mrb[0].mxu0
      %v2451 = vadd.f32 0.0, %v2450
      %v2452 = vpop.f32.mrb[0].mxu0
      %v2453 = vpop.f32.mrb[0].mxu0
      %v2454 = vadd.f32 0.0, %v2453
      %v2455 = vpop.f32.mrb[0].mxu0
      %2456 = vmatprep.mubr.bf16.mxu0 0
      %2457 = vmatmul.mubr.bf16.gmra.mrb[0].mxu0 %v2317
      %v2458 = vpop.f32.mrb[0].mxu0
      %v2459 = vadd.f32 0.0, %v2458
      %v2460 = vpop.f32.mrb[0].mxu0
      %v2461 = vpop.f32.mrb[0].mxu0
      %v2462 = vadd.f32 0.0, %v2461
      %v2463 = vpop.f32.mrb[0].mxu0
      %2464 = vmatprep.mubr.bf16.mxu0 0
      %2465 = vmatmul.mubr.bf16.gmra.mrb[0].mxu0 %v2320
      %v2466 = vpop.f32.mrb[0].mxu0
      %v2467 = vadd.f32 0.0, %v2466
      %v2468 = vpop.f32.mrb[0].mxu0
      %v2469 = vpop.f32.mrb[0].mxu0
      %v2470 = vadd.f32 0.0, %v2469
      %v2471 = vpop.f32.mrb[0].mxu0
      %2472 = vmatprep.mubr.bf16.mxu0 0
      %2473 = vmatmul.mubr.bf16.gmra.mrb[0].mxu0 %v2323
      %v2474 = vpop.f32.mrb[0].mxu0
      %v2475 = vadd.f32 0.0, %v2474
      %v2476 = vpop.f32.mrb[0].mxu0
      %v2477 = vpop.f32.mrb[0].mxu0
      %v2478 = vadd.f32 0.0, %v2477
      %v2479 = vpop.f32.mrb[0].mxu0
      %2480 = vmatprep.mubr.bf16.mxu0 0
      %2481 = vmatmul.mubr.bf16.gmra.mrb[0].mxu0 %v2326
      %v2482 = vpop.f32.mrb[0].mxu0
      %v2483 = vadd.f32 0.0, %v2482
      %v2484 = vpop.f32.mrb[0].mxu0
      %v2485 = vpop.f32.mrb[0].mxu0
      %v2486 = vadd.f32 0.0, %v2485
      %v2487 = vpop.f32.mrb[0].mxu0
      %2488 = vdwg.mxu0
      %v2489 = vadd.f32 %v2191, %v2363
      %v2490 = vadd.f32 %v2192, %v2366
      %v2491 = vadd.f32 %v2193, %v2371
      %v2492 = vadd.f32 %v2194, %v2374
      %v2493 = vadd.f32 %v2195, %v2379
      %v2494 = vadd.f32 %v2196, %v2382
      %v2495 = vadd.f32 %v2197, %v2387
      %v2496 = vadd.f32 %v2198, %v2390
      %v2497 = vadd.f32 %v2199, %v2395
      %v2498 = vadd.f32 %v2200, %v2398
      %v2499 = vadd.f32 %v2201, %v2403
      %v2500 = vadd.f32 %v2202, %v2406
      %v2501 = vadd.f32 %v2203, %v2411
      %v2502 = vadd.f32 %v2204, %v2414
      %v2503 = vadd.f32 %v2205, %v2419
      %v2504 = vadd.f32 %v2206, %v2422
      %v2505 = vadd.f32 %v2207, %v2427
      %v2506 = vadd.f32 %v2208, %v2430
      %v2507 = vadd.f32 %v2209, %v2435
      %v2508 = vadd.f32 %v2210, %v2438
      %v2509 = vadd.f32 %v2211, %v2443
      %v2510 = vadd.f32 %v2212, %v2446
      %v2511 = vadd.f32 %v2213, %v2451
      %v2512 = vadd.f32 %v2214, %v2454
      %v2513 = vadd.f32 %v2215, %v2459
      %v2514 = vadd.f32 %v2216, %v2462
      %v2515 = vadd.f32 %v2217, %v2467
      %v2516 = vadd.f32 %v2218, %v2470
      %v2517 = vadd.f32 %v2219, %v2475
      %v2518 = vadd.f32 %v2220, %v2478
      %v2519 = vadd.f32 %v2221, %v2483
      %v2520 = vadd.f32 %v2222, %v2486
      %v2521 = vld [vmem:[%s1924 + $0x2] sm:$0xff]
      %v2522 = vld [vmem:[%s1924 + $0xa] sm:$0xff]
      %v2523 = vld [vmem:[%s1924 + $0x1a] sm:$0xff]
      %v2524 = vld [vmem:[%s1924 + $0x22] sm:$0xff]
      %v2525 = vld [vmem:[%s1924 + $0x32] sm:$0xff]
      %v2526 = vld [vmem:[%s1924 + $0x3a] sm:$0xff]
      %v2527 = vld [vmem:[%s1924 + $0x4a] sm:$0xff]
      %v2528 = vld [vmem:[%s1924 + $0x52] sm:$0xff]
      %v2529 = vld [vmem:[%s1924 + $0x62] sm:$0xff]
      %v2530 = vld [vmem:[%s1924 + $0x6a] sm:$0xff]
      %v2531 = vld [vmem:[%s1924 + $0x7a] sm:$0xff]
      %v2532 = vld [vmem:[%s1924 + $0x82] sm:$0xff]
      %v2533 = vld [vmem:[%s1924 + $0x92] sm:$0xff]
      %v2534 = vld [vmem:[%s1924 + $0x9a] sm:$0xff]
      %v2535 = vld [vmem:[%s1924 + $0xaa] sm:$0xff]
      %v2536 = vld [vmem:[%s1924 + $0xb2] sm:$0xff]
      %v2537 = vld [vmem:[%s1924 + $0xc2] sm:$0xff]
      %v2538 = vld [vmem:[%s1924 + $0xca] sm:$0xff]
      %v2539 = vld [vmem:[%s1924 + $0xda] sm:$0xff]
      %v2540 = vld [vmem:[%s1924 + $0xe2] sm:$0xff]
      %v2541 = vld [vmem:[%s1924 + $0xf2] sm:$0xff]
      %v2542 = vld [vmem:[%s1924 + $0xfa] sm:$0xff]
      %v2543 = vld [vmem:[%s1924 + $0x10a] sm:$0xff]
      %v2544 = vld [vmem:[%s1924 + $0x112] sm:$0xff]
      %v2545 = vld [vmem:[%s1924 + $0x122] sm:$0xff]
      %v2546 = vld [vmem:[%s1924 + $0x12a] sm:$0xff]
      %v2547 = vld [vmem:[%s1924 + $0x13a] sm:$0xff]
      %v2548 = vld [vmem:[%s1924 + $0x142] sm:$0xff]
      %v2549 = vld [vmem:[%s1924 + $0x152] sm:$0xff]
      %v2550 = vld [vmem:[%s1924 + $0x15a] sm:$0xff]
      %v2551 = vld [vmem:[%s1924 + $0x16a] sm:$0xff]
      %v2552 = vld [vmem:[%s1924 + $0x172] sm:$0xff]
      %v2553 = vpack.c.bf16 %v2522, %v2521
      %v2554 = vpack.c.bf16 %v2524, %v2523
      %v2555 = vpack.c.bf16 %v2526, %v2525
      %v2556 = vpack.c.bf16 %v2528, %v2527
      %v2557 = vpack.c.bf16 %v2530, %v2529
      %v2558 = vpack.c.bf16 %v2532, %v2531
      %v2559 = vpack.c.bf16 %v2534, %v2533
      %v2560 = vpack.c.bf16 %v2536, %v2535
      %v2561 = vpack.c.bf16 %v2538, %v2537
      %v2562 = vpack.c.bf16 %v2540, %v2539
      %v2563 = vpack.c.bf16 %v2542, %v2541
      %v2564 = vpack.c.bf16 %v2544, %v2543
      %v2565 = vpack.c.bf16 %v2546, %v2545
      %v2566 = vpack.c.bf16 %v2548, %v2547
      %v2567 = vpack.c.bf16 %v2550, %v2549
      %v2568 = vpack.c.bf16 %v2552, %v2551
      %s2569 = scalar_lea.vmem %s1, 64
      %v2570 = vld [vmem:[%s2569] sm:$0xf]
      %v2571 = vld [vmem:[%s2569 + $0x4] sm:$0xf]
      %v2574 = vunpack.c.l.b16 %v2570
      %v2575 = vunpack.c.l.b16 %v2571
      %v2576 = vpack.c.b16 %v2575, %v2574
      %v2579 = vsel %vm306, %v2553, 0
      %v2582 = vsel %vm306, %v2554, 0
      %v2585 = vsel %vm306, %v2555, 0
      %v2588 = vsel %vm306, %v2556, 0
      %v2591 = vsel %vm306, %v2557, 0
      %v2594 = vsel %vm306, %v2558, 0
      %v2597 = vsel %vm306, %v2559, 0
      %v2600 = vsel %vm306, %v2560, 0
      %v2603 = vsel %vm306, %v2561, 0
      %v2606 = vsel %vm306, %v2562, 0
      %v2609 = vsel %vm306, %v2563, 0
      %v2612 = vsel %vm306, %v2564, 0
      %v2615 = vsel %vm306, %v2565, 0
      %v2618 = vsel %vm306, %v2566, 0
      %v2621 = vsel %vm306, %v2567, 0
      %v2624 = vsel %vm306, %v2568, 0
      %2626 = vmatprep.subr.bf16.mxu0 0
      %2627 = vmatpush1.bf16.msra.mxu0 %v2576
      %2628 = vmatprep.subr.bf16.mxu0 0
      %2629 = vmatpush1.bf16.msra.mxu0 0
      %2630 = vmatprep.subr.bf16.mxu0 0
      %2631 = vmatpush1.bf16.msra.mxu0 0
      %2632 = vmatprep.subr.bf16.mxu0 0
      %2633 = vmatpush1.bf16.msra.mxu0 0
      %2634 = vmatprep.subr.bf16.mxu0 0
      %2635 = vmatpush1.bf16.msra.mxu0 0
      %2636 = vmatprep.subr.bf16.mxu0 0
      %2637 = vmatpush1.bf16.msra.mxu0 0
      %2638 = vmatprep.subr.bf16.mxu0 0
      %2639 = vmatpush1.bf16.msra.mxu0 0
      %2640 = vmatprep.subr.bf16.mxu0 0
      %2641 = vmatpush1.bf16.msra.mxu0 0
      %2642 = vmatprep.subr.bf16.mxu0 0
      %2643 = vmatpush1.bf16.msra.mxu0 0
      %2644 = vmatprep.subr.bf16.mxu0 0
      %2645 = vmatpush1.bf16.msra.mxu0 0
      %2646 = vmatprep.subr.bf16.mxu0 0
      %2647 = vmatpush1.bf16.msra.mxu0 0
      %2648 = vmatprep.subr.bf16.mxu0 0
      %2649 = vmatpush1.bf16.msra.mxu0 0
      %2650 = vmatprep.subr.bf16.mxu0 0
      %2651 = vmatpush1.bf16.msra.mxu0 0
      %2652 = vmatprep.subr.bf16.mxu0 0
      %2653 = vmatpush1.bf16.msra.mxu0 0
      %2654 = vmatprep.subr.bf16.mxu0 0
      %2655 = vmatpush1.bf16.msra.mxu0 0
      %2656 = vmatprep.subr.bf16.mxu0 0
      %2657 = vmatpush1.bf16.msra.mxu0 0
      %2658 = vmatprep.mubr.bf16.mxu0 0
      %2659 = vmatmul.mubr.bf16.gmra.mrb[0].mxu0 %v2579
      %v2660 = vpop.f32.mrb[0].mxu0
      %v2661 = vadd.f32 0.0, %v2660
      %v2662 = vpop.f32.mrb[0].mxu0
      %v2663 = vpop.f32.mrb[0].mxu0
      %v2664 = vadd.f32 0.0, %v2663
      %v2665 = vpop.f32.mrb[0].mxu0
      %2666 = vmatprep.mubr.bf16.mxu0 0
      %2667 = vmatmul.mubr.bf16.gmra.mrb[0].mxu0 %v2582
      %v2668 = vpop.f32.mrb[0].mxu0
      %v2669 = vadd.f32 0.0, %v2668
      %v2670 = vpop.f32.mrb[0].mxu0
      %v2671 = vpop.f32.mrb[0].mxu0
      %v2672 = vadd.f32 0.0, %v2671
      %v2673 = vpop.f32.mrb[0].mxu0
      %2674 = vmatprep.mubr.bf16.mxu0 0
      %2675 = vmatmul.mubr.bf16.gmra.mrb[0].mxu0 %v2585
      %v2676 = vpop.f32.mrb[0].mxu0
      %v2677 = vadd.f32 0.0, %v2676
      %v2678 = vpop.f32.mrb[0].mxu0
      %v2679 = vpop.f32.mrb[0].mxu0
      %v2680 = vadd.f32 0.0, %v2679
      %v2681 = vpop.f32.mrb[0].mxu0
      %2682 = vmatprep.mubr.bf16.mxu0 0
      %2683 = vmatmul.mubr.bf16.gmra.mrb[0].mxu0 %v2588
      %v2684 = vpop.f32.mrb[0].mxu0
      %v2685 = vadd.f32 0.0, %v2684
      %v2686 = vpop.f32.mrb[0].mxu0
      %v2687 = vpop.f32.mrb[0].mxu0
      %v2688 = vadd.f32 0.0, %v2687
      %v2689 = vpop.f32.mrb[0].mxu0
      %2690 = vmatprep.mubr.bf16.mxu0 0
      %2691 = vmatmul.mubr.bf16.gmra.mrb[0].mxu0 %v2591
      %v2692 = vpop.f32.mrb[0].mxu0
      %v2693 = vadd.f32 0.0, %v2692
      %v2694 = vpop.f32.mrb[0].mxu0
      %v2695 = vpop.f32.mrb[0].mxu0
      %v2696 = vadd.f32 0.0, %v2695
      %v2697 = vpop.f32.mrb[0].mxu0
      %2698 = vmatprep.mubr.bf16.mxu0 0
      %2699 = vmatmul.mubr.bf16.gmra.mrb[0].mxu0 %v2594
      %v2700 = vpop.f32.mrb[0].mxu0
      %v2701 = vadd.f32 0.0, %v2700
      %v2702 = vpop.f32.mrb[0].mxu0
      %v2703 = vpop.f32.mrb[0].mxu0
      %v2704 = vadd.f32 0.0, %v2703
      %v2705 = vpop.f32.mrb[0].mxu0
      %2706 = vmatprep.mubr.bf16.mxu0 0
      %2707 = vmatmul.mubr.bf16.gmra.mrb[0].mxu0 %v2597
      %v2708 = vpop.f32.mrb[0].mxu0
      %v2709 = vadd.f32 0.0, %v2708
      %v2710 = vpop.f32.mrb[0].mxu0
      %v2711 = vpop.f32.mrb[0].mxu0
      %v2712 = vadd.f32 0.0, %v2711
      %v2713 = vpop.f32.mrb[0].mxu0
      %2714 = vmatprep.mubr.bf16.mxu0 0
      %2715 = vmatmul.mubr.bf16.gmra.mrb[0].mxu0 %v2600
      %v2716 = vpop.f32.mrb[0].mxu0
      %v2717 = vadd.f32 0.0, %v2716
      %v2718 = vpop.f32.mrb[0].mxu0
      %v2719 = vpop.f32.mrb[0].mxu0
      %v2720 = vadd.f32 0.0, %v2719
      %v2721 = vpop.f32.mrb[0].mxu0
      %2722 = vmatprep.mubr.bf16.mxu0 0
      %2723 = vmatmul.mubr.bf16.gmra.mrb[0].mxu0 %v2603
      %v2724 = vpop.f32.mrb[0].mxu0
      %v2725 = vadd.f32 0.0, %v2724
      %v2726 = vpop.f32.mrb[0].mxu0
      %v2727 = vpop.f32.mrb[0].mxu0
      %v2728 = vadd.f32 0.0, %v2727
      %v2729 = vpop.f32.mrb[0].mxu0
      %2730 = vmatprep.mubr.bf16.mxu0 0
      %2731 = vmatmul.mubr.bf16.gmra.mrb[0].mxu0 %v2606
      %v2732 = vpop.f32.mrb[0].mxu0
      %v2733 = vadd.f32 0.0, %v2732
      %v2734 = vpop.f32.mrb[0].mxu0
      %v2735 = vpop.f32.mrb[0].mxu0
      %v2736 = vadd.f32 0.0, %v2735
      %v2737 = vpop.f32.mrb[0].mxu0
      %2738 = vmatprep.mubr.bf16.mxu0 0
      %2739 = vmatmul.mubr.bf16.gmra.mrb[0].mxu0 %v2609
      %v2740 = vpop.f32.mrb[0].mxu0
      %v2741 = vadd.f32 0.0, %v2740
      %v2742 = vpop.f32.mrb[0].mxu0
      %v2743 = vpop.f32.mrb[0].mxu0
      %v2744 = vadd.f32 0.0, %v2743
      %v2745 = vpop.f32.mrb[0].mxu0
      %2746 = vmatprep.mubr.bf16.mxu0 0
      %2747 = vmatmul.mubr.bf16.gmra.mrb[0].mxu0 %v2612
      %v2748 = vpop.f32.mrb[0].mxu0
      %v2749 = vadd.f32 0.0, %v2748
      %v2750 = vpop.f32.mrb[0].mxu0
      %v2751 = vpop.f32.mrb[0].mxu0
      %v2752 = vadd.f32 0.0, %v2751
      %v2753 = vpop.f32.mrb[0].mxu0
      %2754 = vmatprep.mubr.bf16.mxu0 0
      %2755 = vmatmul.mubr.bf16.gmra.mrb[0].mxu0 %v2615
      %v2756 = vpop.f32.mrb[0].mxu0
      %v2757 = vadd.f32 0.0, %v2756
      %v2758 = vpop.f32.mrb[0].mxu0
      %v2759 = vpop.f32.mrb[0].mxu0
      %v2760 = vadd.f32 0.0, %v2759
      %v2761 = vpop.f32.mrb[0].mxu0
      %2762 = vmatprep.mubr.bf16.mxu0 0
      %2763 = vmatmul.mubr.bf16.gmra.mrb[0].mxu0 %v2618
      %v2764 = vpop.f32.mrb[0].mxu0
      %v2765 = vadd.f32 0.0, %v2764
      %v2766 = vpop.f32.mrb[0].mxu0
      %v2767 = vpop.f32.mrb[0].mxu0
      %v2768 = vadd.f32 0.0, %v2767
      %v2769 = vpop.f32.mrb[0].mxu0
      %2770 = vmatprep.mubr.bf16.mxu0 0
      %2771 = vmatmul.mubr.bf16.gmra.mrb[0].mxu0 %v2621
      %v2772 = vpop.f32.mrb[0].mxu0
      %v2773 = vadd.f32 0.0, %v2772
      %v2774 = vpop.f32.mrb[0].mxu0
      %v2775 = vpop.f32.mrb[0].mxu0
      %v2776 = vadd.f32 0.0, %v2775
      %v2777 = vpop.f32.mrb[0].mxu0
      %2778 = vmatprep.mubr.bf16.mxu0 0
      %2779 = vmatmul.mubr.bf16.gmra.mrb[0].mxu0 %v2624
      %v2780 = vpop.f32.mrb[0].mxu0
      %v2781 = vadd.f32 0.0, %v2780
      %v2782 = vpop.f32.mrb[0].mxu0
      %v2783 = vpop.f32.mrb[0].mxu0
      %v2784 = vadd.f32 0.0, %v2783
      %v2785 = vpop.f32.mrb[0].mxu0
      %2786 = vdwg.mxu0
      %v2787 = vadd.f32 %v2489, %v2661
      %v2788 = vadd.f32 %v2490, %v2664
      %v2789 = vadd.f32 %v2491, %v2669
      %v2790 = vadd.f32 %v2492, %v2672
      %v2791 = vadd.f32 %v2493, %v2677
      %v2792 = vadd.f32 %v2494, %v2680
      %v2793 = vadd.f32 %v2495, %v2685
      %v2794 = vadd.f32 %v2496, %v2688
      %v2795 = vadd.f32 %v2497, %v2693
      %v2796 = vadd.f32 %v2498, %v2696
      %v2797 = vadd.f32 %v2499, %v2701
      %v2798 = vadd.f32 %v2500, %v2704
      %v2799 = vadd.f32 %v2501, %v2709
      %v2800 = vadd.f32 %v2502, %v2712
      %v2801 = vadd.f32 %v2503, %v2717
      %v2802 = vadd.f32 %v2504, %v2720
      %v2803 = vadd.f32 %v2505, %v2725
      %v2804 = vadd.f32 %v2506, %v2728
      %v2805 = vadd.f32 %v2507, %v2733
      %v2806 = vadd.f32 %v2508, %v2736
      %v2807 = vadd.f32 %v2509, %v2741
      %v2808 = vadd.f32 %v2510, %v2744
      %v2809 = vadd.f32 %v2511, %v2749
      %v2810 = vadd.f32 %v2512, %v2752
      %v2811 = vadd.f32 %v2513, %v2757
      %v2812 = vadd.f32 %v2514, %v2760
      %v2813 = vadd.f32 %v2515, %v2765
      %v2814 = vadd.f32 %v2516, %v2768
      %v2815 = vadd.f32 %v2517, %v2773
      %v2816 = vadd.f32 %v2518, %v2776
      %v2817 = vadd.f32 %v2519, %v2781
      %v2818 = vadd.f32 %v2520, %v2784
      %v2819 = vld [vmem:[%s2] sm:$0x1]
      %v2821 = vlaneseq
      %v2822 = vshrl.u32 %v2821, 7
      %v2823 = vsub.s32 0, %v2822
      %v2824 = vrot.slane %v2819, %v2823
      %v2826 = vmul.f32 %v2787, %v2824
      %v2827 = vmul.f32 %v2788, %v2824
      %v2828 = vmul.f32 %v2789, %v2824
      %v2829 = vmul.f32 %v2790, %v2824
      %v2830 = vmul.f32 %v2791, %v2824
      %v2831 = vmul.f32 %v2792, %v2824
      %v2832 = vmul.f32 %v2793, %v2824
      %v2833 = vmul.f32 %v2794, %v2824
      %v2834 = vmul.f32 %v2795, %v2824
      %v2835 = vmul.f32 %v2796, %v2824
      %v2836 = vmul.f32 %v2797, %v2824
      %v2837 = vmul.f32 %v2798, %v2824
      %v2838 = vmul.f32 %v2799, %v2824
      %v2839 = vmul.f32 %v2800, %v2824
      %v2840 = vmul.f32 %v2801, %v2824
      %v2841 = vmul.f32 %v2802, %v2824
      %v2842 = vmul.f32 %v2803, %v2824
      %v2843 = vmul.f32 %v2804, %v2824
      %v2844 = vmul.f32 %v2805, %v2824
      %v2845 = vmul.f32 %v2806, %v2824
      %v2846 = vmul.f32 %v2807, %v2824
      %v2847 = vmul.f32 %v2808, %v2824
      %v2848 = vmul.f32 %v2809, %v2824
      %v2849 = vmul.f32 %v2810, %v2824
      %v2850 = vmul.f32 %v2811, %v2824
      %v2851 = vmul.f32 %v2812, %v2824
      %v2852 = vmul.f32 %v2813, %v2824
      %v2853 = vmul.f32 %v2814, %v2824
      %v2854 = vmul.f32 %v2815, %v2824
      %v2855 = vmul.f32 %v2816, %v2824
      %v2856 = vmul.f32 %v2817, %v2824
      %v2857 = vmul.f32 %v2818, %v2824
      %v2858 = vld [vmem:[%s3] sm:$0x1]
      %v2860 = vlaneseq
      %v2861 = vshrl.u32 %v2860, 7
      %v2862 = vsub.s32 0, %v2861
      %v2863 = vrot.slane %v2858, %v2862
      %v2865 = vadd.f32 %v2826, %v2863
      %v2866 = vadd.f32 %v2827, %v2863
      %v2867 = vadd.f32 %v2828, %v2863
      %v2868 = vadd.f32 %v2829, %v2863
      %v2869 = vadd.f32 %v2830, %v2863
      %v2870 = vadd.f32 %v2831, %v2863
      %v2871 = vadd.f32 %v2832, %v2863
      %v2872 = vadd.f32 %v2833, %v2863
      %v2873 = vadd.f32 %v2834, %v2863
      %v2874 = vadd.f32 %v2835, %v2863
      %v2875 = vadd.f32 %v2836, %v2863
      %v2876 = vadd.f32 %v2837, %v2863
      %v2877 = vadd.f32 %v2838, %v2863
      %v2878 = vadd.f32 %v2839, %v2863
      %v2879 = vadd.f32 %v2840, %v2863
      %v2880 = vadd.f32 %v2841, %v2863
      %v2881 = vadd.f32 %v2842, %v2863
      %v2882 = vadd.f32 %v2843, %v2863
      %v2883 = vadd.f32 %v2844, %v2863
      %v2884 = vadd.f32 %v2845, %v2863
      %v2885 = vadd.f32 %v2846, %v2863
      %v2886 = vadd.f32 %v2847, %v2863
      %v2887 = vadd.f32 %v2848, %v2863
      %v2888 = vadd.f32 %v2849, %v2863
      %v2889 = vadd.f32 %v2850, %v2863
      %v2890 = vadd.f32 %v2851, %v2863
      %v2891 = vadd.f32 %v2852, %v2863
      %v2892 = vadd.f32 %v2853, %v2863
      %v2893 = vadd.f32 %v2854, %v2863
      %v2894 = vadd.f32 %v2855, %v2863
      %v2895 = vadd.f32 %v2856, %v2863
      %v2896 = vadd.f32 %v2857, %v2863
      %vm2897 = vcmp.ge.f32.partialorder %v2865, 0.0
      %vm2898 = vcmp.ge.f32.partialorder %v2866, 0.0
      %vm2899 = vcmp.ge.f32.partialorder %v2867, 0.0
      %vm2900 = vcmp.ge.f32.partialorder %v2868, 0.0
      %vm2901 = vcmp.ge.f32.partialorder %v2869, 0.0
      %vm2902 = vcmp.ge.f32.partialorder %v2870, 0.0
      %vm2903 = vcmp.ge.f32.partialorder %v2871, 0.0
      %vm2904 = vcmp.ge.f32.partialorder %v2872, 0.0
      %vm2905 = vcmp.ge.f32.partialorder %v2873, 0.0
      %vm2906 = vcmp.ge.f32.partialorder %v2874, 0.0
      %vm2907 = vcmp.ge.f32.partialorder %v2875, 0.0
      %vm2908 = vcmp.ge.f32.partialorder %v2876, 0.0
      %vm2909 = vcmp.ge.f32.partialorder %v2877, 0.0
      %vm2910 = vcmp.ge.f32.partialorder %v2878, 0.0
      %vm2911 = vcmp.ge.f32.partialorder %v2879, 0.0
      %vm2912 = vcmp.ge.f32.partialorder %v2880, 0.0
      %vm2913 = vcmp.ge.f32.partialorder %v2881, 0.0
      %vm2914 = vcmp.ge.f32.partialorder %v2882, 0.0
      %vm2915 = vcmp.ge.f32.partialorder %v2883, 0.0
      %vm2916 = vcmp.ge.f32.partialorder %v2884, 0.0
      %vm2917 = vcmp.ge.f32.partialorder %v2885, 0.0
      %vm2918 = vcmp.ge.f32.partialorder %v2886, 0.0
      %vm2919 = vcmp.ge.f32.partialorder %v2887, 0.0
      %vm2920 = vcmp.ge.f32.partialorder %v2888, 0.0
      %vm2921 = vcmp.ge.f32.partialorder %v2889, 0.0
      %vm2922 = vcmp.ge.f32.partialorder %v2890, 0.0
      %vm2923 = vcmp.ge.f32.partialorder %v2891, 0.0
      %vm2924 = vcmp.ge.f32.partialorder %v2892, 0.0
      %vm2925 = vcmp.ge.f32.partialorder %v2893, 0.0
      %vm2926 = vcmp.ge.f32.partialorder %v2894, 0.0
      %vm2927 = vcmp.ge.f32.partialorder %v2895, 0.0
      %vm2928 = vcmp.ge.f32.partialorder %v2896, 0.0
      %v2929 = vmul.f32 %v2865, 0.2
      %v2930 = vmul.f32 %v2866, 0.2
      %v2931 = vmul.f32 %v2867, 0.2
      %v2932 = vmul.f32 %v2868, 0.2
      %v2933 = vmul.f32 %v2869, 0.2
      %v2934 = vmul.f32 %v2870, 0.2
      %v2935 = vmul.f32 %v2871, 0.2
      %v2936 = vmul.f32 %v2872, 0.2
      %v2937 = vmul.f32 %v2873, 0.2
      %v2938 = vmul.f32 %v2874, 0.2
      %v2939 = vmul.f32 %v2875, 0.2
      %v2940 = vmul.f32 %v2876, 0.2
      %v2941 = vmul.f32 %v2877, 0.2
      %v2942 = vmul.f32 %v2878, 0.2
      %v2943 = vmul.f32 %v2879, 0.2
      %v2944 = vmul.f32 %v2880, 0.2
      %v2945 = vmul.f32 %v2881, 0.2
      %v2946 = vmul.f32 %v2882, 0.2
      %v2947 = vmul.f32 %v2883, 0.2
      %v2948 = vmul.f32 %v2884, 0.2
      %v2949 = vmul.f32 %v2885, 0.2
      %v2950 = vmul.f32 %v2886, 0.2
      %v2951 = vmul.f32 %v2887, 0.2
      %v2952 = vmul.f32 %v2888, 0.2
      %v2953 = vmul.f32 %v2889, 0.2
      %v2954 = vmul.f32 %v2890, 0.2
      %v2955 = vmul.f32 %v2891, 0.2
      %v2956 = vmul.f32 %v2892, 0.2
      %v2957 = vmul.f32 %v2893, 0.2
      %v2958 = vmul.f32 %v2894, 0.2
      %v2959 = vmul.f32 %v2895, 0.2
      %v2960 = vmul.f32 %v2896, 0.2
      %v2961 = vsel %vm2897, %v2865, %v2929
      %v2962 = vsel %vm2898, %v2866, %v2930
      %v2963 = vsel %vm2899, %v2867, %v2931
      %v2964 = vsel %vm2900, %v2868, %v2932
      %v2965 = vsel %vm2901, %v2869, %v2933
      %v2966 = vsel %vm2902, %v2870, %v2934
      %v2967 = vsel %vm2903, %v2871, %v2935
      %v2968 = vsel %vm2904, %v2872, %v2936
      %v2969 = vsel %vm2905, %v2873, %v2937
      %v2970 = vsel %vm2906, %v2874, %v2938
      %v2971 = vsel %vm2907, %v2875, %v2939
      %v2972 = vsel %vm2908, %v2876, %v2940
      %v2973 = vsel %vm2909, %v2877, %v2941
      %v2974 = vsel %vm2910, %v2878, %v2942
      %v2975 = vsel %vm2911, %v2879, %v2943
      %v2976 = vsel %vm2912, %v2880, %v2944
      %v2977 = vsel %vm2913, %v2881, %v2945
      %v2978 = vsel %vm2914, %v2882, %v2946
      %v2979 = vsel %vm2915, %v2883, %v2947
      %v2980 = vsel %vm2916, %v2884, %v2948
      %v2981 = vsel %vm2917, %v2885, %v2949
      %v2982 = vsel %vm2918, %v2886, %v2950
      %v2983 = vsel %vm2919, %v2887, %v2951
      %v2984 = vsel %vm2920, %v2888, %v2952
      %v2985 = vsel %vm2921, %v2889, %v2953
      %v2986 = vsel %vm2922, %v2890, %v2954
      %v2987 = vsel %vm2923, %v2891, %v2955
      %v2988 = vsel %vm2924, %v2892, %v2956
      %v2989 = vsel %vm2925, %v2893, %v2957
      %v2990 = vsel %vm2926, %v2894, %v2958
      %v2991 = vsel %vm2927, %v2895, %v2959
      %v2992 = vsel %vm2928, %v2896, %v2960
      %2993 = vst.msk [vmem:[%s197] sm:$0xff] %vm306, %v2961
      %2994 = vst.msk [vmem:[%s197 + $0x8] sm:$0xff] %vm306, %v2962
      %2995 = vst.msk [vmem:[%s197 + $0x10] sm:$0xff] %vm306, %v2963
      %2996 = vst.msk [vmem:[%s197 + $0x18] sm:$0xff] %vm306, %v2964
      %2997 = vst.msk [vmem:[%s197 + $0x20] sm:$0xff] %vm306, %v2965
      %2998 = vst.msk [vmem:[%s197 + $0x28] sm:$0xff] %vm306, %v2966
      %2999 = vst.msk [vmem:[%s197 + $0x30] sm:$0xff] %vm306, %v2967
      %3000 = vst.msk [vmem:[%s197 + $0x38] sm:$0xff] %vm306, %v2968
      %3001 = vst.msk [vmem:[%s197 + $0x40] sm:$0xff] %vm306, %v2969
      %3002 = vst.msk [vmem:[%s197 + $0x48] sm:$0xff] %vm306, %v2970
      %3003 = vst.msk [vmem:[%s197 + $0x50] sm:$0xff] %vm306, %v2971
      %3004 = vst.msk [vmem:[%s197 + $0x58] sm:$0xff] %vm306, %v2972
      %3005 = vst.msk [vmem:[%s197 + $0x60] sm:$0xff] %vm306, %v2973
      %3006 = vst.msk [vmem:[%s197 + $0x68] sm:$0xff] %vm306, %v2974
      %3007 = vst.msk [vmem:[%s197 + $0x70] sm:$0xff] %vm306, %v2975
      %3008 = vst.msk [vmem:[%s197 + $0x78] sm:$0xff] %vm306, %v2976
      %3009 = vst.msk [vmem:[%s197 + $0x80] sm:$0xff] %vm306, %v2977
      %3010 = vst.msk [vmem:[%s197 + $0x88] sm:$0xff] %vm306, %v2978
      %3011 = vst.msk [vmem:[%s197 + $0x90] sm:$0xff] %vm306, %v2979
      %3012 = vst.msk [vmem:[%s197 + $0x98] sm:$0xff] %vm306, %v2980
      %3013 = vst.msk [vmem:[%s197 + $0xa0] sm:$0xff] %vm306, %v2981
      %3014 = vst.msk [vmem:[%s197 + $0xa8] sm:$0xff] %vm306, %v2982
      %3015 = vst.msk [vmem:[%s197 + $0xb0] sm:$0xff] %vm306, %v2983
      %3016 = vst.msk [vmem:[%s197 + $0xb8] sm:$0xff] %vm306, %v2984
      %3017 = vst.msk [vmem:[%s197 + $0xc0] sm:$0xff] %vm306, %v2985
      %3018 = vst.msk [vmem:[%s197 + $0xc8] sm:$0xff] %vm306, %v2986
      %3019 = vst.msk [vmem:[%s197 + $0xd0] sm:$0xff] %vm306, %v2987
      %3020 = vst.msk [vmem:[%s197 + $0xd8] sm:$0xff] %vm306, %v2988
      %3021 = vst.msk [vmem:[%s197 + $0xe0] sm:$0xff] %vm306, %v2989
      %3022 = vst.msk [vmem:[%s197 + $0xe8] sm:$0xff] %vm306, %v2990
      %3023 = vst.msk [vmem:[%s197 + $0xf0] sm:$0xff] %vm306, %v2991
      %3024 = vst.msk [vmem:[%s197 + $0xf8] sm:$0xff] %vm306, %v2992
      %p3025 = scmp.lt.s32.totalorder %s15, 1
      %s3026 = scalar_select %p3025, %s15, 1
      %s3027 = smul.addr %s3026, 32
      %s3028 = smul.addr %s3027, 8
      %s3029 = scalar_lea.vmem %s4, %s3028
      // Predicated region
      $region37: #{transformer_forward.6} parent=35 // pred_check
        %p3030 = pneg %p122
      $region38: #{transformer_forward.6} parent=35 // pred_check_branch
        %3032 = sbr.rel (%p3030) target = $region40
      $region39: #{transformer_forward.6} parent=35 // pred_region
        _
      $region40: #{transformer_forward.6} parent=35 // pred_fallthru
        _
    $region36: #{transformer_forward.6} parent=5 // pred_fallthru
      _
    %p3033 = scmp.le.s32.totalorder 2, %s10
    // Predicated region
    $region41: #{transformer_forward.6} parent=5 // pred_check
      %p3034 = pneg %p3033
    $region42: #{transformer_forward.6} parent=5 // pred_check_branch
      %3036 = sbr.rel (%p3034) target = $region44
    $region43: #{transformer_forward.6} parent=5 // pred_region
      %s3037 = ssub.s32 %s10, 2
      // Predicated region
      $region45: #{transformer_forward.6} parent=43 // pred_check
        %p3038 = pneg %p128
      $region46: #{transformer_forward.6} parent=43 // pred_check_branch
        %3040 = sbr.rel (%p3038) target = $region48
      $region47: #{transformer_forward.6} parent=43 // pred_region
        %p3041 = scmp.lt.s32.totalorder %s16, 1
        %s3042 = scalar_select %p3041, %s16, 1
        %s3043 = smul.addr %s3042, 32
        %s3044 = smul.addr %s3043, 8
        %s3045 = scalar_lea.vmem %s4, %s3044
      $region48: #{transformer_forward.6} parent=43 // pred_fallthru
        _
    $region44: #{transformer_forward.6} parent=5 // pred_fallthru
      _
  $region6: #{transformer_forward.6} parent=0 // loop_footer
    %s14 = sadd.s32 1, %s10
  $region7: #{transformer_forward.6} parent=0 // loop_footer_branch
    %9 = sbr.rel target = $region3
  $region8: #{transformer_forward.6} parent=0 // loop_exit
    _

// kernel: transformer_forward.7
$region0: #{transformer_forward.7}
  #allocation0 [shape = 'u32[]', space=smem, size = 0x4, offset = 0x4, fixed_abs, tag = 'smem constant byte address 0x4 - core index']
  #allocation1 [shape = 'u32[144,128]{1,0:T(1,128)}', space=vmem, size = 0x12000, scoped, tag = 'internal scratch']
  %s0 = inlined_call_operand.vmem [shape: f32[2,18,18,16], index: 0, kind: input, shape index: {}]
  %s1 = inlined_call_operand.vmem [shape: bf16[3,3,16,16], index: 1, kind: input, shape index: {}]
  %s2 = inlined_call_operand.vmem [shape: f32[1,16], index: 2, kind: input, shape index: {}]
  %s3 = inlined_call_operand.vmem [shape: f32[1,16], index: 3, kind: input, shape index: {}]
  %s4 = inlined_call_operand.vmem [shape: f32[2,16,16,16], index: 4, kind: input, shape index: {}]
  %s5 = inlined_call_operand.vmem [shape: f32[2,16,16,16], index: 5, kind: output, shape index: {}]
  %s6 = sld [smem:[#allocation0]]
  $region53: #{transformer_forward.7} parent=0
    _
  %s8 = ssub.s32 1, %s6
  %s9 = scalar_select 0, %s8, %s6
  loop: start=0, step=1, limit=4
  $region2: #{transformer_forward.7} parent=0 // loop_pre_header
    _
  $region3: #{transformer_forward.7} parent=0 // loop_header
    %s11 = sphi 0, %s15
    %p12 = scmp.ge.s32.totalorder %s11, 4
    %s21 = sphi 0, %s23
    %s24 = sphi 0, %s21
    %s25 = sphi 0, %s24
    %s41 = sphi 0, %s25
    %s45 = sphi 0, %s45
    %s47 = sphi 0, %s45
    %s48 = sphi 0, %s47
    %s62 = sphi 0, %s48
    %s66 = sphi 0, %s66
    %s68 = sphi 0, %s66
    %s69 = sphi 0, %s68
    %s83 = sphi 0, %s69
    %s87 = sphi 0, %s87
    %s89 = sphi 0, %s87
    %s90 = sphi 0, %s89
    %s104 = sphi 0, %s90
    %s110 = sphi 0, %s112
    %s113 = sphi 0, %s110
    %s114 = sphi 0, %s113
    %s130 = sphi 0, %s114
    %s136 = sphi 0, %s138
    %s139 = sphi 0, %s136
    %s140 = sphi 0, %s139
    %s156 = sphi 0, %s140
  $region4: #{transformer_forward.7} parent=0 // loop_header_branch
    %14 = sbr.rel (%p12) target = $region8
  $region5: #{transformer_forward.7} parent=0 // loop_body
    %s16 = ssub.s32 %s11, 1
    %s17 = ssub.s32 %s11, 2
    %s18 = sadd.s32 %s11, 1
    %s19 = ssub.s32 %s11, %s18
    %p20 = scmp.eq.s32.totalorder %s19, 0
    %s22 = sadd.s32 %s21, 1
    %s23 = scalar_select %p20, %s21, %s22
    %p26 = pneg %p20
    %p27 = scmp.eq.s32.totalorder %s11, 1
    %p28 = por %p26, %p27
    %p29 = scmp.ne.s32.totalorder %s21, %s24
    %p30 = scmp.eq.s32.totalorder %s11, 0
    %p31 = por %p29, %p30
    %p32 = scmp.ne.s32.totalorder %s21, %s24
    %p33 = scmp.eq.s32.totalorder %s16, 1
    %p34 = por %p32, %p33
    %p35 = scmp.ne.s32.totalorder %s24, %s25
    %p36 = scmp.eq.s32.totalorder %s16, 0
    %p37 = por %p35, %p36
    %p38 = scmp.ne.s32.totalorder %s24, %s25
    %p39 = scmp.eq.s32.totalorder %s17, 1
    %p40 = por %p38, %p39
    %p42 = scmp.ne.s32.totalorder %s25, %s41
    %p43 = scmp.eq.s32.totalorder %s17, 0
    %p44 = por %p42, %p43
    %s46 = sadd.s32 %s45, 1
    %p49 = scmp.eq.s32.totalorder %s11, 1
    %p50 = scmp.ne.s32.totalorder %s45, %s47
    %p51 = scmp.eq.s32.totalorder %s11, 0
    %p52 = por %p50, %p51
    %p53 = scmp.ne.s32.totalorder %s45, %s47
    %p54 = scmp.eq.s32.totalorder %s16, 1
    %p55 = por %p53, %p54
    %p56 = scmp.ne.s32.totalorder %s47, %s48
    %p57 = scmp.eq.s32.totalorder %s16, 0
    %p58 = por %p56, %p57
    %p59 = scmp.ne.s32.totalorder %s47, %s48
    %p60 = scmp.eq.s32.totalorder %s17, 1
    %p61 = por %p59, %p60
    %p63 = scmp.ne.s32.totalorder %s48, %s62
    %p64 = scmp.eq.s32.totalorder %s17, 0
    %p65 = por %p63, %p64
    %s67 = sadd.s32 %s66, 1
    %p70 = scmp.eq.s32.totalorder %s11, 1
    %p71 = scmp.ne.s32.totalorder %s66, %s68
    %p72 = scmp.eq.s32.totalorder %s11, 0
    %p73 = por %p71, %p72
    %p74 = scmp.ne.s32.totalorder %s66, %s68
    %p75 = scmp.eq.s32.totalorder %s16, 1
    %p76 = por %p74, %p75
    %p77 = scmp.ne.s32.totalorder %s68, %s69
    %p78 = scmp.eq.s32.totalorder %s16, 0
    %p79 = por %p77, %p78
    %p80 = scmp.ne.s32.totalorder %s68, %s69
    %p81 = scmp.eq.s32.totalorder %s17, 1
    %p82 = por %p80, %p81
    %p84 = scmp.ne.s32.totalorder %s69, %s83
    %p85 = scmp.eq.s32.totalorder %s17, 0
    %p86 = por %p84, %p85
    %s88 = sadd.s32 %s87, 1
    %p91 = scmp.eq.s32.totalorder %s11, 1
    %p92 = scmp.ne.s32.totalorder %s87, %s89
    %p93 = scmp.eq.s32.totalorder %s11, 0
    %p94 = por %p92, %p93
    %p95 = scmp.ne.s32.totalorder %s87, %s89
    %p96 = scmp.eq.s32.totalorder %s16, 1
    %p97 = por %p95, %p96
    %p98 = scmp.ne.s32.totalorder %s89, %s90
    %p99 = scmp.eq.s32.totalorder %s16, 0
    %p100 = por %p98, %p99
    %p101 = scmp.ne.s32.totalorder %s89, %s90
    %p102 = scmp.eq.s32.totalorder %s17, 1
    %p103 = por %p101, %p102
    %p105 = scmp.ne.s32.totalorder %s90, %s104
    %p106 = scmp.eq.s32.totalorder %s17, 0
    %p107 = por %p105, %p106
    %s108 = ssub.s32 %s11, %s18
    %p109 = scmp.eq.s32.totalorder %s108, 0
    %s111 = sadd.s32 %s110, 1
    %s112 = scalar_select %p109, %s110, %s111
    %p115 = pneg %p109
    %p116 = scmp.eq.s32.totalorder %s11, 1
    %p117 = por %p115, %p116
    %p118 = scmp.ne.s32.totalorder %s110, %s113
    %p119 = scmp.eq.s32.totalorder %s11, 0
    %p120 = por %p118, %p119
    %p121 = scmp.ne.s32.totalorder %s110, %s113
    %p122 = scmp.eq.s32.totalorder %s16, 1
    %p123 = por %p121, %p122
    %p124 = scmp.ne.s32.totalorder %s113, %s114
    %p125 = scmp.eq.s32.totalorder %s16, 0
    %p126 = por %p124, %p125
    %p127 = scmp.ne.s32.totalorder %s113, %s114
    %p128 = scmp.eq.s32.totalorder %s17, 1
    %p129 = por %p127, %p128
    %p131 = scmp.ne.s32.totalorder %s114, %s130
    %p132 = scmp.eq.s32.totalorder %s17, 0
    %p133 = por %p131, %p132
    %s134 = ssub.s32 %s11, %s18
    %p135 = scmp.eq.s32.totalorder %s134, 0
    %s137 = sadd.s32 %s136, 1
    %s138 = scalar_select %p135, %s136, %s137
    %p141 = pneg %p135
    %p142 = scmp.eq.s32.totalorder %s11, 1
    %p143 = por %p141, %p142
    %p144 = scmp.ne.s32.totalorder %s136, %s139
    %p145 = scmp.eq.s32.totalorder %s11, 0
    %p146 = por %p144, %p145
    %p147 = scmp.ne.s32.totalorder %s136, %s139
    %p148 = scmp.eq.s32.totalorder %s16, 1
    %p149 = por %p147, %p148
    %p150 = scmp.ne.s32.totalorder %s139, %s140
    %p151 = scmp.eq.s32.totalorder %s16, 0
    %p152 = por %p150, %p151
    %p153 = scmp.ne.s32.totalorder %s139, %s140
    %p154 = scmp.eq.s32.totalorder %s17, 1
    %p155 = por %p153, %p154
    %p157 = scmp.ne.s32.totalorder %s140, %s156
    %p158 = scmp.eq.s32.totalorder %s17, 0
    %p159 = por %p157, %p158
    %p160 = scmp.le.s32.totalorder 1, %s11
    %p161 = scmp.lt.s32.totalorder %s11, 3
    %p162 = pnand %p160, %p161
    %p163 = pneg %p162
    // Predicated region
    $region9: #{transformer_forward.7} parent=5 // pred_check
      _
    $region10: #{transformer_forward.7} parent=5 // pred_check_branch
      %165 = sbr.rel (%p162) target = $region12
    $region11: #{transformer_forward.7} parent=5 // pred_region
      %s166 = ssub.s32 %s11, 1
      // Predicated region
      $region13: #{transformer_forward.7} parent=11 // pred_check
        %p167 = pneg %p58
      $region14: #{transformer_forward.7} parent=11 // pred_check_branch
        %169 = sbr.rel (%p167) target = $region16
      $region15: #{transformer_forward.7} parent=11 // pred_region
        _
      $region16: #{transformer_forward.7} parent=11 // pred_fallthru
        _
      // Predicated region
      $region17: #{transformer_forward.7} parent=11 // pred_check
        %p170 = pneg %p79
      $region18: #{transformer_forward.7} parent=11 // pred_check_branch
        %172 = sbr.rel (%p170) target = $region20
      $region19: #{transformer_forward.7} parent=11 // pred_region
        _
      $region20: #{transformer_forward.7} parent=11 // pred_fallthru
        _
      // Predicated region
      $region21: #{transformer_forward.7} parent=11 // pred_check
        %p173 = pneg %p100
      $region22: #{transformer_forward.7} parent=11 // pred_check_branch
        %175 = sbr.rel (%p173) target = $region24
      $region23: #{transformer_forward.7} parent=11 // pred_region
        _
      $region24: #{transformer_forward.7} parent=11 // pred_fallthru
        _
    $region12: #{transformer_forward.7} parent=5 // pred_fallthru
      _
    %p176 = scmp.lt.s32.totalorder %s11, 2
    // Predicated region
    $region25: #{transformer_forward.7} parent=5 // pred_check
      %p177 = pneg %p176
    $region26: #{transformer_forward.7} parent=5 // pred_check_branch
      %179 = sbr.rel (%p177) target = $region28
    $region27: #{transformer_forward.7} parent=5 // pred_region
      // Predicated region
      $region29: #{transformer_forward.7} parent=27 // pred_check
        %p180 = pneg %p31
      $region30: #{transformer_forward.7} parent=27 // pred_check_branch
        %182 = sbr.rel (%p180) target = $region32
      $region31: #{transformer_forward.7} parent=27 // pred_region
        %p183 = scmp.lt.s32.totalorder %s11, 1
        %s184 = scalar_select %p183, %s11, 1
        %s185 = smul.addr %s184, 54
        %s186 = smul.addr %s185, 8
        %s187 = scalar_lea.vmem %s0, %s186
      $region32: #{transformer_forward.7} parent=27 // pred_fallthru
        _
      // Predicated region
      $region33: #{transformer_forward.7} parent=27 // pred_check
        %p188 = pneg %p120
      $region34: #{transformer_forward.7} parent=27 // pred_check_branch
        %190 = sbr.rel (%p188) target = $region36
      $region35: #{transformer_forward.7} parent=27 // pred_region
        %p191 = scmp.lt.s32.totalorder %s11, 1
        %s192 = scalar_select %p191, %s11, 1
        %s193 = smul.addr %s192, 32
        %s194 = smul.addr %s193, 8
        %s195 = scalar_lea.vmem %s4, %s194
      $region36: #{transformer_forward.7} parent=27 // pred_fallthru
        _
    $region28: #{transformer_forward.7} parent=5 // pred_fallthru
      _
    %p196 = scmp.le.s32.totalorder 1, %s11
    %p197 = scmp.lt.s32.totalorder %s11, 3
    %p198 = pnand %p196, %p197
    %p199 = pneg %p198
    // Predicated region
    $region37: #{transformer_forward.7} parent=5 // pred_check
      _
    $region38: #{transformer_forward.7} parent=5 // pred_check_branch
      %201 = sbr.rel (%p198) target = $region40
    $region39: #{transformer_forward.7} parent=5 // pred_region
      %s202 = ssub.s32 %s11, 1
      %p203 = scmp.lt.s32.totalorder %s16, 1
      %s204 = scalar_select %p203, %s16, 1
      %s205 = smul.addr %s204, 54
      %s206 = smul.addr %s205, 8
      %s207 = scalar_lea.vmem %s0, %s206
      %p208 = pneg %p37
      %p209 = pneg %p34
      %p210 = pneg %p58
      %p211 = pneg %p55
      %p212 = pneg %p79
      %p213 = pneg %p76
      %p214 = pneg %p100
      %p215 = pneg %p97
      %p216 = scmp.lt.s32.totalorder %s16, 1
      %s217 = scalar_select %p216, %s16, 1
      %s218 = smul.addr %s217, 32
      %s219 = smul.addr %s218, 8
      %s220 = scalar_lea.vmem %s4, %s219
      %p221 = pneg %p126
      %p222 = pneg %p123
      %p223 = pneg %p152
      %p224 = pneg %p149
      %p225 = scmp.lt.s32.totalorder %s16, 1
      %s226 = scalar_select %p225, %s16, 1
      %s227 = smul.addr %s226, 32
      %s228 = smul.addr %s227, 8
      %s229 = scalar_lea.vmem %s5, %s228
      %p230 = scmp.lt.s32.totalorder %s16, 1
      %s231 = scalar_select %p230, %s16, 1
      %s232 = smul.addr %s231, 54
      %s233 = smul.addr %s232, 8
      %s234 = scalar_lea.vmem %s0, %s233
      %p235 = scmp.lt.s32.totalorder %s16, 1
      %s236 = scalar_select %p235, %s16, 1
      %s237 = smul.addr %s236, 32
      %s238 = smul.addr %s237, 8
      %s239 = scalar_lea.vmem %s4, %s238
      %p240 = scmp.lt.s32.totalorder %s16, 1
      %s241 = scalar_select %p240, %s16, 1
      %s242 = smul.addr %s241, 32
      %s243 = smul.addr %s242, 8
      %s244 = scalar_lea.vmem %s5, %s243
      %v246 = vld [vmem:[%s234] sm:$0xff]
      %v247 = vld [vmem:[%s234 + $0x8] sm:$0xff]
      %v248 = vld [vmem:[%s234 + $0x18] sm:$0xff]
      %v249 = vld [vmem:[%s234 + $0x20] sm:$0xff]
      %v250 = vld [vmem:[%s234 + $0x30] sm:$0xff]
      %v251 = vld [vmem:[%s234 + $0x38] sm:$0xff]
      %v252 = vld [vmem:[%s234 + $0x48] sm:$0xff]
      %v253 = vld [vmem:[%s234 + $0x50] sm:$0xff]
      %v254 = vld [vmem:[%s234 + $0x60] sm:$0xff]
      %v255 = vld [vmem:[%s234 + $0x68] sm:$0xff]
      %v256 = vld [vmem:[%s234 + $0x78] sm:$0xff]
      %v257 = vld [vmem:[%s234 + $0x80] sm:$0xff]
      %v258 = vld [vmem:[%s234 + $0x90] sm:$0xff]
      %v259 = vld [vmem:[%s234 + $0x98] sm:$0xff]
      %v260 = vld [vmem:[%s234 + $0xa8] sm:$0xff]
      %v261 = vld [vmem:[%s234 + $0xb0] sm:$0xff]
      %v262 = vld [vmem:[%s234 + $0xc0] sm:$0xff]
      %v263 = vld [vmem:[%s234 + $0xc8] sm:$0xff]
      %v264 = vld [vmem:[%s234 + $0xd8] sm:$0xff]
      %v265 = vld [vmem:[%s234 + $0xe0] sm:$0xff]
      %v266 = vld [vmem:[%s234 + $0xf0] sm:$0xff]
      %v267 = vld [vmem:[%s234 + $0xf8] sm:$0xff]
      %v268 = vld [vmem:[%s234 + $0x108] sm:$0xff]
      %v269 = vld [vmem:[%s234 + $0x110] sm:$0xff]
      %v270 = vld [vmem:[%s234 + $0x120] sm:$0xff]
      %v271 = vld [vmem:[%s234 + $0x128] sm:$0xff]
      %v272 = vld [vmem:[%s234 + $0x138] sm:$0xff]
      %v273 = vld [vmem:[%s234 + $0x140] sm:$0xff]
      %v274 = vld [vmem:[%s234 + $0x150] sm:$0xff]
      %v275 = vld [vmem:[%s234 + $0x158] sm:$0xff]
      %v276 = vld [vmem:[%s234 + $0x168] sm:$0xff]
      %v277 = vld [vmem:[%s234 + $0x170] sm:$0xff]
      %v278 = vpack.c.bf16 %v247, %v246
      %v279 = vpack.c.bf16 %v249, %v248
      %v280 = vpack.c.bf16 %v251, %v250
      %v281 = vpack.c.bf16 %v253, %v252
      %v282 = vpack.c.bf16 %v255, %v254
      %v283 = vpack.c.bf16 %v257, %v256
      %v284 = vpack.c.bf16 %v259, %v258
      %v285 = vpack.c.bf16 %v261, %v260
      %v286 = vpack.c.bf16 %v263, %v262
      %v287 = vpack.c.bf16 %v265, %v264
      %v288 = vpack.c.bf16 %v267, %v266
      %v289 = vpack.c.bf16 %v269, %v268
      %v290 = vpack.c.bf16 %v271, %v270
      %v291 = vpack.c.bf16 %v273, %v272
      %v292 = vpack.c.bf16 %v275, %v274
      %v293 = vpack.c.bf16 %v277, %v276
      %v294 = vld [vmem:[%s1] sm:$0xf]
      %v295 = vld [vmem:[%s1 + $0x4] sm:$0xf]
      %v296 = vld [vmem:[%s234 + $0x1] sm:$0xff]
      %v297 = vld [vmem:[%s234 + $0x9] sm:$0xff]
      %v298 = vld [vmem:[%s234 + $0x19] sm:$0xff]
      %v299 = vld [vmem:[%s234 + $0x21] sm:$0xff]
      %v300 = vld [vmem:[%s234 + $0x31] sm:$0xff]
      %v301 = vld [vmem:[%s234 + $0x39] sm:$0xff]
      %v302 = vld [vmem:[%s234 + $0x49] sm:$0xff]
      %v303 = vld [vmem:[%s234 + $0x51] sm:$0xff]
      %v304 = vld [vmem:[%s234 + $0x61] sm:$0xff]
      %v305 = vld [vmem:[%s234 + $0x69] sm:$0xff]
      %v306 = vld [vmem:[%s234 + $0x79] sm:$0xff]
      %v307 = vld [vmem:[%s234 + $0x81] sm:$0xff]
      %v308 = vld [vmem:[%s234 + $0x91] sm:$0xff]
      %v309 = vld [vmem:[%s234 + $0x99] sm:$0xff]
      %v310 = vld [vmem:[%s234 + $0xa9] sm:$0xff]
      %v311 = vld [vmem:[%s234 + $0xb1] sm:$0xff]
      %v312 = vld [vmem:[%s234 + $0xc1] sm:$0xff]
      %v313 = vld [vmem:[%s234 + $0xc9] sm:$0xff]
      %v314 = vld [vmem:[%s234 + $0xd9] sm:$0xff]
      %v315 = vld [vmem:[%s234 + $0xe1] sm:$0xff]
      %v316 = vld [vmem:[%s234 + $0xf1] sm:$0xff]
      %v317 = vld [vmem:[%s234 + $0xf9] sm:$0xff]
      %v318 = vld [vmem:[%s234 + $0x109] sm:$0xff]
      %v319 = vld [vmem:[%s234 + $0x111] sm:$0xff]
      %v320 = vld [vmem:[%s234 + $0x121] sm:$0xff]
      %v321 = vld [vmem:[%s234 + $0x129] sm:$0xff]
      %v322 = vld [vmem:[%s234 + $0x139] sm:$0xff]
      %v323 = vld [vmem:[%s234 + $0x141] sm:$0xff]
      %v324 = vld [vmem:[%s234 + $0x151] sm:$0xff]
      %v325 = vld [vmem:[%s234 + $0x159] sm:$0xff]
      %v326 = vld [vmem:[%s234 + $0x169] sm:$0xff]
      %v327 = vld [vmem:[%s234 + $0x171] sm:$0xff]
      %v328 = vpack.c.bf16 %v297, %v296
      %v329 = vpack.c.bf16 %v299, %v298
      %v330 = vpack.c.bf16 %v301, %v300
      %v331 = vpack.c.bf16 %v303, %v302
      %v332 = vpack.c.bf16 %v305, %v304
      %v333 = vpack.c.bf16 %v307, %v306
      %v334 = vpack.c.bf16 %v309, %v308
      %v335 = vpack.c.bf16 %v311, %v310
      %v336 = vpack.c.bf16 %v313, %v312
      %v337 = vpack.c.bf16 %v315, %v314
      %v338 = vpack.c.bf16 %v317, %v316
      %v339 = vpack.c.bf16 %v319, %v318
      %v340 = vpack.c.bf16 %v321, %v320
      %v341 = vpack.c.bf16 %v323, %v322
      %v342 = vpack.c.bf16 %v325, %v324
      %v343 = vpack.c.bf16 %v327, %v326
      %s344 = scalar_lea.vmem %s1, 8
      %v345 = vld [vmem:[%s344] sm:$0xf]
      %v346 = vld [vmem:[%s344 + $0x4] sm:$0xf]
      %v349 = vunpack.c.l.b16 %v345
      %v350 = vunpack.c.l.b16 %v346
      %v351 = vpack.c.b16 %v350, %v349
      %vm353 = vcmask 130048
      %v355 = vsel %vm353, %v328, 0
      %v358 = vsel %vm353, %v329, 0
      %v361 = vsel %vm353, %v330, 0
      %v364 = vsel %vm353, %v331, 0
      %v367 = vsel %vm353, %v332, 0
      %v370 = vsel %vm353, %v333, 0
      %v373 = vsel %vm353, %v334, 0
      %v376 = vsel %vm353, %v335, 0
      %v379 = vsel %vm353, %v336, 0
      %v382 = vsel %vm353, %v337, 0
      %v385 = vsel %vm353, %v338, 0
      %v388 = vsel %vm353, %v339, 0
      %v391 = vsel %vm353, %v340, 0
      %v394 = vsel %vm353, %v341, 0
      %v397 = vsel %vm353, %v342, 0
      %v400 = vsel %vm353, %v343, 0
      %402 = vmatprep.subr.bf16.mxu0 0
      %403 = vmatpush1.bf16.msra.mxu0 %v351
      %404 = vmatprep.subr.bf16.mxu0 0
      %405 = vmatpush1.bf16.msra.mxu0 0
      %406 = vmatprep.subr.bf16.mxu0 0
      %407 = vmatpush1.bf16.msra.mxu0 0
      %408 = vmatprep.subr.bf16.mxu0 0
      %409 = vmatpush1.bf16.msra.mxu0 0
      %410 = vmatprep.subr.bf16.mxu0 0
      %411 = vmatpush1.bf16.msra.mxu0 0
      %412 = vmatprep.subr.bf16.mxu0 0
      %413 = vmatpush1.bf16.msra.mxu0 0
      %414 = vmatprep.subr.bf16.mxu0 0
      %415 = vmatpush1.bf16.msra.mxu0 0
      %416 = vmatprep.subr.bf16.mxu0 0
      %417 = vmatpush1.bf16.msra.mxu0 0
      %418 = vmatprep.subr.bf16.mxu0 0
      %419 = vmatpush1.bf16.msra.mxu0 0
      %420 = vmatprep.subr.bf16.mxu0 0
      %421 = vmatpush1.bf16.msra.mxu0 0
      %422 = vmatprep.subr.bf16.mxu0 0
      %423 = vmatpush1.bf16.msra.mxu0 0
      %424 = vmatprep.subr.bf16.mxu0 0
      %425 = vmatpush1.bf16.msra.mxu0 0
      %426 = vmatprep.subr.bf16.mxu0 0
      %427 = vmatpush1.bf16.msra.mxu0 0
      %428 = vmatprep.subr.bf16.mxu0 0
      %429 = vmatpush1.bf16.msra.mxu0 0
      %430 = vmatprep.subr.bf16.mxu0 0
      %431 = vmatpush1.bf16.msra.mxu0 0
      %432 = vmatprep.subr.bf16.mxu0 0
      %433 = vmatpush1.bf16.msra.mxu0 0
      %434 = vmatprep.mubr.bf16.mxu0 0
      %435 = vmatmul.mubr.bf16.gmra.mrb[0].mxu0 %v355
      %v436 = vpop.f32.mrb[0].mxu0
      %v437 = vadd.f32 0.0, %v436
      %v438 = vpop.f32.mrb[0].mxu0
      %v439 = vpop.f32.mrb[0].mxu0
      %v440 = vadd.f32 0.0, %v439
      %v441 = vpop.f32.mrb[0].mxu0
      %442 = vmatprep.mubr.bf16.mxu0 0
      %443 = vmatmul.mubr.bf16.gmra.mrb[0].mxu0 %v358
      %v444 = vpop.f32.mrb[0].mxu0
      %v445 = vadd.f32 0.0, %v444
      %v446 = vpop.f32.mrb[0].mxu0
      %v447 = vpop.f32.mrb[0].mxu0
      %v448 = vadd.f32 0.0, %v447
      %v449 = vpop.f32.mrb[0].mxu0
      %450 = vmatprep.mubr.bf16.mxu0 0
      %451 = vmatmul.mubr.bf16.gmra.mrb[0].mxu0 %v361
      %v452 = vpop.f32.mrb[0].mxu0
      %v453 = vadd.f32 0.0, %v452
      %v454 = vpop.f32.mrb[0].mxu0
      %v455 = vpop.f32.mrb[0].mxu0
      %v456 = vadd.f32 0.0, %v455
      %v457 = vpop.f32.mrb[0].mxu0
      %458 = vmatprep.mubr.bf16.mxu0 0
      %459 = vmatmul.mubr.bf16.gmra.mrb[0].mxu0 %v364
      %v460 = vpop.f32.mrb[0].mxu0
      %v461 = vadd.f32 0.0, %v460
      %v462 = vpop.f32.mrb[0].mxu0
      %v463 = vpop.f32.mrb[0].mxu0
      %v464 = vadd.f32 0.0, %v463
      %v465 = vpop.f32.mrb[0].mxu0
      %466 = vmatprep.mubr.bf16.mxu0 0
      %467 = vmatmul.mubr.bf16.gmra.mrb[0].mxu0 %v367
      %v468 = vpop.f32.mrb[0].mxu0
      %v469 = vadd.f32 0.0, %v468
      %v470 = vpop.f32.mrb[0].mxu0
      %v471 = vpop.f32.mrb[0].mxu0
      %v472 = vadd.f32 0.0, %v471
      %v473 = vpop.f32.mrb[0].mxu0
      %474 = vmatprep.mubr.bf16.mxu0 0
      %475 = vmatmul.mubr.bf16.gmra.mrb[0].mxu0 %v370
      %v476 = vpop.f32.mrb[0].mxu0
      %v477 = vadd.f32 0.0, %v476
      %v478 = vpop.f32.mrb[0].mxu0
      %v479 = vpop.f32.mrb[0].mxu0
      %v480 = vadd.f32 0.0, %v479
      %v481 = vpop.f32.mrb[0].mxu0
      %482 = vmatprep.mubr.bf16.mxu0 0
      %483 = vmatmul.mubr.bf16.gmra.mrb[0].mxu0 %v373
      %v484 = vpop.f32.mrb[0].mxu0
      %v485 = vadd.f32 0.0, %v484
      %v486 = vpop.f32.mrb[0].mxu0
      %v487 = vpop.f32.mrb[0].mxu0
      %v488 = vadd.f32 0.0, %v487
      %v489 = vpop.f32.mrb[0].mxu0
      %490 = vmatprep.mubr.bf16.mxu0 0
      %491 = vmatmul.mubr.bf16.gmra.mrb[0].mxu0 %v376
      %v492 = vpop.f32.mrb[0].mxu0
      %v493 = vadd.f32 0.0, %v492
      %v494 = vpop.f32.mrb[0].mxu0
      %v495 = vpop.f32.mrb[0].mxu0
      %v496 = vadd.f32 0.0, %v495
      %v497 = vpop.f32.mrb[0].mxu0
      %498 = vmatprep.mubr.bf16.mxu0 0
      %499 = vmatmul.mubr.bf16.gmra.mrb[0].mxu0 %v379
      %v500 = vpop.f32.mrb[0].mxu0
      %v501 = vadd.f32 0.0, %v500
      %v502 = vpop.f32.mrb[0].mxu0
      %v503 = vpop.f32.mrb[0].mxu0
      %v504 = vadd.f32 0.0, %v503
      %v505 = vpop.f32.mrb[0].mxu0
      %506 = vmatprep.mubr.bf16.mxu0 0
      %507 = vmatmul.mubr.bf16.gmra.mrb[0].mxu0 %v382
      %v508 = vpop.f32.mrb[0].mxu0
      %v509 = vadd.f32 0.0, %v508
      %v510 = vpop.f32.mrb[0].mxu0
      %v511 = vpop.f32.mrb[0].mxu0
      %v512 = vadd.f32 0.0, %v511
      %v513 = vpop.f32.mrb[0].mxu0
      %514 = vmatprep.mubr.bf16.mxu0 0
      %515 = vmatmul.mubr.bf16.gmra.mrb[0].mxu0 %v385
      %v516 = vpop.f32.mrb[0].mxu0
      %v517 = vadd.f32 0.0, %v516
      %v518 = vpop.f32.mrb[0].mxu0
      %v519 = vpop.f32.mrb[0].mxu0
      %v520 = vadd.f32 0.0, %v519
      %v521 = vpop.f32.mrb[0].mxu0
      %522 = vmatprep.mubr.bf16.mxu0 0
      %523 = vmatmul.mubr.bf16.gmra.mrb[0].mxu0 %v388
      %v524 = vpop.f32.mrb[0].mxu0
      %v525 = vadd.f32 0.0, %v524
      %v526 = vpop.f32.mrb[0].mxu0
      %v527 = vpop.f32.mrb[0].mxu0
      %v528 = vadd.f32 0.0, %v527
      %v529 = vpop.f32.mrb[0].mxu0
      %530 = vmatprep.mubr.bf16.mxu0 0
      %531 = vmatmul.mubr.bf16.gmra.mrb[0].mxu0 %v391
      %v532 = vpop.f32.mrb[0].mxu0
      %v533 = vadd.f32 0.0, %v532
      %v534 = vpop.f32.mrb[0].mxu0
      %v535 = vpop.f32.mrb[0].mxu0
      %v536 = vadd.f32 0.0, %v535
      %v537 = vpop.f32.mrb[0].mxu0
      %538 = vmatprep.mubr.bf16.mxu0 0
      %539 = vmatmul.mubr.bf16.gmra.mrb[0].mxu0 %v394
      %v540 = vpop.f32.mrb[0].mxu0
      %v541 = vadd.f32 0.0, %v540
      %v542 = vpop.f32.mrb[0].mxu0
      %v543 = vpop.f32.mrb[0].mxu0
      %v544 = vadd.f32 0.0, %v543
      %v545 = vpop.f32.mrb[0].mxu0
      %546 = vmatprep.mubr.bf16.mxu0 0
      %547 = vmatmul.mubr.bf16.gmra.mrb[0].mxu0 %v397
      %v548 = vpop.f32.mrb[0].mxu0
      %v549 = vadd.f32 0.0, %v548
      %v550 = vpop.f32.mrb[0].mxu0
      %v551 = vpop.f32.mrb[0].mxu0
      %v552 = vadd.f32 0.0, %v551
      %v553 = vpop.f32.mrb[0].mxu0
      %554 = vmatprep.mubr.bf16.mxu0 0
      %555 = vmatmul.mubr.bf16.gmra.mrb[0].mxu0 %v400
      %v556 = vpop.f32.mrb[0].mxu0
      %v557 = vadd.f32 0.0, %v556
      %v558 = vpop.f32.mrb[0].mxu0
      %v559 = vpop.f32.mrb[0].mxu0
      %v560 = vadd.f32 0.0, %v559
      %v561 = vpop.f32.mrb[0].mxu0
      %562 = vdwg.mxu0
      %v565 = vunpack.c.l.b16 %v294
      %v566 = vunpack.c.l.b16 %v295
      %v567 = vpack.c.b16 %v566, %v565
      %v570 = vsel %vm353, %v278, 0
      %v573 = vsel %vm353, %v279, 0
      %v576 = vsel %vm353, %v280, 0
      %v579 = vsel %vm353, %v281, 0
      %v582 = vsel %vm353, %v282, 0
      %v585 = vsel %vm353, %v283, 0
      %v588 = vsel %vm353, %v284, 0
      %v591 = vsel %vm353, %v285, 0
      %v594 = vsel %vm353, %v286, 0
      %v597 = vsel %vm353, %v287, 0
      %v600 = vsel %vm353, %v288, 0
      %v603 = vsel %vm353, %v289, 0
      %v606 = vsel %vm353, %v290, 0
      %v609 = vsel %vm353, %v291, 0
      %v612 = vsel %vm353, %v292, 0
      %v615 = vsel %vm353, %v293, 0
      %617 = vmatprep.subr.bf16.mxu0 0
      %618 = vmatpush1.bf16.msra.mxu0 %v567
      %619 = vmatprep.subr.bf16.mxu0 0
      %620 = vmatpush1.bf16.msra.mxu0 0
      %621 = vmatprep.subr.bf16.mxu0 0
      %622 = vmatpush1.bf16.msra.mxu0 0
      %623 = vmatprep.subr.bf16.mxu0 0
      %624 = vmatpush1.bf16.msra.mxu0 0
      %625 = vmatprep.subr.bf16.mxu0 0
      %626 = vmatpush1.bf16.msra.mxu0 0
      %627 = vmatprep.subr.bf16.mxu0 0
      %628 = vmatpush1.bf16.msra.mxu0 0
      %629 = vmatprep.subr.bf16.mxu0 0
      %630 = vmatpush1.bf16.msra.mxu0 0
      %631 = vmatprep.subr.bf16.mxu0 0
      %632 = vmatpush1.bf16.msra.mxu0 0
      %633 = vmatprep.subr.bf16.mxu0 0
      %634 = vmatpush1.bf16.msra.mxu0 0
      %635 = vmatprep.subr.bf16.mxu0 0
      %636 = vmatpush1.bf16.msra.mxu0 0
      %637 = vmatprep.subr.bf16.mxu0 0
      %638 = vmatpush1.bf16.msra.mxu0 0
      %639 = vmatprep.subr.bf16.mxu0 0
      %640 = vmatpush1.bf16.msra.mxu0 0
      %641 = vmatprep.subr.bf16.mxu0 0
      %642 = vmatpush1.bf16.msra.mxu0 0
      %643 = vmatprep.subr.bf16.mxu0 0
      %644 = vmatpush1.bf16.msra.mxu0 0
      %645 = vmatprep.subr.bf16.mxu0 0
      %646 = vmatpush1.bf16.msra.mxu0 0
      %647 = vmatprep.subr.bf16.mxu0 0
      %648 = vmatpush1.bf16.msra.mxu0 0
      %649 = vmatprep.mubr.bf16.mxu0 0
      %650 = vmatmul.mubr.bf16.gmra.mrb[0].mxu0 %v570
      %v651 = vpop.f32.mrb[0].mxu0
      %v652 = vadd.f32 %v437, %v651
      %v653 = vpop.f32.mrb[0].mxu0
      %v654 = vpop.f32.mrb[0].mxu0
      %v655 = vadd.f32 %v440, %v654
      %v656 = vpop.f32.mrb[0].mxu0
      %657 = vmatprep.mubr.bf16.mxu0 0
      %658 = vmatmul.mubr.bf16.gmra.mrb[0].mxu0 %v573
      %v659 = vpop.f32.mrb[0].mxu0
      %v660 = vadd.f32 %v445, %v659
      %v661 = vpop.f32.mrb[0].mxu0
      %v662 = vpop.f32.mrb[0].mxu0
      %v663 = vadd.f32 %v448, %v662
      %v664 = vpop.f32.mrb[0].mxu0
      %665 = vmatprep.mubr.bf16.mxu0 0
      %666 = vmatmul.mubr.bf16.gmra.mrb[0].mxu0 %v576
      %v667 = vpop.f32.mrb[0].mxu0
      %v668 = vadd.f32 %v453, %v667
      %v669 = vpop.f32.mrb[0].mxu0
      %v670 = vpop.f32.mrb[0].mxu0
      %v671 = vadd.f32 %v456, %v670
      %v672 = vpop.f32.mrb[0].mxu0
      %673 = vmatprep.mubr.bf16.mxu0 0
      %674 = vmatmul.mubr.bf16.gmra.mrb[0].mxu0 %v579
      %v675 = vpop.f32.mrb[0].mxu0
      %v676 = vadd.f32 %v461, %v675
      %v677 = vpop.f32.mrb[0].mxu0
      %v678 = vpop.f32.mrb[0].mxu0
      %v679 = vadd.f32 %v464, %v678
      %v680 = vpop.f32.mrb[0].mxu0
      %681 = vmatprep.mubr.bf16.mxu0 0
      %682 = vmatmul.mubr.bf16.gmra.mrb[0].mxu0 %v582
      %v683 = vpop.f32.mrb[0].mxu0
      %v684 = vadd.f32 %v469, %v683
      %v685 = vpop.f32.mrb[0].mxu0
      %v686 = vpop.f32.mrb[0].mxu0
      %v687 = vadd.f32 %v472, %v686
      %v688 = vpop.f32.mrb[0].mxu0
      %689 = vmatprep.mubr.bf16.mxu0 0
      %690 = vmatmul.mubr.bf16.gmra.mrb[0].mxu0 %v585
      %v691 = vpop.f32.mrb[0].mxu0
      %v692 = vadd.f32 %v477, %v691
      %v693 = vpop.f32.mrb[0].mxu0
      %v694 = vpop.f32.mrb[0].mxu0
      %v695 = vadd.f32 %v480, %v694
      %v696 = vpop.f32.mrb[0].mxu0
      %697 = vmatprep.mubr.bf16.mxu0 0
      %698 = vmatmul.mubr.bf16.gmra.mrb[0].mxu0 %v588
      %v699 = vpop.f32.mrb[0].mxu0
      %v700 = vadd.f32 %v485, %v699
      %v701 = vpop.f32.mrb[0].mxu0
      %v702 = vpop.f32.mrb[0].mxu0
      %v703 = vadd.f32 %v488, %v702
      %v704 = vpop.f32.mrb[0].mxu0
      %705 = vmatprep.mubr.bf16.mxu0 0
      %706 = vmatmul.mubr.bf16.gmra.mrb[0].mxu0 %v591
      %v707 = vpop.f32.mrb[0].mxu0
      %v708 = vadd.f32 %v493, %v707
      %v709 = vpop.f32.mrb[0].mxu0
      %v710 = vpop.f32.mrb[0].mxu0
      %v711 = vadd.f32 %v496, %v710
      %v712 = vpop.f32.mrb[0].mxu0
      %713 = vmatprep.mubr.bf16.mxu0 0
      %714 = vmatmul.mubr.bf16.gmra.mrb[0].mxu0 %v594
      %v715 = vpop.f32.mrb[0].mxu0
      %v716 = vadd.f32 %v501, %v715
      %v717 = vpop.f32.mrb[0].mxu0
      %v718 = vpop.f32.mrb[0].mxu0
      %v719 = vadd.f32 %v504, %v718
      %v720 = vpop.f32.mrb[0].mxu0
      %721 = vmatprep.mubr.bf16.mxu0 0
      %722 = vmatmul.mubr.bf16.gmra.mrb[0].mxu0 %v597
      %v723 = vpop.f32.mrb[0].mxu0
      %v724 = vadd.f32 %v509, %v723
      %v725 = vpop.f32.mrb[0].mxu0
      %v726 = vpop.f32.mrb[0].mxu0
      %v727 = vadd.f32 %v512, %v726
      %v728 = vpop.f32.mrb[0].mxu0
      %729 = vmatprep.mubr.bf16.mxu0 0
      %730 = vmatmul.mubr.bf16.gmra.mrb[0].mxu0 %v600
      %v731 = vpop.f32.mrb[0].mxu0
      %v732 = vadd.f32 %v517, %v731
      %v733 = vpop.f32.mrb[0].mxu0
      %v734 = vpop.f32.mrb[0].mxu0
      %v735 = vadd.f32 %v520, %v734
      %v736 = vpop.f32.mrb[0].mxu0
      %737 = vmatprep.mubr.bf16.mxu0 0
      %738 = vmatmul.mubr.bf16.gmra.mrb[0].mxu0 %v603
      %v739 = vpop.f32.mrb[0].mxu0
      %v740 = vadd.f32 %v525, %v739
      %v741 = vpop.f32.mrb[0].mxu0
      %v742 = vpop.f32.mrb[0].mxu0
      %v743 = vadd.f32 %v528, %v742
      %v744 = vpop.f32.mrb[0].mxu0
      %745 = vmatprep.mubr.bf16.mxu0 0
      %746 = vmatmul.mubr.bf16.gmra.mrb[0].mxu0 %v606
      %v747 = vpop.f32.mrb[0].mxu0
      %v748 = vadd.f32 %v533, %v747
      %v749 = vpop.f32.mrb[0].mxu0
      %v750 = vpop.f32.mrb[0].mxu0
      %v751 = vadd.f32 %v536, %v750
      %v752 = vpop.f32.mrb[0].mxu0
      %753 = vmatprep.mubr.bf16.mxu0 0
      %754 = vmatmul.mubr.bf16.gmra.mrb[0].mxu0 %v609
      %v755 = vpop.f32.mrb[0].mxu0
      %v756 = vadd.f32 %v541, %v755
      %v757 = vpop.f32.mrb[0].mxu0
      %v758 = vpop.f32.mrb[0].mxu0
      %v759 = vadd.f32 %v544, %v758
      %v760 = vpop.f32.mrb[0].mxu0
      %761 = vmatprep.mubr.bf16.mxu0 0
      %762 = vmatmul.mubr.bf16.gmra.mrb[0].mxu0 %v612
      %v763 = vpop.f32.mrb[0].mxu0
      %v764 = vadd.f32 %v549, %v763
      %v765 = vpop.f32.mrb[0].mxu0
      %v766 = vpop.f32.mrb[0].mxu0
      %v767 = vadd.f32 %v552, %v766
      %v768 = vpop.f32.mrb[0].mxu0
      %769 = vmatprep.mubr.bf16.mxu0 0
      %770 = vmatmul.mubr.bf16.gmra.mrb[0].mxu0 %v615
      %v771 = vpop.f32.mrb[0].mxu0
      %v772 = vadd.f32 %v557, %v771
      %v773 = vpop.f32.mrb[0].mxu0
      %v774 = vpop.f32.mrb[0].mxu0
      %v775 = vadd.f32 %v560, %v774
      %v776 = vpop.f32.mrb[0].mxu0
      %777 = vdwg.mxu0
      %v778 = vld [vmem:[%s234 + $0x2] sm:$0xff]
      %v779 = vld [vmem:[%s234 + $0xa] sm:$0xff]
      %v780 = vld [vmem:[%s234 + $0x1a] sm:$0xff]
      %v781 = vld [vmem:[%s234 + $0x22] sm:$0xff]
      %v782 = vld [vmem:[%s234 + $0x32] sm:$0xff]
      %v783 = vld [vmem:[%s234 + $0x3a] sm:$0xff]
      %v784 = vld [vmem:[%s234 + $0x4a] sm:$0xff]
      %v785 = vld [vmem:[%s234 + $0x52] sm:$0xff]
      %v786 = vld [vmem:[%s234 + $0x62] sm:$0xff]
      %v787 = vld [vmem:[%s234 + $0x6a] sm:$0xff]
      %v788 = vld [vmem:[%s234 + $0x7a] sm:$0xff]
      %v789 = vld [vmem:[%s234 + $0x82] sm:$0xff]
      %v790 = vld [vmem:[%s234 + $0x92] sm:$0xff]
      %v791 = vld [vmem:[%s234 + $0x9a] sm:$0xff]
      %v792 = vld [vmem:[%s234 + $0xaa] sm:$0xff]
      %v793 = vld [vmem:[%s234 + $0xb2] sm:$0xff]
      %v794 = vld [vmem:[%s234 + $0xc2] sm:$0xff]
      %v795 = vld [vmem:[%s234 + $0xca] sm:$0xff]
      %v796 = vld [vmem:[%s234 + $0xda] sm:$0xff]
      %v797 = vld [vmem:[%s234 + $0xe2] sm:$0xff]
      %v798 = vld [vmem:[%s234 + $0xf2] sm:$0xff]
      %v799 = vld [vmem:[%s234 + $0xfa] sm:$0xff]
      %v800 = vld [vmem:[%s234 + $0x10a] sm:$0xff]
      %v801 = vld [vmem:[%s234 + $0x112] sm:$0xff]
      %v802 = vld [vmem:[%s234 + $0x122] sm:$0xff]
      %v803 = vld [vmem:[%s234 + $0x12a] sm:$0xff]
      %v804 = vld [vmem:[%s234 + $0x13a] sm:$0xff]
      %v805 = vld [vmem:[%s234 + $0x142] sm:$0xff]
      %v806 = vld [vmem:[%s234 + $0x152] sm:$0xff]
      %v807 = vld [vmem:[%s234 + $0x15a] sm:$0xff]
      %v808 = vld [vmem:[%s234 + $0x16a] sm:$0xff]
      %v809 = vld [vmem:[%s234 + $0x172] sm:$0xff]
      %v810 = vpack.c.bf16 %v779, %v778
      %v811 = vpack.c.bf16 %v781, %v780
      %v812 = vpack.c.bf16 %v783, %v782
      %v813 = vpack.c.bf16 %v785, %v784
      %v814 = vpack.c.bf16 %v787, %v786
      %v815 = vpack.c.bf16 %v789, %v788
      %v816 = vpack.c.bf16 %v791, %v790
      %v817 = vpack.c.bf16 %v793, %v792
      %v818 = vpack.c.bf16 %v795, %v794
      %v819 = vpack.c.bf16 %v797, %v796
      %v820 = vpack.c.bf16 %v799, %v798
      %v821 = vpack.c.bf16 %v801, %v800
      %v822 = vpack.c.bf16 %v803, %v802
      %v823 = vpack.c.bf16 %v805, %v804
      %v824 = vpack.c.bf16 %v807, %v806
      %v825 = vpack.c.bf16 %v809, %v808
      %s826 = scalar_lea.vmem %s1, 16
      %v827 = vld [vmem:[%s826] sm:$0xf]
      %v828 = vld [vmem:[%s826 + $0x4] sm:$0xf]
      %v831 = vunpack.c.l.b16 %v827
      %v832 = vunpack.c.l.b16 %v828
      %v833 = vpack.c.b16 %v832, %v831
      %v836 = vsel %vm353, %v810, 0
      %v839 = vsel %vm353, %v811, 0
      %v842 = vsel %vm353, %v812, 0
      %v845 = vsel %vm353, %v813, 0
      %v848 = vsel %vm353, %v814, 0
      %v851 = vsel %vm353, %v815, 0
      %v854 = vsel %vm353, %v816, 0
      %v857 = vsel %vm353, %v817, 0
      %v860 = vsel %vm353, %v818, 0
      %v863 = vsel %vm353, %v819, 0
      %v866 = vsel %vm353, %v820, 0
      %v869 = vsel %vm353, %v821, 0
      %v872 = vsel %vm353, %v822, 0
      %v875 = vsel %vm353, %v823, 0
      %v878 = vsel %vm353, %v824, 0
      %v881 = vsel %vm353, %v825, 0
      %883 = vmatprep.subr.bf16.mxu0 0
      %884 = vmatpush1.bf16.msra.mxu0 %v833
      %885 = vmatprep.subr.bf16.mxu0 0
      %886 = vmatpush1.bf16.msra.mxu0 0
      %887 = vmatprep.subr.bf16.mxu0 0
      %888 = vmatpush1.bf16.msra.mxu0 0
      %889 = vmatprep.subr.bf16.mxu0 0
      %890 = vmatpush1.bf16.msra.mxu0 0
      %891 = vmatprep.subr.bf16.mxu0 0
      %892 = vmatpush1.bf16.msra.mxu0 0
      %893 = vmatprep.subr.bf16.mxu0 0
      %894 = vmatpush1.bf16.msra.mxu0 0
      %895 = vmatprep.subr.bf16.mxu0 0
      %896 = vmatpush1.bf16.msra.mxu0 0
      %897 = vmatprep.subr.bf16.mxu0 0
      %898 = vmatpush1.bf16.msra.mxu0 0
      %899 = vmatprep.subr.bf16.mxu0 0
      %900 = vmatpush1.bf16.msra.mxu0 0
      %901 = vmatprep.subr.bf16.mxu0 0
      %902 = vmatpush1.bf16.msra.mxu0 0
      %903 = vmatprep.subr.bf16.mxu0 0
      %904 = vmatpush1.bf16.msra.mxu0 0
      %905 = vmatprep.subr.bf16.mxu0 0
      %906 = vmatpush1.bf16.msra.mxu0 0
      %907 = vmatprep.subr.bf16.mxu0 0
      %908 = vmatpush1.bf16.msra.mxu0 0
      %909 = vmatprep.subr.bf16.mxu0 0
      %910 = vmatpush1.bf16.msra.mxu0 0
      %911 = vmatprep.subr.bf16.mxu0 0
      %912 = vmatpush1.bf16.msra.mxu0 0
      %913 = vmatprep.subr.bf16.mxu0 0
      %914 = vmatpush1.bf16.msra.mxu0 0
      %915 = vmatprep.mubr.bf16.mxu0 0
      %916 = vmatmul.mubr.bf16.gmra.mrb[0].mxu0 %v836
      %v917 = vpop.f32.mrb[0].mxu0
      %v918 = vadd.f32 0.0, %v917
      %v919 = vpop.f32.mrb[0].mxu0
      %v920 = vpop.f32.mrb[0].mxu0
      %v921 = vadd.f32 0.0, %v920
      %v922 = vpop.f32.mrb[0].mxu0
      %923 = vmatprep.mubr.bf16.mxu0 0
      %924 = vmatmul.mubr.bf16.gmra.mrb[0].mxu0 %v839
      %v925 = vpop.f32.mrb[0].mxu0
      %v926 = vadd.f32 0.0, %v925
      %v927 = vpop.f32.mrb[0].mxu0
      %v928 = vpop.f32.mrb[0].mxu0
      %v929 = vadd.f32 0.0, %v928
      %v930 = vpop.f32.mrb[0].mxu0
      %931 = vmatprep.mubr.bf16.mxu0 0
      %932 = vmatmul.mubr.bf16.gmra.mrb[0].mxu0 %v842
      %v933 = vpop.f32.mrb[0].mxu0
      %v934 = vadd.f32 0.0, %v933
      %v935 = vpop.f32.mrb[0].mxu0
      %v936 = vpop.f32.mrb[0].mxu0
      %v937 = vadd.f32 0.0, %v936
      %v938 = vpop.f32.mrb[0].mxu0
      %939 = vmatprep.mubr.bf16.mxu0 0
      %940 = vmatmul.mubr.bf16.gmra.mrb[0].mxu0 %v845
      %v941 = vpop.f32.mrb[0].mxu0
      %v942 = vadd.f32 0.0, %v941
      %v943 = vpop.f32.mrb[0].mxu0
      %v944 = vpop.f32.mrb[0].mxu0
      %v945 = vadd.f32 0.0, %v944
      %v946 = vpop.f32.mrb[0].mxu0
      %947 = vmatprep.mubr.bf16.mxu0 0
      %948 = vmatmul.mubr.bf16.gmra.mrb[0].mxu0 %v848
      %v949 = vpop.f32.mrb[0].mxu0
      %v950 = vadd.f32 0.0, %v949
      %v951 = vpop.f32.mrb[0].mxu0
      %v952 = vpop.f32.mrb[0].mxu0
      %v953 = vadd.f32 0.0, %v952
      %v954 = vpop.f32.mrb[0].mxu0
      %955 = vmatprep.mubr.bf16.mxu0 0
      %956 = vmatmul.mubr.bf16.gmra.mrb[0].mxu0 %v851
      %v957 = vpop.f32.mrb[0].mxu0
      %v958 = vadd.f32 0.0, %v957
      %v959 = vpop.f32.mrb[0].mxu0
      %v960 = vpop.f32.mrb[0].mxu0
      %v961 = vadd.f32 0.0, %v960
      %v962 = vpop.f32.mrb[0].mxu0
      %963 = vmatprep.mubr.bf16.mxu0 0
      %964 = vmatmul.mubr.bf16.gmra.mrb[0].mxu0 %v854
      %v965 = vpop.f32.mrb[0].mxu0
      %v966 = vadd.f32 0.0, %v965
      %v967 = vpop.f32.mrb[0].mxu0
      %v968 = vpop.f32.mrb[0].mxu0
      %v969 = vadd.f32 0.0, %v968
      %v970 = vpop.f32.mrb[0].mxu0
      %971 = vmatprep.mubr.bf16.mxu0 0
      %972 = vmatmul.mubr.bf16.gmra.mrb[0].mxu0 %v857
      %v973 = vpop.f32.mrb[0].mxu0
      %v974 = vadd.f32 0.0, %v973
      %v975 = vpop.f32.mrb[0].mxu0
      %v976 = vpop.f32.mrb[0].mxu0
      %v977 = vadd.f32 0.0, %v976
      %v978 = vpop.f32.mrb[0].mxu0
      %979 = vmatprep.mubr.bf16.mxu0 0
      %980 = vmatmul.mubr.bf16.gmra.mrb[0].mxu0 %v860
      %v981 = vpop.f32.mrb[0].mxu0
      %v982 = vadd.f32 0.0, %v981
      %v983 = vpop.f32.mrb[0].mxu0
      %v984 = vpop.f32.mrb[0].mxu0
      %v985 = vadd.f32 0.0, %v984
      %v986 = vpop.f32.mrb[0].mxu0
      %987 = vmatprep.mubr.bf16.mxu0 0
      %988 = vmatmul.mubr.bf16.gmra.mrb[0].mxu0 %v863
      %v989 = vpop.f32.mrb[0].mxu0
      %v990 = vadd.f32 0.0, %v989
      %v991 = vpop.f32.mrb[0].mxu0
      %v992 = vpop.f32.mrb[0].mxu0
      %v993 = vadd.f32 0.0, %v992
      %v994 = vpop.f32.mrb[0].mxu0
      %995 = vmatprep.mubr.bf16.mxu0 0
      %996 = vmatmul.mubr.bf16.gmra.mrb[0].mxu0 %v866
      %v997 = vpop.f32.mrb[0].mxu0
      %v998 = vadd.f32 0.0, %v997
      %v999 = vpop.f32.mrb[0].mxu0
      %v1000 = vpop.f32.mrb[0].mxu0
      %v1001 = vadd.f32 0.0, %v1000
      %v1002 = vpop.f32.mrb[0].mxu0
      %1003 = vmatprep.mubr.bf16.mxu0 0
      %1004 = vmatmul.mubr.bf16.gmra.mrb[0].mxu0 %v869
      %v1005 = vpop.f32.mrb[0].mxu0
      %v1006 = vadd.f32 0.0, %v1005
      %v1007 = vpop.f32.mrb[0].mxu0
      %v1008 = vpop.f32.mrb[0].mxu0
      %v1009 = vadd.f32 0.0, %v1008
      %v1010 = vpop.f32.mrb[0].mxu0
      %1011 = vmatprep.mubr.bf16.mxu0 0
      %1012 = vmatmul.mubr.bf16.gmra.mrb[0].mxu0 %v872
      %v1013 = vpop.f32.mrb[0].mxu0
      %v1014 = vadd.f32 0.0, %v1013
      %v1015 = vpop.f32.mrb[0].mxu0
      %v1016 = vpop.f32.mrb[0].mxu0
      %v1017 = vadd.f32 0.0, %v1016
      %v1018 = vpop.f32.mrb[0].mxu0
      %1019 = vmatprep.mubr.bf16.mxu0 0
      %1020 = vmatmul.mubr.bf16.gmra.mrb[0].mxu0 %v875
      %v1021 = vpop.f32.mrb[0].mxu0
      %v1022 = vadd.f32 0.0, %v1021
      %v1023 = vpop.f32.mrb[0].mxu0
      %v1024 = vpop.f32.mrb[0].mxu0
      %v1025 = vadd.f32 0.0, %v1024
      %v1026 = vpop.f32.mrb[0].mxu0
      %1027 = vmatprep.mubr.bf16.mxu0 0
      %1028 = vmatmul.mubr.bf16.gmra.mrb[0].mxu0 %v878
      %v1029 = vpop.f32.mrb[0].mxu0
      %v1030 = vadd.f32 0.0, %v1029
      %v1031 = vpop.f32.mrb[0].mxu0
      %v1032 = vpop.f32.mrb[0].mxu0
      %v1033 = vadd.f32 0.0, %v1032
      %v1034 = vpop.f32.mrb[0].mxu0
      %1035 = vmatprep.mubr.bf16.mxu0 0
      %1036 = vmatmul.mubr.bf16.gmra.mrb[0].mxu0 %v881
      %v1037 = vpop.f32.mrb[0].mxu0
      %v1038 = vadd.f32 0.0, %v1037
      %v1039 = vpop.f32.mrb[0].mxu0
      %v1040 = vpop.f32.mrb[0].mxu0
      %v1041 = vadd.f32 0.0, %v1040
      %v1042 = vpop.f32.mrb[0].mxu0
      %1043 = vdwg.mxu0
      %v1044 = vadd.f32 %v652, %v918
      %v1045 = vadd.f32 %v655, %v921
      %v1046 = vadd.f32 %v660, %v926
      %v1047 = vadd.f32 %v663, %v929
      %v1048 = vadd.f32 %v668, %v934
      %v1049 = vadd.f32 %v671, %v937
      %v1050 = vadd.f32 %v676, %v942
      %v1051 = vadd.f32 %v679, %v945
      %v1052 = vadd.f32 %v684, %v950
      %v1053 = vadd.f32 %v687, %v953
      %v1054 = vadd.f32 %v692, %v958
      %v1055 = vadd.f32 %v695, %v961
      %v1056 = vadd.f32 %v700, %v966
      %v1057 = vadd.f32 %v703, %v969
      %v1058 = vadd.f32 %v708, %v974
      %v1059 = vadd.f32 %v711, %v977
      %v1060 = vadd.f32 %v716, %v982
      %v1061 = vadd.f32 %v719, %v985
      %v1062 = vadd.f32 %v724, %v990
      %v1063 = vadd.f32 %v727, %v993
      %v1064 = vadd.f32 %v732, %v998
      %v1065 = vadd.f32 %v735, %v1001
      %v1066 = vadd.f32 %v740, %v1006
      %v1067 = vadd.f32 %v743, %v1009
      %v1068 = vadd.f32 %v748, %v1014
      %v1069 = vadd.f32 %v751, %v1017
      %v1070 = vadd.f32 %v756, %v1022
      %v1071 = vadd.f32 %v759, %v1025
      %v1072 = vadd.f32 %v764, %v1030
      %v1073 = vadd.f32 %v767, %v1033
      %v1074 = vadd.f32 %v772, %v1038
      %v1075 = vadd.f32 %v775, %v1041
      %s1076 = scalar_lea.vmem %s234, 24
      %v1077 = vld [vmem:[%s1076] sm:$0xff]
      %v1078 = vld [vmem:[%s1076 + $0x8] sm:$0xff]
      %v1079 = vld [vmem:[%s1076 + $0x18] sm:$0xff]
      %v1080 = vld [vmem:[%s1076 + $0x20] sm:$0xff]
      %v1081 = vld [vmem:[%s1076 + $0x30] sm:$0xff]
      %v1082 = vld [vmem:[%s1076 + $0x38] sm:$0xff]
      %v1083 = vld [vmem:[%s1076 + $0x48] sm:$0xff]
      %v1084 = vld [vmem:[%s1076 + $0x50] sm:$0xff]
      %v1085 = vld [vmem:[%s1076 + $0x60] sm:$0xff]
      %v1086 = vld [vmem:[%s1076 + $0x68] sm:$0xff]
      %v1087 = vld [vmem:[%s1076 + $0x78] sm:$0xff]
      %v1088 = vld [vmem:[%s1076 + $0x80] sm:$0xff]
      %v1089 = vld [vmem:[%s1076 + $0x90] sm:$0xff]
      %v1090 = vld [vmem:[%s1076 + $0x98] sm:$0xff]
      %v1091 = vld [vmem:[%s1076 + $0xa8] sm:$0xff]
      %v1092 = vld [vmem:[%s1076 + $0xb0] sm:$0xff]
      %v1093 = vld [vmem:[%s1076 + $0xc0] sm:$0xff]
      %v1094 = vld [vmem:[%s1076 + $0xc8] sm:$0xff]
      %v1095 = vld [vmem:[%s1076 + $0xd8] sm:$0xff]
      %v1096 = vld [vmem:[%s1076 + $0xe0] sm:$0xff]
      %v1097 = vld [vmem:[%s1076 + $0xf0] sm:$0xff]
      %v1098 = vld [vmem:[%s1076 + $0xf8] sm:$0xff]
      %v1099 = vld [vmem:[%s1076 + $0x108] sm:$0xff]
      %v1100 = vld [vmem:[%s1076 + $0x110] sm:$0xff]
      %v1101 = vld [vmem:[%s1076 + $0x120] sm:$0xff]
      %v1102 = vld [vmem:[%s1076 + $0x128] sm:$0xff]
      %v1103 = vld [vmem:[%s1076 + $0x138] sm:$0xff]
      %v1104 = vld [vmem:[%s1076 + $0x140] sm:$0xff]
      %v1105 = vld [vmem:[%s1076 + $0x150] sm:$0xff]
      %v1106 = vld [vmem:[%s1076 + $0x158] sm:$0xff]
      %v1107 = vld [vmem:[%s1076 + $0x168] sm:$0xff]
      %v1108 = vld [vmem:[%s1076 + $0x170] sm:$0xff]
      %v1109 = vpack.c.bf16 %v1078, %v1077
      %v1110 = vpack.c.bf16 %v1080, %v1079
      %v1111 = vpack.c.bf16 %v1082, %v1081
      %v1112 = vpack.c.bf16 %v1084, %v1083
      %v1113 = vpack.c.bf16 %v1086, %v1085
      %v1114 = vpack.c.bf16 %v1088, %v1087
      %v1115 = vpack.c.bf16 %v1090, %v1089
      %v1116 = vpack.c.bf16 %v1092, %v1091
      %v1117 = vpack.c.bf16 %v1094, %v1093
      %v1118 = vpack.c.bf16 %v1096, %v1095
      %v1119 = vpack.c.bf16 %v1098, %v1097
      %v1120 = vpack.c.bf16 %v1100, %v1099
      %v1121 = vpack.c.bf16 %v1102, %v1101
      %v1122 = vpack.c.bf16 %v1104, %v1103
      %v1123 = vpack.c.bf16 %v1106, %v1105
      %v1124 = vpack.c.bf16 %v1108, %v1107
      %s1125 = scalar_lea.vmem %s1, 24
      %v1126 = vld [vmem:[%s1125] sm:$0xf]
      %v1127 = vld [vmem:[%s1125 + $0x4] sm:$0xf]
      %v1130 = vunpack.c.l.b16 %v1126
      %v1131 = vunpack.c.l.b16 %v1127
      %v1132 = vpack.c.b16 %v1131, %v1130
      %v1135 = vsel %vm353, %v1109, 0
      %v1138 = vsel %vm353, %v1110, 0
      %v1141 = vsel %vm353, %v1111, 0
      %v1144 = vsel %vm353, %v1112, 0
      %v1147 = vsel %vm353, %v1113, 0
      %v1150 = vsel %vm353, %v1114, 0
      %v1153 = vsel %vm353, %v1115, 0
      %v1156 = vsel %vm353, %v1116, 0
      %v1159 = vsel %vm353, %v1117, 0
      %v1162 = vsel %vm353, %v1118, 0
      %v1165 = vsel %vm353, %v1119, 0
      %v1168 = vsel %vm353, %v1120, 0
      %v1171 = vsel %vm353, %v1121, 0
      %v1174 = vsel %vm353, %v1122, 0
      %v1177 = vsel %vm353, %v1123, 0
      %v1180 = vsel %vm353, %v1124, 0
      %1182 = vmatprep.subr.bf16.mxu0 0
      %1183 = vmatpush1.bf16.msra.mxu0 %v1132
      %1184 = vmatprep.subr.bf16.mxu0 0
      %1185 = vmatpush1.bf16.msra.mxu0 0
      %1186 = vmatprep.subr.bf16.mxu0 0
      %1187 = vmatpush1.bf16.msra.mxu0 0
      %1188 = vmatprep.subr.bf16.mxu0 0
      %1189 = vmatpush1.bf16.msra.mxu0 0
      %1190 = vmatprep.subr.bf16.mxu0 0
      %1191 = vmatpush1.bf16.msra.mxu0 0
      %1192 = vmatprep.subr.bf16.mxu0 0
      %1193 = vmatpush1.bf16.msra.mxu0 0
      %1194 = vmatprep.subr.bf16.mxu0 0
      %1195 = vmatpush1.bf16.msra.mxu0 0
      %1196 = vmatprep.subr.bf16.mxu0 0
      %1197 = vmatpush1.bf16.msra.mxu0 0
      %1198 = vmatprep.subr.bf16.mxu0 0
      %1199 = vmatpush1.bf16.msra.mxu0 0
      %1200 = vmatprep.subr.bf16.mxu0 0
      %1201 = vmatpush1.bf16.msra.mxu0 0
      %1202 = vmatprep.subr.bf16.mxu0 0
      %1203 = vmatpush1.bf16.msra.mxu0 0
      %1204 = vmatprep.subr.bf16.mxu0 0
      %1205 = vmatpush1.bf16.msra.mxu0 0
      %1206 = vmatprep.subr.bf16.mxu0 0
      %1207 = vmatpush1.bf16.msra.mxu0 0
      %1208 = vmatprep.subr.bf16.mxu0 0
      %1209 = vmatpush1.bf16.msra.mxu0 0
      %1210 = vmatprep.subr.bf16.mxu0 0
      %1211 = vmatpush1.bf16.msra.mxu0 0
      %1212 = vmatprep.subr.bf16.mxu0 0
      %1213 = vmatpush1.bf16.msra.mxu0 0
      %1214 = vmatprep.mubr.bf16.mxu0 0
      %1215 = vmatmul.mubr.bf16.gmra.mrb[0].mxu0 %v1135
      %v1216 = vpop.f32.mrb[0].mxu0
      %v1217 = vadd.f32 0.0, %v1216
      %v1218 = vpop.f32.mrb[0].mxu0
      %v1219 = vpop.f32.mrb[0].mxu0
      %v1220 = vadd.f32 0.0, %v1219
      %v1221 = vpop.f32.mrb[0].mxu0
      %1222 = vmatprep.mubr.bf16.mxu0 0
      %1223 = vmatmul.mubr.bf16.gmra.mrb[0].mxu0 %v1138
      %v1224 = vpop.f32.mrb[0].mxu0
      %v1225 = vadd.f32 0.0, %v1224
      %v1226 = vpop.f32.mrb[0].mxu0
      %v1227 = vpop.f32.mrb[0].mxu0
      %v1228 = vadd.f32 0.0, %v1227
      %v1229 = vpop.f32.mrb[0].mxu0
      %1230 = vmatprep.mubr.bf16.mxu0 0
      %1231 = vmatmul.mubr.bf16.gmra.mrb[0].mxu0 %v1141
      %v1232 = vpop.f32.mrb[0].mxu0
      %v1233 = vadd.f32 0.0, %v1232
      %v1234 = vpop.f32.mrb[0].mxu0
      %v1235 = vpop.f32.mrb[0].mxu0
      %v1236 = vadd.f32 0.0, %v1235
      %v1237 = vpop.f32.mrb[0].mxu0
      %1238 = vmatprep.mubr.bf16.mxu0 0
      %1239 = vmatmul.mubr.bf16.gmra.mrb[0].mxu0 %v1144
      %v1240 = vpop.f32.mrb[0].mxu0
      %v1241 = vadd.f32 0.0, %v1240
      %v1242 = vpop.f32.mrb[0].mxu0
      %v1243 = vpop.f32.mrb[0].mxu0
      %v1244 = vadd.f32 0.0, %v1243
      %v1245 = vpop.f32.mrb[0].mxu0
      %1246 = vmatprep.mubr.bf16.mxu0 0
      %1247 = vmatmul.mubr.bf16.gmra.mrb[0].mxu0 %v1147
      %v1248 = vpop.f32.mrb[0].mxu0
      %v1249 = vadd.f32 0.0, %v1248
      %v1250 = vpop.f32.mrb[0].mxu0
      %v1251 = vpop.f32.mrb[0].mxu0
      %v1252 = vadd.f32 0.0, %v1251
      %v1253 = vpop.f32.mrb[0].mxu0
      %1254 = vmatprep.mubr.bf16.mxu0 0
      %1255 = vmatmul.mubr.bf16.gmra.mrb[0].mxu0 %v1150
      %v1256 = vpop.f32.mrb[0].mxu0
      %v1257 = vadd.f32 0.0, %v1256
      %v1258 = vpop.f32.mrb[0].mxu0
      %v1259 = vpop.f32.mrb[0].mxu0
      %v1260 = vadd.f32 0.0, %v1259
      %v1261 = vpop.f32.mrb[0].mxu0
      %1262 = vmatprep.mubr.bf16.mxu0 0
      %1263 = vmatmul.mubr.bf16.gmra.mrb[0].mxu0 %v1153
      %v1264 = vpop.f32.mrb[0].mxu0
      %v1265 = vadd.f32 0.0, %v1264
      %v1266 = vpop.f32.mrb[0].mxu0
      %v1267 = vpop.f32.mrb[0].mxu0
      %v1268 = vadd.f32 0.0, %v1267
      %v1269 = vpop.f32.mrb[0].mxu0
      %1270 = vmatprep.mubr.bf16.mxu0 0
      %1271 = vmatmul.mubr.bf16.gmra.mrb[0].mxu0 %v1156
      %v1272 = vpop.f32.mrb[0].mxu0
      %v1273 = vadd.f32 0.0, %v1272
      %v1274 = vpop.f32.mrb[0].mxu0
      %v1275 = vpop.f32.mrb[0].mxu0
      %v1276 = vadd.f32 0.0, %v1275
      %v1277 = vpop.f32.mrb[0].mxu0
      %1278 = vmatprep.mubr.bf16.mxu0 0
      %1279 = vmatmul.mubr.bf16.gmra.mrb[0].mxu0 %v1159
      %v1280 = vpop.f32.mrb[0].mxu0
      %v1281 = vadd.f32 0.0, %v1280
      %v1282 = vpop.f32.mrb[0].mxu0
      %v1283 = vpop.f32.mrb[0].mxu0
      %v1284 = vadd.f32 0.0, %v1283
      %v1285 = vpop.f32.mrb[0].mxu0
      %1286 = vmatprep.mubr.bf16.mxu0 0
      %1287 = vmatmul.mubr.bf16.gmra.mrb[0].mxu0 %v1162
      %v1288 = vpop.f32.mrb[0].mxu0
      %v1289 = vadd.f32 0.0, %v1288
      %v1290 = vpop.f32.mrb[0].mxu0
      %v1291 = vpop.f32.mrb[0].mxu0
      %v1292 = vadd.f32 0.0, %v1291
      %v1293 = vpop.f32.mrb[0].mxu0
      %1294 = vmatprep.mubr.bf16.mxu0 0
      %1295 = vmatmul.mubr.bf16.gmra.mrb[0].mxu0 %v1165
      %v1296 = vpop.f32.mrb[0].mxu0
      %v1297 = vadd.f32 0.0, %v1296
      %v1298 = vpop.f32.mrb[0].mxu0
      %v1299 = vpop.f32.mrb[0].mxu0
      %v1300 = vadd.f32 0.0, %v1299
      %v1301 = vpop.f32.mrb[0].mxu0
      %1302 = vmatprep.mubr.bf16.mxu0 0
      %1303 = vmatmul.mubr.bf16.gmra.mrb[0].mxu0 %v1168
      %v1304 = vpop.f32.mrb[0].mxu0
      %v1305 = vadd.f32 0.0, %v1304
      %v1306 = vpop.f32.mrb[0].mxu0
      %v1307 = vpop.f32.mrb[0].mxu0
      %v1308 = vadd.f32 0.0, %v1307
      %v1309 = vpop.f32.mrb[0].mxu0
      %1310 = vmatprep.mubr.bf16.mxu0 0
      %1311 = vmatmul.mubr.bf16.gmra.mrb[0].mxu0 %v1171
      %v1312 = vpop.f32.mrb[0].mxu0
      %v1313 = vadd.f32 0.0, %v1312
      %v1314 = vpop.f32.mrb[0].mxu0
      %v1315 = vpop.f32.mrb[0].mxu0
      %v1316 = vadd.f32 0.0, %v1315
      %v1317 = vpop.f32.mrb[0].mxu0
      %1318 = vmatprep.mubr.bf16.mxu0 0
      %1319 = vmatmul.mubr.bf16.gmra.mrb[0].mxu0 %v1174
      %v1320 = vpop.f32.mrb[0].mxu0
      %v1321 = vadd.f32 0.0, %v1320
      %v1322 = vpop.f32.mrb[0].mxu0
      %v1323 = vpop.f32.mrb[0].mxu0
      %v1324 = vadd.f32 0.0, %v1323
      %v1325 = vpop.f32.mrb[0].mxu0
      %1326 = vmatprep.mubr.bf16.mxu0 0
      %1327 = vmatmul.mubr.bf16.gmra.mrb[0].mxu0 %v1177
      %v1328 = vpop.f32.mrb[0].mxu0
      %v1329 = vadd.f32 0.0, %v1328
      %v1330 = vpop.f32.mrb[0].mxu0
      %v1331 = vpop.f32.mrb[0].mxu0
      %v1332 = vadd.f32 0.0, %v1331
      %v1333 = vpop.f32.mrb[0].mxu0
      %1334 = vmatprep.mubr.bf16.mxu0 0
      %1335 = vmatmul.mubr.bf16.gmra.mrb[0].mxu0 %v1180
      %v1336 = vpop.f32.mrb[0].mxu0
      %v1337 = vadd.f32 0.0, %v1336
      %v1338 = vpop.f32.mrb[0].mxu0
      %v1339 = vpop.f32.mrb[0].mxu0
      %v1340 = vadd.f32 0.0, %v1339
      %v1341 = vpop.f32.mrb[0].mxu0
      %1342 = vdwg.mxu0
      %v1343 = vadd.f32 %v1044, %v1217
      %v1344 = vadd.f32 %v1045, %v1220
      %v1345 = vadd.f32 %v1046, %v1225
      %v1346 = vadd.f32 %v1047, %v1228
      %v1347 = vadd.f32 %v1048, %v1233
      %v1348 = vadd.f32 %v1049, %v1236
      %v1349 = vadd.f32 %v1050, %v1241
      %v1350 = vadd.f32 %v1051, %v1244
      %v1351 = vadd.f32 %v1052, %v1249
      %v1352 = vadd.f32 %v1053, %v1252
      %v1353 = vadd.f32 %v1054, %v1257
      %v1354 = vadd.f32 %v1055, %v1260
      %v1355 = vadd.f32 %v1056, %v1265
      %v1356 = vadd.f32 %v1057, %v1268
      %v1357 = vadd.f32 %v1058, %v1273
      %v1358 = vadd.f32 %v1059, %v1276
      %v1359 = vadd.f32 %v1060, %v1281
      %v1360 = vadd.f32 %v1061, %v1284
      %v1361 = vadd.f32 %v1062, %v1289
      %v1362 = vadd.f32 %v1063, %v1292
      %v1363 = vadd.f32 %v1064, %v1297
      %v1364 = vadd.f32 %v1065, %v1300
      %v1365 = vadd.f32 %v1066, %v1305
      %v1366 = vadd.f32 %v1067, %v1308
      %v1367 = vadd.f32 %v1068, %v1313
      %v1368 = vadd.f32 %v1069, %v1316
      %v1369 = vadd.f32 %v1070, %v1321
      %v1370 = vadd.f32 %v1071, %v1324
      %v1371 = vadd.f32 %v1072, %v1329
      %v1372 = vadd.f32 %v1073, %v1332
      %v1373 = vadd.f32 %v1074, %v1337
      %v1374 = vadd.f32 %v1075, %v1340
      %v1375 = vld [vmem:[%s1076 + $0x1] sm:$0xff]
      %v1376 = vld [vmem:[%s1076 + $0x9] sm:$0xff]
      %v1377 = vld [vmem:[%s1076 + $0x19] sm:$0xff]
      %v1378 = vld [vmem:[%s1076 + $0x21] sm:$0xff]
      %v1379 = vld [vmem:[%s1076 + $0x31] sm:$0xff]
      %v1380 = vld [vmem:[%s1076 + $0x39] sm:$0xff]
      %v1381 = vld [vmem:[%s1076 + $0x49] sm:$0xff]
      %v1382 = vld [vmem:[%s1076 + $0x51] sm:$0xff]
      %v1383 = vld [vmem:[%s1076 + $0x61] sm:$0xff]
      %v1384 = vld [vmem:[%s1076 + $0x69] sm:$0xff]
      %v1385 = vld [vmem:[%s1076 + $0x79] sm:$0xff]
      %v1386 = vld [vmem:[%s1076 + $0x81] sm:$0xff]
      %v1387 = vld [vmem:[%s1076 + $0x91] sm:$0xff]
      %v1388 = vld [vmem:[%s1076 + $0x99] sm:$0xff]
      %v1389 = vld [vmem:[%s1076 + $0xa9] sm:$0xff]
      %v1390 = vld [vmem:[%s1076 + $0xb1] sm:$0xff]
      %v1391 = vld [vmem:[%s1076 + $0xc1] sm:$0xff]
      %v1392 = vld [vmem:[%s1076 + $0xc9] sm:$0xff]
      %v1393 = vld [vmem:[%s1076 + $0xd9] sm:$0xff]
      %v1394 = vld [vmem:[%s1076 + $0xe1] sm:$0xff]
      %v1395 = vld [vmem:[%s1076 + $0xf1] sm:$0xff]
      %v1396 = vld [vmem:[%s1076 + $0xf9] sm:$0xff]
      %v1397 = vld [vmem:[%s1076 + $0x109] sm:$0xff]
      %v1398 = vld [vmem:[%s1076 + $0x111] sm:$0xff]
      %v1399 = vld [vmem:[%s1076 + $0x121] sm:$0xff]
      %v1400 = vld [vmem:[%s1076 + $0x129] sm:$0xff]
      %v1401 = vld [vmem:[%s1076 + $0x139] sm:$0xff]
      %v1402 = vld [vmem:[%s1076 + $0x141] sm:$0xff]
      %v1403 = vld [vmem:[%s1076 + $0x151] sm:$0xff]
      %v1404 = vld [vmem:[%s1076 + $0x159] sm:$0xff]
      %v1405 = vld [vmem:[%s1076 + $0x169] sm:$0xff]
      %v1406 = vld [vmem:[%s1076 + $0x171] sm:$0xff]
      %v1407 = vpack.c.bf16 %v1376, %v1375
      %v1408 = vpack.c.bf16 %v1378, %v1377
      %v1409 = vpack.c.bf16 %v1380, %v1379
      %v1410 = vpack.c.bf16 %v1382, %v1381
      %v1411 = vpack.c.bf16 %v1384, %v1383
      %v1412 = vpack.c.bf16 %v1386, %v1385
      %v1413 = vpack.c.bf16 %v1388, %v1387
      %v1414 = vpack.c.bf16 %v1390, %v1389
      %v1415 = vpack.c.bf16 %v1392, %v1391
      %v1416 = vpack.c.bf16 %v1394, %v1393
      %v1417 = vpack.c.bf16 %v1396, %v1395
      %v1418 = vpack.c.bf16 %v1398, %v1397
      %v1419 = vpack.c.bf16 %v1400, %v1399
      %v1420 = vpack.c.bf16 %v1402, %v1401
      %v1421 = vpack.c.bf16 %v1404, %v1403
      %v1422 = vpack.c.bf16 %v1406, %v1405
      %s1423 = scalar_lea.vmem %s1, 32
      %v1424 = vld [vmem:[%s1423] sm:$0xf]
      %v1425 = vld [vmem:[%s1423 + $0x4] sm:$0xf]
      %v1428 = vunpack.c.l.b16 %v1424
      %v1429 = vunpack.c.l.b16 %v1425
      %v1430 = vpack.c.b16 %v1429, %v1428
      %v1433 = vsel %vm353, %v1407, 0
      %v1436 = vsel %vm353, %v1408, 0
      %v1439 = vsel %vm353, %v1409, 0
      %v1442 = vsel %vm353, %v1410, 0
      %v1445 = vsel %vm353, %v1411, 0
      %v1448 = vsel %vm353, %v1412, 0
      %v1451 = vsel %vm353, %v1413, 0
      %v1454 = vsel %vm353, %v1414, 0
      %v1457 = vsel %vm353, %v1415, 0
      %v1460 = vsel %vm353, %v1416, 0
      %v1463 = vsel %vm353, %v1417, 0
      %v1466 = vsel %vm353, %v1418, 0
      %v1469 = vsel %vm353, %v1419, 0
      %v1472 = vsel %vm353, %v1420, 0
      %v1475 = vsel %vm353, %v1421, 0
      %v1478 = vsel %vm353, %v1422, 0
      %1480 = vmatprep.subr.bf16.mxu0 0
      %1481 = vmatpush1.bf16.msra.mxu0 %v1430
      %1482 = vmatprep.subr.bf16.mxu0 0
      %1483 = vmatpush1.bf16.msra.mxu0 0
      %1484 = vmatprep.subr.bf16.mxu0 0
      %1485 = vmatpush1.bf16.msra.mxu0 0
      %1486 = vmatprep.subr.bf16.mxu0 0
      %1487 = vmatpush1.bf16.msra.mxu0 0
      %1488 = vmatprep.subr.bf16.mxu0 0
      %1489 = vmatpush1.bf16.msra.mxu0 0
      %1490 = vmatprep.subr.bf16.mxu0 0
      %1491 = vmatpush1.bf16.msra.mxu0 0
      %1492 = vmatprep.subr.bf16.mxu0 0
      %1493 = vmatpush1.bf16.msra.mxu0 0
      %1494 = vmatprep.subr.bf16.mxu0 0
      %1495 = vmatpush1.bf16.msra.mxu0 0
      %1496 = vmatprep.subr.bf16.mxu0 0
      %1497 = vmatpush1.bf16.msra.mxu0 0
      %1498 = vmatprep.subr.bf16.mxu0 0
      %1499 = vmatpush1.bf16.msra.mxu0 0
      %1500 = vmatprep.subr.bf16.mxu0 0
      %1501 = vmatpush1.bf16.msra.mxu0 0
      %1502 = vmatprep.subr.bf16.mxu0 0
      %1503 = vmatpush1.bf16.msra.mxu0 0
      %1504 = vmatprep.subr.bf16.mxu0 0
      %1505 = vmatpush1.bf16.msra.mxu0 0
      %1506 = vmatprep.subr.bf16.mxu0 0
      %1507 = vmatpush1.bf16.msra.mxu0 0
      %1508 = vmatprep.subr.bf16.mxu0 0
      %1509 = vmatpush1.bf16.msra.mxu0 0
      %1510 = vmatprep.subr.bf16.mxu0 0
      %1511 = vmatpush1.bf16.msra.mxu0 0
      %1512 = vmatprep.mubr.bf16.mxu0 0
      %1513 = vmatmul.mubr.bf16.gmra.mrb[0].mxu0 %v1433
      %v1514 = vpop.f32.mrb[0].mxu0
      %v1515 = vadd.f32 0.0, %v1514
      %v1516 = vpop.f32.mrb[0].mxu0
      %v1517 = vpop.f32.mrb[0].mxu0
      %v1518 = vadd.f32 0.0, %v1517
      %v1519 = vpop.f32.mrb[0].mxu0
      %1520 = vmatprep.mubr.bf16.mxu0 0
      %1521 = vmatmul.mubr.bf16.gmra.mrb[0].mxu0 %v1436
      %v1522 = vpop.f32.mrb[0].mxu0
      %v1523 = vadd.f32 0.0, %v1522
      %v1524 = vpop.f32.mrb[0].mxu0
      %v1525 = vpop.f32.mrb[0].mxu0
      %v1526 = vadd.f32 0.0, %v1525
      %v1527 = vpop.f32.mrb[0].mxu0
      %1528 = vmatprep.mubr.bf16.mxu0 0
      %1529 = vmatmul.mubr.bf16.gmra.mrb[0].mxu0 %v1439
      %v1530 = vpop.f32.mrb[0].mxu0
      %v1531 = vadd.f32 0.0, %v1530
      %v1532 = vpop.f32.mrb[0].mxu0
      %v1533 = vpop.f32.mrb[0].mxu0
      %v1534 = vadd.f32 0.0, %v1533
      %v1535 = vpop.f32.mrb[0].mxu0
      %1536 = vmatprep.mubr.bf16.mxu0 0
      %1537 = vmatmul.mubr.bf16.gmra.mrb[0].mxu0 %v1442
      %v1538 = vpop.f32.mrb[0].mxu0
      %v1539 = vadd.f32 0.0, %v1538
      %v1540 = vpop.f32.mrb[0].mxu0
      %v1541 = vpop.f32.mrb[0].mxu0
      %v1542 = vadd.f32 0.0, %v1541
      %v1543 = vpop.f32.mrb[0].mxu0
      %1544 = vmatprep.mubr.bf16.mxu0 0
      %1545 = vmatmul.mubr.bf16.gmra.mrb[0].mxu0 %v1445
      %v1546 = vpop.f32.mrb[0].mxu0
      %v1547 = vadd.f32 0.0, %v1546
      %v1548 = vpop.f32.mrb[0].mxu0
      %v1549 = vpop.f32.mrb[0].mxu0
      %v1550 = vadd.f32 0.0, %v1549
      %v1551 = vpop.f32.mrb[0].mxu0
      %1552 = vmatprep.mubr.bf16.mxu0 0
      %1553 = vmatmul.mubr.bf16.gmra.mrb[0].mxu0 %v1448
      %v1554 = vpop.f32.mrb[0].mxu0
      %v1555 = vadd.f32 0.0, %v1554
      %v1556 = vpop.f32.mrb[0].mxu0
      %v1557 = vpop.f32.mrb[0].mxu0
      %v1558 = vadd.f32 0.0, %v1557
      %v1559 = vpop.f32.mrb[0].mxu0
      %1560 = vmatprep.mubr.bf16.mxu0 0
      %1561 = vmatmul.mubr.bf16.gmra.mrb[0].mxu0 %v1451
      %v1562 = vpop.f32.mrb[0].mxu0
      %v1563 = vadd.f32 0.0, %v1562
      %v1564 = vpop.f32.mrb[0].mxu0
      %v1565 = vpop.f32.mrb[0].mxu0
      %v1566 = vadd.f32 0.0, %v1565
      %v1567 = vpop.f32.mrb[0].mxu0
      %1568 = vmatprep.mubr.bf16.mxu0 0
      %1569 = vmatmul.mubr.bf16.gmra.mrb[0].mxu0 %v1454
      %v1570 = vpop.f32.mrb[0].mxu0
      %v1571 = vadd.f32 0.0, %v1570
      %v1572 = vpop.f32.mrb[0].mxu0
      %v1573 = vpop.f32.mrb[0].mxu0
      %v1574 = vadd.f32 0.0, %v1573
      %v1575 = vpop.f32.mrb[0].mxu0
      %1576 = vmatprep.mubr.bf16.mxu0 0
      %1577 = vmatmul.mubr.bf16.gmra.mrb[0].mxu0 %v1457
      %v1578 = vpop.f32.mrb[0].mxu0
      %v1579 = vadd.f32 0.0, %v1578
      %v1580 = vpop.f32.mrb[0].mxu0
      %v1581 = vpop.f32.mrb[0].mxu0
      %v1582 = vadd.f32 0.0, %v1581
      %v1583 = vpop.f32.mrb[0].mxu0
      %1584 = vmatprep.mubr.bf16.mxu0 0
      %1585 = vmatmul.mubr.bf16.gmra.mrb[0].mxu0 %v1460
      %v1586 = vpop.f32.mrb[0].mxu0
      %v1587 = vadd.f32 0.0, %v1586
      %v1588 = vpop.f32.mrb[0].mxu0
      %v1589 = vpop.f32.mrb[0].mxu0
      %v1590 = vadd.f32 0.0, %v1589
      %v1591 = vpop.f32.mrb[0].mxu0
      %1592 = vmatprep.mubr.bf16.mxu0 0
      %1593 = vmatmul.mubr.bf16.gmra.mrb[0].mxu0 %v1463
      %v1594 = vpop.f32.mrb[0].mxu0
      %v1595 = vadd.f32 0.0, %v1594
      %v1596 = vpop.f32.mrb[0].mxu0
      %v1597 = vpop.f32.mrb[0].mxu0
      %v1598 = vadd.f32 0.0, %v1597
      %v1599 = vpop.f32.mrb[0].mxu0
      %1600 = vmatprep.mubr.bf16.mxu0 0
      %1601 = vmatmul.mubr.bf16.gmra.mrb[0].mxu0 %v1466
      %v1602 = vpop.f32.mrb[0].mxu0
      %v1603 = vadd.f32 0.0, %v1602
      %v1604 = vpop.f32.mrb[0].mxu0
      %v1605 = vpop.f32.mrb[0].mxu0
      %v1606 = vadd.f32 0.0, %v1605
      %v1607 = vpop.f32.mrb[0].mxu0
      %1608 = vmatprep.mubr.bf16.mxu0 0
      %1609 = vmatmul.mubr.bf16.gmra.mrb[0].mxu0 %v1469
      %v1610 = vpop.f32.mrb[0].mxu0
      %v1611 = vadd.f32 0.0, %v1610
      %v1612 = vpop.f32.mrb[0].mxu0
      %v1613 = vpop.f32.mrb[0].mxu0
      %v1614 = vadd.f32 0.0, %v1613
      %v1615 = vpop.f32.mrb[0].mxu0
      %1616 = vmatprep.mubr.bf16.mxu0 0
      %1617 = vmatmul.mubr.bf16.gmra.mrb[0].mxu0 %v1472
      %v1618 = vpop.f32.mrb[0].mxu0
      %v1619 = vadd.f32 0.0, %v1618
      %v1620 = vpop.f32.mrb[0].mxu0
      %v1621 = vpop.f32.mrb[0].mxu0
      %v1622 = vadd.f32 0.0, %v1621
      %v1623 = vpop.f32.mrb[0].mxu0
      %1624 = vmatprep.mubr.bf16.mxu0 0
      %1625 = vmatmul.mubr.bf16.gmra.mrb[0].mxu0 %v1475
      %v1626 = vpop.f32.mrb[0].mxu0
      %v1627 = vadd.f32 0.0, %v1626
      %v1628 = vpop.f32.mrb[0].mxu0
      %v1629 = vpop.f32.mrb[0].mxu0
      %v1630 = vadd.f32 0.0, %v1629
      %v1631 = vpop.f32.mrb[0].mxu0
      %1632 = vmatprep.mubr.bf16.mxu0 0
      %1633 = vmatmul.mubr.bf16.gmra.mrb[0].mxu0 %v1478
      %v1634 = vpop.f32.mrb[0].mxu0
      %v1635 = vadd.f32 0.0, %v1634
      %v1636 = vpop.f32.mrb[0].mxu0
      %v1637 = vpop.f32.mrb[0].mxu0
      %v1638 = vadd.f32 0.0, %v1637
      %v1639 = vpop.f32.mrb[0].mxu0
      %1640 = vdwg.mxu0
      %v1641 = vadd.f32 %v1343, %v1515
      %v1642 = vadd.f32 %v1344, %v1518
      %v1643 = vadd.f32 %v1345, %v1523
      %v1644 = vadd.f32 %v1346, %v1526
      %v1645 = vadd.f32 %v1347, %v1531
      %v1646 = vadd.f32 %v1348, %v1534
      %v1647 = vadd.f32 %v1349, %v1539
      %v1648 = vadd.f32 %v1350, %v1542
      %v1649 = vadd.f32 %v1351, %v1547
      %v1650 = vadd.f32 %v1352, %v1550
      %v1651 = vadd.f32 %v1353, %v1555
      %v1652 = vadd.f32 %v1354, %v1558
      %v1653 = vadd.f32 %v1355, %v1563
      %v1654 = vadd.f32 %v1356, %v1566
      %v1655 = vadd.f32 %v1357, %v1571
      %v1656 = vadd.f32 %v1358, %v1574
      %v1657 = vadd.f32 %v1359, %v1579
      %v1658 = vadd.f32 %v1360, %v1582
      %v1659 = vadd.f32 %v1361, %v1587
      %v1660 = vadd.f32 %v1362, %v1590
      %v1661 = vadd.f32 %v1363, %v1595
      %v1662 = vadd.f32 %v1364, %v1598
      %v1663 = vadd.f32 %v1365, %v1603
      %v1664 = vadd.f32 %v1366, %v1606
      %v1665 = vadd.f32 %v1367, %v1611
      %v1666 = vadd.f32 %v1368, %v1614
      %v1667 = vadd.f32 %v1369, %v1619
      %v1668 = vadd.f32 %v1370, %v1622
      %v1669 = vadd.f32 %v1371, %v1627
      %v1670 = vadd.f32 %v1372, %v1630
      %v1671 = vadd.f32 %v1373, %v1635
      %v1672 = vadd.f32 %v1374, %v1638
      %v1673 = vld [vmem:[%s1076 + $0x2] sm:$0xff]
      %v1674 = vld [vmem:[%s1076 + $0xa] sm:$0xff]
      %v1675 = vld [vmem:[%s1076 + $0x1a] sm:$0xff]
      %v1676 = vld [vmem:[%s1076 + $0x22] sm:$0xff]
      %v1677 = vld [vmem:[%s1076 + $0x32] sm:$0xff]
      %v1678 = vld [vmem:[%s1076 + $0x3a] sm:$0xff]
      %v1679 = vld [vmem:[%s1076 + $0x4a] sm:$0xff]
      %v1680 = vld [vmem:[%s1076 + $0x52] sm:$0xff]
      %v1681 = vld [vmem:[%s1076 + $0x62] sm:$0xff]
      %v1682 = vld [vmem:[%s1076 + $0x6a] sm:$0xff]
      %v1683 = vld [vmem:[%s1076 + $0x7a] sm:$0xff]
      %v1684 = vld [vmem:[%s1076 + $0x82] sm:$0xff]
      %v1685 = vld [vmem:[%s1076 + $0x92] sm:$0xff]
      %v1686 = vld [vmem:[%s1076 + $0x9a] sm:$0xff]
      %v1687 = vld [vmem:[%s1076 + $0xaa] sm:$0xff]
      %v1688 = vld [vmem:[%s1076 + $0xb2] sm:$0xff]
      %v1689 = vld [vmem:[%s1076 + $0xc2] sm:$0xff]
      %v1690 = vld [vmem:[%s1076 + $0xca] sm:$0xff]
      %v1691 = vld [vmem:[%s1076 + $0xda] sm:$0xff]
      %v1692 = vld [vmem:[%s1076 + $0xe2] sm:$0xff]
      %v1693 = vld [vmem:[%s1076 + $0xf2] sm:$0xff]
      %v1694 = vld [vmem:[%s1076 + $0xfa] sm:$0xff]
      %v1695 = vld [vmem:[%s1076 + $0x10a] sm:$0xff]
      %v1696 = vld [vmem:[%s1076 + $0x112] sm:$0xff]
      %v1697 = vld [vmem:[%s1076 + $0x122] sm:$0xff]
      %v1698 = vld [vmem:[%s1076 + $0x12a] sm:$0xff]
      %v1699 = vld [vmem:[%s1076 + $0x13a] sm:$0xff]
      %v1700 = vld [vmem:[%s1076 + $0x142] sm:$0xff]
      %v1701 = vld [vmem:[%s1076 + $0x152] sm:$0xff]
      %v1702 = vld [vmem:[%s1076 + $0x15a] sm:$0xff]
      %v1703 = vld [vmem:[%s1076 + $0x16a] sm:$0xff]
      %v1704 = vld [vmem:[%s1076 + $0x172] sm:$0xff]
      %v1705 = vpack.c.bf16 %v1674, %v1673
      %v1706 = vpack.c.bf16 %v1676, %v1675
      %v1707 = vpack.c.bf16 %v1678, %v1677
      %v1708 = vpack.c.bf16 %v1680, %v1679
      %v1709 = vpack.c.bf16 %v1682, %v1681
      %v1710 = vpack.c.bf16 %v1684, %v1683
      %v1711 = vpack.c.bf16 %v1686, %v1685
      %v1712 = vpack.c.bf16 %v1688, %v1687
      %v1713 = vpack.c.bf16 %v1690, %v1689
      %v1714 = vpack.c.bf16 %v1692, %v1691
      %v1715 = vpack.c.bf16 %v1694, %v1693
      %v1716 = vpack.c.bf16 %v1696, %v1695
      %v1717 = vpack.c.bf16 %v1698, %v1697
      %v1718 = vpack.c.bf16 %v1700, %v1699
      %v1719 = vpack.c.bf16 %v1702, %v1701
      %v1720 = vpack.c.bf16 %v1704, %v1703
      %s1721 = scalar_lea.vmem %s1, 40
      %v1722 = vld [vmem:[%s1721] sm:$0xf]
      %v1723 = vld [vmem:[%s1721 + $0x4] sm:$0xf]
      %v1726 = vunpack.c.l.b16 %v1722
      %v1727 = vunpack.c.l.b16 %v1723
      %v1728 = vpack.c.b16 %v1727, %v1726
      %v1731 = vsel %vm353, %v1705, 0
      %v1734 = vsel %vm353, %v1706, 0
      %v1737 = vsel %vm353, %v1707, 0
      %v1740 = vsel %vm353, %v1708, 0
      %v1743 = vsel %vm353, %v1709, 0
      %v1746 = vsel %vm353, %v1710, 0
      %v1749 = vsel %vm353, %v1711, 0
      %v1752 = vsel %vm353, %v1712, 0
      %v1755 = vsel %vm353, %v1713, 0
      %v1758 = vsel %vm353, %v1714, 0
      %v1761 = vsel %vm353, %v1715, 0
      %v1764 = vsel %vm353, %v1716, 0
      %v1767 = vsel %vm353, %v1717, 0
      %v1770 = vsel %vm353, %v1718, 0
      %v1773 = vsel %vm353, %v1719, 0
      %v1776 = vsel %vm353, %v1720, 0
      %1778 = vmatprep.subr.bf16.mxu0 0
      %1779 = vmatpush1.bf16.msra.mxu0 %v1728
      %1780 = vmatprep.subr.bf16.mxu0 0
      %1781 = vmatpush1.bf16.msra.mxu0 0
      %1782 = vmatprep.subr.bf16.mxu0 0
      %1783 = vmatpush1.bf16.msra.mxu0 0
      %1784 = vmatprep.subr.bf16.mxu0 0
      %1785 = vmatpush1.bf16.msra.mxu0 0
      %1786 = vmatprep.subr.bf16.mxu0 0
      %1787 = vmatpush1.bf16.msra.mxu0 0
      %1788 = vmatprep.subr.bf16.mxu0 0
      %1789 = vmatpush1.bf16.msra.mxu0 0
      %1790 = vmatprep.subr.bf16.mxu0 0
      %1791 = vmatpush1.bf16.msra.mxu0 0
      %1792 = vmatprep.subr.bf16.mxu0 0
      %1793 = vmatpush1.bf16.msra.mxu0 0
      %1794 = vmatprep.subr.bf16.mxu0 0
      %1795 = vmatpush1.bf16.msra.mxu0 0
      %1796 = vmatprep.subr.bf16.mxu0 0
      %1797 = vmatpush1.bf16.msra.mxu0 0
      %1798 = vmatprep.subr.bf16.mxu0 0
      %1799 = vmatpush1.bf16.msra.mxu0 0
      %1800 = vmatprep.subr.bf16.mxu0 0
      %1801 = vmatpush1.bf16.msra.mxu0 0
      %1802 = vmatprep.subr.bf16.mxu0 0
      %1803 = vmatpush1.bf16.msra.mxu0 0
      %1804 = vmatprep.subr.bf16.mxu0 0
      %1805 = vmatpush1.bf16.msra.mxu0 0
      %1806 = vmatprep.subr.bf16.mxu0 0
      %1807 = vmatpush1.bf16.msra.mxu0 0
      %1808 = vmatprep.subr.bf16.mxu0 0
      %1809 = vmatpush1.bf16.msra.mxu0 0
      %1810 = vmatprep.mubr.bf16.mxu0 0
      %1811 = vmatmul.mubr.bf16.gmra.mrb[0].mxu0 %v1731
      %v1812 = vpop.f32.mrb[0].mxu0
      %v1813 = vadd.f32 0.0, %v1812
      %v1814 = vpop.f32.mrb[0].mxu0
      %v1815 = vpop.f32.mrb[0].mxu0
      %v1816 = vadd.f32 0.0, %v1815
      %v1817 = vpop.f32.mrb[0].mxu0
      %1818 = vmatprep.mubr.bf16.mxu0 0
      %1819 = vmatmul.mubr.bf16.gmra.mrb[0].mxu0 %v1734
      %v1820 = vpop.f32.mrb[0].mxu0
      %v1821 = vadd.f32 0.0, %v1820
      %v1822 = vpop.f32.mrb[0].mxu0
      %v1823 = vpop.f32.mrb[0].mxu0
      %v1824 = vadd.f32 0.0, %v1823
      %v1825 = vpop.f32.mrb[0].mxu0
      %1826 = vmatprep.mubr.bf16.mxu0 0
      %1827 = vmatmul.mubr.bf16.gmra.mrb[0].mxu0 %v1737
      %v1828 = vpop.f32.mrb[0].mxu0
      %v1829 = vadd.f32 0.0, %v1828
      %v1830 = vpop.f32.mrb[0].mxu0
      %v1831 = vpop.f32.mrb[0].mxu0
      %v1832 = vadd.f32 0.0, %v1831
      %v1833 = vpop.f32.mrb[0].mxu0
      %1834 = vmatprep.mubr.bf16.mxu0 0
      %1835 = vmatmul.mubr.bf16.gmra.mrb[0].mxu0 %v1740
      %v1836 = vpop.f32.mrb[0].mxu0
      %v1837 = vadd.f32 0.0, %v1836
      %v1838 = vpop.f32.mrb[0].mxu0
      %v1839 = vpop.f32.mrb[0].mxu0
      %v1840 = vadd.f32 0.0, %v1839
      %v1841 = vpop.f32.mrb[0].mxu0
      %1842 = vmatprep.mubr.bf16.mxu0 0
      %1843 = vmatmul.mubr.bf16.gmra.mrb[0].mxu0 %v1743
      %v1844 = vpop.f32.mrb[0].mxu0
      %v1845 = vadd.f32 0.0, %v1844
      %v1846 = vpop.f32.mrb[0].mxu0
      %v1847 = vpop.f32.mrb[0].mxu0
      %v1848 = vadd.f32 0.0, %v1847
      %v1849 = vpop.f32.mrb[0].mxu0
      %1850 = vmatprep.mubr.bf16.mxu0 0
      %1851 = vmatmul.mubr.bf16.gmra.mrb[0].mxu0 %v1746
      %v1852 = vpop.f32.mrb[0].mxu0
      %v1853 = vadd.f32 0.0, %v1852
      %v1854 = vpop.f32.mrb[0].mxu0
      %v1855 = vpop.f32.mrb[0].mxu0
      %v1856 = vadd.f32 0.0, %v1855
      %v1857 = vpop.f32.mrb[0].mxu0
      %1858 = vmatprep.mubr.bf16.mxu0 0
      %1859 = vmatmul.mubr.bf16.gmra.mrb[0].mxu0 %v1749
      %v1860 = vpop.f32.mrb[0].mxu0
      %v1861 = vadd.f32 0.0, %v1860
      %v1862 = vpop.f32.mrb[0].mxu0
      %v1863 = vpop.f32.mrb[0].mxu0
      %v1864 = vadd.f32 0.0, %v1863
      %v1865 = vpop.f32.mrb[0].mxu0
      %1866 = vmatprep.mubr.bf16.mxu0 0
      %1867 = vmatmul.mubr.bf16.gmra.mrb[0].mxu0 %v1752
      %v1868 = vpop.f32.mrb[0].mxu0
      %v1869 = vadd.f32 0.0, %v1868
      %v1870 = vpop.f32.mrb[0].mxu0
      %v1871 = vpop.f32.mrb[0].mxu0
      %v1872 = vadd.f32 0.0, %v1871
      %v1873 = vpop.f32.mrb[0].mxu0
      %1874 = vmatprep.mubr.bf16.mxu0 0
      %1875 = vmatmul.mubr.bf16.gmra.mrb[0].mxu0 %v1755
      %v1876 = vpop.f32.mrb[0].mxu0
      %v1877 = vadd.f32 0.0, %v1876
      %v1878 = vpop.f32.mrb[0].mxu0
      %v1879 = vpop.f32.mrb[0].mxu0
      %v1880 = vadd.f32 0.0, %v1879
      %v1881 = vpop.f32.mrb[0].mxu0
      %1882 = vmatprep.mubr.bf16.mxu0 0
      %1883 = vmatmul.mubr.bf16.gmra.mrb[0].mxu0 %v1758
      %v1884 = vpop.f32.mrb[0].mxu0
      %v1885 = vadd.f32 0.0, %v1884
      %v1886 = vpop.f32.mrb[0].mxu0
      %v1887 = vpop.f32.mrb[0].mxu0
      %v1888 = vadd.f32 0.0, %v1887
      %v1889 = vpop.f32.mrb[0].mxu0
      %1890 = vmatprep.mubr.bf16.mxu0 0
      %1891 = vmatmul.mubr.bf16.gmra.mrb[0].mxu0 %v1761
      %v1892 = vpop.f32.mrb[0].mxu0
      %v1893 = vadd.f32 0.0, %v1892
      %v1894 = vpop.f32.mrb[0].mxu0
      %v1895 = vpop.f32.mrb[0].mxu0
      %v1896 = vadd.f32 0.0, %v1895
      %v1897 = vpop.f32.mrb[0].mxu0
      %1898 = vmatprep.mubr.bf16.mxu0 0
      %1899 = vmatmul.mubr.bf16.gmra.mrb[0].mxu0 %v1764
      %v1900 = vpop.f32.mrb[0].mxu0
      %v1901 = vadd.f32 0.0, %v1900
      %v1902 = vpop.f32.mrb[0].mxu0
      %v1903 = vpop.f32.mrb[0].mxu0
      %v1904 = vadd.f32 0.0, %v1903
      %v1905 = vpop.f32.mrb[0].mxu0
      %1906 = vmatprep.mubr.bf16.mxu0 0
      %1907 = vmatmul.mubr.bf16.gmra.mrb[0].mxu0 %v1767
      %v1908 = vpop.f32.mrb[0].mxu0
      %v1909 = vadd.f32 0.0, %v1908
      %v1910 = vpop.f32.mrb[0].mxu0
      %v1911 = vpop.f32.mrb[0].mxu0
      %v1912 = vadd.f32 0.0, %v1911
      %v1913 = vpop.f32.mrb[0].mxu0
      %1914 = vmatprep.mubr.bf16.mxu0 0
      %1915 = vmatmul.mubr.bf16.gmra.mrb[0].mxu0 %v1770
      %v1916 = vpop.f32.mrb[0].mxu0
      %v1917 = vadd.f32 0.0, %v1916
      %v1918 = vpop.f32.mrb[0].mxu0
      %v1919 = vpop.f32.mrb[0].mxu0
      %v1920 = vadd.f32 0.0, %v1919
      %v1921 = vpop.f32.mrb[0].mxu0
      %1922 = vmatprep.mubr.bf16.mxu0 0
      %1923 = vmatmul.mubr.bf16.gmra.mrb[0].mxu0 %v1773
      %v1924 = vpop.f32.mrb[0].mxu0
      %v1925 = vadd.f32 0.0, %v1924
      %v1926 = vpop.f32.mrb[0].mxu0
      %v1927 = vpop.f32.mrb[0].mxu0
      %v1928 = vadd.f32 0.0, %v1927
      %v1929 = vpop.f32.mrb[0].mxu0
      %1930 = vmatprep.mubr.bf16.mxu0 0
      %1931 = vmatmul.mubr.bf16.gmra.mrb[0].mxu0 %v1776
      %v1932 = vpop.f32.mrb[0].mxu0
      %v1933 = vadd.f32 0.0, %v1932
      %v1934 = vpop.f32.mrb[0].mxu0
      %v1935 = vpop.f32.mrb[0].mxu0
      %v1936 = vadd.f32 0.0, %v1935
      %v1937 = vpop.f32.mrb[0].mxu0
      %1938 = vdwg.mxu0
      %v1939 = vadd.f32 %v1641, %v1813
      %v1940 = vadd.f32 %v1642, %v1816
      %v1941 = vadd.f32 %v1643, %v1821
      %v1942 = vadd.f32 %v1644, %v1824
      %v1943 = vadd.f32 %v1645, %v1829
      %v1944 = vadd.f32 %v1646, %v1832
      %v1945 = vadd.f32 %v1647, %v1837
      %v1946 = vadd.f32 %v1648, %v1840
      %v1947 = vadd.f32 %v1649, %v1845
      %v1948 = vadd.f32 %v1650, %v1848
      %v1949 = vadd.f32 %v1651, %v1853
      %v1950 = vadd.f32 %v1652, %v1856
      %v1951 = vadd.f32 %v1653, %v1861
      %v1952 = vadd.f32 %v1654, %v1864
      %v1953 = vadd.f32 %v1655, %v1869
      %v1954 = vadd.f32 %v1656, %v1872
      %v1955 = vadd.f32 %v1657, %v1877
      %v1956 = vadd.f32 %v1658, %v1880
      %v1957 = vadd.f32 %v1659, %v1885
      %v1958 = vadd.f32 %v1660, %v1888
      %v1959 = vadd.f32 %v1661, %v1893
      %v1960 = vadd.f32 %v1662, %v1896
      %v1961 = vadd.f32 %v1663, %v1901
      %v1962 = vadd.f32 %v1664, %v1904
      %v1963 = vadd.f32 %v1665, %v1909
      %v1964 = vadd.f32 %v1666, %v1912
      %v1965 = vadd.f32 %v1667, %v1917
      %v1966 = vadd.f32 %v1668, %v1920
      %v1967 = vadd.f32 %v1669, %v1925
      %v1968 = vadd.f32 %v1670, %v1928
      %v1969 = vadd.f32 %v1671, %v1933
      %v1970 = vadd.f32 %v1672, %v1936
      %s1971 = scalar_lea.vmem %s234, 48
      %v1972 = vld [vmem:[%s1971] sm:$0xff]
      %v1973 = vld [vmem:[%s1971 + $0x8] sm:$0xff]
      %v1974 = vld [vmem:[%s1971 + $0x18] sm:$0xff]
      %v1975 = vld [vmem:[%s1971 + $0x20] sm:$0xff]
      %v1976 = vld [vmem:[%s1971 + $0x30] sm:$0xff]
      %v1977 = vld [vmem:[%s1971 + $0x38] sm:$0xff]
      %v1978 = vld [vmem:[%s1971 + $0x48] sm:$0xff]
      %v1979 = vld [vmem:[%s1971 + $0x50] sm:$0xff]
      %v1980 = vld [vmem:[%s1971 + $0x60] sm:$0xff]
      %v1981 = vld [vmem:[%s1971 + $0x68] sm:$0xff]
      %v1982 = vld [vmem:[%s1971 + $0x78] sm:$0xff]
      %v1983 = vld [vmem:[%s1971 + $0x80] sm:$0xff]
      %v1984 = vld [vmem:[%s1971 + $0x90] sm:$0xff]
      %v1985 = vld [vmem:[%s1971 + $0x98] sm:$0xff]
      %v1986 = vld [vmem:[%s1971 + $0xa8] sm:$0xff]
      %v1987 = vld [vmem:[%s1971 + $0xb0] sm:$0xff]
      %v1988 = vld [vmem:[%s1971 + $0xc0] sm:$0xff]
      %v1989 = vld [vmem:[%s1971 + $0xc8] sm:$0xff]
      %v1990 = vld [vmem:[%s1971 + $0xd8] sm:$0xff]
      %v1991 = vld [vmem:[%s1971 + $0xe0] sm:$0xff]
      %v1992 = vld [vmem:[%s1971 + $0xf0] sm:$0xff]
      %v1993 = vld [vmem:[%s1971 + $0xf8] sm:$0xff]
      %v1994 = vld [vmem:[%s1971 + $0x108] sm:$0xff]
      %v1995 = vld [vmem:[%s1971 + $0x110] sm:$0xff]
      %v1996 = vld [vmem:[%s1971 + $0x120] sm:$0xff]
      %v1997 = vld [vmem:[%s1971 + $0x128] sm:$0xff]
      %v1998 = vld [vmem:[%s1971 + $0x138] sm:$0xff]
      %v1999 = vld [vmem:[%s1971 + $0x140] sm:$0xff]
      %v2000 = vld [vmem:[%s1971 + $0x150] sm:$0xff]
      %v2001 = vld [vmem:[%s1971 + $0x158] sm:$0xff]
      %v2002 = vld [vmem:[%s1971 + $0x168] sm:$0xff]
      %v2003 = vld [vmem:[%s1971 + $0x170] sm:$0xff]
      %v2004 = vpack.c.bf16 %v1973, %v1972
      %v2005 = vpack.c.bf16 %v1975, %v1974
      %v2006 = vpack.c.bf16 %v1977, %v1976
      %v2007 = vpack.c.bf16 %v1979, %v1978
      %v2008 = vpack.c.bf16 %v1981, %v1980
      %v2009 = vpack.c.bf16 %v1983, %v1982
      %v2010 = vpack.c.bf16 %v1985, %v1984
      %v2011 = vpack.c.bf16 %v1987, %v1986
      %v2012 = vpack.c.bf16 %v1989, %v1988
      %v2013 = vpack.c.bf16 %v1991, %v1990
      %v2014 = vpack.c.bf16 %v1993, %v1992
      %v2015 = vpack.c.bf16 %v1995, %v1994
      %v2016 = vpack.c.bf16 %v1997, %v1996
      %v2017 = vpack.c.bf16 %v1999, %v1998
      %v2018 = vpack.c.bf16 %v2001, %v2000
      %v2019 = vpack.c.bf16 %v2003, %v2002
      %s2020 = scalar_lea.vmem %s1, 48
      %v2021 = vld [vmem:[%s2020] sm:$0xf]
      %v2022 = vld [vmem:[%s2020 + $0x4] sm:$0xf]
      %v2025 = vunpack.c.l.b16 %v2021
      %v2026 = vunpack.c.l.b16 %v2022
      %v2027 = vpack.c.b16 %v2026, %v2025
      %v2030 = vsel %vm353, %v2004, 0
      %v2033 = vsel %vm353, %v2005, 0
      %v2036 = vsel %vm353, %v2006, 0
      %v2039 = vsel %vm353, %v2007, 0
      %v2042 = vsel %vm353, %v2008, 0
      %v2045 = vsel %vm353, %v2009, 0
      %v2048 = vsel %vm353, %v2010, 0
      %v2051 = vsel %vm353, %v2011, 0
      %v2054 = vsel %vm353, %v2012, 0
      %v2057 = vsel %vm353, %v2013, 0
      %v2060 = vsel %vm353, %v2014, 0
      %v2063 = vsel %vm353, %v2015, 0
      %v2066 = vsel %vm353, %v2016, 0
      %v2069 = vsel %vm353, %v2017, 0
      %v2072 = vsel %vm353, %v2018, 0
      %v2075 = vsel %vm353, %v2019, 0
      %2077 = vmatprep.subr.bf16.mxu0 0
      %2078 = vmatpush1.bf16.msra.mxu0 %v2027
      %2079 = vmatprep.subr.bf16.mxu0 0
      %2080 = vmatpush1.bf16.msra.mxu0 0
      %2081 = vmatprep.subr.bf16.mxu0 0
      %2082 = vmatpush1.bf16.msra.mxu0 0
      %2083 = vmatprep.subr.bf16.mxu0 0
      %2084 = vmatpush1.bf16.msra.mxu0 0
      %2085 = vmatprep.subr.bf16.mxu0 0
      %2086 = vmatpush1.bf16.msra.mxu0 0
      %2087 = vmatprep.subr.bf16.mxu0 0
      %2088 = vmatpush1.bf16.msra.mxu0 0
      %2089 = vmatprep.subr.bf16.mxu0 0
      %2090 = vmatpush1.bf16.msra.mxu0 0
      %2091 = vmatprep.subr.bf16.mxu0 0
      %2092 = vmatpush1.bf16.msra.mxu0 0
      %2093 = vmatprep.subr.bf16.mxu0 0
      %2094 = vmatpush1.bf16.msra.mxu0 0
      %2095 = vmatprep.subr.bf16.mxu0 0
      %2096 = vmatpush1.bf16.msra.mxu0 0
      %2097 = vmatprep.subr.bf16.mxu0 0
      %2098 = vmatpush1.bf16.msra.mxu0 0
      %2099 = vmatprep.subr.bf16.mxu0 0
      %2100 = vmatpush1.bf16.msra.mxu0 0
      %2101 = vmatprep.subr.bf16.mxu0 0
      %2102 = vmatpush1.bf16.msra.mxu0 0
      %2103 = vmatprep.subr.bf16.mxu0 0
      %2104 = vmatpush1.bf16.msra.mxu0 0
      %2105 = vmatprep.subr.bf16.mxu0 0
      %2106 = vmatpush1.bf16.msra.mxu0 0
      %2107 = vmatprep.subr.bf16.mxu0 0
      %2108 = vmatpush1.bf16.msra.mxu0 0
      %2109 = vmatprep.mubr.bf16.mxu0 0
      %2110 = vmatmul.mubr.bf16.gmra.mrb[0].mxu0 %v2030
      %v2111 = vpop.f32.mrb[0].mxu0
      %v2112 = vadd.f32 0.0, %v2111
      %v2113 = vpop.f32.mrb[0].mxu0
      %v2114 = vpop.f32.mrb[0].mxu0
      %v2115 = vadd.f32 0.0, %v2114
      %v2116 = vpop.f32.mrb[0].mxu0
      %2117 = vmatprep.mubr.bf16.mxu0 0
      %2118 = vmatmul.mubr.bf16.gmra.mrb[0].mxu0 %v2033
      %v2119 = vpop.f32.mrb[0].mxu0
      %v2120 = vadd.f32 0.0, %v2119
      %v2121 = vpop.f32.mrb[0].mxu0
      %v2122 = vpop.f32.mrb[0].mxu0
      %v2123 = vadd.f32 0.0, %v2122
      %v2124 = vpop.f32.mrb[0].mxu0
      %2125 = vmatprep.mubr.bf16.mxu0 0
      %2126 = vmatmul.mubr.bf16.gmra.mrb[0].mxu0 %v2036
      %v2127 = vpop.f32.mrb[0].mxu0
      %v2128 = vadd.f32 0.0, %v2127
      %v2129 = vpop.f32.mrb[0].mxu0
      %v2130 = vpop.f32.mrb[0].mxu0
      %v2131 = vadd.f32 0.0, %v2130
      %v2132 = vpop.f32.mrb[0].mxu0
      %2133 = vmatprep.mubr.bf16.mxu0 0
      %2134 = vmatmul.mubr.bf16.gmra.mrb[0].mxu0 %v2039
      %v2135 = vpop.f32.mrb[0].mxu0
      %v2136 = vadd.f32 0.0, %v2135
      %v2137 = vpop.f32.mrb[0].mxu0
      %v2138 = vpop.f32.mrb[0].mxu0
      %v2139 = vadd.f32 0.0, %v2138
      %v2140 = vpop.f32.mrb[0].mxu0
      %2141 = vmatprep.mubr.bf16.mxu0 0
      %2142 = vmatmul.mubr.bf16.gmra.mrb[0].mxu0 %v2042
      %v2143 = vpop.f32.mrb[0].mxu0
      %v2144 = vadd.f32 0.0, %v2143
      %v2145 = vpop.f32.mrb[0].mxu0
      %v2146 = vpop.f32.mrb[0].mxu0
      %v2147 = vadd.f32 0.0, %v2146
      %v2148 = vpop.f32.mrb[0].mxu0
      %2149 = vmatprep.mubr.bf16.mxu0 0
      %2150 = vmatmul.mubr.bf16.gmra.mrb[0].mxu0 %v2045
      %v2151 = vpop.f32.mrb[0].mxu0
      %v2152 = vadd.f32 0.0, %v2151
      %v2153 = vpop.f32.mrb[0].mxu0
      %v2154 = vpop.f32.mrb[0].mxu0
      %v2155 = vadd.f32 0.0, %v2154
      %v2156 = vpop.f32.mrb[0].mxu0
      %2157 = vmatprep.mubr.bf16.mxu0 0
      %2158 = vmatmul.mubr.bf16.gmra.mrb[0].mxu0 %v2048
      %v2159 = vpop.f32.mrb[0].mxu0
      %v2160 = vadd.f32 0.0, %v2159
      %v2161 = vpop.f32.mrb[0].mxu0
      %v2162 = vpop.f32.mrb[0].mxu0
      %v2163 = vadd.f32 0.0, %v2162
      %v2164 = vpop.f32.mrb[0].mxu0
      %2165 = vmatprep.mubr.bf16.mxu0 0
      %2166 = vmatmul.mubr.bf16.gmra.mrb[0].mxu0 %v2051
      %v2167 = vpop.f32.mrb[0].mxu0
      %v2168 = vadd.f32 0.0, %v2167
      %v2169 = vpop.f32.mrb[0].mxu0
      %v2170 = vpop.f32.mrb[0].mxu0
      %v2171 = vadd.f32 0.0, %v2170
      %v2172 = vpop.f32.mrb[0].mxu0
      %2173 = vmatprep.mubr.bf16.mxu0 0
      %2174 = vmatmul.mubr.bf16.gmra.mrb[0].mxu0 %v2054
      %v2175 = vpop.f32.mrb[0].mxu0
      %v2176 = vadd.f32 0.0, %v2175
      %v2177 = vpop.f32.mrb[0].mxu0
      %v2178 = vpop.f32.mrb[0].mxu0
      %v2179 = vadd.f32 0.0, %v2178
      %v2180 = vpop.f32.mrb[0].mxu0
      %2181 = vmatprep.mubr.bf16.mxu0 0
      %2182 = vmatmul.mubr.bf16.gmra.mrb[0].mxu0 %v2057
      %v2183 = vpop.f32.mrb[0].mxu0
      %v2184 = vadd.f32 0.0, %v2183
      %v2185 = vpop.f32.mrb[0].mxu0
      %v2186 = vpop.f32.mrb[0].mxu0
      %v2187 = vadd.f32 0.0, %v2186
      %v2188 = vpop.f32.mrb[0].mxu0
      %2189 = vmatprep.mubr.bf16.mxu0 0
      %2190 = vmatmul.mubr.bf16.gmra.mrb[0].mxu0 %v2060
      %v2191 = vpop.f32.mrb[0].mxu0
      %v2192 = vadd.f32 0.0, %v2191
      %v2193 = vpop.f32.mrb[0].mxu0
      %v2194 = vpop.f32.mrb[0].mxu0
      %v2195 = vadd.f32 0.0, %v2194
      %v2196 = vpop.f32.mrb[0].mxu0
      %2197 = vmatprep.mubr.bf16.mxu0 0
      %2198 = vmatmul.mubr.bf16.gmra.mrb[0].mxu0 %v2063
      %v2199 = vpop.f32.mrb[0].mxu0
      %v2200 = vadd.f32 0.0, %v2199
      %v2201 = vpop.f32.mrb[0].mxu0
      %v2202 = vpop.f32.mrb[0].mxu0
      %v2203 = vadd.f32 0.0, %v2202
      %v2204 = vpop.f32.mrb[0].mxu0
      %2205 = vmatprep.mubr.bf16.mxu0 0
      %2206 = vmatmul.mubr.bf16.gmra.mrb[0].mxu0 %v2066
      %v2207 = vpop.f32.mrb[0].mxu0
      %v2208 = vadd.f32 0.0, %v2207
      %v2209 = vpop.f32.mrb[0].mxu0
      %v2210 = vpop.f32.mrb[0].mxu0
      %v2211 = vadd.f32 0.0, %v2210
      %v2212 = vpop.f32.mrb[0].mxu0
      %2213 = vmatprep.mubr.bf16.mxu0 0
      %2214 = vmatmul.mubr.bf16.gmra.mrb[0].mxu0 %v2069
      %v2215 = vpop.f32.mrb[0].mxu0
      %v2216 = vadd.f32 0.0, %v2215
      %v2217 = vpop.f32.mrb[0].mxu0
      %v2218 = vpop.f32.mrb[0].mxu0
      %v2219 = vadd.f32 0.0, %v2218
      %v2220 = vpop.f32.mrb[0].mxu0
      %2221 = vmatprep.mubr.bf16.mxu0 0
      %2222 = vmatmul.mubr.bf16.gmra.mrb[0].mxu0 %v2072
      %v2223 = vpop.f32.mrb[0].mxu0
      %v2224 = vadd.f32 0.0, %v2223
      %v2225 = vpop.f32.mrb[0].mxu0
      %v2226 = vpop.f32.mrb[0].mxu0
      %v2227 = vadd.f32 0.0, %v2226
      %v2228 = vpop.f32.mrb[0].mxu0
      %2229 = vmatprep.mubr.bf16.mxu0 0
      %2230 = vmatmul.mubr.bf16.gmra.mrb[0].mxu0 %v2075
      %v2231 = vpop.f32.mrb[0].mxu0
      %v2232 = vadd.f32 0.0, %v2231
      %v2233 = vpop.f32.mrb[0].mxu0
      %v2234 = vpop.f32.mrb[0].mxu0
      %v2235 = vadd.f32 0.0, %v2234
      %v2236 = vpop.f32.mrb[0].mxu0
      %2237 = vdwg.mxu0
      %v2238 = vadd.f32 %v1939, %v2112
      %v2239 = vadd.f32 %v1940, %v2115
      %v2240 = vadd.f32 %v1941, %v2120
      %v2241 = vadd.f32 %v1942, %v2123
      %v2242 = vadd.f32 %v1943, %v2128
      %v2243 = vadd.f32 %v1944, %v2131
      %v2244 = vadd.f32 %v1945, %v2136
      %v2245 = vadd.f32 %v1946, %v2139
      %v2246 = vadd.f32 %v1947, %v2144
      %v2247 = vadd.f32 %v1948, %v2147
      %v2248 = vadd.f32 %v1949, %v2152
      %v2249 = vadd.f32 %v1950, %v2155
      %v2250 = vadd.f32 %v1951, %v2160
      %v2251 = vadd.f32 %v1952, %v2163
      %v2252 = vadd.f32 %v1953, %v2168
      %v2253 = vadd.f32 %v1954, %v2171
      %v2254 = vadd.f32 %v1955, %v2176
      %v2255 = vadd.f32 %v1956, %v2179
      %v2256 = vadd.f32 %v1957, %v2184
      %v2257 = vadd.f32 %v1958, %v2187
      %v2258 = vadd.f32 %v1959, %v2192
      %v2259 = vadd.f32 %v1960, %v2195
      %v2260 = vadd.f32 %v1961, %v2200
      %v2261 = vadd.f32 %v1962, %v2203
      %v2262 = vadd.f32 %v1963, %v2208
      %v2263 = vadd.f32 %v1964, %v2211
      %v2264 = vadd.f32 %v1965, %v2216
      %v2265 = vadd.f32 %v1966, %v2219
      %v2266 = vadd.f32 %v1967, %v2224
      %v2267 = vadd.f32 %v1968, %v2227
      %v2268 = vadd.f32 %v1969, %v2232
      %v2269 = vadd.f32 %v1970, %v2235
      %v2270 = vld [vmem:[%s1971 + $0x1] sm:$0xff]
      %v2271 = vld [vmem:[%s1971 + $0x9] sm:$0xff]
      %v2272 = vld [vmem:[%s1971 + $0x19] sm:$0xff]
      %v2273 = vld [vmem:[%s1971 + $0x21] sm:$0xff]
      %v2274 = vld [vmem:[%s1971 + $0x31] sm:$0xff]
      %v2275 = vld [vmem:[%s1971 + $0x39] sm:$0xff]
      %v2276 = vld [vmem:[%s1971 + $0x49] sm:$0xff]
      %v2277 = vld [vmem:[%s1971 + $0x51] sm:$0xff]
      %v2278 = vld [vmem:[%s1971 + $0x61] sm:$0xff]
      %v2279 = vld [vmem:[%s1971 + $0x69] sm:$0xff]
      %v2280 = vld [vmem:[%s1971 + $0x79] sm:$0xff]
      %v2281 = vld [vmem:[%s1971 + $0x81] sm:$0xff]
      %v2282 = vld [vmem:[%s1971 + $0x91] sm:$0xff]
      %v2283 = vld [vmem:[%s1971 + $0x99] sm:$0xff]
      %v2284 = vld [vmem:[%s1971 + $0xa9] sm:$0xff]
      %v2285 = vld [vmem:[%s1971 + $0xb1] sm:$0xff]
      %v2286 = vld [vmem:[%s1971 + $0xc1] sm:$0xff]
      %v2287 = vld [vmem:[%s1971 + $0xc9] sm:$0xff]
      %v2288 = vld [vmem:[%s1971 + $0xd9] sm:$0xff]
      %v2289 = vld [vmem:[%s1971 + $0xe1] sm:$0xff]
      %v2290 = vld [vmem:[%s1971 + $0xf1] sm:$0xff]
      %v2291 = vld [vmem:[%s1971 + $0xf9] sm:$0xff]
      %v2292 = vld [vmem:[%s1971 + $0x109] sm:$0xff]
      %v2293 = vld [vmem:[%s1971 + $0x111] sm:$0xff]
      %v2294 = vld [vmem:[%s1971 + $0x121] sm:$0xff]
      %v2295 = vld [vmem:[%s1971 + $0x129] sm:$0xff]
      %v2296 = vld [vmem:[%s1971 + $0x139] sm:$0xff]
      %v2297 = vld [vmem:[%s1971 + $0x141] sm:$0xff]
      %v2298 = vld [vmem:[%s1971 + $0x151] sm:$0xff]
      %v2299 = vld [vmem:[%s1971 + $0x159] sm:$0xff]
      %v2300 = vld [vmem:[%s1971 + $0x169] sm:$0xff]
      %v2301 = vld [vmem:[%s1971 + $0x171] sm:$0xff]
      %v2302 = vpack.c.bf16 %v2271, %v2270
      %v2303 = vpack.c.bf16 %v2273, %v2272
      %v2304 = vpack.c.bf16 %v2275, %v2274
      %v2305 = vpack.c.bf16 %v2277, %v2276
      %v2306 = vpack.c.bf16 %v2279, %v2278
      %v2307 = vpack.c.bf16 %v2281, %v2280
      %v2308 = vpack.c.bf16 %v2283, %v2282
      %v2309 = vpack.c.bf16 %v2285, %v2284
      %v2310 = vpack.c.bf16 %v2287, %v2286
      %v2311 = vpack.c.bf16 %v2289, %v2288
      %v2312 = vpack.c.bf16 %v2291, %v2290
      %v2313 = vpack.c.bf16 %v2293, %v2292
      %v2314 = vpack.c.bf16 %v2295, %v2294
      %v2315 = vpack.c.bf16 %v2297, %v2296
      %v2316 = vpack.c.bf16 %v2299, %v2298
      %v2317 = vpack.c.bf16 %v2301, %v2300
      %s2318 = scalar_lea.vmem %s1, 56
      %v2319 = vld [vmem:[%s2318] sm:$0xf]
      %v2320 = vld [vmem:[%s2318 + $0x4] sm:$0xf]
      %v2323 = vunpack.c.l.b16 %v2319
      %v2324 = vunpack.c.l.b16 %v2320
      %v2325 = vpack.c.b16 %v2324, %v2323
      %v2328 = vsel %vm353, %v2302, 0
      %v2331 = vsel %vm353, %v2303, 0
      %v2334 = vsel %vm353, %v2304, 0
      %v2337 = vsel %vm353, %v2305, 0
      %v2340 = vsel %vm353, %v2306, 0
      %v2343 = vsel %vm353, %v2307, 0
      %v2346 = vsel %vm353, %v2308, 0
      %v2349 = vsel %vm353, %v2309, 0
      %v2352 = vsel %vm353, %v2310, 0
      %v2355 = vsel %vm353, %v2311, 0
      %v2358 = vsel %vm353, %v2312, 0
      %v2361 = vsel %vm353, %v2313, 0
      %v2364 = vsel %vm353, %v2314, 0
      %v2367 = vsel %vm353, %v2315, 0
      %v2370 = vsel %vm353, %v2316, 0
      %v2373 = vsel %vm353, %v2317, 0
      %2375 = vmatprep.subr.bf16.mxu0 0
      %2376 = vmatpush1.bf16.msra.mxu0 %v2325
      %2377 = vmatprep.subr.bf16.mxu0 0
      %2378 = vmatpush1.bf16.msra.mxu0 0
      %2379 = vmatprep.subr.bf16.mxu0 0
      %2380 = vmatpush1.bf16.msra.mxu0 0
      %2381 = vmatprep.subr.bf16.mxu0 0
      %2382 = vmatpush1.bf16.msra.mxu0 0
      %2383 = vmatprep.subr.bf16.mxu0 0
      %2384 = vmatpush1.bf16.msra.mxu0 0
      %2385 = vmatprep.subr.bf16.mxu0 0
      %2386 = vmatpush1.bf16.msra.mxu0 0
      %2387 = vmatprep.subr.bf16.mxu0 0
      %2388 = vmatpush1.bf16.msra.mxu0 0
      %2389 = vmatprep.subr.bf16.mxu0 0
      %2390 = vmatpush1.bf16.msra.mxu0 0
      %2391 = vmatprep.subr.bf16.mxu0 0
      %2392 = vmatpush1.bf16.msra.mxu0 0
      %2393 = vmatprep.subr.bf16.mxu0 0
      %2394 = vmatpush1.bf16.msra.mxu0 0
      %2395 = vmatprep.subr.bf16.mxu0 0
      %2396 = vmatpush1.bf16.msra.mxu0 0
      %2397 = vmatprep.subr.bf16.mxu0 0
      %2398 = vmatpush1.bf16.msra.mxu0 0
      %2399 = vmatprep.subr.bf16.mxu0 0
      %2400 = vmatpush1.bf16.msra.mxu0 0
      %2401 = vmatprep.subr.bf16.mxu0 0
      %2402 = vmatpush1.bf16.msra.mxu0 0
      %2403 = vmatprep.subr.bf16.mxu0 0
      %2404 = vmatpush1.bf16.msra.mxu0 0
      %2405 = vmatprep.subr.bf16.mxu0 0
      %2406 = vmatpush1.bf16.msra.mxu0 0
      %2407 = vmatprep.mubr.bf16.mxu0 0
      %2408 = vmatmul.mubr.bf16.gmra.mrb[0].mxu0 %v2328
      %v2409 = vpop.f32.mrb[0].mxu0
      %v2410 = vadd.f32 0.0, %v2409
      %v2411 = vpop.f32.mrb[0].mxu0
      %v2412 = vpop.f32.mrb[0].mxu0
      %v2413 = vadd.f32 0.0, %v2412
      %v2414 = vpop.f32.mrb[0].mxu0
      %2415 = vmatprep.mubr.bf16.mxu0 0
      %2416 = vmatmul.mubr.bf16.gmra.mrb[0].mxu0 %v2331
      %v2417 = vpop.f32.mrb[0].mxu0
      %v2418 = vadd.f32 0.0, %v2417
      %v2419 = vpop.f32.mrb[0].mxu0
      %v2420 = vpop.f32.mrb[0].mxu0
      %v2421 = vadd.f32 0.0, %v2420
      %v2422 = vpop.f32.mrb[0].mxu0
      %2423 = vmatprep.mubr.bf16.mxu0 0
      %2424 = vmatmul.mubr.bf16.gmra.mrb[0].mxu0 %v2334
      %v2425 = vpop.f32.mrb[0].mxu0
      %v2426 = vadd.f32 0.0, %v2425
      %v2427 = vpop.f32.mrb[0].mxu0
      %v2428 = vpop.f32.mrb[0].mxu0
      %v2429 = vadd.f32 0.0, %v2428
      %v2430 = vpop.f32.mrb[0].mxu0
      %2431 = vmatprep.mubr.bf16.mxu0 0
      %2432 = vmatmul.mubr.bf16.gmra.mrb[0].mxu0 %v2337
      %v2433 = vpop.f32.mrb[0].mxu0
      %v2434 = vadd.f32 0.0, %v2433
      %v2435 = vpop.f32.mrb[0].mxu0
      %v2436 = vpop.f32.mrb[0].mxu0
      %v2437 = vadd.f32 0.0, %v2436
      %v2438 = vpop.f32.mrb[0].mxu0
      %2439 = vmatprep.mubr.bf16.mxu0 0
      %2440 = vmatmul.mubr.bf16.gmra.mrb[0].mxu0 %v2340
      %v2441 = vpop.f32.mrb[0].mxu0
      %v2442 = vadd.f32 0.0, %v2441
      %v2443 = vpop.f32.mrb[0].mxu0
      %v2444 = vpop.f32.mrb[0].mxu0
      %v2445 = vadd.f32 0.0, %v2444
      %v2446 = vpop.f32.mrb[0].mxu0
      %2447 = vmatprep.mubr.bf16.mxu0 0
      %2448 = vmatmul.mubr.bf16.gmra.mrb[0].mxu0 %v2343
      %v2449 = vpop.f32.mrb[0].mxu0
      %v2450 = vadd.f32 0.0, %v2449
      %v2451 = vpop.f32.mrb[0].mxu0
      %v2452 = vpop.f32.mrb[0].mxu0
      %v2453 = vadd.f32 0.0, %v2452
      %v2454 = vpop.f32.mrb[0].mxu0
      %2455 = vmatprep.mubr.bf16.mxu0 0
      %2456 = vmatmul.mubr.bf16.gmra.mrb[0].mxu0 %v2346
      %v2457 = vpop.f32.mrb[0].mxu0
      %v2458 = vadd.f32 0.0, %v2457
      %v2459 = vpop.f32.mrb[0].mxu0
      %v2460 = vpop.f32.mrb[0].mxu0
      %v2461 = vadd.f32 0.0, %v2460
      %v2462 = vpop.f32.mrb[0].mxu0
      %2463 = vmatprep.mubr.bf16.mxu0 0
      %2464 = vmatmul.mubr.bf16.gmra.mrb[0].mxu0 %v2349
      %v2465 = vpop.f32.mrb[0].mxu0
      %v2466 = vadd.f32 0.0, %v2465
      %v2467 = vpop.f32.mrb[0].mxu0
      %v2468 = vpop.f32.mrb[0].mxu0
      %v2469 = vadd.f32 0.0, %v2468
      %v2470 = vpop.f32.mrb[0].mxu0
      %2471 = vmatprep.mubr.bf16.mxu0 0
      %2472 = vmatmul.mubr.bf16.gmra.mrb[0].mxu0 %v2352
      %v2473 = vpop.f32.mrb[0].mxu0
      %v2474 = vadd.f32 0.0, %v2473
      %v2475 = vpop.f32.mrb[0].mxu0
      %v2476 = vpop.f32.mrb[0].mxu0
      %v2477 = vadd.f32 0.0, %v2476
      %v2478 = vpop.f32.mrb[0].mxu0
      %2479 = vmatprep.mubr.bf16.mxu0 0
      %2480 = vmatmul.mubr.bf16.gmra.mrb[0].mxu0 %v2355
      %v2481 = vpop.f32.mrb[0].mxu0
      %v2482 = vadd.f32 0.0, %v2481
      %v2483 = vpop.f32.mrb[0].mxu0
      %v2484 = vpop.f32.mrb[0].mxu0
      %v2485 = vadd.f32 0.0, %v2484
      %v2486 = vpop.f32.mrb[0].mxu0
      %2487 = vmatprep.mubr.bf16.mxu0 0
      %2488 = vmatmul.mubr.bf16.gmra.mrb[0].mxu0 %v2358
      %v2489 = vpop.f32.mrb[0].mxu0
      %v2490 = vadd.f32 0.0, %v2489
      %v2491 = vpop.f32.mrb[0].mxu0
      %v2492 = vpop.f32.mrb[0].mxu0
      %v2493 = vadd.f32 0.0, %v2492
      %v2494 = vpop.f32.mrb[0].mxu0
      %2495 = vmatprep.mubr.bf16.mxu0 0
      %2496 = vmatmul.mubr.bf16.gmra.mrb[0].mxu0 %v2361
      %v2497 = vpop.f32.mrb[0].mxu0
      %v2498 = vadd.f32 0.0, %v2497
      %v2499 = vpop.f32.mrb[0].mxu0
      %v2500 = vpop.f32.mrb[0].mxu0
      %v2501 = vadd.f32 0.0, %v2500
      %v2502 = vpop.f32.mrb[0].mxu0
      %2503 = vmatprep.mubr.bf16.mxu0 0
      %2504 = vmatmul.mubr.bf16.gmra.mrb[0].mxu0 %v2364
      %v2505 = vpop.f32.mrb[0].mxu0
      %v2506 = vadd.f32 0.0, %v2505
      %v2507 = vpop.f32.mrb[0].mxu0
      %v2508 = vpop.f32.mrb[0].mxu0
      %v2509 = vadd.f32 0.0, %v2508
      %v2510 = vpop.f32.mrb[0].mxu0
      %2511 = vmatprep.mubr.bf16.mxu0 0
      %2512 = vmatmul.mubr.bf16.gmra.mrb[0].mxu0 %v2367
      %v2513 = vpop.f32.mrb[0].mxu0
      %v2514 = vadd.f32 0.0, %v2513
      %v2515 = vpop.f32.mrb[0].mxu0
      %v2516 = vpop.f32.mrb[0].mxu0
      %v2517 = vadd.f32 0.0, %v2516
      %v2518 = vpop.f32.mrb[0].mxu0
      %2519 = vmatprep.mubr.bf16.mxu0 0
      %2520 = vmatmul.mubr.bf16.gmra.mrb[0].mxu0 %v2370
      %v2521 = vpop.f32.mrb[0].mxu0
      %v2522 = vadd.f32 0.0, %v2521
      %v2523 = vpop.f32.mrb[0].mxu0
      %v2524 = vpop.f32.mrb[0].mxu0
      %v2525 = vadd.f32 0.0, %v2524
      %v2526 = vpop.f32.mrb[0].mxu0
      %2527 = vmatprep.mubr.bf16.mxu0 0
      %2528 = vmatmul.mubr.bf16.gmra.mrb[0].mxu0 %v2373
      %v2529 = vpop.f32.mrb[0].mxu0
      %v2530 = vadd.f32 0.0, %v2529
      %v2531 = vpop.f32.mrb[0].mxu0
      %v2532 = vpop.f32.mrb[0].mxu0
      %v2533 = vadd.f32 0.0, %v2532
      %v2534 = vpop.f32.mrb[0].mxu0
      %2535 = vdwg.mxu0
      %v2536 = vadd.f32 %v2238, %v2410
      %v2537 = vadd.f32 %v2239, %v2413
      %v2538 = vadd.f32 %v2240, %v2418
      %v2539 = vadd.f32 %v2241, %v2421
      %v2540 = vadd.f32 %v2242, %v2426
      %v2541 = vadd.f32 %v2243, %v2429
      %v2542 = vadd.f32 %v2244, %v2434
      %v2543 = vadd.f32 %v2245, %v2437
      %v2544 = vadd.f32 %v2246, %v2442
      %v2545 = vadd.f32 %v2247, %v2445
      %v2546 = vadd.f32 %v2248, %v2450
      %v2547 = vadd.f32 %v2249, %v2453
      %v2548 = vadd.f32 %v2250, %v2458
      %v2549 = vadd.f32 %v2251, %v2461
      %v2550 = vadd.f32 %v2252, %v2466
      %v2551 = vadd.f32 %v2253, %v2469
      %v2552 = vadd.f32 %v2254, %v2474
      %v2553 = vadd.f32 %v2255, %v2477
      %v2554 = vadd.f32 %v2256, %v2482
      %v2555 = vadd.f32 %v2257, %v2485
      %v2556 = vadd.f32 %v2258, %v2490
      %v2557 = vadd.f32 %v2259, %v2493
      %v2558 = vadd.f32 %v2260, %v2498
      %v2559 = vadd.f32 %v2261, %v2501
      %v2560 = vadd.f32 %v2262, %v2506
      %v2561 = vadd.f32 %v2263, %v2509
      %v2562 = vadd.f32 %v2264, %v2514
      %v2563 = vadd.f32 %v2265, %v2517
      %v2564 = vadd.f32 %v2266, %v2522
      %v2565 = vadd.f32 %v2267, %v2525
      %v2566 = vadd.f32 %v2268, %v2530
      %v2567 = vadd.f32 %v2269, %v2533
      %v2568 = vld [vmem:[%s1971 + $0x2] sm:$0xff]
      %v2569 = vld [vmem:[%s1971 + $0xa] sm:$0xff]
      %v2570 = vld [vmem:[%s1971 + $0x1a] sm:$0xff]
      %v2571 = vld [vmem:[%s1971 + $0x22] sm:$0xff]
      %v2572 = vld [vmem:[%s1971 + $0x32] sm:$0xff]
      %v2573 = vld [vmem:[%s1971 + $0x3a] sm:$0xff]
      %v2574 = vld [vmem:[%s1971 + $0x4a] sm:$0xff]
      %v2575 = vld [vmem:[%s1971 + $0x52] sm:$0xff]
      %v2576 = vld [vmem:[%s1971 + $0x62] sm:$0xff]
      %v2577 = vld [vmem:[%s1971 + $0x6a] sm:$0xff]
      %v2578 = vld [vmem:[%s1971 + $0x7a] sm:$0xff]
      %v2579 = vld [vmem:[%s1971 + $0x82] sm:$0xff]
      %v2580 = vld [vmem:[%s1971 + $0x92] sm:$0xff]
      %v2581 = vld [vmem:[%s1971 + $0x9a] sm:$0xff]
      %v2582 = vld [vmem:[%s1971 + $0xaa] sm:$0xff]
      %v2583 = vld [vmem:[%s1971 + $0xb2] sm:$0xff]
      %v2584 = vld [vmem:[%s1971 + $0xc2] sm:$0xff]
      %v2585 = vld [vmem:[%s1971 + $0xca] sm:$0xff]
      %v2586 = vld [vmem:[%s1971 + $0xda] sm:$0xff]
      %v2587 = vld [vmem:[%s1971 + $0xe2] sm:$0xff]
      %v2588 = vld [vmem:[%s1971 + $0xf2] sm:$0xff]
      %v2589 = vld [vmem:[%s1971 + $0xfa] sm:$0xff]
      %v2590 = vld [vmem:[%s1971 + $0x10a] sm:$0xff]
      %v2591 = vld [vmem:[%s1971 + $0x112] sm:$0xff]
      %v2592 = vld [vmem:[%s1971 + $0x122] sm:$0xff]
      %v2593 = vld [vmem:[%s1971 + $0x12a] sm:$0xff]
      %v2594 = vld [vmem:[%s1971 + $0x13a] sm:$0xff]
      %v2595 = vld [vmem:[%s1971 + $0x142] sm:$0xff]
      %v2596 = vld [vmem:[%s1971 + $0x152] sm:$0xff]
      %v2597 = vld [vmem:[%s1971 + $0x15a] sm:$0xff]
      %v2598 = vld [vmem:[%s1971 + $0x16a] sm:$0xff]
      %v2599 = vld [vmem:[%s1971 + $0x172] sm:$0xff]
      %v2600 = vpack.c.bf16 %v2569, %v2568
      %v2601 = vpack.c.bf16 %v2571, %v2570
      %v2602 = vpack.c.bf16 %v2573, %v2572
      %v2603 = vpack.c.bf16 %v2575, %v2574
      %v2604 = vpack.c.bf16 %v2577, %v2576
      %v2605 = vpack.c.bf16 %v2579, %v2578
      %v2606 = vpack.c.bf16 %v2581, %v2580
      %v2607 = vpack.c.bf16 %v2583, %v2582
      %v2608 = vpack.c.bf16 %v2585, %v2584
      %v2609 = vpack.c.bf16 %v2587, %v2586
      %v2610 = vpack.c.bf16 %v2589, %v2588
      %v2611 = vpack.c.bf16 %v2591, %v2590
      %v2612 = vpack.c.bf16 %v2593, %v2592
      %v2613 = vpack.c.bf16 %v2595, %v2594
      %v2614 = vpack.c.bf16 %v2597, %v2596
      %v2615 = vpack.c.bf16 %v2599, %v2598
      %s2616 = scalar_lea.vmem %s1, 64
      %v2617 = vld [vmem:[%s2616] sm:$0xf]
      %v2618 = vld [vmem:[%s2616 + $0x4] sm:$0xf]
      %v2621 = vunpack.c.l.b16 %v2617
      %v2622 = vunpack.c.l.b16 %v2618
      %v2623 = vpack.c.b16 %v2622, %v2621
      %v2626 = vsel %vm353, %v2600, 0
      %v2629 = vsel %vm353, %v2601, 0
      %v2632 = vsel %vm353, %v2602, 0
      %v2635 = vsel %vm353, %v2603, 0
      %v2638 = vsel %vm353, %v2604, 0
      %v2641 = vsel %vm353, %v2605, 0
      %v2644 = vsel %vm353, %v2606, 0
      %v2647 = vsel %vm353, %v2607, 0
      %v2650 = vsel %vm353, %v2608, 0
      %v2653 = vsel %vm353, %v2609, 0
      %v2656 = vsel %vm353, %v2610, 0
      %v2659 = vsel %vm353, %v2611, 0
      %v2662 = vsel %vm353, %v2612, 0
      %v2665 = vsel %vm353, %v2613, 0
      %v2668 = vsel %vm353, %v2614, 0
      %v2671 = vsel %vm353, %v2615, 0
      %2673 = vmatprep.subr.bf16.mxu0 0
      %2674 = vmatpush1.bf16.msra.mxu0 %v2623
      %2675 = vmatprep.subr.bf16.mxu0 0
      %2676 = vmatpush1.bf16.msra.mxu0 0
      %2677 = vmatprep.subr.bf16.mxu0 0
      %2678 = vmatpush1.bf16.msra.mxu0 0
      %2679 = vmatprep.subr.bf16.mxu0 0
      %2680 = vmatpush1.bf16.msra.mxu0 0
      %2681 = vmatprep.subr.bf16.mxu0 0
      %2682 = vmatpush1.bf16.msra.mxu0 0
      %2683 = vmatprep.subr.bf16.mxu0 0
      %2684 = vmatpush1.bf16.msra.mxu0 0
      %2685 = vmatprep.subr.bf16.mxu0 0
      %2686 = vmatpush1.bf16.msra.mxu0 0
      %2687 = vmatprep.subr.bf16.mxu0 0
      %2688 = vmatpush1.bf16.msra.mxu0 0
      %2689 = vmatprep.subr.bf16.mxu0 0
      %2690 = vmatpush1.bf16.msra.mxu0 0
      %2691 = vmatprep.subr.bf16.mxu0 0
      %2692 = vmatpush1.bf16.msra.mxu0 0
      %2693 = vmatprep.subr.bf16.mxu0 0
      %2694 = vmatpush1.bf16.msra.mxu0 0
      %2695 = vmatprep.subr.bf16.mxu0 0
      %2696 = vmatpush1.bf16.msra.mxu0 0
      %2697 = vmatprep.subr.bf16.mxu0 0
      %2698 = vmatpush1.bf16.msra.mxu0 0
      %2699 = vmatprep.subr.bf16.mxu0 0
      %2700 = vmatpush1.bf16.msra.mxu0 0
      %2701 = vmatprep.subr.bf16.mxu0 0
      %2702 = vmatpush1.bf16.msra.mxu0 0
      %2703 = vmatprep.subr.bf16.mxu0 0
      %2704 = vmatpush1.bf16.msra.mxu0 0
      %2705 = vmatprep.mubr.bf16.mxu0 0
      %2706 = vmatmul.mubr.bf16.gmra.mrb[0].mxu0 %v2626
      %v2707 = vpop.f32.mrb[0].mxu0
      %v2708 = vadd.f32 0.0, %v2707
      %v2709 = vpop.f32.mrb[0].mxu0
      %v2710 = vpop.f32.mrb[0].mxu0
      %v2711 = vadd.f32 0.0, %v2710
      %v2712 = vpop.f32.mrb[0].mxu0
      %2713 = vmatprep.mubr.bf16.mxu0 0
      %2714 = vmatmul.mubr.bf16.gmra.mrb[0].mxu0 %v2629
      %v2715 = vpop.f32.mrb[0].mxu0
      %v2716 = vadd.f32 0.0, %v2715
      %v2717 = vpop.f32.mrb[0].mxu0
      %v2718 = vpop.f32.mrb[0].mxu0
      %v2719 = vadd.f32 0.0, %v2718
      %v2720 = vpop.f32.mrb[0].mxu0
      %2721 = vmatprep.mubr.bf16.mxu0 0
      %2722 = vmatmul.mubr.bf16.gmra.mrb[0].mxu0 %v2632
      %v2723 = vpop.f32.mrb[0].mxu0
      %v2724 = vadd.f32 0.0, %v2723
      %v2725 = vpop.f32.mrb[0].mxu0
      %v2726 = vpop.f32.mrb[0].mxu0
      %v2727 = vadd.f32 0.0, %v2726
      %v2728 = vpop.f32.mrb[0].mxu0
      %2729 = vmatprep.mubr.bf16.mxu0 0
      %2730 = vmatmul.mubr.bf16.gmra.mrb[0].mxu0 %v2635
      %v2731 = vpop.f32.mrb[0].mxu0
      %v2732 = vadd.f32 0.0, %v2731
      %v2733 = vpop.f32.mrb[0].mxu0
      %v2734 = vpop.f32.mrb[0].mxu0
      %v2735 = vadd.f32 0.0, %v2734
      %v2736 = vpop.f32.mrb[0].mxu0
      %2737 = vmatprep.mubr.bf16.mxu0 0
      %2738 = vmatmul.mubr.bf16.gmra.mrb[0].mxu0 %v2638
      %v2739 = vpop.f32.mrb[0].mxu0
      %v2740 = vadd.f32 0.0, %v2739
      %v2741 = vpop.f32.mrb[0].mxu0
      %v2742 = vpop.f32.mrb[0].mxu0
      %v2743 = vadd.f32 0.0, %v2742
      %v2744 = vpop.f32.mrb[0].mxu0
      %2745 = vmatprep.mubr.bf16.mxu0 0
      %2746 = vmatmul.mubr.bf16.gmra.mrb[0].mxu0 %v2641
      %v2747 = vpop.f32.mrb[0].mxu0
      %v2748 = vadd.f32 0.0, %v2747
      %v2749 = vpop.f32.mrb[0].mxu0
      %v2750 = vpop.f32.mrb[0].mxu0
      %v2751 = vadd.f32 0.0, %v2750
      %v2752 = vpop.f32.mrb[0].mxu0
      %2753 = vmatprep.mubr.bf16.mxu0 0
      %2754 = vmatmul.mubr.bf16.gmra.mrb[0].mxu0 %v2644
      %v2755 = vpop.f32.mrb[0].mxu0
      %v2756 = vadd.f32 0.0, %v2755
      %v2757 = vpop.f32.mrb[0].mxu0
      %v2758 = vpop.f32.mrb[0].mxu0
      %v2759 = vadd.f32 0.0, %v2758
      %v2760 = vpop.f32.mrb[0].mxu0
      %2761 = vmatprep.mubr.bf16.mxu0 0
      %2762 = vmatmul.mubr.bf16.gmra.mrb[0].mxu0 %v2647
      %v2763 = vpop.f32.mrb[0].mxu0
      %v2764 = vadd.f32 0.0, %v2763
      %v2765 = vpop.f32.mrb[0].mxu0
      %v2766 = vpop.f32.mrb[0].mxu0
      %v2767 = vadd.f32 0.0, %v2766
      %v2768 = vpop.f32.mrb[0].mxu0
      %2769 = vmatprep.mubr.bf16.mxu0 0
      %2770 = vmatmul.mubr.bf16.gmra.mrb[0].mxu0 %v2650
      %v2771 = vpop.f32.mrb[0].mxu0
      %v2772 = vadd.f32 0.0, %v2771
      %v2773 = vpop.f32.mrb[0].mxu0
      %v2774 = vpop.f32.mrb[0].mxu0
      %v2775 = vadd.f32 0.0, %v2774
      %v2776 = vpop.f32.mrb[0].mxu0
      %2777 = vmatprep.mubr.bf16.mxu0 0
      %2778 = vmatmul.mubr.bf16.gmra.mrb[0].mxu0 %v2653
      %v2779 = vpop.f32.mrb[0].mxu0
      %v2780 = vadd.f32 0.0, %v2779
      %v2781 = vpop.f32.mrb[0].mxu0
      %v2782 = vpop.f32.mrb[0].mxu0
      %v2783 = vadd.f32 0.0, %v2782
      %v2784 = vpop.f32.mrb[0].mxu0
      %2785 = vmatprep.mubr.bf16.mxu0 0
      %2786 = vmatmul.mubr.bf16.gmra.mrb[0].mxu0 %v2656
      %v2787 = vpop.f32.mrb[0].mxu0
      %v2788 = vadd.f32 0.0, %v2787
      %v2789 = vpop.f32.mrb[0].mxu0
      %v2790 = vpop.f32.mrb[0].mxu0
      %v2791 = vadd.f32 0.0, %v2790
      %v2792 = vpop.f32.mrb[0].mxu0
      %2793 = vmatprep.mubr.bf16.mxu0 0
      %2794 = vmatmul.mubr.bf16.gmra.mrb[0].mxu0 %v2659
      %v2795 = vpop.f32.mrb[0].mxu0
      %v2796 = vadd.f32 0.0, %v2795
      %v2797 = vpop.f32.mrb[0].mxu0
      %v2798 = vpop.f32.mrb[0].mxu0
      %v2799 = vadd.f32 0.0, %v2798
      %v2800 = vpop.f32.mrb[0].mxu0
      %2801 = vmatprep.mubr.bf16.mxu0 0
      %2802 = vmatmul.mubr.bf16.gmra.mrb[0].mxu0 %v2662
      %v2803 = vpop.f32.mrb[0].mxu0
      %v2804 = vadd.f32 0.0, %v2803
      %v2805 = vpop.f32.mrb[0].mxu0
      %v2806 = vpop.f32.mrb[0].mxu0
      %v2807 = vadd.f32 0.0, %v2806
      %v2808 = vpop.f32.mrb[0].mxu0
      %2809 = vmatprep.mubr.bf16.mxu0 0
      %2810 = vmatmul.mubr.bf16.gmra.mrb[0].mxu0 %v2665
      %v2811 = vpop.f32.mrb[0].mxu0
      %v2812 = vadd.f32 0.0, %v2811
      %v2813 = vpop.f32.mrb[0].mxu0
      %v2814 = vpop.f32.mrb[0].mxu0
      %v2815 = vadd.f32 0.0, %v2814
      %v2816 = vpop.f32.mrb[0].mxu0
      %2817 = vmatprep.mubr.bf16.mxu0 0
      %2818 = vmatmul.mubr.bf16.gmra.mrb[0].mxu0 %v2668
      %v2819 = vpop.f32.mrb[0].mxu0
      %v2820 = vadd.f32 0.0, %v2819
      %v2821 = vpop.f32.mrb[0].mxu0
      %v2822 = vpop.f32.mrb[0].mxu0
      %v2823 = vadd.f32 0.0, %v2822
      %v2824 = vpop.f32.mrb[0].mxu0
      %2825 = vmatprep.mubr.bf16.mxu0 0
      %2826 = vmatmul.mubr.bf16.gmra.mrb[0].mxu0 %v2671
      %v2827 = vpop.f32.mrb[0].mxu0
      %v2828 = vadd.f32 0.0, %v2827
      %v2829 = vpop.f32.mrb[0].mxu0
      %v2830 = vpop.f32.mrb[0].mxu0
      %v2831 = vadd.f32 0.0, %v2830
      %v2832 = vpop.f32.mrb[0].mxu0
      %2833 = vdwg.mxu0
      %v2834 = vadd.f32 %v2536, %v2708
      %v2835 = vadd.f32 %v2537, %v2711
      %v2836 = vadd.f32 %v2538, %v2716
      %v2837 = vadd.f32 %v2539, %v2719
      %v2838 = vadd.f32 %v2540, %v2724
      %v2839 = vadd.f32 %v2541, %v2727
      %v2840 = vadd.f32 %v2542, %v2732
      %v2841 = vadd.f32 %v2543, %v2735
      %v2842 = vadd.f32 %v2544, %v2740
      %v2843 = vadd.f32 %v2545, %v2743
      %v2844 = vadd.f32 %v2546, %v2748
      %v2845 = vadd.f32 %v2547, %v2751
      %v2846 = vadd.f32 %v2548, %v2756
      %v2847 = vadd.f32 %v2549, %v2759
      %v2848 = vadd.f32 %v2550, %v2764
      %v2849 = vadd.f32 %v2551, %v2767
      %v2850 = vadd.f32 %v2552, %v2772
      %v2851 = vadd.f32 %v2553, %v2775
      %v2852 = vadd.f32 %v2554, %v2780
      %v2853 = vadd.f32 %v2555, %v2783
      %v2854 = vadd.f32 %v2556, %v2788
      %v2855 = vadd.f32 %v2557, %v2791
      %v2856 = vadd.f32 %v2558, %v2796
      %v2857 = vadd.f32 %v2559, %v2799
      %v2858 = vadd.f32 %v2560, %v2804
      %v2859 = vadd.f32 %v2561, %v2807
      %v2860 = vadd.f32 %v2562, %v2812
      %v2861 = vadd.f32 %v2563, %v2815
      %v2862 = vadd.f32 %v2564, %v2820
      %v2863 = vadd.f32 %v2565, %v2823
      %v2864 = vadd.f32 %v2566, %v2828
      %v2865 = vadd.f32 %v2567, %v2831
      %v2866 = vld [vmem:[%s2] sm:$0x1]
      %v2868 = vlaneseq
      %v2869 = vshrl.u32 %v2868, 7
      %v2870 = vsub.s32 0, %v2869
      %v2871 = vrot.slane %v2866, %v2870
      %v2873 = vmul.f32 %v2834, %v2871
      %v2874 = vmul.f32 %v2835, %v2871
      %v2875 = vmul.f32 %v2836, %v2871
      %v2876 = vmul.f32 %v2837, %v2871
      %v2877 = vmul.f32 %v2838, %v2871
      %v2878 = vmul.f32 %v2839, %v2871
      %v2879 = vmul.f32 %v2840, %v2871
      %v2880 = vmul.f32 %v2841, %v2871
      %v2881 = vmul.f32 %v2842, %v2871
      %v2882 = vmul.f32 %v2843, %v2871
      %v2883 = vmul.f32 %v2844, %v2871
      %v2884 = vmul.f32 %v2845, %v2871
      %v2885 = vmul.f32 %v2846, %v2871
      %v2886 = vmul.f32 %v2847, %v2871
      %v2887 = vmul.f32 %v2848, %v2871
      %v2888 = vmul.f32 %v2849, %v2871
      %v2889 = vmul.f32 %v2850, %v2871
      %v2890 = vmul.f32 %v2851, %v2871
      %v2891 = vmul.f32 %v2852, %v2871
      %v2892 = vmul.f32 %v2853, %v2871
      %v2893 = vmul.f32 %v2854, %v2871
      %v2894 = vmul.f32 %v2855, %v2871
      %v2895 = vmul.f32 %v2856, %v2871
      %v2896 = vmul.f32 %v2857, %v2871
      %v2897 = vmul.f32 %v2858, %v2871
      %v2898 = vmul.f32 %v2859, %v2871
      %v2899 = vmul.f32 %v2860, %v2871
      %v2900 = vmul.f32 %v2861, %v2871
      %v2901 = vmul.f32 %v2862, %v2871
      %v2902 = vmul.f32 %v2863, %v2871
      %v2903 = vmul.f32 %v2864, %v2871
      %v2904 = vmul.f32 %v2865, %v2871
      %v2905 = vld [vmem:[%s3] sm:$0x1]
      %v2907 = vlaneseq
      %v2908 = vshrl.u32 %v2907, 7
      %v2909 = vsub.s32 0, %v2908
      %v2910 = vrot.slane %v2905, %v2909
      %v2912 = vadd.f32 %v2873, %v2910
      %v2913 = vadd.f32 %v2874, %v2910
      %v2914 = vadd.f32 %v2875, %v2910
      %v2915 = vadd.f32 %v2876, %v2910
      %v2916 = vadd.f32 %v2877, %v2910
      %v2917 = vadd.f32 %v2878, %v2910
      %v2918 = vadd.f32 %v2879, %v2910
      %v2919 = vadd.f32 %v2880, %v2910
      %v2920 = vadd.f32 %v2881, %v2910
      %v2921 = vadd.f32 %v2882, %v2910
      %v2922 = vadd.f32 %v2883, %v2910
      %v2923 = vadd.f32 %v2884, %v2910
      %v2924 = vadd.f32 %v2885, %v2910
      %v2925 = vadd.f32 %v2886, %v2910
      %v2926 = vadd.f32 %v2887, %v2910
      %v2927 = vadd.f32 %v2888, %v2910
      %v2928 = vadd.f32 %v2889, %v2910
      %v2929 = vadd.f32 %v2890, %v2910
      %v2930 = vadd.f32 %v2891, %v2910
      %v2931 = vadd.f32 %v2892, %v2910
      %v2932 = vadd.f32 %v2893, %v2910
      %v2933 = vadd.f32 %v2894, %v2910
      %v2934 = vadd.f32 %v2895, %v2910
      %v2935 = vadd.f32 %v2896, %v2910
      %v2936 = vadd.f32 %v2897, %v2910
      %v2937 = vadd.f32 %v2898, %v2910
      %v2938 = vadd.f32 %v2899, %v2910
      %v2939 = vadd.f32 %v2900, %v2910
      %v2940 = vadd.f32 %v2901, %v2910
      %v2941 = vadd.f32 %v2902, %v2910
      %v2942 = vadd.f32 %v2903, %v2910
      %v2943 = vadd.f32 %v2904, %v2910
      %vm2944 = vcmp.ge.f32.partialorder %v2912, 0.0
      %vm2945 = vcmp.ge.f32.partialorder %v2913, 0.0
      %vm2946 = vcmp.ge.f32.partialorder %v2914, 0.0
      %vm2947 = vcmp.ge.f32.partialorder %v2915, 0.0
      %vm2948 = vcmp.ge.f32.partialorder %v2916, 0.0
      %vm2949 = vcmp.ge.f32.partialorder %v2917, 0.0
      %vm2950 = vcmp.ge.f32.partialorder %v2918, 0.0
      %vm2951 = vcmp.ge.f32.partialorder %v2919, 0.0
      %vm2952 = vcmp.ge.f32.partialorder %v2920, 0.0
      %vm2953 = vcmp.ge.f32.partialorder %v2921, 0.0
      %vm2954 = vcmp.ge.f32.partialorder %v2922, 0.0
      %vm2955 = vcmp.ge.f32.partialorder %v2923, 0.0
      %vm2956 = vcmp.ge.f32.partialorder %v2924, 0.0
      %vm2957 = vcmp.ge.f32.partialorder %v2925, 0.0
      %vm2958 = vcmp.ge.f32.partialorder %v2926, 0.0
      %vm2959 = vcmp.ge.f32.partialorder %v2927, 0.0
      %vm2960 = vcmp.ge.f32.partialorder %v2928, 0.0
      %vm2961 = vcmp.ge.f32.partialorder %v2929, 0.0
      %vm2962 = vcmp.ge.f32.partialorder %v2930, 0.0
      %vm2963 = vcmp.ge.f32.partialorder %v2931, 0.0
      %vm2964 = vcmp.ge.f32.partialorder %v2932, 0.0
      %vm2965 = vcmp.ge.f32.partialorder %v2933, 0.0
      %vm2966 = vcmp.ge.f32.partialorder %v2934, 0.0
      %vm2967 = vcmp.ge.f32.partialorder %v2935, 0.0
      %vm2968 = vcmp.ge.f32.partialorder %v2936, 0.0
      %vm2969 = vcmp.ge.f32.partialorder %v2937, 0.0
      %vm2970 = vcmp.ge.f32.partialorder %v2938, 0.0
      %vm2971 = vcmp.ge.f32.partialorder %v2939, 0.0
      %vm2972 = vcmp.ge.f32.partialorder %v2940, 0.0
      %vm2973 = vcmp.ge.f32.partialorder %v2941, 0.0
      %vm2974 = vcmp.ge.f32.partialorder %v2942, 0.0
      %vm2975 = vcmp.ge.f32.partialorder %v2943, 0.0
      %v2976 = vmul.f32 %v2912, 0.2
      %v2977 = vmul.f32 %v2913, 0.2
      %v2978 = vmul.f32 %v2914, 0.2
      %v2979 = vmul.f32 %v2915, 0.2
      %v2980 = vmul.f32 %v2916, 0.2
      %v2981 = vmul.f32 %v2917, 0.2
      %v2982 = vmul.f32 %v2918, 0.2
      %v2983 = vmul.f32 %v2919, 0.2
      %v2984 = vmul.f32 %v2920, 0.2
      %v2985 = vmul.f32 %v2921, 0.2
      %v2986 = vmul.f32 %v2922, 0.2
      %v2987 = vmul.f32 %v2923, 0.2
      %v2988 = vmul.f32 %v2924, 0.2
      %v2989 = vmul.f32 %v2925, 0.2
      %v2990 = vmul.f32 %v2926, 0.2
      %v2991 = vmul.f32 %v2927, 0.2
      %v2992 = vmul.f32 %v2928, 0.2
      %v2993 = vmul.f32 %v2929, 0.2
      %v2994 = vmul.f32 %v2930, 0.2
      %v2995 = vmul.f32 %v2931, 0.2
      %v2996 = vmul.f32 %v2932, 0.2
      %v2997 = vmul.f32 %v2933, 0.2
      %v2998 = vmul.f32 %v2934, 0.2
      %v2999 = vmul.f32 %v2935, 0.2
      %v3000 = vmul.f32 %v2936, 0.2
      %v3001 = vmul.f32 %v2937, 0.2
      %v3002 = vmul.f32 %v2938, 0.2
      %v3003 = vmul.f32 %v2939, 0.2
      %v3004 = vmul.f32 %v2940, 0.2
      %v3005 = vmul.f32 %v2941, 0.2
      %v3006 = vmul.f32 %v2942, 0.2
      %v3007 = vmul.f32 %v2943, 0.2
      %v3008 = vsel %vm2944, %v2912, %v2976
      %v3009 = vsel %vm2945, %v2913, %v2977
      %v3010 = vsel %vm2946, %v2914, %v2978
      %v3011 = vsel %vm2947, %v2915, %v2979
      %v3012 = vsel %vm2948, %v2916, %v2980
      %v3013 = vsel %vm2949, %v2917, %v2981
      %v3014 = vsel %vm2950, %v2918, %v2982
      %v3015 = vsel %vm2951, %v2919, %v2983
      %v3016 = vsel %vm2952, %v2920, %v2984
      %v3017 = vsel %vm2953, %v2921, %v2985
      %v3018 = vsel %vm2954, %v2922, %v2986
      %v3019 = vsel %vm2955, %v2923, %v2987
      %v3020 = vsel %vm2956, %v2924, %v2988
      %v3021 = vsel %vm2957, %v2925, %v2989
      %v3022 = vsel %vm2958, %v2926, %v2990
      %v3023 = vsel %vm2959, %v2927, %v2991
      %v3024 = vsel %vm2960, %v2928, %v2992
      %v3025 = vsel %vm2961, %v2929, %v2993
      %v3026 = vsel %vm2962, %v2930, %v2994
      %v3027 = vsel %vm2963, %v2931, %v2995
      %v3028 = vsel %vm2964, %v2932, %v2996
      %v3029 = vsel %vm2965, %v2933, %v2997
      %v3030 = vsel %vm2966, %v2934, %v2998
      %v3031 = vsel %vm2967, %v2935, %v2999
      %v3032 = vsel %vm2968, %v2936, %v3000
      %v3033 = vsel %vm2969, %v2937, %v3001
      %v3034 = vsel %vm2970, %v2938, %v3002
      %v3035 = vsel %vm2971, %v2939, %v3003
      %v3036 = vsel %vm2972, %v2940, %v3004
      %v3037 = vsel %vm2973, %v2941, %v3005
      %v3038 = vsel %vm2974, %v2942, %v3006
      %v3039 = vsel %vm2975, %v2943, %v3007
      %v3040 = vld [vmem:[%s239] sm:$0xff]
      %v3041 = vld [vmem:[%s239 + $0x8] sm:$0xff]
      %v3042 = vld [vmem:[%s239 + $0x10] sm:$0xff]
      %v3043 = vld [vmem:[%s239 + $0x18] sm:$0xff]
      %v3044 = vld [vmem:[%s239 + $0x20] sm:$0xff]
      %v3045 = vld [vmem:[%s239 + $0x28] sm:$0xff]
      %v3046 = vld [vmem:[%s239 + $0x30] sm:$0xff]
      %v3047 = vld [vmem:[%s239 + $0x38] sm:$0xff]
      %v3048 = vld [vmem:[%s239 + $0x40] sm:$0xff]
      %v3049 = vld [vmem:[%s239 + $0x48] sm:$0xff]
      %v3050 = vld [vmem:[%s239 + $0x50] sm:$0xff]
      %v3051 = vld [vmem:[%s239 + $0x58] sm:$0xff]
      %v3052 = vld [vmem:[%s239 + $0x60] sm:$0xff]
      %v3053 = vld [vmem:[%s239 + $0x68] sm:$0xff]
      %v3054 = vld [vmem:[%s239 + $0x70] sm:$0xff]
      %v3055 = vld [vmem:[%s239 + $0x78] sm:$0xff]
      %v3056 = vld [vmem:[%s239 + $0x80] sm:$0xff]
      %v3057 = vld [vmem:[%s239 + $0x88] sm:$0xff]
      %v3058 = vld [vmem:[%s239 + $0x90] sm:$0xff]
      %v3059 = vld [vmem:[%s239 + $0x98] sm:$0xff]
      %v3060 = vld [vmem:[%s239 + $0xa0] sm:$0xff]
      %v3061 = vld [vmem:[%s239 + $0xa8] sm:$0xff]
      %v3062 = vld [vmem:[%s239 + $0xb0] sm:$0xff]
      %v3063 = vld [vmem:[%s239 + $0xb8] sm:$0xff]
      %v3064 = vld [vmem:[%s239 + $0xc0] sm:$0xff]
      %v3065 = vld [vmem:[%s239 + $0xc8] sm:$0xff]
      %v3066 = vld [vmem:[%s239 + $0xd0] sm:$0xff]
      %v3067 = vld [vmem:[%s239 + $0xd8] sm:$0xff]
      %v3068 = vld [vmem:[%s239 + $0xe0] sm:$0xff]
      %v3069 = vld [vmem:[%s239 + $0xe8] sm:$0xff]
      %v3070 = vld [vmem:[%s239 + $0xf0] sm:$0xff]
      %v3071 = vld [vmem:[%s239 + $0xf8] sm:$0xff]
      %v3072 = vadd.f32 %v3008, %v3040
      %v3073 = vadd.f32 %v3009, %v3041
      %v3074 = vadd.f32 %v3010, %v3042
      %v3075 = vadd.f32 %v3011, %v3043
      %v3076 = vadd.f32 %v3012, %v3044
      %v3077 = vadd.f32 %v3013, %v3045
      %v3078 = vadd.f32 %v3014, %v3046
      %v3079 = vadd.f32 %v3015, %v3047
      %v3080 = vadd.f32 %v3016, %v3048
      %v3081 = vadd.f32 %v3017, %v3049
      %v3082 = vadd.f32 %v3018, %v3050
      %v3083 = vadd.f32 %v3019, %v3051
      %v3084 = vadd.f32 %v3020, %v3052
      %v3085 = vadd.f32 %v3021, %v3053
      %v3086 = vadd.f32 %v3022, %v3054
      %v3087 = vadd.f32 %v3023, %v3055
      %v3088 = vadd.f32 %v3024, %v3056
      %v3089 = vadd.f32 %v3025, %v3057
      %v3090 = vadd.f32 %v3026, %v3058
      %v3091 = vadd.f32 %v3027, %v3059
      %v3092 = vadd.f32 %v3028, %v3060
      %v3093 = vadd.f32 %v3029, %v3061
      %v3094 = vadd.f32 %v3030, %v3062
      %v3095 = vadd.f32 %v3031, %v3063
      %v3096 = vadd.f32 %v3032, %v3064
      %v3097 = vadd.f32 %v3033, %v3065
      %v3098 = vadd.f32 %v3034, %v3066
      %v3099 = vadd.f32 %v3035, %v3067
      %v3100 = vadd.f32 %v3036, %v3068
      %v3101 = vadd.f32 %v3037, %v3069
      %v3102 = vadd.f32 %v3038, %v3070
      %v3103 = vadd.f32 %v3039, %v3071
      %3104 = vst.msk [vmem:[%s244] sm:$0xff] %vm353, %v3072
      %3105 = vst.msk [vmem:[%s244 + $0x8] sm:$0xff] %vm353, %v3073
      %3106 = vst.msk [vmem:[%s244 + $0x10] sm:$0xff] %vm353, %v3074
      %3107 = vst.msk [vmem:[%s244 + $0x18] sm:$0xff] %vm353, %v3075
      %3108 = vst.msk [vmem:[%s244 + $0x20] sm:$0xff] %vm353, %v3076
      %3109 = vst.msk [vmem:[%s244 + $0x28] sm:$0xff] %vm353, %v3077
      %3110 = vst.msk [vmem:[%s244 + $0x30] sm:$0xff] %vm353, %v3078
      %3111 = vst.msk [vmem:[%s244 + $0x38] sm:$0xff] %vm353, %v3079
      %3112 = vst.msk [vmem:[%s244 + $0x40] sm:$0xff] %vm353, %v3080
      %3113 = vst.msk [vmem:[%s244 + $0x48] sm:$0xff] %vm353, %v3081
      %3114 = vst.msk [vmem:[%s244 + $0x50] sm:$0xff] %vm353, %v3082
      %3115 = vst.msk [vmem:[%s244 + $0x58] sm:$0xff] %vm353, %v3083
      %3116 = vst.msk [vmem:[%s244 + $0x60] sm:$0xff] %vm353, %v3084
      %3117 = vst.msk [vmem:[%s244 + $0x68] sm:$0xff] %vm353, %v3085
      %3118 = vst.msk [vmem:[%s244 + $0x70] sm:$0xff] %vm353, %v3086
      %3119 = vst.msk [vmem:[%s244 + $0x78] sm:$0xff] %vm353, %v3087
      %3120 = vst.msk [vmem:[%s244 + $0x80] sm:$0xff] %vm353, %v3088
      %3121 = vst.msk [vmem:[%s244 + $0x88] sm:$0xff] %vm353, %v3089
      %3122 = vst.msk [vmem:[%s244 + $0x90] sm:$0xff] %vm353, %v3090
      %3123 = vst.msk [vmem:[%s244 + $0x98] sm:$0xff] %vm353, %v3091
      %3124 = vst.msk [vmem:[%s244 + $0xa0] sm:$0xff] %vm353, %v3092
      %3125 = vst.msk [vmem:[%s244 + $0xa8] sm:$0xff] %vm353, %v3093
      %3126 = vst.msk [vmem:[%s244 + $0xb0] sm:$0xff] %vm353, %v3094
      %3127 = vst.msk [vmem:[%s244 + $0xb8] sm:$0xff] %vm353, %v3095
      %3128 = vst.msk [vmem:[%s244 + $0xc0] sm:$0xff] %vm353, %v3096
      %3129 = vst.msk [vmem:[%s244 + $0xc8] sm:$0xff] %vm353, %v3097
      %3130 = vst.msk [vmem:[%s244 + $0xd0] sm:$0xff] %vm353, %v3098
      %3131 = vst.msk [vmem:[%s244 + $0xd8] sm:$0xff] %vm353, %v3099
      %3132 = vst.msk [vmem:[%s244 + $0xe0] sm:$0xff] %vm353, %v3100
      %3133 = vst.msk [vmem:[%s244 + $0xe8] sm:$0xff] %vm353, %v3101
      %3134 = vst.msk [vmem:[%s244 + $0xf0] sm:$0xff] %vm353, %v3102
      %3135 = vst.msk [vmem:[%s244 + $0xf8] sm:$0xff] %vm353, %v3103
      %p3136 = scmp.lt.s32.totalorder %s16, 1
      %s3137 = scalar_select %p3136, %s16, 1
      %s3138 = smul.addr %s3137, 32
      %s3139 = smul.addr %s3138, 8
      %s3140 = scalar_lea.vmem %s5, %s3139
      // Predicated region
      $region41: #{transformer_forward.7} parent=39 // pred_check
        %p3141 = pneg %p149
      $region42: #{transformer_forward.7} parent=39 // pred_check_branch
        %3143 = sbr.rel (%p3141) target = $region44
      $region43: #{transformer_forward.7} parent=39 // pred_region
        _
      $region44: #{transformer_forward.7} parent=39 // pred_fallthru
        _
    $region40: #{transformer_forward.7} parent=5 // pred_fallthru
      _
    %p3144 = scmp.le.s32.totalorder 2, %s11
    // Predicated region
    $region45: #{transformer_forward.7} parent=5 // pred_check
      %p3145 = pneg %p3144
    $region46: #{transformer_forward.7} parent=5 // pred_check_branch
      %3147 = sbr.rel (%p3145) target = $region48
    $region47: #{transformer_forward.7} parent=5 // pred_region
      %s3148 = ssub.s32 %s11, 2
      // Predicated region
      $region49: #{transformer_forward.7} parent=47 // pred_check
        %p3149 = pneg %p155
      $region50: #{transformer_forward.7} parent=47 // pred_check_branch
        %3151 = sbr.rel (%p3149) target = $region52
      $region51: #{transformer_forward.7} parent=47 // pred_region
        %p3152 = scmp.lt.s32.totalorder %s17, 1
        %s3153 = scalar_select %p3152, %s17, 1
        %s3154 = smul.addr %s3153, 32
        %s3155 = smul.addr %s3154, 8
        %s3156 = scalar_lea.vmem %s5, %s3155
      $region52: #{transformer_forward.7} parent=47 // pred_fallthru
        _
    $region48: #{transformer_forward.7} parent=5 // pred_fallthru
      _
  $region6: #{transformer_forward.7} parent=0 // loop_footer
    %s15 = sadd.s32 1, %s11
  $region7: #{transformer_forward.7} parent=0 // loop_footer_branch
    %10 = sbr.rel target = $region3
  $region8: #{transformer_forward.7} parent=0 // loop_exit
    _

</llo_original>
